<compile_context>
chip_gen: v6e
topology: v6e:2x2x1
jax: 0.10.0
libtpu: 0.0.40
codegen_flags: <defaults>
</compile_context>

<pallas_src>
import functools
import numpy as np
import jax
import jax.numpy as jnp
from jax.experimental import pallas as pl
from jax.experimental.pallas import tpu as pltpu

MASK_VALUE = -1e30


def _vmem_limit_bytes():
    # Generation-aware VMEM budget: ~physical minus 16 MiB headroom
    # (v7x: 64 MiB -> 48 MiB; v5e/v6e: 128 MiB -> capped at 96 MiB).
    try:
        cap = pltpu.get_tpu_info().vmem_capacity_bytes
    except Exception:
        cap = 64 * 1024 * 1024
    return int(min(max(cap - 16 * 1024 * 1024, 32 * 1024 * 1024),
                   96 * 1024 * 1024))


# ----------------------------------------------------------------------------
# Fused QKV projection + rotary epilogue
#   grid = (row_block i, group j) with j in {0: q, 1: k, 2: v} innermost.
#   One (tm, E) x (E, E) matmul per step (that group's weight is streamed);
#   the three lane-dense (T, E) outputs are revisited across j and each is
#   written exactly once per row block.
# ----------------------------------------------------------------------------
def _qkv_rope_kernel(x_ref, w_ref, b_ref, cos_ref, sinf_ref, sinb_ref,
                     q_ref, k_ref, v_ref, *, half):
    j = pl.program_id(1)

    acc = jnp.dot(x_ref[...], w_ref[0], preferred_element_type=jnp.float32)
    acc = acc + b_ref[0].astype(jnp.float32)

    # Rotate-half RoPE on the head-tiled (tm, E) slab: two XLU lane rotations
    # over the full E axis; the half/sign masks baked into sinf/sinb zero out
    # any cross-head wrap, so no reshape / concat / per-head loop is needed.
    # (Computed for every group but only stored for q/k — cheap VPU filler
    # under the MXU matmul.)
    width = acc.shape[1]
    fwd = pltpu.roll(acc, shift=width - half, axis=1)   # x[:, c + half]
    bwd = pltpu.roll(acc, shift=half, axis=1)           # x[:, c - half]
    rot = (acc * cos_ref[...].astype(jnp.float32)
           + fwd * sinf_ref[...].astype(jnp.float32)
           + bwd * sinb_ref[...].astype(jnp.float32))

    @pl.when(j == 0)
    def _():
        q_ref[...] = rot.astype(q_ref.dtype)   # q scaling folded into W/b at init

    @pl.when(j == 1)
    def _():
        k_ref[...] = rot.astype(k_ref.dtype)

    @pl.when(j == 2)
    def _():
        v_ref[...] = acc.astype(v_ref.dtype)   # no rotary on v


def pallas_qkv_rope(x, w_qkv, b_qkv, cos, sinf, sinb, head_dim, *, block_m=256):
    Tp, E = x.shape
    tm = min(block_m, Tp)
    assert Tp % tm == 0
    grid = (Tp // tm, 3)
    half = head_dim // 2

    flops = 2 * Tp * E * (3 * E)
    bytes_accessed = 2 * (Tp * E + 3 * E * E + 3 * E + 3 * Tp * E + 3 * Tp * E)

    # TODO(synk): for very large E, additionally tile each group's (E, E)
    # weight over its output columns (extra grid axis) — unnecessary here.
    return pl.pallas_call(
        functools.partial(_qkv_rope_kernel, half=half),
        out_shape=tuple(jax.ShapeDtypeStruct((Tp, E), x.dtype) for _ in range(3)),
        grid_spec=pltpu.PrefetchScalarGridSpec(
            num_scalar_prefetch=0,
            grid=grid,
            in_specs=[
                pl.BlockSpec((tm, E), lambda i, j: (i, 0)),        # x rows
                pl.BlockSpec((1, E, E), lambda i, j: (j, 0, 0)),   # group weight
                pl.BlockSpec((1, 1, E), lambda i, j: (j, 0, 0)),   # group bias
                pl.BlockSpec((tm, E), lambda i, j: (i, 0)),        # cos (head-tiled)
                pl.BlockSpec((tm, E), lambda i, j: (i, 0)),        # -sin, first half cols
                pl.BlockSpec((tm, E), lambda i, j: (i, 0)),        # +sin, second half cols
            ],
            out_specs=[
                pl.BlockSpec((tm, E), lambda i, j: (i, 0)),        # q (revisited over j)
                pl.BlockSpec((tm, E), lambda i, j: (i, 0)),        # k
                pl.BlockSpec((tm, E), lambda i, j: (i, 0)),        # v
            ],
        ),
        compiler_params=pltpu.CompilerParams(
            dimension_semantics=("parallel", "arbitrary"),
            vmem_limit_bytes=_vmem_limit_bytes()),
        cost_estimate=pl.CostEstimate(flops=flops, transcendentals=0,
                                      bytes_accessed=bytes_accessed),
    )(x, w_qkv, b_qkv, cos, sinf, sinb)


# ----------------------------------------------------------------------------
# Flash (online-softmax) varlen attention
#   q/k/v already rotated + scaled, stored lane-dense as (T, E).
#   grid = (q_block, kv_block), kv innermost ("arbitrary"); heads are a small
#   static in-kernel loop over D-wide column slices (zero-cost ref views), so
#   both the inputs and the output keep an E-wide (lane-dense) last dim.
# ----------------------------------------------------------------------------
def _flash_attn_kernel(qseg_ref, kseg_ref, q_ref, k_ref, v_ref, o_ref,
                       m_sc, l_sc, acc_sc, *, num_heads, head_dim):
    kv_idx = pl.program_id(1)

    @pl.when(kv_idx == 0)
    def _():
        m_sc[...] = jnp.full(m_sc.shape, -jnp.inf, dtype=m_sc.dtype)
        l_sc[...] = jnp.zeros(l_sc.shape, dtype=l_sc.dtype)
        acc_sc[...] = jnp.zeros(acc_sc.shape, dtype=acc_sc.dtype)

    # Additive packed-sequence mask, built once per (q, kv) tile, shared by
    # all heads.  softmax_scale == 1: q was pre-scaled via folded weights.
    mask_add = jnp.where(qseg_ref[...] == kseg_ref[...], 0.0, MASK_VALUE)  # (tq, tkv)

    for h in range(num_heads):           # static unroll; small H
        cols = slice(h * head_dim, (h + 1) * head_dim)
        q_h = q_ref[:, cols]             # (tq, D) bf16, static ref slice
        k_h = k_ref[:, cols]             # (tkv, D)
        v_h = v_ref[:, cols]

        s = jnp.einsum('qd,kd->qk', q_h, k_h,
                       preferred_element_type=jnp.float32)      # (tq, tkv) f32
        s = s + mask_add

        m_prev = m_sc[h]                                         # (tq, 1)
        m_new = jnp.maximum(m_prev, jnp.max(s, axis=-1, keepdims=True))
        alpha = jnp.exp(m_prev - m_new)
        p = jnp.exp(s - m_new)
        l_sc[h] = alpha * l_sc[h] + jnp.sum(p, axis=-1, keepdims=True)
        acc_sc[h] = alpha * acc_sc[h] + jnp.einsum(
            'qk,kd->qd', p.astype(v_h.dtype), v_h,
            preferred_element_type=jnp.float32)
        m_sc[h] = m_new

    @pl.when(kv_idx == pl.num_programs(1) - 1)
    def _():
        for h in range(num_heads):
            cols = slice(h * head_dim, (h + 1) * head_dim)
            inv_l = pl.reciprocal(l_sc[h], approx=True)          # (tq, 1)
            o_ref[:, cols] = (acc_sc[h] * inv_l).astype(o_ref.dtype)


def pallas_flash_varlen_attention(q, k, v, seg_ids, num_heads,
                                  *, block_q=256, block_kv=256):
    Tp, E = q.shape
    D = E // num_heads
    tq = min(block_q, Tp)
    tkv = min(block_kv, Tp)
    assert Tp % tq == 0 and Tp % tkv == 0

    seg_col = seg_ids.reshape(Tp, 1).astype(jnp.int32)
    seg_row = seg_ids.reshape(1, Tp).astype(jnp.int32)

    grid = (Tp // tq, Tp // tkv)
    flops = 4 * num_heads * Tp * Tp * D
    bytes_accessed = 2 * 4 * Tp * E + 8 * Tp

    return pl.pallas_call(
        functools.partial(_flash_attn_kernel, num_heads=num_heads, head_dim=D),
        out_shape=jax.ShapeDtypeStruct((Tp, E), q.dtype),
        grid_spec=pltpu.PrefetchScalarGridSpec(
            num_scalar_prefetch=0,
            grid=grid,
            in_specs=[
                pl.BlockSpec((tq, 1), lambda qi, ki: (qi, 0)),     # seg ids (q rows)
                pl.BlockSpec((1, tkv), lambda qi, ki: (0, ki)),    # seg ids (kv cols)
                pl.BlockSpec((tq, E), lambda qi, ki: (qi, 0)),     # q
                pl.BlockSpec((tkv, E), lambda qi, ki: (ki, 0)),    # k
                pl.BlockSpec((tkv, E), lambda qi, ki: (ki, 0)),    # v
            ],
            # Lane-dense (tq, E) output -> unmasked full-width stores, and the
            # wrapper needs no (H,T,D)->(T,E) transpose afterwards.
            out_specs=pl.BlockSpec((tq, E), lambda qi, ki: (qi, 0)),
            scratch_shapes=[
                pltpu.VMEM((num_heads, tq, 1), jnp.float32),   # m (running max)
                pltpu.VMEM((num_heads, tq, 1), jnp.float32),   # l (running denom)
                pltpu.VMEM((num_heads, tq, D), jnp.float32),   # acc
            ],
        ),
        # q axis "parallel" -> v7x megacore shards q blocks across the 2 TCs.
        compiler_params=pltpu.CompilerParams(
            dimension_semantics=("parallel", "arbitrary"),
            vmem_limit_bytes=_vmem_limit_bytes()),
        cost_estimate=pl.CostEstimate(flops=flops,
                                      transcendentals=num_heads * Tp * Tp,
                                      bytes_accessed=bytes_accessed),
    )(seg_col, seg_row, q, k, v)


# ----------------------------------------------------------------------------
# Output projection (plain tiled linear, bf16 MXU + f32 accumulate)
# ----------------------------------------------------------------------------
def _linear_kernel(x_ref, w_ref, b_ref, o_ref):
    acc = jnp.dot(x_ref[...], w_ref[...], preferred_element_type=jnp.float32)
    o_ref[...] = (acc + b_ref[...].astype(jnp.float32)).astype(o_ref.dtype)


def pallas_linear(x, w, b, *, block_m=256):
    Tp, E_in = x.shape
    E_out = w.shape[1]
    tm = min(block_m, Tp)
    assert Tp % tm == 0
    grid = (Tp // tm,)
    flops = 2 * Tp * E_in * E_out
    bytes_accessed = 2 * (Tp * E_in + E_in * E_out + E_out + Tp * E_out)

    return pl.pallas_call(
        _linear_kernel,
        out_shape=jax.ShapeDtypeStruct((Tp, E_out), x.dtype),
        grid_spec=pltpu.PrefetchScalarGridSpec(
            num_scalar_prefetch=0,
            grid=grid,
            in_specs=[
                pl.BlockSpec((tm, E_in), lambda i: (i, 0)),
                pl.BlockSpec((E_in, E_out), lambda i: (0, 0)),
                pl.BlockSpec((1, E_out), lambda i: (0, 0)),
            ],
            out_specs=pl.BlockSpec((tm, E_out), lambda i: (i, 0)),
        ),
        compiler_params=pltpu.CompilerParams(
            dimension_semantics=("parallel",),
            vmem_limit_bytes=_vmem_limit_bytes()),
        cost_estimate=pl.CostEstimate(flops=flops, transcendentals=0,
                                      bytes_accessed=bytes_accessed),
    )(x, w, b.reshape(1, E_out))


# ----------------------------------------------------------------------------
# FlashMultiheadAttention forward (Pallas)
# ----------------------------------------------------------------------------
def flash_mha_forward(x, params, seg_ids, positions, num_heads,
                      *, block_m=256, block_q=256, block_kv=256):
    T, E = x.shape
    D = E // num_heads
    half = D // 2

    # Pad T to a tile multiple (no full-T fallback blocks); padded tokens get
    # seg_id = -1 so they never attend to / are attended by real tokens.
    pad_to = max(block_m, block_q, block_kv)
    Tp = ((T + pad_to - 1) // pad_to) * pad_to
    pad = Tp - T
    if pad:
        x = jnp.pad(x, ((0, pad), (0, 0)))
        seg_ids = jnp.pad(seg_ids, (0, pad), constant_values=-1)
        positions = jnp.pad(positions, (0, pad))

    # Rotary tables (GPT-NeoX rotate-half convention assumed; positions reset
    # per packed sequence).  Head-tiled to (Tp, E) bf16 with sign / half masks
    # baked into the two sin tables so the QKV kernel's two full-width lane
    # rolls implement an exact per-head rotate-half.
    inv_freq = 1.0 / (10000.0 ** (jnp.arange(half, dtype=jnp.float32) / half))
    freqs = positions.astype(jnp.float32)[:, None] * inv_freq[None, :]   # (Tp, half)
    zeros = jnp.zeros_like(freqs)
    cos_d = jnp.concatenate([jnp.cos(freqs), jnp.cos(freqs)], axis=-1)   # (Tp, D)
    sinf_d = jnp.concatenate([-jnp.sin(freqs), zeros], axis=-1)
    sinb_d = jnp.concatenate([zeros, jnp.sin(freqs)], axis=-1)
    cos = jnp.tile(cos_d, (1, num_heads)).astype(jnp.bfloat16)           # (Tp, E)
    sinf = jnp.tile(sinf_d, (1, num_heads)).astype(jnp.bfloat16)
    sinb = jnp.tile(sinb_d, (1, num_heads)).astype(jnp.bfloat16)

    # Fused q/k/v projection + RoPE (q pre-scaled via folded weights); emits
    # three lane-dense (Tp, E) tensors — no wrapper relayout of activations.
    q, k, v = pallas_qkv_rope(x, params["w_qkv"], params["b_qkv"],
                              cos, sinf, sinb, D, block_m=block_m)

    # Flash varlen attention; output written lane-dense as (Tp, E) directly.
    o = pallas_flash_varlen_attention(q, k, v, seg_ids, num_heads,
                                      block_q=block_q, block_kv=block_kv)

    # Output projection.
    # TODO(synk): dropout not implemented (module default dropout=0.0 -> no-op).
    y = pallas_linear(o, params["w_out"], params["b_out"], block_m=block_m)
    return y[:T] if pad else y


# ----------------------------------------------------------------------------
# Deterministic parameter init (same shapes / init scheme as the module).
# Weights stored pre-transposed (in, out); q/k/v stacked as (3, E, E); the
# head_dim**-0.5 q-scaling is folded into the q weight & bias (perf feedback).
# ----------------------------------------------------------------------------
def init_params(key, embed_dim, num_heads, dtype=jnp.bfloat16):
    head_dim = embed_dim // num_heads
    scaling = head_dim ** (-0.5)

    def xavier(k, gain):
        bound = gain * (6.0 / (embed_dim + embed_dim)) ** 0.5
        return jax.random.uniform(k, (embed_dim, embed_dim), jnp.float32,
                                  -bound, bound)

    def bias_init(k):
        bound = 1.0 / (embed_dim ** 0.5)
        return jax.random.uniform(k, (embed_dim,), jnp.float32, -bound, bound)

    ks = jax.random.split(key, 8)
    g = 1.0 / (2.0 ** 0.5)
    wq, bq = xavier(ks[0], g) * scaling, bias_init(ks[1]) * scaling
    wk, bk = xavier(ks[2], g), bias_init(ks[3])
    wv, bv = xavier(ks[4], g), bias_init(ks[5])
    return {
        "w_qkv": jnp.stack([wq, wk, wv]).astype(dtype),                       # (3, E, E)
        "b_qkv": jnp.stack([bq, bk, bv]).reshape(3, 1, embed_dim).astype(dtype),
        "w_out": xavier(ks[6], 1.0).astype(dtype),
        "b_out": bias_init(ks[7]).astype(dtype),
    }


if __name__ == "__main__":
    embed_dim = 64
    num_heads = 2
    # three packed sequences of lengths 96, 64, 90 -> 250 tokens (exercises
    # the T-padding path: padded to 256 inside the wrapper, sliced back).
    cu_lens = np.array([0, 96, 160, 250], dtype=np.int32)
    max_len = int(np.max(np.diff(cu_lens)))  # noqa: F841 (mask built from seg ids)
    T = int(cu_lens[-1])

    lens = np.diff(cu_lens)
    seg_ids = jnp.asarray(np.repeat(np.arange(len(lens)), lens), dtype=jnp.int32)
    positions = jnp.asarray(np.concatenate([np.arange(l) for l in lens]),
                            dtype=jnp.int32)

    key = jax.random.PRNGKey(0)
    kx, kp = jax.random.split(key)
    x = jax.random.normal(kx, (T, embed_dim), jnp.float32).astype(jnp.bfloat16)
    params = init_params(kp, embed_dim, num_heads)

    fwd = jax.jit(functools.partial(flash_mha_forward, num_heads=num_heads))
    out = fwd(x, params, seg_ids, positions)
    out = jax.block_until_ready(out)
    assert out.shape == (T, embed_dim) and out.dtype == jnp.bfloat16
    assert bool(jnp.isfinite(out.astype(jnp.float32)).all())
    print("KERNEL_OK")
</pallas_src>

<mosaic_0001>
module attributes {stable_mosaic.version = 11 : i64} {
  func.func @_qkv_rope_kernel(%arg0: i32, %arg1: i32, %arg2: memref<256x64xbf16, #tpu.memory_space<vmem>>, %arg3: memref<1x64x64xbf16, #tpu.memory_space<vmem>>, %arg4: memref<1x1x64xbf16, #tpu.memory_space<vmem>>, %arg5: memref<256x64xbf16, #tpu.memory_space<vmem>>, %arg6: memref<256x64xbf16, #tpu.memory_space<vmem>>, %arg7: memref<256x64xbf16, #tpu.memory_space<vmem>>, %arg8: memref<256x64xbf16, #tpu.memory_space<vmem>>, %arg9: memref<256x64xbf16, #tpu.memory_space<vmem>>, %arg10: memref<256x64xbf16, #tpu.memory_space<vmem>>) attributes {dimension_semantics = [#tpu.dimension_semantics<parallel>, #tpu.dimension_semantics<arbitrary>], iteration_bounds = array<i64: 1, 3>, scalar_prefetch = 0 : i64, scratch_operands = 0 : i64, tpu.core_type = #tpu.core_type<tc>, window_params = [{transform_indices = @transform_0, window_bounds = array<i64: 256, 64>}, {transform_indices = @transform_1, window_bounds = array<i64: 1, 64, 64>}, {transform_indices = @transform_2, window_bounds = array<i64: 1, 1, 64>}, {transform_indices = @transform_3, window_bounds = array<i64: 256, 64>}, {transform_indices = @transform_4, window_bounds = array<i64: 256, 64>}, {transform_indices = @transform_5, window_bounds = array<i64: 256, 64>}, {transform_indices = @transform_6, window_bounds = array<i64: 256, 64>}, {transform_indices = @transform_7, window_bounds = array<i64: 256, 64>}, {transform_indices = @transform_8, window_bounds = array<i64: 256, 64>}]} {
    %c0 = arith.constant 0 : index
    %c0_0 = arith.constant 0 : index
    %0 = vector.load %arg2[%c0, %c0_0] : memref<256x64xbf16, #tpu.memory_space<vmem>>, vector<256x64xbf16>
    %c0_1 = arith.constant 0 : index
    %c0_2 = arith.constant 0 : index
    %c0_3 = arith.constant 0 : index
    %1 = vector.load %arg3[%c0_1, %c0_2, %c0_3] : memref<1x64x64xbf16, #tpu.memory_space<vmem>>, vector<1x64x64xbf16>
    %2 = vector.shape_cast %1 : vector<1x64x64xbf16> to vector<64x64xbf16>
    %cst = arith.constant dense<0.000000e+00> : vector<256x64xf32>
    %3 = tpu.matmul %0, %2, %cst {dimension_numbers = #tpu.dot_dimension_numbers<[1], [0], [0], [1], [0, 0, 1, 1], [], []>} : vector<256x64xbf16>, vector<64x64xbf16>, vector<256x64xf32> -> vector<256x64xf32>
    %c0_4 = arith.constant 0 : index
    %c0_5 = arith.constant 0 : index
    %c0_6 = arith.constant 0 : index
    %4 = vector.load %arg4[%c0_4, %c0_5, %c0_6] : memref<1x1x64xbf16, #tpu.memory_space<vmem>>, vector<1x1x64xbf16>
    %5 = vector.shape_cast %4 : vector<1x1x64xbf16> to vector<1x64xbf16>
    %6 = arith.extf %5 : vector<1x64xbf16> to vector<1x64xf32>
    %7 = vector.broadcast %6 : vector<1x64xf32> to vector<256x64xf32>
    %8 = arith.addf %3, %7 : vector<256x64xf32>
    %c48_i32 = arith.constant 48 : i32
    %9 = tpu.dynamic_rotate %8 by %c48_i32 dim 1 : vector<256x64xf32>, i32 -> vector<256x64xf32>
    %c16_i32 = arith.constant 16 : i32
    %10 = tpu.dynamic_rotate %8 by %c16_i32 dim 1 : vector<256x64xf32>, i32 -> vector<256x64xf32>
    %c0_7 = arith.constant 0 : index
    %c0_8 = arith.constant 0 : index
    %11 = vector.load %arg5[%c0_7, %c0_8] : memref<256x64xbf16, #tpu.memory_space<vmem>>, vector<256x64xbf16>
    %12 = arith.extf %11 : vector<256x64xbf16> to vector<256x64xf32>
    %13 = arith.mulf %8, %12 : vector<256x64xf32>
    %c0_9 = arith.constant 0 : index
    %c0_10 = arith.constant 0 : index
    %14 = vector.load %arg6[%c0_9, %c0_10] : memref<256x64xbf16, #tpu.memory_space<vmem>>, vector<256x64xbf16>
    %15 = arith.extf %14 : vector<256x64xbf16> to vector<256x64xf32>
    %16 = arith.mulf %9, %15 : vector<256x64xf32>
    %17 = arith.addf %13, %16 : vector<256x64xf32>
    %c0_11 = arith.constant 0 : index
    %c0_12 = arith.constant 0 : index
    %18 = vector.load %arg7[%c0_11, %c0_12] : memref<256x64xbf16, #tpu.memory_space<vmem>>, vector<256x64xbf16>
    %19 = arith.extf %18 : vector<256x64xbf16> to vector<256x64xf32>
    %20 = arith.mulf %10, %19 : vector<256x64xf32>
    %21 = arith.addf %17, %20 : vector<256x64xf32>
    %c0_i32 = arith.constant 0 : i32
    %22 = arith.cmpi eq, %arg1, %c0_i32 : i32
    %23 = arith.extui %22 : i1 to i32
    %c0_i32_13 = arith.constant 0 : i32
    %24 = arith.cmpi ne, %23, %c0_i32_13 : i32
    scf.if %24 {
      %31 = arith.truncf %21 : vector<256x64xf32> to vector<256x64xbf16>
      %c0_16 = arith.constant 0 : index
      %c0_17 = arith.constant 0 : index
      %32 = vector.load %arg8[%c0_16, %c0_17] : memref<256x64xbf16, #tpu.memory_space<vmem>>, vector<256x64xbf16>
      tpu.vector_store %arg8[%c0_16, %c0_17], %31 {strides = array<i32>} : memref<256x64xbf16, #tpu.memory_space<vmem>>, vector<256x64xbf16>,
    } else {
    }
    %c1_i32 = arith.constant 1 : i32
    %25 = arith.cmpi eq, %arg1, %c1_i32 : i32
    %26 = arith.extui %25 : i1 to i32
    %c0_i32_14 = arith.constant 0 : i32
    %27 = arith.cmpi ne, %26, %c0_i32_14 : i32
    scf.if %27 {
      %31 = arith.truncf %21 : vector<256x64xf32> to vector<256x64xbf16>
      %c0_16 = arith.constant 0 : index
      %c0_17 = arith.constant 0 : index
      %32 = vector.load %arg9[%c0_16, %c0_17] : memref<256x64xbf16, #tpu.memory_space<vmem>>, vector<256x64xbf16>
      tpu.vector_store %arg9[%c0_16, %c0_17], %31 {strides = array<i32>} : memref<256x64xbf16, #tpu.memory_space<vmem>>, vector<256x64xbf16>,
    } else {
    }
    %c2_i32 = arith.constant 2 : i32
    %28 = arith.cmpi eq, %arg1, %c2_i32 : i32
    %29 = arith.extui %28 : i1 to i32
    %c0_i32_15 = arith.constant 0 : i32
    %30 = arith.cmpi ne, %29, %c0_i32_15 : i32
    scf.if %30 {
      %31 = arith.truncf %8 : vector<256x64xf32> to vector<256x64xbf16>
      %c0_16 = arith.constant 0 : index
      %c0_17 = arith.constant 0 : index
      %32 = vector.load %arg10[%c0_16, %c0_17] : memref<256x64xbf16, #tpu.memory_space<vmem>>, vector<256x64xbf16>
      tpu.vector_store %arg10[%c0_16, %c0_17], %31 {strides = array<i32>} : memref<256x64xbf16, #tpu.memory_space<vmem>>, vector<256x64xbf16>,
    } else {
    }
    return
  }
  func.func @transform_0(%arg0: i32, %arg1: i32) -> (i32, i32) {
    %c0_i32 = arith.constant 0 : i32
    %c0_i32_0 = arith.constant 0 : i32
    return %arg0, %c0_i32 : i32, i32
  }
  func.func @transform_1(%arg0: i32, %arg1: i32) -> (i32, i32, i32) {
    %c0_i32 = arith.constant 0 : i32
    %c0_i32_0 = arith.constant 0 : i32
    %c0_i32_1 = arith.constant 0 : i32
    return %arg1, %c0_i32, %c0_i32_0 : i32, i32, i32
  }
  func.func @transform_2(%arg0: i32, %arg1: i32) -> (i32, i32, i32) {
    %c0_i32 = arith.constant 0 : i32
    %c0_i32_0 = arith.constant 0 : i32
    %c0_i32_1 = arith.constant 0 : i32
    return %arg1, %c0_i32, %c0_i32_0 : i32, i32, i32
  }
  func.func @transform_3(%arg0: i32, %arg1: i32) -> (i32, i32) {
    %c0_i32 = arith.constant 0 : i32
    %c0_i32_0 = arith.constant 0 : i32
    return %arg0, %c0_i32 : i32, i32
  }
  func.func @transform_4(%arg0: i32, %arg1: i32) -> (i32, i32) {
    %c0_i32 = arith.constant 0 : i32
    %c0_i32_0 = arith.constant 0 : i32
    return %arg0, %c0_i32 : i32, i32
  }
  func.func @transform_5(%arg0: i32, %arg1: i32) -> (i32, i32) {
    %c0_i32 = arith.constant 0 : i32
    %c0_i32_0 = arith.constant 0 : i32
    return %arg0, %c0_i32 : i32, i32
  }
  func.func @transform_6(%arg0: i32, %arg1: i32) -> (i32, i32) {
    %c0_i32 = arith.constant 0 : i32
    %c0_i32_0 = arith.constant 0 : i32
    return %arg0, %c0_i32 : i32, i32
  }
  func.func @transform_7(%arg0: i32, %arg1: i32) -> (i32, i32) {
    %c0_i32 = arith.constant 0 : i32
    %c0_i32_0 = arith.constant 0 : i32
    return %arg0, %c0_i32 : i32, i32
  }
  func.func @transform_8(%arg0: i32, %arg1: i32) -> (i32, i32) {
    %c0_i32 = arith.constant 0 : i32
    %c0_i32_0 = arith.constant 0 : i32
    return %arg0, %c0_i32 : i32, i32
  }
}

module attributes {stable_mosaic.version = 11 : i64} {
  func.func @_flash_attn_kernel(%arg0: i32, %arg1: i32, %arg2: memref<256x1xi32, #tpu.memory_space<vmem>>, %arg3: memref<1x256xi32, #tpu.memory_space<vmem>>, %arg4: memref<256x64xbf16, #tpu.memory_space<vmem>>, %arg5: memref<256x64xbf16, #tpu.memory_space<vmem>>, %arg6: memref<256x64xbf16, #tpu.memory_space<vmem>>, %arg7: memref<256x64xbf16, #tpu.memory_space<vmem>>, %arg8: memref<2x256x1xf32, #tpu.memory_space<vmem>>, %arg9: memref<2x256x1xf32, #tpu.memory_space<vmem>>, %arg10: memref<2x256x32xf32, #tpu.memory_space<vmem>>) attributes {dimension_semantics = [#tpu.dimension_semantics<parallel>, #tpu.dimension_semantics<arbitrary>], iteration_bounds = array<i64: 1, 1>, scalar_prefetch = 0 : i64, scratch_operands = 3 : i64, tpu.core_type = #tpu.core_type<tc>, window_params = [{transform_indices = @transform_0, window_bounds = array<i64: 256, 1>}, {transform_indices = @transform_1, window_bounds = array<i64: 1, 256>}, {transform_indices = @transform_2, window_bounds = array<i64: 256, 64>}, {transform_indices = @transform_3, window_bounds = array<i64: 256, 64>}, {transform_indices = @transform_4, window_bounds = array<i64: 256, 64>}, {transform_indices = @transform_5, window_bounds = array<i64: 256, 64>}]} {
    %c0_i32 = arith.constant 0 : i32
    %0 = arith.cmpi eq, %arg1, %c0_i32 : i32
    %1 = arith.extui %0 : i1 to i32
    %c0_i32_0 = arith.constant 0 : i32
    %2 = arith.cmpi ne, %1, %c0_i32_0 : i32
    scf.if %2 {
      %cst_61 = arith.constant 0xFF800000 : f32
      %88 = vector.broadcast %cst_61 : f32 to vector<2x256x1xf32>
      %c0_62 = arith.constant 0 : index
      %c0_63 = arith.constant 0 : index
      %c0_64 = arith.constant 0 : index
      %89 = vector.load %arg8[%c0_62, %c0_63, %c0_64] : memref<2x256x1xf32, #tpu.memory_space<vmem>>, vector<2x256x1xf32>
      tpu.vector_store %arg8[%c0_62, %c0_63, %c0_64], %88 {strides = array<i32>} : memref<2x256x1xf32, #tpu.memory_space<vmem>>, vector<2x256x1xf32>,
      %cst_65 = arith.constant 0.000000e+00 : f32
      %90 = vector.broadcast %cst_65 : f32 to vector<2x256x1xf32>
      %c0_66 = arith.constant 0 : index
      %c0_67 = arith.constant 0 : index
      %c0_68 = arith.constant 0 : index
      %91 = vector.load %arg9[%c0_66, %c0_67, %c0_68] : memref<2x256x1xf32, #tpu.memory_space<vmem>>, vector<2x256x1xf32>
      tpu.vector_store %arg9[%c0_66, %c0_67, %c0_68], %90 {strides = array<i32>} : memref<2x256x1xf32, #tpu.memory_space<vmem>>, vector<2x256x1xf32>,
      %cst_69 = arith.constant 0.000000e+00 : f32
      %92 = vector.broadcast %cst_69 : f32 to vector<2x256x32xf32>
      %c0_70 = arith.constant 0 : index
      %c0_71 = arith.constant 0 : index
      %c0_72 = arith.constant 0 : index
      %93 = vector.load %arg10[%c0_70, %c0_71, %c0_72] : memref<2x256x32xf32, #tpu.memory_space<vmem>>, vector<2x256x32xf32>
      tpu.vector_store %arg10[%c0_70, %c0_71, %c0_72], %92 {strides = array<i32>} : memref<2x256x32xf32, #tpu.memory_space<vmem>>, vector<2x256x32xf32>,
    } else {
    }
    %c0 = arith.constant 0 : index
    %c0_1 = arith.constant 0 : index
    %3 = vector.load %arg2[%c0, %c0_1] : memref<256x1xi32, #tpu.memory_space<vmem>>, vector<256x1xi32>
    %c0_2 = arith.constant 0 : index
    %c0_3 = arith.constant 0 : index
    %4 = vector.load %arg3[%c0_2, %c0_3] : memref<1x256xi32, #tpu.memory_space<vmem>>, vector<1x256xi32>
    %5 = vector.broadcast %3 : vector<256x1xi32> to vector<256x256xi32>
    %6 = vector.broadcast %4 : vector<1x256xi32> to vector<256x256xi32>
    %7 = arith.cmpi eq, %5, %6 : vector<256x256xi32>
    %cst = arith.constant 0.000000e+00 : f32
    %cst_4 = arith.constant -1.000000e+30 : f32
    %8 = vector.broadcast %cst : f32 to vector<256x256xf32>
    %9 = vector.broadcast %cst_4 : f32 to vector<256x256xf32>
    %10 = arith.select %7, %8, %9 : vector<256x256xi1>, vector<256x256xf32>
    %c0_5 = arith.constant 0 : index
    %c0_6 = arith.constant 0 : index
    %11 = vector.load %arg4[%c0_5, %c0_6] : memref<256x64xbf16, #tpu.memory_space<vmem>>, vector<256x32xbf16>
    %c0_7 = arith.constant 0 : index
    %c0_8 = arith.constant 0 : index
    %12 = vector.load %arg5[%c0_7, %c0_8] : memref<256x64xbf16, #tpu.memory_space<vmem>>, vector<256x32xbf16>
    %c0_9 = arith.constant 0 : index
    %c0_10 = arith.constant 0 : index
    %13 = vector.load %arg6[%c0_9, %c0_10] : memref<256x64xbf16, #tpu.memory_space<vmem>>, vector<256x32xbf16>
    "tpu.trace_start"() <{level = 10 : i32, message = "qd,kd->qk"}> : () -> ()
    %cst_11 = arith.constant dense<0.000000e+00> : vector<256x256xf32>
    %14 = tpu.matmul %11, %12, %cst_11 {dimension_numbers = #tpu.dot_dimension_numbers<[1], [1], [0], [0], [0, 0, 1, 0], [], []>} : vector<256x32xbf16>, vector<256x32xbf16>, vector<256x256xf32> -> vector<256x256xf32>
    "tpu.trace_stop"() : () -> ()
    %15 = arith.addf %14, %10 : vector<256x256xf32>
    %c0_12 = arith.constant 0 : index
    %c0_13 = arith.constant 0 : index
    %c0_14 = arith.constant 0 : index
    %16 = vector.load %arg8[%c0_12, %c0_13, %c0_14] : memref<2x256x1xf32, #tpu.memory_space<vmem>>, vector<1x256x1xf32>
    %17 = vector.shape_cast %16 : vector<1x256x1xf32> to vector<256x1xf32>
    %cst_15 = arith.constant dense<0xFF800000> : vector<256xf32>
    %18 = vector.multi_reduction <maximumf>, %15, %cst_15 [1] : vector<256x256xf32> to vector<256xf32>
    %19 = vector.shape_cast %18 : vector<256xf32> to vector<256x1xf32>
    %20 = arith.maximumf %17, %19 : vector<256x1xf32>
    %21 = arith.subf %17, %20 : vector<256x1xf32>
    %22 = math.exp %21 : vector<256x1xf32>
    %23 = vector.broadcast %20 : vector<256x1xf32> to vector<256x256xf32>
    %24 = arith.subf %15, %23 : vector<256x256xf32>
    %25 = math.exp %24 : vector<256x256xf32>
    %c0_16 = arith.constant 0 : index
    %c0_17 = arith.constant 0 : index
    %c0_18 = arith.constant 0 : index
    %26 = vector.load %arg9[%c0_16, %c0_17, %c0_18] : memref<2x256x1xf32, #tpu.memory_space<vmem>>, vector<1x256x1xf32>
    %27 = vector.shape_cast %26 : vector<1x256x1xf32> to vector<256x1xf32>
    %28 = arith.mulf %22, %27 : vector<256x1xf32>
    %cst_19 = arith.constant dense<0.000000e+00> : vector<256xf32>
    %29 = vector.multi_reduction <add>, %25, %cst_19 [1] : vector<256x256xf32> to vector<256xf32>
    %30 = vector.shape_cast %29 : vector<256xf32> to vector<256x1xf32>
    %31 = arith.addf %28, %30 : vector<256x1xf32>
    %c0_20 = arith.constant 0 : index
    %c0_21 = arith.constant 0 : index
    %c0_22 = arith.constant 0 : index
    %32 = vector.load %arg9[%c0_20, %c0_21, %c0_22] : memref<2x256x1xf32, #tpu.memory_space<vmem>>, vector<1x256x1xf32>
    %33 = vector.shape_cast %32 : vector<1x256x1xf32> to vector<256x1xf32>
    %34 = vector.shape_cast %31 : vector<256x1xf32> to vector<1x256x1xf32>
    tpu.vector_store %arg9[%c0_20, %c0_21, %c0_22], %34 {strides = array<i32>} : memref<2x256x1xf32, #tpu.memory_space<vmem>>, vector<1x256x1xf32>,
    %c0_23 = arith.constant 0 : index
    %c0_24 = arith.constant 0 : index
    %c0_25 = arith.constant 0 : index
    %35 = vector.load %arg10[%c0_23, %c0_24, %c0_25] : memref<2x256x32xf32, #tpu.memory_space<vmem>>, vector<1x256x32xf32>
    %36 = vector.shape_cast %35 : vector<1x256x32xf32> to vector<256x32xf32>
    %37 = vector.broadcast %22 : vector<256x1xf32> to vector<256x32xf32>
    %38 = arith.mulf %37, %36 : vector<256x32xf32>
    %39 = arith.truncf %25 : vector<256x256xf32> to vector<256x256xbf16>
    "tpu.trace_start"() <{level = 10 : i32, message = "qk,kd->qd"}> : () -> ()
    %cst_26 = arith.constant dense<0.000000e+00> : vector<256x32xf32>
    %40 = tpu.matmul %39, %13, %cst_26 {dimension_numbers = #tpu.dot_dimension_numbers<[1], [0], [0], [1], [0, 0, 1, 1], [], []>} : vector<256x256xbf16>, vector<256x32xbf16>, vector<256x32xf32> -> vector<256x32xf32>
    "tpu.trace_stop"() : () -> ()
    %41 = arith.addf %38, %40 : vector<256x32xf32>
    %c0_27 = arith.constant 0 : index
    %c0_28 = arith.constant 0 : index
    %c0_29 = arith.constant 0 : index
    %42 = vector.load %arg10[%c0_27, %c0_28, %c0_29] : memref<2x256x32xf32, #tpu.memory_space<vmem>>, vector<1x256x32xf32>
    %43 = vector.shape_cast %42 : vector<1x256x32xf32> to vector<256x32xf32>
    %44 = vector.shape_cast %41 : vector<256x32xf32> to vector<1x256x32xf32>
    tpu.vector_store %arg10[%c0_27, %c0_28, %c0_29], %44 {strides = array<i32>} : memref<2x256x32xf32, #tpu.memory_space<vmem>>, vector<1x256x32xf32>,
    %c0_30 = arith.constant 0 : index
    %c0_31 = arith.constant 0 : index
    %c0_32 = arith.constant 0 : index
    %45 = vector.load %arg8[%c0_30, %c0_31, %c0_32] : memref<2x256x1xf32, #tpu.memory_space<vmem>>, vector<1x256x1xf32>
    %46 = vector.shape_cast %45 : vector<1x256x1xf32> to vector<256x1xf32>
    %47 = vector.shape_cast %20 : vector<256x1xf32> to vector<1x256x1xf32>
    tpu.vector_store %arg8[%c0_30, %c0_31, %c0_32], %47 {strides = array<i32>} : memref<2x256x1xf32, #tpu.memory_space<vmem>>, vector<1x256x1xf32>,
    %c0_33 = arith.constant 0 : index
    %c32 = arith.constant 32 : index
    %48 = vector.load %arg4[%c0_33, %c32] : memref<256x64xbf16, #tpu.memory_space<vmem>>, vector<256x32xbf16>
    %c0_34 = arith.constant 0 : index
    %c32_35 = arith.constant 32 : index
    %49 = vector.load %arg5[%c0_34, %c32_35] : memref<256x64xbf16, #tpu.memory_space<vmem>>, vector<256x32xbf16>
    %c0_36 = arith.constant 0 : index
    %c32_37 = arith.constant 32 : index
    %50 = vector.load %arg6[%c0_36, %c32_37] : memref<256x64xbf16, #tpu.memory_space<vmem>>, vector<256x32xbf16>
    "tpu.trace_start"() <{level = 10 : i32, message = "qd,kd->qk"}> : () -> ()
    %cst_38 = arith.constant dense<0.000000e+00> : vector<256x256xf32>
    %51 = tpu.matmul %48, %49, %cst_38 {dimension_numbers = #tpu.dot_dimension_numbers<[1], [1], [0], [0], [0, 0, 1, 0], [], []>} : vector<256x32xbf16>, vector<256x32xbf16>, vector<256x256xf32> -> vector<256x256xf32>
    "tpu.trace_stop"() : () -> ()
    %52 = arith.addf %51, %10 : vector<256x256xf32>
    %c1 = arith.constant 1 : index
    %c0_39 = arith.constant 0 : index
    %c0_40 = arith.constant 0 : index
    %53 = vector.load %arg8[%c1, %c0_39, %c0_40] : memref<2x256x1xf32, #tpu.memory_space<vmem>>, vector<1x256x1xf32>
    %54 = vector.shape_cast %53 : vector<1x256x1xf32> to vector<256x1xf32>
    %cst_41 = arith.constant dense<0xFF800000> : vector<256xf32>
    %55 = vector.multi_reduction <maximumf>, %52, %cst_41 [1] : vector<256x256xf32> to vector<256xf32>
    %56 = vector.shape_cast %55 : vector<256xf32> to vector<256x1xf32>
    %57 = arith.maximumf %54, %56 : vector<256x1xf32>
    %58 = arith.subf %54, %57 : vector<256x1xf32>
    %59 = math.exp %58 : vector<256x1xf32>
    %60 = vector.broadcast %57 : vector<256x1xf32> to vector<256x256xf32>
    %61 = arith.subf %52, %60 : vector<256x256xf32>
    %62 = math.exp %61 : vector<256x256xf32>
    %c1_42 = arith.constant 1 : index
    %c0_43 = arith.constant 0 : index
    %c0_44 = arith.constant 0 : index
    %63 = vector.load %arg9[%c1_42, %c0_43, %c0_44] : memref<2x256x1xf32, #tpu.memory_space<vmem>>, vector<1x256x1xf32>
    %64 = vector.shape_cast %63 : vector<1x256x1xf32> to vector<256x1xf32>
    %65 = arith.mulf %59, %64 : vector<256x1xf32>
    %cst_45 = arith.constant dense<0.000000e+00> : vector<256xf32>
    %66 = vector.multi_reduction <add>, %62, %cst_45 [1] : vector<256x256xf32> to vector<256xf32>
    %67 = vector.shape_cast %66 : vector<256xf32> to vector<256x1xf32>
    %68 = arith.addf %65, %67 : vector<256x1xf32>
    %c1_46 = arith.constant 1 : index
    %c0_47 = arith.constant 0 : index
    %c0_48 = arith.constant 0 : index
    %69 = vector.load %arg9[%c1_46, %c0_47, %c0_48] : memref<2x256x1xf32, #tpu.memory_space<vmem>>, vector<1x256x1xf32>
    %70 = vector.shape_cast %69 : vector<1x256x1xf32> to vector<256x1xf32>
    %71 = vector.shape_cast %68 : vector<256x1xf32> to vector<1x256x1xf32>
    tpu.vector_store %arg9[%c1_46, %c0_47, %c0_48], %71 {strides = array<i32>} : memref<2x256x1xf32, #tpu.memory_space<vmem>>, vector<1x256x1xf32>,
    %c1_49 = arith.constant 1 : index
    %c0_50 = arith.constant 0 : index
    %c0_51 = arith.constant 0 : index
    %72 = vector.load %arg10[%c1_49, %c0_50, %c0_51] : memref<2x256x32xf32, #tpu.memory_space<vmem>>, vector<1x256x32xf32>
    %73 = vector.shape_cast %72 : vector<1x256x32xf32> to vector<256x32xf32>
    %74 = vector.broadcast %59 : vector<256x1xf32> to vector<256x32xf32>
    %75 = arith.mulf %74, %73 : vector<256x32xf32>
    %76 = arith.truncf %62 : vector<256x256xf32> to vector<256x256xbf16>
    "tpu.trace_start"() <{level = 10 : i32, message = "qk,kd->qd"}> : () -> ()
    %cst_52 = arith.constant dense<0.000000e+00> : vector<256x32xf32>
    %77 = tpu.matmul %76, %50, %cst_52 {dimension_numbers = #tpu.dot_dimension_numbers<[1], [0], [0], [1], [0, 0, 1, 1], [], []>} : vector<256x256xbf16>, vector<256x32xbf16>, vector<256x32xf32> -> vector<256x32xf32>
    "tpu.trace_stop"() : () -> ()
    %78 = arith.addf %75, %77 : vector<256x32xf32>
    %c1_53 = arith.constant 1 : index
    %c0_54 = arith.constant 0 : index
    %c0_55 = arith.constant 0 : index
    %79 = vector.load %arg10[%c1_53, %c0_54, %c0_55] : memref<2x256x32xf32, #tpu.memory_space<vmem>>, vector<1x256x32xf32>
    %80 = vector.shape_cast %79 : vector<1x256x32xf32> to vector<256x32xf32>
    %81 = vector.shape_cast %78 : vector<256x32xf32> to vector<1x256x32xf32>
    tpu.vector_store %arg10[%c1_53, %c0_54, %c0_55], %81 {strides = array<i32>} : memref<2x256x32xf32, #tpu.memory_space<vmem>>, vector<1x256x32xf32>,
    %c1_56 = arith.constant 1 : index
    %c0_57 = arith.constant 0 : index
    %c0_58 = arith.constant 0 : index
    %82 = vector.load %arg8[%c1_56, %c0_57, %c0_58] : memref<2x256x1xf32, #tpu.memory_space<vmem>>, vector<1x256x1xf32>
    %83 = vector.shape_cast %82 : vector<1x256x1xf32> to vector<256x1xf32>
    %84 = vector.shape_cast %57 : vector<256x1xf32> to vector<1x256x1xf32>
    tpu.vector_store %arg8[%c1_56, %c0_57, %c0_58], %84 {strides = array<i32>} : memref<2x256x1xf32, #tpu.memory_space<vmem>>, vector<1x256x1xf32>,
    %c0_i32_59 = arith.constant 0 : i32
    %85 = arith.cmpi eq, %arg1, %c0_i32_59 : i32
    %86 = arith.extui %85 : i1 to i32
    %c0_i32_60 = arith.constant 0 : i32
    %87 = arith.cmpi ne, %86, %c0_i32_60 : i32
    scf.if %87 {
      %c0_61 = arith.constant 0 : index
      %c0_62 = arith.constant 0 : index
      %c0_63 = arith.constant 0 : index
      %88 = vector.load %arg9[%c0_61, %c0_62, %c0_63] : memref<2x256x1xf32, #tpu.memory_space<vmem>>, vector<1x256x1xf32>
      %89 = vector.shape_cast %88 : vector<1x256x1xf32> to vector<256x1xf32>
      %90 = tpu.reciprocal %89 {approx = true} : vector<256x1xf32> -> vector<256x1xf32>
      %c0_64 = arith.constant 0 : index
      %c0_65 = arith.constant 0 : index
      %c0_66 = arith.constant 0 : index
      %91 = vector.load %arg10[%c0_64, %c0_65, %c0_66] : memref<2x256x32xf32, #tpu.memory_space<vmem>>, vector<1x256x32xf32>
      %92 = vector.shape_cast %91 : vector<1x256x32xf32> to vector<256x32xf32>
      %93 = vector.broadcast %90 : vector<256x1xf32> to vector<256x32xf32>
      %94 = arith.mulf %92, %93 : vector<256x32xf32>
      %95 = arith.truncf %94 : vector<256x32xf32> to vector<256x32xbf16>
      %c0_67 = arith.constant 0 : index
      %c0_68 = arith.constant 0 : index
      %96 = vector.load %arg7[%c0_67, %c0_68] : memref<256x64xbf16, #tpu.memory_space<vmem>>, vector<256x32xbf16>
      tpu.vector_store %arg7[%c0_67, %c0_68], %95 {strides = array<i32>} : memref<256x64xbf16, #tpu.memory_space<vmem>>, vector<256x32xbf16>,
      %c1_69 = arith.constant 1 : index
      %c0_70 = arith.constant 0 : index
      %c0_71 = arith.constant 0 : index
      %97 = vector.load %arg9[%c1_69, %c0_70, %c0_71] : memref<2x256x1xf32, #tpu.memory_space<vmem>>, vector<1x256x1xf32>
      %98 = vector.shape_cast %97 : vector<1x256x1xf32> to vector<256x1xf32>
      %99 = tpu.reciprocal %98 {approx = true} : vector<256x1xf32> -> vector<256x1xf32>
      %c1_72 = arith.constant 1 : index
      %c0_73 = arith.constant 0 : index
      %c0_74 = arith.constant 0 : index
      %100 = vector.load %arg10[%c1_72, %c0_73, %c0_74] : memref<2x256x32xf32, #tpu.memory_space<vmem>>, vector<1x256x32xf32>
      %101 = vector.shape_cast %100 : vector<1x256x32xf32> to vector<256x32xf32>
      %102 = vector.broadcast %99 : vector<256x1xf32> to vector<256x32xf32>
      %103 = arith.mulf %101, %102 : vector<256x32xf32>
      %104 = arith.truncf %103 : vector<256x32xf32> to vector<256x32xbf16>
      %c0_75 = arith.constant 0 : index
      %c32_76 = arith.constant 32 : index
      %105 = vector.load %arg7[%c0_75, %c32_76] : memref<256x64xbf16, #tpu.memory_space<vmem>>, vector<256x32xbf16>
      tpu.vector_store %arg7[%c0_75, %c32_76], %104 {strides = array<i32>} : memref<256x64xbf16, #tpu.memory_space<vmem>>, vector<256x32xbf16>,
    } else {
    }
    return
  }
  func.func @transform_0(%arg0: i32, %arg1: i32) -> (i32, i32) {
    %c0_i32 = arith.constant 0 : i32
    %c0_i32_0 = arith.constant 0 : i32
    return %arg0, %c0_i32 : i32, i32
  }
  func.func @transform_1(%arg0: i32, %arg1: i32) -> (i32, i32) {
    %c0_i32 = arith.constant 0 : i32
    %c0_i32_0 = arith.constant 0 : i32
    return %c0_i32, %arg1 : i32, i32
  }
  func.func @transform_2(%arg0: i32, %arg1: i32) -> (i32, i32) {
    %c0_i32 = arith.constant 0 : i32
    %c0_i32_0 = arith.constant 0 : i32
    return %arg0, %c0_i32 : i32, i32
  }
  func.func @transform_3(%arg0: i32, %arg1: i32) -> (i32, i32) {
    %c0_i32 = arith.constant 0 : i32
    %c0_i32_0 = arith.constant 0 : i32
    return %arg1, %c0_i32 : i32, i32
  }
  func.func @transform_4(%arg0: i32, %arg1: i32) -> (i32, i32) {
    %c0_i32 = arith.constant 0 : i32
    %c0_i32_0 = arith.constant 0 : i32
    return %arg1, %c0_i32 : i32, i32
  }
  func.func @transform_5(%arg0: i32, %arg1: i32) -> (i32, i32) {
    %c0_i32 = arith.constant 0 : i32
    %c0_i32_0 = arith.constant 0 : i32
    return %arg0, %c0_i32 : i32, i32
  }
}

module attributes {stable_mosaic.version = 11 : i64} {
  func.func @_linear_kernel(%arg0: i32, %arg1: memref<256x64xbf16, #tpu.memory_space<vmem>>, %arg2: memref<64x64xbf16, #tpu.memory_space<vmem>>, %arg3: memref<1x64xbf16, #tpu.memory_space<vmem>>, %arg4: memref<256x64xbf16, #tpu.memory_space<vmem>>) attributes {dimension_semantics = [#tpu.dimension_semantics<parallel>], iteration_bounds = array<i64: 1>, scalar_prefetch = 0 : i64, scratch_operands = 0 : i64, tpu.core_type = #tpu.core_type<tc>, window_params = [{transform_indices = @transform_0, window_bounds = array<i64: 256, 64>}, {pipeline_mode = #tpu.pipeline_mode<synchronous>, transform_indices = @transform_1, window_bounds = array<i64: 64, 64>}, {pipeline_mode = #tpu.pipeline_mode<synchronous>, transform_indices = @transform_2, window_bounds = array<i64: 1, 64>}, {transform_indices = @transform_3, window_bounds = array<i64: 256, 64>}]} {
    %c0 = arith.constant 0 : index
    %c0_0 = arith.constant 0 : index
    %0 = vector.load %arg1[%c0, %c0_0] : memref<256x64xbf16, #tpu.memory_space<vmem>>, vector<256x64xbf16>
    %c0_1 = arith.constant 0 : index
    %c0_2 = arith.constant 0 : index
    %1 = vector.load %arg2[%c0_1, %c0_2] : memref<64x64xbf16, #tpu.memory_space<vmem>>, vector<64x64xbf16>
    %cst = arith.constant dense<0.000000e+00> : vector<256x64xf32>
    %2 = tpu.matmul %0, %1, %cst {dimension_numbers = #tpu.dot_dimension_numbers<[1], [0], [0], [1], [0, 0, 1, 1], [], []>} : vector<256x64xbf16>, vector<64x64xbf16>, vector<256x64xf32> -> vector<256x64xf32>
    %c0_3 = arith.constant 0 : index
    %c0_4 = arith.constant 0 : index
    %3 = vector.load %arg3[%c0_3, %c0_4] : memref<1x64xbf16, #tpu.memory_space<vmem>>, vector<1x64xbf16>
    %4 = arith.extf %3 : vector<1x64xbf16> to vector<1x64xf32>
    %5 = vector.broadcast %4 : vector<1x64xf32> to vector<256x64xf32>
    %6 = arith.addf %2, %5 : vector<256x64xf32>
    %7 = arith.truncf %6 : vector<256x64xf32> to vector<256x64xbf16>
    %c0_5 = arith.constant 0 : index
    %c0_6 = arith.constant 0 : index
    %8 = vector.load %arg4[%c0_5, %c0_6] : memref<256x64xbf16, #tpu.memory_space<vmem>>, vector<256x64xbf16>
    tpu.vector_store %arg4[%c0_5, %c0_6], %7 {strides = array<i32>} : memref<256x64xbf16, #tpu.memory_space<vmem>>, vector<256x64xbf16>,
    return
  }
  func.func @transform_0(%arg0: i32) -> (i32, i32) {
    %c0_i32 = arith.constant 0 : i32
    %c0_i32_0 = arith.constant 0 : i32
    return %arg0, %c0_i32 : i32, i32
  }
  func.func @transform_1(%arg0: i32) -> (i32, i32) {
    %c0_i32 = arith.constant 0 : i32
    %c0_i32_0 = arith.constant 0 : i32
    %c0_i32_1 = arith.constant 0 : i32
    return %c0_i32, %c0_i32_0 : i32, i32
  }
  func.func @transform_2(%arg0: i32) -> (i32, i32) {
    %c0_i32 = arith.constant 0 : i32
    %c0_i32_0 = arith.constant 0 : i32
    %c0_i32_1 = arith.constant 0 : i32
    return %c0_i32, %c0_i32_0 : i32, i32
  }
  func.func @transform_3(%arg0: i32) -> (i32, i32) {
    %c0_i32 = arith.constant 0 : i32
    %c0_i32_0 = arith.constant 0 : i32
    return %arg0, %c0_i32 : i32, i32
  }
}

</mosaic_0001>

<llo_original>
// kernel: flash_mha_forward.5
$region0: #{flash_mha_forward.5}
  #allocation0 [shape = 'u32[]', space=smem, size = 0x4, offset = 0x4, fixed_abs, tag = 'smem constant byte address 0x4 - core index']
  #allocation1 [shape = 'u32[144,128]{1,0:T(1,128)}', space=vmem, size = 0x12000, scoped, tag = 'internal scratch']
  %s0 = inlined_call_operand.vmem [shape: bf16[256,64], index: 0, kind: input, shape index: {}]
  %s1 = inlined_call_operand.vmem [shape: bf16[64,64], index: 1, kind: input, shape index: {}]
  %s2 = inlined_call_operand.vmem [shape: bf16[1,64], index: 2, kind: input, shape index: {}]
  %s3 = inlined_call_operand.vmem [shape: bf16[256,64], index: 3, kind: output, shape index: {}]
  %s4 = sld [smem:[#allocation0]]
  $region22: #{flash_mha_forward.5} parent=0
    _
  %s6 = ssub.s32 1, %s4
  %s7 = scalar_select 0, %s6, %s4
  // Predicated region
  $region2: #{flash_mha_forward.5} parent=0 // pred_check
    _
  $region3: #{flash_mha_forward.5} parent=0 // pred_check_branch
    %9 = sbr.rel (0) target = $region5
  $region4: #{flash_mha_forward.5} parent=0 // pred_region
    _
  $region5: #{flash_mha_forward.5} parent=0 // pred_fallthru
    _
  // Predicated region
  $region6: #{flash_mha_forward.5} parent=0 // pred_check
    _
  $region7: #{flash_mha_forward.5} parent=0 // pred_check_branch
    %11 = sbr.rel (0) target = $region9
  $region8: #{flash_mha_forward.5} parent=0 // pred_region
    _
  $region9: #{flash_mha_forward.5} parent=0 // pred_fallthru
    _
  // Predicated region
  $region10: #{flash_mha_forward.5} parent=0 // pred_check
    _
  $region11: #{flash_mha_forward.5} parent=0 // pred_check_branch
    %13 = sbr.rel (0) target = $region13
  $region12: #{flash_mha_forward.5} parent=0 // pred_region
    _
  $region13: #{flash_mha_forward.5} parent=0 // pred_fallthru
    _
  %v15 = vld [vmem:[%s0] sm:$0xf]
  %v16 = vld [vmem:[%s0 + $0x4] sm:$0xf]
  %v17 = vld [vmem:[%s0 + $0x8] sm:$0xf]
  %v18 = vld [vmem:[%s0 + $0xc] sm:$0xf]
  %v19 = vld [vmem:[%s0 + $0x10] sm:$0xf]
  %v20 = vld [vmem:[%s0 + $0x14] sm:$0xf]
  %v21 = vld [vmem:[%s0 + $0x18] sm:$0xf]
  %v22 = vld [vmem:[%s0 + $0x1c] sm:$0xf]
  %v23 = vld [vmem:[%s0 + $0x20] sm:$0xf]
  %v24 = vld [vmem:[%s0 + $0x24] sm:$0xf]
  %v25 = vld [vmem:[%s0 + $0x28] sm:$0xf]
  %v26 = vld [vmem:[%s0 + $0x2c] sm:$0xf]
  %v27 = vld [vmem:[%s0 + $0x30] sm:$0xf]
  %v28 = vld [vmem:[%s0 + $0x34] sm:$0xf]
  %v29 = vld [vmem:[%s0 + $0x38] sm:$0xf]
  %v30 = vld [vmem:[%s0 + $0x3c] sm:$0xf]
  %v31 = vld [vmem:[%s0 + $0x40] sm:$0xf]
  %v32 = vld [vmem:[%s0 + $0x44] sm:$0xf]
  %v33 = vld [vmem:[%s0 + $0x48] sm:$0xf]
  %v34 = vld [vmem:[%s0 + $0x4c] sm:$0xf]
  %v35 = vld [vmem:[%s0 + $0x50] sm:$0xf]
  %v36 = vld [vmem:[%s0 + $0x54] sm:$0xf]
  %v37 = vld [vmem:[%s0 + $0x58] sm:$0xf]
  %v38 = vld [vmem:[%s0 + $0x5c] sm:$0xf]
  %v39 = vld [vmem:[%s0 + $0x60] sm:$0xf]
  %v40 = vld [vmem:[%s0 + $0x64] sm:$0xf]
  %v41 = vld [vmem:[%s0 + $0x68] sm:$0xf]
  %v42 = vld [vmem:[%s0 + $0x6c] sm:$0xf]
  %v43 = vld [vmem:[%s0 + $0x70] sm:$0xf]
  %v44 = vld [vmem:[%s0 + $0x74] sm:$0xf]
  %v45 = vld [vmem:[%s0 + $0x78] sm:$0xf]
  %v46 = vld [vmem:[%s0 + $0x7c] sm:$0xf]
  %v47 = vld [vmem:[%s1] sm:$0xf]
  %v48 = vld [vmem:[%s1 + $0x4] sm:$0xf]
  %v49 = vld [vmem:[%s1 + $0x8] sm:$0xf]
  %v50 = vld [vmem:[%s1 + $0xc] sm:$0xf]
  %v51 = vld [vmem:[%s1 + $0x10] sm:$0xf]
  %v52 = vld [vmem:[%s1 + $0x14] sm:$0xf]
  %v53 = vld [vmem:[%s1 + $0x18] sm:$0xf]
  %v54 = vld [vmem:[%s1 + $0x1c] sm:$0xf]
  %v55 = vld [vmem:[%s2] sm:$0x1]
  %v56 = vunpack.c.l.bf16 %v55
  %v57 = vlaneseq
  %v58 = vshrl.u32 %v57, 7
  %v59 = vsub.s32 0, %v58
  %v60 = vrot.slane %v56, %v59
  %v93 = vunpack.c.l.b16 %v15
  %v94 = vunpack.c.l.b16 %v16
  %v95 = vunpack.c.l.b16 %v17
  %v96 = vunpack.c.l.b16 %v18
  %v97 = vunpack.c.l.b16 %v19
  %v98 = vunpack.c.l.b16 %v20
  %v99 = vunpack.c.l.b16 %v21
  %v100 = vunpack.c.l.b16 %v22
  %v101 = vunpack.c.l.b16 %v23
  %v102 = vunpack.c.l.b16 %v24
  %v103 = vunpack.c.l.b16 %v25
  %v104 = vunpack.c.l.b16 %v26
  %v105 = vunpack.c.l.b16 %v27
  %v106 = vunpack.c.l.b16 %v28
  %v107 = vunpack.c.l.b16 %v29
  %v108 = vunpack.c.l.b16 %v30
  %v109 = vunpack.c.l.b16 %v31
  %v110 = vunpack.c.l.b16 %v32
  %v111 = vunpack.c.l.b16 %v33
  %v112 = vunpack.c.l.b16 %v34
  %v113 = vunpack.c.l.b16 %v35
  %v114 = vunpack.c.l.b16 %v36
  %v115 = vunpack.c.l.b16 %v37
  %v116 = vunpack.c.l.b16 %v38
  %v117 = vunpack.c.l.b16 %v39
  %v118 = vunpack.c.l.b16 %v40
  %v119 = vunpack.c.l.b16 %v41
  %v120 = vunpack.c.l.b16 %v42
  %v121 = vunpack.c.l.b16 %v43
  %v122 = vunpack.c.l.b16 %v44
  %v123 = vunpack.c.l.b16 %v45
  %v124 = vunpack.c.l.b16 %v46
  %v125 = vpack.c.b16 %v94, %v93
  %v126 = vpack.c.b16 %v96, %v95
  %v127 = vpack.c.b16 %v98, %v97
  %v128 = vpack.c.b16 %v100, %v99
  %v129 = vpack.c.b16 %v102, %v101
  %v130 = vpack.c.b16 %v104, %v103
  %v131 = vpack.c.b16 %v106, %v105
  %v132 = vpack.c.b16 %v108, %v107
  %v133 = vpack.c.b16 %v110, %v109
  %v134 = vpack.c.b16 %v112, %v111
  %v135 = vpack.c.b16 %v114, %v113
  %v136 = vpack.c.b16 %v116, %v115
  %v137 = vpack.c.b16 %v118, %v117
  %v138 = vpack.c.b16 %v120, %v119
  %v139 = vpack.c.b16 %v122, %v121
  %v140 = vpack.c.b16 %v124, %v123
  %v149 = vunpack.c.l.b16 %v47
  %v150 = vunpack.c.l.b16 %v48
  %v151 = vunpack.c.l.b16 %v49
  %v152 = vunpack.c.l.b16 %v50
  %v153 = vunpack.c.l.b16 %v51
  %v154 = vunpack.c.l.b16 %v52
  %v155 = vunpack.c.l.b16 %v53
  %v156 = vunpack.c.l.b16 %v54
  %v157 = vpack.c.b16 %v150, %v149
  %v158 = vpack.c.b16 %v152, %v151
  %v159 = vpack.c.b16 %v154, %v153
  %v160 = vpack.c.b16 %v156, %v155
  %vm165 = vcmask 523264
  %v167 = vsel %vm165, %v125, 0
  %v170 = vsel %vm165, %v126, 0
  %v173 = vsel %vm165, %v127, 0
  %v176 = vsel %vm165, %v128, 0
  %v179 = vsel %vm165, %v129, 0
  %v182 = vsel %vm165, %v130, 0
  %v185 = vsel %vm165, %v131, 0
  %v188 = vsel %vm165, %v132, 0
  %v191 = vsel %vm165, %v133, 0
  %v194 = vsel %vm165, %v134, 0
  %v197 = vsel %vm165, %v135, 0
  %v200 = vsel %vm165, %v136, 0
  %v203 = vsel %vm165, %v137, 0
  %v206 = vsel %vm165, %v138, 0
  %v209 = vsel %vm165, %v139, 0
  %v212 = vsel %vm165, %v140, 0
  %214 = vmatprep.subr.bf16.mxu0 0
  %215 = vmatpush1.bf16.msra.mxu0 0
  %216 = vmatprep.subr.bf16.mxu0 0
  %217 = vmatpush1.bf16.msra.mxu0 0
  %218 = vmatprep.subr.bf16.mxu0 0
  %219 = vmatpush1.bf16.msra.mxu0 0
  %220 = vmatprep.subr.bf16.mxu0 0
  %221 = vmatpush1.bf16.msra.mxu0 0
  %222 = vmatprep.subr.bf16.mxu0 0
  %223 = vmatpush1.bf16.msra.mxu0 %v160
  %224 = vmatprep.subr.bf16.mxu0 0
  %225 = vmatpush1.bf16.msra.mxu0 %v159
  %226 = vmatprep.subr.bf16.mxu0 0
  %227 = vmatpush1.bf16.msra.mxu0 %v158
  %228 = vmatprep.subr.bf16.mxu0 0
  %229 = vmatpush1.bf16.msra.mxu0 %v157
  %230 = vmatprep.subr.bf16.mxu0 0
  %231 = vmatpush2.bf16.msra.mxu0 0
  %232 = vmatprep.subr.bf16.mxu0 0
  %233 = vmatpush2.bf16.msra.mxu0 0
  %234 = vmatprep.subr.bf16.mxu0 0
  %235 = vmatpush2.bf16.msra.mxu0 0
  %236 = vmatprep.subr.bf16.mxu0 0
  %237 = vmatpush2.bf16.msra.mxu0 0
  %238 = vmatprep.subr.bf16.mxu0 0
  %239 = vmatpush2.bf16.msra.mxu0 0
  %240 = vmatprep.subr.bf16.mxu0 0
  %241 = vmatpush2.bf16.msra.mxu0 0
  %242 = vmatprep.subr.bf16.mxu0 0
  %243 = vmatpush2.bf16.msra.mxu0 0
  %244 = vmatprep.subr.bf16.mxu0 0
  %245 = vmatpush2.bf16.msra.mxu0 0
  %246 = vmatprep.mubr.bf16.mxu0 0
  %247 = vmatmul.mubr.bf16.gmra.mxu0 %v167
  %v248 = vpop.f32.mrf.mxu0
  %v249 = vadd.f32 %v60, %v248
  %v250 = vpop.f32.mrf.mxu0
  %v251 = vpop.f32.mrf.mxu0
  %v252 = vadd.f32 %v60, %v251
  %v253 = vpop.f32.mrf.mxu0
  %254 = vmatprep.mubr.bf16.mxu0 0
  %255 = vmatmul.mubr.bf16.gmra.mxu0 %v170
  %v256 = vpop.f32.mrf.mxu0
  %v257 = vadd.f32 %v60, %v256
  %v258 = vpop.f32.mrf.mxu0
  %v259 = vpop.f32.mrf.mxu0
  %v260 = vadd.f32 %v60, %v259
  %v261 = vpop.f32.mrf.mxu0
  %262 = vmatprep.mubr.bf16.mxu0 0
  %263 = vmatmul.mubr.bf16.gmra.mxu0 %v173
  %v264 = vpop.f32.mrf.mxu0
  %v265 = vadd.f32 %v60, %v264
  %v266 = vpop.f32.mrf.mxu0
  %v267 = vpop.f32.mrf.mxu0
  %v268 = vadd.f32 %v60, %v267
  %v269 = vpop.f32.mrf.mxu0
  %270 = vmatprep.mubr.bf16.mxu0 0
  %271 = vmatmul.mubr.bf16.gmra.mxu0 %v176
  %v272 = vpop.f32.mrf.mxu0
  %v273 = vadd.f32 %v60, %v272
  %v274 = vpop.f32.mrf.mxu0
  %v275 = vpop.f32.mrf.mxu0
  %v276 = vadd.f32 %v60, %v275
  %v277 = vpop.f32.mrf.mxu0
  %278 = vmatprep.mubr.bf16.mxu0 0
  %279 = vmatmul.mubr.bf16.gmra.mxu0 %v179
  %v280 = vpop.f32.mrf.mxu0
  %v281 = vadd.f32 %v60, %v280
  %v282 = vpop.f32.mrf.mxu0
  %v283 = vpop.f32.mrf.mxu0
  %v284 = vadd.f32 %v60, %v283
  %v285 = vpop.f32.mrf.mxu0
  %286 = vmatprep.mubr.bf16.mxu0 0
  %287 = vmatmul.mubr.bf16.gmra.mxu0 %v182
  %v288 = vpop.f32.mrf.mxu0
  %v289 = vadd.f32 %v60, %v288
  %v290 = vpop.f32.mrf.mxu0
  %v291 = vpop.f32.mrf.mxu0
  %v292 = vadd.f32 %v60, %v291
  %v293 = vpop.f32.mrf.mxu0
  %294 = vmatprep.mubr.bf16.mxu0 0
  %295 = vmatmul.mubr.bf16.gmra.mxu0 %v185
  %v296 = vpop.f32.mrf.mxu0
  %v297 = vadd.f32 %v60, %v296
  %v298 = vpop.f32.mrf.mxu0
  %v299 = vpop.f32.mrf.mxu0
  %v300 = vadd.f32 %v60, %v299
  %v301 = vpop.f32.mrf.mxu0
  %302 = vmatprep.mubr.bf16.mxu0 0
  %303 = vmatmul.mubr.bf16.gmra.mxu0 %v188
  %v304 = vpop.f32.mrf.mxu0
  %v305 = vadd.f32 %v60, %v304
  %v306 = vpop.f32.mrf.mxu0
  %v307 = vpop.f32.mrf.mxu0
  %v308 = vadd.f32 %v60, %v307
  %v309 = vpop.f32.mrf.mxu0
  %310 = vmatprep.mubr.bf16.mxu0 0
  %311 = vmatmul.mubr.bf16.gmra.mxu0 %v191
  %v312 = vpop.f32.mrf.mxu0
  %v313 = vadd.f32 %v60, %v312
  %v314 = vpop.f32.mrf.mxu0
  %v315 = vpop.f32.mrf.mxu0
  %v316 = vadd.f32 %v60, %v315
  %v317 = vpop.f32.mrf.mxu0
  %318 = vmatprep.mubr.bf16.mxu0 0
  %319 = vmatmul.mubr.bf16.gmra.mxu0 %v194
  %v320 = vpop.f32.mrf.mxu0
  %v321 = vadd.f32 %v60, %v320
  %v322 = vpop.f32.mrf.mxu0
  %v323 = vpop.f32.mrf.mxu0
  %v324 = vadd.f32 %v60, %v323
  %v325 = vpop.f32.mrf.mxu0
  %326 = vmatprep.mubr.bf16.mxu0 0
  %327 = vmatmul.mubr.bf16.gmra.mxu0 %v197
  %v328 = vpop.f32.mrf.mxu0
  %v329 = vadd.f32 %v60, %v328
  %v330 = vpop.f32.mrf.mxu0
  %v331 = vpop.f32.mrf.mxu0
  %v332 = vadd.f32 %v60, %v331
  %v333 = vpop.f32.mrf.mxu0
  %334 = vmatprep.mubr.bf16.mxu0 0
  %335 = vmatmul.mubr.bf16.gmra.mxu0 %v200
  %v336 = vpop.f32.mrf.mxu0
  %v337 = vadd.f32 %v60, %v336
  %v338 = vpop.f32.mrf.mxu0
  %v339 = vpop.f32.mrf.mxu0
  %v340 = vadd.f32 %v60, %v339
  %v341 = vpop.f32.mrf.mxu0
  %342 = vmatprep.mubr.bf16.mxu0 0
  %343 = vmatmul.mubr.bf16.gmra.mxu0 %v203
  %v344 = vpop.f32.mrf.mxu0
  %v345 = vadd.f32 %v60, %v344
  %v346 = vpop.f32.mrf.mxu0
  %v347 = vpop.f32.mrf.mxu0
  %v348 = vadd.f32 %v60, %v347
  %v349 = vpop.f32.mrf.mxu0
  %350 = vmatprep.mubr.bf16.mxu0 0
  %351 = vmatmul.mubr.bf16.gmra.mxu0 %v206
  %v352 = vpop.f32.mrf.mxu0
  %v353 = vadd.f32 %v60, %v352
  %v354 = vpop.f32.mrf.mxu0
  %v355 = vpop.f32.mrf.mxu0
  %v356 = vadd.f32 %v60, %v355
  %v357 = vpop.f32.mrf.mxu0
  %358 = vmatprep.mubr.bf16.mxu0 0
  %359 = vmatmul.mubr.bf16.gmra.mxu0 %v209
  %v360 = vpop.f32.mrf.mxu0
  %v361 = vadd.f32 %v60, %v360
  %v362 = vpop.f32.mrf.mxu0
  %v363 = vpop.f32.mrf.mxu0
  %v364 = vadd.f32 %v60, %v363
  %v365 = vpop.f32.mrf.mxu0
  %366 = vmatprep.mubr.bf16.mxu0 0
  %367 = vmatmul.mubr.bf16.gmra.mxu0 %v212
  %v368 = vpop.f32.mrf.mxu0
  %v369 = vadd.f32 %v60, %v368
  %v370 = vpop.f32.mrf.mxu0
  %v371 = vpop.f32.mrf.mxu0
  %v372 = vadd.f32 %v60, %v371
  %v373 = vpop.f32.mrf.mxu0
  %374 = vdwg.mxu0
  %v375 = vpack.c.bf16 %v252, %v249
  %v376 = vpack.c.bf16 %v260, %v257
  %v377 = vpack.c.bf16 %v268, %v265
  %v378 = vpack.c.bf16 %v276, %v273
  %v379 = vpack.c.bf16 %v284, %v281
  %v380 = vpack.c.bf16 %v292, %v289
  %v381 = vpack.c.bf16 %v300, %v297
  %v382 = vpack.c.bf16 %v308, %v305
  %v383 = vpack.c.bf16 %v316, %v313
  %v384 = vpack.c.bf16 %v324, %v321
  %v385 = vpack.c.bf16 %v332, %v329
  %v386 = vpack.c.bf16 %v340, %v337
  %v387 = vpack.c.bf16 %v348, %v345
  %v388 = vpack.c.bf16 %v356, %v353
  %v389 = vpack.c.bf16 %v364, %v361
  %v390 = vpack.c.bf16 %v372, %v369
  %v407 = vunpack.c.l.b16 %v375
  %v408 = vunpack.c.h.b16 %v375
  %v409 = vunpack.c.l.b16 %v376
  %v410 = vunpack.c.h.b16 %v376
  %v411 = vunpack.c.l.b16 %v377
  %v412 = vunpack.c.h.b16 %v377
  %v413 = vunpack.c.l.b16 %v378
  %v414 = vunpack.c.h.b16 %v378
  %v415 = vunpack.c.l.b16 %v379
  %v416 = vunpack.c.h.b16 %v379
  %v417 = vunpack.c.l.b16 %v380
  %v418 = vunpack.c.h.b16 %v380
  %v419 = vunpack.c.l.b16 %v381
  %v420 = vunpack.c.h.b16 %v381
  %v421 = vunpack.c.l.b16 %v382
  %v422 = vunpack.c.h.b16 %v382
  %v423 = vunpack.c.l.b16 %v383
  %v424 = vunpack.c.h.b16 %v383
  %v425 = vunpack.c.l.b16 %v384
  %v426 = vunpack.c.h.b16 %v384
  %v427 = vunpack.c.l.b16 %v385
  %v428 = vunpack.c.h.b16 %v385
  %v429 = vunpack.c.l.b16 %v386
  %v430 = vunpack.c.h.b16 %v386
  %v431 = vunpack.c.l.b16 %v387
  %v432 = vunpack.c.h.b16 %v387
  %v433 = vunpack.c.l.b16 %v388
  %v434 = vunpack.c.h.b16 %v388
  %v435 = vunpack.c.l.b16 %v389
  %v436 = vunpack.c.h.b16 %v389
  %v437 = vunpack.c.l.b16 %v390
  %v438 = vunpack.c.h.b16 %v390
  %v439 = vpack.c.b16 %v407, %v407
  %v440 = vpack.c.b16 %v408, %v408
  %v441 = vpack.c.b16 %v409, %v409
  %v442 = vpack.c.b16 %v410, %v410
  %v443 = vpack.c.b16 %v411, %v411
  %v444 = vpack.c.b16 %v412, %v412
  %v445 = vpack.c.b16 %v413, %v413
  %v446 = vpack.c.b16 %v414, %v414
  %v447 = vpack.c.b16 %v415, %v415
  %v448 = vpack.c.b16 %v416, %v416
  %v449 = vpack.c.b16 %v417, %v417
  %v450 = vpack.c.b16 %v418, %v418
  %v451 = vpack.c.b16 %v419, %v419
  %v452 = vpack.c.b16 %v420, %v420
  %v453 = vpack.c.b16 %v421, %v421
  %v454 = vpack.c.b16 %v422, %v422
  %v455 = vpack.c.b16 %v423, %v423
  %v456 = vpack.c.b16 %v424, %v424
  %v457 = vpack.c.b16 %v425, %v425
  %v458 = vpack.c.b16 %v426, %v426
  %v459 = vpack.c.b16 %v427, %v427
  %v460 = vpack.c.b16 %v428, %v428
  %v461 = vpack.c.b16 %v429, %v429
  %v462 = vpack.c.b16 %v430, %v430
  %v463 = vpack.c.b16 %v431, %v431
  %v464 = vpack.c.b16 %v432, %v432
  %v465 = vpack.c.b16 %v433, %v433
  %v466 = vpack.c.b16 %v434, %v434
  %v467 = vpack.c.b16 %v435, %v435
  %v468 = vpack.c.b16 %v436, %v436
  %v469 = vpack.c.b16 %v437, %v437
  %v470 = vpack.c.b16 %v438, %v438
  %vm503 = vcmask 519168
  %504 = vst.msk [vmem:[%s3] sm:$0xf] %vm503, %v439
  %505 = vst.msk [vmem:[%s3 + $0x4] sm:$0xf] %vm503, %v440
  %506 = vst.msk [vmem:[%s3 + $0x8] sm:$0xf] %vm503, %v441
  %507 = vst.msk [vmem:[%s3 + $0xc] sm:$0xf] %vm503, %v442
  %508 = vst.msk [vmem:[%s3 + $0x10] sm:$0xf] %vm503, %v443
  %509 = vst.msk [vmem:[%s3 + $0x14] sm:$0xf] %vm503, %v444
  %510 = vst.msk [vmem:[%s3 + $0x18] sm:$0xf] %vm503, %v445
  %511 = vst.msk [vmem:[%s3 + $0x1c] sm:$0xf] %vm503, %v446
  %512 = vst.msk [vmem:[%s3 + $0x20] sm:$0xf] %vm503, %v447
  %513 = vst.msk [vmem:[%s3 + $0x24] sm:$0xf] %vm503, %v448
  %514 = vst.msk [vmem:[%s3 + $0x28] sm:$0xf] %vm503, %v449
  %515 = vst.msk [vmem:[%s3 + $0x2c] sm:$0xf] %vm503, %v450
  %516 = vst.msk [vmem:[%s3 + $0x30] sm:$0xf] %vm503, %v451
  %517 = vst.msk [vmem:[%s3 + $0x34] sm:$0xf] %vm503, %v452
  %518 = vst.msk [vmem:[%s3 + $0x38] sm:$0xf] %vm503, %v453
  %519 = vst.msk [vmem:[%s3 + $0x3c] sm:$0xf] %vm503, %v454
  %520 = vst.msk [vmem:[%s3 + $0x40] sm:$0xf] %vm503, %v455
  %521 = vst.msk [vmem:[%s3 + $0x44] sm:$0xf] %vm503, %v456
  %522 = vst.msk [vmem:[%s3 + $0x48] sm:$0xf] %vm503, %v457
  %523 = vst.msk [vmem:[%s3 + $0x4c] sm:$0xf] %vm503, %v458
  %524 = vst.msk [vmem:[%s3 + $0x50] sm:$0xf] %vm503, %v459
  %525 = vst.msk [vmem:[%s3 + $0x54] sm:$0xf] %vm503, %v460
  %526 = vst.msk [vmem:[%s3 + $0x58] sm:$0xf] %vm503, %v461
  %527 = vst.msk [vmem:[%s3 + $0x5c] sm:$0xf] %vm503, %v462
  %528 = vst.msk [vmem:[%s3 + $0x60] sm:$0xf] %vm503, %v463
  %529 = vst.msk [vmem:[%s3 + $0x64] sm:$0xf] %vm503, %v464
  %530 = vst.msk [vmem:[%s3 + $0x68] sm:$0xf] %vm503, %v465
  %531 = vst.msk [vmem:[%s3 + $0x6c] sm:$0xf] %vm503, %v466
  %532 = vst.msk [vmem:[%s3 + $0x70] sm:$0xf] %vm503, %v467
  %533 = vst.msk [vmem:[%s3 + $0x74] sm:$0xf] %vm503, %v468
  %534 = vst.msk [vmem:[%s3 + $0x78] sm:$0xf] %vm503, %v469
  %535 = vst.msk [vmem:[%s3 + $0x7c] sm:$0xf] %vm503, %v470
  // Predicated region
  $region14: #{flash_mha_forward.5} parent=0 // pred_check
    _
  $region15: #{flash_mha_forward.5} parent=0 // pred_check_branch
    %537 = sbr.rel (0) target = $region17
  $region16: #{flash_mha_forward.5} parent=0 // pred_region
    _
  $region17: #{flash_mha_forward.5} parent=0 // pred_fallthru
    _
  // Predicated region
  $region18: #{flash_mha_forward.5} parent=0 // pred_check
    _
  $region19: #{flash_mha_forward.5} parent=0 // pred_check_branch
    %539 = sbr.rel (0) target = $region21
  $region20: #{flash_mha_forward.5} parent=0 // pred_region
    _
  $region21: #{flash_mha_forward.5} parent=0 // pred_fallthru
    _

// kernel: flash_mha_forward.3
$region0: #{flash_mha_forward.3}
  #allocation0 [shape = 'u32[]', space=smem, size = 0x4, offset = 0x4, fixed_abs, tag = 'smem constant byte address 0x4 - core index']
  #allocation1 [shape = 'u32[144,128]{1,0:T(1,128)}', space=vmem, size = 0x12000, scoped, tag = 'internal scratch']
  %s0 = inlined_call_operand.vmem [shape: bf16[256,64], index: 0, kind: input, shape index: {}]
  %s1 = inlined_call_operand.vmem [shape: bf16[3,64,64], index: 1, kind: input, shape index: {}]
  %s2 = inlined_call_operand.vmem [shape: bf16[3,1,64], index: 2, kind: input, shape index: {}]
  %s3 = inlined_call_operand.vmem [shape: bf16[256,64], index: 3, kind: input, shape index: {}]
  %s4 = inlined_call_operand.vmem [shape: bf16[256,64], index: 4, kind: input, shape index: {}]
  %s5 = inlined_call_operand.vmem [shape: bf16[256,64], index: 5, kind: input, shape index: {}]
  %s6 = inlined_call_operand.vmem [shape: bf16[256,64], index: 6, kind: output, shape index: {0}]
  %s7 = inlined_call_operand.vmem [shape: bf16[256,64], index: 7, kind: output, shape index: {1}]
  %s8 = inlined_call_operand.vmem [shape: bf16[256,64], index: 8, kind: output, shape index: {2}]
  %9 = xla_tuple %s6, %s7, %s8
  %s10 = sld [smem:[#allocation0]]
  $region85: #{flash_mha_forward.3} parent=0
    _
  %s12 = ssub.s32 1, %s10
  %s13 = scalar_select 0, %s12, %s10
  loop: start=0, step=1, limit=5
  $region2: #{flash_mha_forward.3} parent=0 // loop_pre_header
    _
  $region3: #{flash_mha_forward.3} parent=0 // loop_header
    %s15 = sphi 0, %s19
    %p16 = scmp.ge.s32.totalorder %s15, 5
    %s22 = sphi 0, %s34
    %s23 = sphi 0, %s30
    %s24 = sphi 0, %s22
    %s25 = sphi 0, %s23
    %s26 = sphi 0, %s24
    %s27 = sphi 0, %s25
    %s37 = sphi 0, %s39
    %s40 = sphi 0, %s37
    %s41 = sphi 0, %s40
    %s57 = sphi 0, %s41
    %s63 = sphi 0, %s65
    %s66 = sphi 0, %s63
    %s67 = sphi 0, %s66
    %s83 = sphi 0, %s67
    %s89 = sphi 0, %s91
    %s92 = sphi 0, %s89
    %s93 = sphi 0, %s92
    %s109 = sphi 0, %s93
    %s115 = sphi 0, %s117
    %s118 = sphi 0, %s115
    %s119 = sphi 0, %s118
    %s135 = sphi 0, %s119
    %s141 = sphi 0, %s143
    %s144 = sphi 0, %s141
    %s145 = sphi 0, %s144
    %s161 = sphi 0, %s145
    %s167 = sphi 0, %s169
    %s170 = sphi 0, %s167
    %s171 = sphi 0, %s170
    %s187 = sphi 0, %s171
    %s193 = sphi 0, %s195
    %s196 = sphi 0, %s193
    %s197 = sphi 0, %s196
    %s213 = sphi 0, %s197
    %s219 = sphi 0, %s221
    %s222 = sphi 0, %s219
    %s223 = sphi 0, %s222
    %s239 = sphi 0, %s223
    %s245 = sphi 0, %s247
    %s248 = sphi 0, %s245
    %s249 = sphi 0, %s248
    %s265 = sphi 0, %s249
  $region4: #{flash_mha_forward.3} parent=0 // loop_header_branch
    %18 = sbr.rel (%p16) target = $region8
  $region5: #{flash_mha_forward.3} parent=0 // loop_body
    %s20 = ssub.s32 %s15, 1
    %s21 = ssub.s32 %s15, 2
    %s28 = sadd.s32 1, %s23
    %p29 = scmp.ge.s32.totalorder %s28, 3
    %s30 = scalar_select %p29, 0, %s28
    %s31 = sadd.s32 1, %s22
    %s32 = scalar_select %p29, %s31, %s22
    %p33 = scmp.ge.s32.totalorder %s32, 1
    %s34 = scalar_select %p33, 0, %s32
    %s35 = ssub.s32 %s22, %s34
    %p36 = scmp.eq.s32.totalorder %s35, 0
    %s38 = sadd.s32 %s37, 1
    %s39 = scalar_select %p36, %s37, %s38
    %p42 = pneg %p36
    %p43 = scmp.eq.s32.totalorder %s15, 2
    %p44 = por %p42, %p43
    %p45 = scmp.ne.s32.totalorder %s37, %s40
    %p46 = scmp.eq.s32.totalorder %s15, 0
    %p47 = por %p45, %p46
    %p48 = scmp.ne.s32.totalorder %s37, %s40
    %p49 = scmp.eq.s32.totalorder %s20, 2
    %p50 = por %p48, %p49
    %p51 = scmp.ne.s32.totalorder %s40, %s41
    %p52 = scmp.eq.s32.totalorder %s20, 0
    %p53 = por %p51, %p52
    %p54 = scmp.ne.s32.totalorder %s40, %s41
    %p55 = scmp.eq.s32.totalorder %s21, 2
    %p56 = por %p54, %p55
    %p58 = scmp.ne.s32.totalorder %s41, %s57
    %p59 = scmp.eq.s32.totalorder %s21, 0
    %p60 = por %p58, %p59
    %s61 = ssub.s32 %s23, %s30
    %p62 = scmp.eq.s32.totalorder %s61, 0
    %s64 = sadd.s32 %s63, 1
    %s65 = scalar_select %p62, %s63, %s64
    %p68 = pneg %p62
    %p69 = scmp.eq.s32.totalorder %s15, 2
    %p70 = por %p68, %p69
    %p71 = scmp.ne.s32.totalorder %s63, %s66
    %p72 = scmp.eq.s32.totalorder %s15, 0
    %p73 = por %p71, %p72
    %p74 = scmp.ne.s32.totalorder %s63, %s66
    %p75 = scmp.eq.s32.totalorder %s20, 2
    %p76 = por %p74, %p75
    %p77 = scmp.ne.s32.totalorder %s66, %s67
    %p78 = scmp.eq.s32.totalorder %s20, 0
    %p79 = por %p77, %p78
    %p80 = scmp.ne.s32.totalorder %s66, %s67
    %p81 = scmp.eq.s32.totalorder %s21, 2
    %p82 = por %p80, %p81
    %p84 = scmp.ne.s32.totalorder %s67, %s83
    %p85 = scmp.eq.s32.totalorder %s21, 0
    %p86 = por %p84, %p85
    %s87 = ssub.s32 %s23, %s30
    %p88 = scmp.eq.s32.totalorder %s87, 0
    %s90 = sadd.s32 %s89, 1
    %s91 = scalar_select %p88, %s89, %s90
    %p94 = pneg %p88
    %p95 = scmp.eq.s32.totalorder %s15, 2
    %p96 = por %p94, %p95
    %p97 = scmp.ne.s32.totalorder %s89, %s92
    %p98 = scmp.eq.s32.totalorder %s15, 0
    %p99 = por %p97, %p98
    %p100 = scmp.ne.s32.totalorder %s89, %s92
    %p101 = scmp.eq.s32.totalorder %s20, 2
    %p102 = por %p100, %p101
    %p103 = scmp.ne.s32.totalorder %s92, %s93
    %p104 = scmp.eq.s32.totalorder %s20, 0
    %p105 = por %p103, %p104
    %p106 = scmp.ne.s32.totalorder %s92, %s93
    %p107 = scmp.eq.s32.totalorder %s21, 2
    %p108 = por %p106, %p107
    %p110 = scmp.ne.s32.totalorder %s93, %s109
    %p111 = scmp.eq.s32.totalorder %s21, 0
    %p112 = por %p110, %p111
    %s113 = ssub.s32 %s22, %s34
    %p114 = scmp.eq.s32.totalorder %s113, 0
    %s116 = sadd.s32 %s115, 1
    %s117 = scalar_select %p114, %s115, %s116
    %p120 = pneg %p114
    %p121 = scmp.eq.s32.totalorder %s15, 2
    %p122 = por %p120, %p121
    %p123 = scmp.ne.s32.totalorder %s115, %s118
    %p124 = scmp.eq.s32.totalorder %s15, 0
    %p125 = por %p123, %p124
    %p126 = scmp.ne.s32.totalorder %s115, %s118
    %p127 = scmp.eq.s32.totalorder %s20, 2
    %p128 = por %p126, %p127
    %p129 = scmp.ne.s32.totalorder %s118, %s119
    %p130 = scmp.eq.s32.totalorder %s20, 0
    %p131 = por %p129, %p130
    %p132 = scmp.ne.s32.totalorder %s118, %s119
    %p133 = scmp.eq.s32.totalorder %s21, 2
    %p134 = por %p132, %p133
    %p136 = scmp.ne.s32.totalorder %s119, %s135
    %p137 = scmp.eq.s32.totalorder %s21, 0
    %p138 = por %p136, %p137
    %s139 = ssub.s32 %s22, %s34
    %p140 = scmp.eq.s32.totalorder %s139, 0
    %s142 = sadd.s32 %s141, 1
    %s143 = scalar_select %p140, %s141, %s142
    %p146 = pneg %p140
    %p147 = scmp.eq.s32.totalorder %s15, 2
    %p148 = por %p146, %p147
    %p149 = scmp.ne.s32.totalorder %s141, %s144
    %p150 = scmp.eq.s32.totalorder %s15, 0
    %p151 = por %p149, %p150
    %p152 = scmp.ne.s32.totalorder %s141, %s144
    %p153 = scmp.eq.s32.totalorder %s20, 2
    %p154 = por %p152, %p153
    %p155 = scmp.ne.s32.totalorder %s144, %s145
    %p156 = scmp.eq.s32.totalorder %s20, 0
    %p157 = por %p155, %p156
    %p158 = scmp.ne.s32.totalorder %s144, %s145
    %p159 = scmp.eq.s32.totalorder %s21, 2
    %p160 = por %p158, %p159
    %p162 = scmp.ne.s32.totalorder %s145, %s161
    %p163 = scmp.eq.s32.totalorder %s21, 0
    %p164 = por %p162, %p163
    %s165 = ssub.s32 %s22, %s34
    %p166 = scmp.eq.s32.totalorder %s165, 0
    %s168 = sadd.s32 %s167, 1
    %s169 = scalar_select %p166, %s167, %s168
    %p172 = pneg %p166
    %p173 = scmp.eq.s32.totalorder %s15, 2
    %p174 = por %p172, %p173
    %p175 = scmp.ne.s32.totalorder %s167, %s170
    %p176 = scmp.eq.s32.totalorder %s15, 0
    %p177 = por %p175, %p176
    %p178 = scmp.ne.s32.totalorder %s167, %s170
    %p179 = scmp.eq.s32.totalorder %s20, 2
    %p180 = por %p178, %p179
    %p181 = scmp.ne.s32.totalorder %s170, %s171
    %p182 = scmp.eq.s32.totalorder %s20, 0
    %p183 = por %p181, %p182
    %p184 = scmp.ne.s32.totalorder %s170, %s171
    %p185 = scmp.eq.s32.totalorder %s21, 2
    %p186 = por %p184, %p185
    %p188 = scmp.ne.s32.totalorder %s171, %s187
    %p189 = scmp.eq.s32.totalorder %s21, 0
    %p190 = por %p188, %p189
    %s191 = ssub.s32 %s22, %s34
    %p192 = scmp.eq.s32.totalorder %s191, 0
    %s194 = sadd.s32 %s193, 1
    %s195 = scalar_select %p192, %s193, %s194
    %p198 = pneg %p192
    %p199 = scmp.eq.s32.totalorder %s15, 2
    %p200 = por %p198, %p199
    %p201 = scmp.ne.s32.totalorder %s193, %s196
    %p202 = scmp.eq.s32.totalorder %s15, 0
    %p203 = por %p201, %p202
    %p204 = scmp.ne.s32.totalorder %s193, %s196
    %p205 = scmp.eq.s32.totalorder %s20, 2
    %p206 = por %p204, %p205
    %p207 = scmp.ne.s32.totalorder %s196, %s197
    %p208 = scmp.eq.s32.totalorder %s20, 0
    %p209 = por %p207, %p208
    %p210 = scmp.ne.s32.totalorder %s196, %s197
    %p211 = scmp.eq.s32.totalorder %s21, 2
    %p212 = por %p210, %p211
    %p214 = scmp.ne.s32.totalorder %s197, %s213
    %p215 = scmp.eq.s32.totalorder %s21, 0
    %p216 = por %p214, %p215
    %s217 = ssub.s32 %s22, %s34
    %p218 = scmp.eq.s32.totalorder %s217, 0
    %s220 = sadd.s32 %s219, 1
    %s221 = scalar_select %p218, %s219, %s220
    %p224 = pneg %p218
    %p225 = scmp.eq.s32.totalorder %s15, 2
    %p226 = por %p224, %p225
    %p227 = scmp.ne.s32.totalorder %s219, %s222
    %p228 = scmp.eq.s32.totalorder %s15, 0
    %p229 = por %p227, %p228
    %p230 = scmp.ne.s32.totalorder %s219, %s222
    %p231 = scmp.eq.s32.totalorder %s20, 2
    %p232 = por %p230, %p231
    %p233 = scmp.ne.s32.totalorder %s222, %s223
    %p234 = scmp.eq.s32.totalorder %s20, 0
    %p235 = por %p233, %p234
    %p236 = scmp.ne.s32.totalorder %s222, %s223
    %p237 = scmp.eq.s32.totalorder %s21, 2
    %p238 = por %p236, %p237
    %p240 = scmp.ne.s32.totalorder %s223, %s239
    %p241 = scmp.eq.s32.totalorder %s21, 0
    %p242 = por %p240, %p241
    %s243 = ssub.s32 %s22, %s34
    %p244 = scmp.eq.s32.totalorder %s243, 0
    %s246 = sadd.s32 %s245, 1
    %s247 = scalar_select %p244, %s245, %s246
    %p250 = pneg %p244
    %p251 = scmp.eq.s32.totalorder %s15, 2
    %p252 = por %p250, %p251
    %p253 = scmp.ne.s32.totalorder %s245, %s248
    %p254 = scmp.eq.s32.totalorder %s15, 0
    %p255 = por %p253, %p254
    %p256 = scmp.ne.s32.totalorder %s245, %s248
    %p257 = scmp.eq.s32.totalorder %s20, 2
    %p258 = por %p256, %p257
    %p259 = scmp.ne.s32.totalorder %s248, %s249
    %p260 = scmp.eq.s32.totalorder %s20, 0
    %p261 = por %p259, %p260
    %p262 = scmp.ne.s32.totalorder %s248, %s249
    %p263 = scmp.eq.s32.totalorder %s21, 2
    %p264 = por %p262, %p263
    %p266 = scmp.ne.s32.totalorder %s249, %s265
    %p267 = scmp.eq.s32.totalorder %s21, 0
    %p268 = por %p266, %p267
    %p269 = scmp.le.s32.totalorder 1, %s15
    %p270 = scmp.lt.s32.totalorder %s15, 4
    %p271 = pnand %p269, %p270
    %p272 = pneg %p271
    // Predicated region
    $region9: #{flash_mha_forward.3} parent=5 // pred_check
      _
    $region10: #{flash_mha_forward.3} parent=5 // pred_check_branch
      %274 = sbr.rel (%p271) target = $region12
    $region11: #{flash_mha_forward.3} parent=5 // pred_region
      %s275 = ssub.s32 %s15, 1
      // Predicated region
      $region13: #{flash_mha_forward.3} parent=11 // pred_check
        %p276 = pneg %p53
      $region14: #{flash_mha_forward.3} parent=11 // pred_check_branch
        %278 = sbr.rel (%p276) target = $region16
      $region15: #{flash_mha_forward.3} parent=11 // pred_region
        %s279 = smul.u32 32, %s24
        %p280 = scmp.lt.s32.totalorder %s279, 31
        %s281 = scalar_select %p280, %s279, 31
        %s282 = smul.addr %s281, 4
        %s283 = scalar_lea.vmem %s0, %s282
        %s284 = smul.u32 32, %s24
      $region16: #{flash_mha_forward.3} parent=11 // pred_fallthru
        _
      // Predicated region
      $region17: #{flash_mha_forward.3} parent=11 // pred_check
        %p285 = pneg %p131
      $region18: #{flash_mha_forward.3} parent=11 // pred_check_branch
        %287 = sbr.rel (%p285) target = $region20
      $region19: #{flash_mha_forward.3} parent=11 // pred_region
        %s288 = smul.u32 32, %s24
        %p289 = scmp.lt.s32.totalorder %s288, 31
        %s290 = scalar_select %p289, %s288, 31
        %s291 = smul.addr %s290, 4
        %s292 = scalar_lea.vmem %s3, %s291
        %s293 = smul.u32 32, %s24
      $region20: #{flash_mha_forward.3} parent=11 // pred_fallthru
        _
      // Predicated region
      $region21: #{flash_mha_forward.3} parent=11 // pred_check
        %p294 = pneg %p157
      $region22: #{flash_mha_forward.3} parent=11 // pred_check_branch
        %296 = sbr.rel (%p294) target = $region24
      $region23: #{flash_mha_forward.3} parent=11 // pred_region
        %s297 = smul.u32 32, %s24
        %p298 = scmp.lt.s32.totalorder %s297, 31
        %s299 = scalar_select %p298, %s297, 31
        %s300 = smul.addr %s299, 4
        %s301 = scalar_lea.vmem %s4, %s300
        %s302 = smul.u32 32, %s24
      $region24: #{flash_mha_forward.3} parent=11 // pred_fallthru
        _
      // Predicated region
      $region25: #{flash_mha_forward.3} parent=11 // pred_check
        %p303 = pneg %p183
      $region26: #{flash_mha_forward.3} parent=11 // pred_check_branch
        %305 = sbr.rel (%p303) target = $region28
      $region27: #{flash_mha_forward.3} parent=11 // pred_region
        %s306 = smul.u32 32, %s24
        %p307 = scmp.lt.s32.totalorder %s306, 31
        %s308 = scalar_select %p307, %s306, 31
        %s309 = smul.addr %s308, 4
        %s310 = scalar_lea.vmem %s5, %s309
        %s311 = smul.u32 32, %s24
      $region28: #{flash_mha_forward.3} parent=11 // pred_fallthru
        _
    $region12: #{flash_mha_forward.3} parent=5 // pred_fallthru
      _
    %p312 = scmp.lt.s32.totalorder %s15, 3
    // Predicated region
    $region29: #{flash_mha_forward.3} parent=5 // pred_check
      %p313 = pneg %p312
    $region30: #{flash_mha_forward.3} parent=5 // pred_check_branch
      %315 = sbr.rel (%p313) target = $region32
    $region31: #{flash_mha_forward.3} parent=5 // pred_region
      // Predicated region
      $region33: #{flash_mha_forward.3} parent=31 // pred_check
        %p316 = pneg %p73
      $region34: #{flash_mha_forward.3} parent=31 // pred_check_branch
        %318 = sbr.rel (%p316) target = $region36
      $region35: #{flash_mha_forward.3} parent=31 // pred_region
        %p319 = scmp.lt.s32.totalorder %s23, 2
        %s320 = scalar_select %p319, %s23, 2
        %s321 = smul.addr %s320, 8
        %s322 = smul.addr %s321, 4
        %s323 = scalar_lea.vmem %s1, %s322
      $region36: #{flash_mha_forward.3} parent=31 // pred_fallthru
        _
      // Predicated region
      $region37: #{flash_mha_forward.3} parent=31 // pred_check
        %p324 = pneg %p99
      $region38: #{flash_mha_forward.3} parent=31 // pred_check_branch
        %326 = sbr.rel (%p324) target = $region40
      $region39: #{flash_mha_forward.3} parent=31 // pred_region
        %p327 = scmp.lt.s32.totalorder %s23, 2
        %s328 = scalar_select %p327, %s23, 2
        %s329 = scalar_lea.vmem %s2, %s328
      $region40: #{flash_mha_forward.3} parent=31 // pred_fallthru
        _
    $region32: #{flash_mha_forward.3} parent=5 // pred_fallthru
      _
    %p330 = scmp.le.s32.totalorder 1, %s15
    %p331 = scmp.lt.s32.totalorder %s15, 4
    %p332 = pnand %p330, %p331
    %p333 = pneg %p332
    // Predicated region
    $region41: #{flash_mha_forward.3} parent=5 // pred_check
      _
    $region42: #{flash_mha_forward.3} parent=5 // pred_check_branch
      %335 = sbr.rel (%p332) target = $region44
    $region43: #{flash_mha_forward.3} parent=5 // pred_region
      %s336 = ssub.s32 %s15, 1
      %s337 = smul.u32 32, %s24
      %p338 = scmp.lt.s32.totalorder %s337, 31
      %s339 = scalar_select %p338, %s337, 31
      %s340 = smul.addr %s339, 4
      %s341 = scalar_lea.vmem %s0, %s340
      %p342 = pneg %p53
      %p343 = pneg %p50
      %p344 = scmp.lt.s32.totalorder %s25, 2
      %s345 = scalar_select %p344, %s25, 2
      %s346 = smul.addr %s345, 8
      %s347 = smul.addr %s346, 4
      %s348 = scalar_lea.vmem %s1, %s347
      %p349 = pneg %p79
      %p350 = pneg %p76
      %p351 = scmp.lt.s32.totalorder %s25, 2
      %s352 = scalar_select %p351, %s25, 2
      %s353 = scalar_lea.vmem %s2, %s352
      %p354 = pneg %p105
      %p355 = pneg %p102
      %s356 = smul.u32 32, %s24
      %p357 = scmp.lt.s32.totalorder %s356, 31
      %s358 = scalar_select %p357, %s356, 31
      %s359 = smul.addr %s358, 4
      %s360 = scalar_lea.vmem %s3, %s359
      %p361 = pneg %p131
      %p362 = pneg %p128
      %s363 = smul.u32 32, %s24
      %p364 = scmp.lt.s32.totalorder %s363, 31
      %s365 = scalar_select %p364, %s363, 31
      %s366 = smul.addr %s365, 4
      %s367 = scalar_lea.vmem %s4, %s366
      %p368 = pneg %p157
      %p369 = pneg %p154
      %s370 = smul.u32 32, %s24
      %p371 = scmp.lt.s32.totalorder %s370, 31
      %s372 = scalar_select %p371, %s370, 31
      %s373 = smul.addr %s372, 4
      %s374 = scalar_lea.vmem %s5, %s373
      %p375 = pneg %p183
      %p376 = pneg %p180
      %p377 = pneg %p209
      %p378 = pneg %p206
      %s379 = smul.u32 32, %s24
      %p380 = scmp.lt.s32.totalorder %s379, 31
      %s381 = scalar_select %p380, %s379, 31
      %s382 = smul.addr %s381, 4
      %s383 = scalar_lea.vmem %s6, %s382
      %p384 = pneg %p235
      %p385 = pneg %p232
      %s386 = smul.u32 32, %s24
      %p387 = scmp.lt.s32.totalorder %s386, 31
      %s388 = scalar_select %p387, %s386, 31
      %s389 = smul.addr %s388, 4
      %s390 = scalar_lea.vmem %s7, %s389
      %p391 = pneg %p261
      %p392 = pneg %p258
      %s393 = smul.u32 32, %s24
      %p394 = scmp.lt.s32.totalorder %s393, 31
      %s395 = scalar_select %p394, %s393, 31
      %s396 = smul.addr %s395, 4
      %s397 = scalar_lea.vmem %s8, %s396
      %s398 = smul.u32 32, %s24
      %p399 = scmp.lt.s32.totalorder %s398, 31
      %s400 = scalar_select %p399, %s398, 31
      %s401 = smul.addr %s400, 4
      %s402 = scalar_lea.vmem %s0, %s401
      %s403 = smul.u32 32, %s24
      %p404 = scmp.lt.s32.totalorder %s25, 2
      %s405 = scalar_select %p404, %s25, 2
      %s406 = smul.addr %s405, 8
      %s407 = smul.addr %s406, 4
      %s408 = scalar_lea.vmem %s1, %s407
      %p409 = scmp.lt.s32.totalorder %s25, 2
      %s410 = scalar_select %p409, %s25, 2
      %s411 = scalar_lea.vmem %s2, %s410
      %s412 = smul.u32 32, %s24
      %p413 = scmp.lt.s32.totalorder %s412, 31
      %s414 = scalar_select %p413, %s412, 31
      %s415 = smul.addr %s414, 4
      %s416 = scalar_lea.vmem %s3, %s415
      %s417 = smul.u32 32, %s24
      %s418 = smul.u32 32, %s24
      %p419 = scmp.lt.s32.totalorder %s418, 31
      %s420 = scalar_select %p419, %s418, 31
      %s421 = smul.addr %s420, 4
      %s422 = scalar_lea.vmem %s4, %s421
      %s423 = smul.u32 32, %s24
      %s424 = smul.u32 32, %s24
      %p425 = scmp.lt.s32.totalorder %s424, 31
      %s426 = scalar_select %p425, %s424, 31
      %s427 = smul.addr %s426, 4
      %s428 = scalar_lea.vmem %s5, %s427
      %s429 = smul.u32 32, %s24
      %s430 = smul.u32 32, %s24
      %p431 = scmp.lt.s32.totalorder %s430, 31
      %s432 = scalar_select %p431, %s430, 31
      %s433 = smul.addr %s432, 4
      %s434 = scalar_lea.vmem %s6, %s433
      %s435 = smul.u32 32, %s24
      %s436 = smul.u32 32, %s24
      %p437 = scmp.lt.s32.totalorder %s436, 31
      %s438 = scalar_select %p437, %s436, 31
      %s439 = smul.addr %s438, 4
      %s440 = scalar_lea.vmem %s7, %s439
      %s441 = smul.u32 32, %s24
      %s442 = smul.u32 32, %s24
      %p443 = scmp.lt.s32.totalorder %s442, 31
      %s444 = scalar_select %p443, %s442, 31
      %s445 = smul.addr %s444, 4
      %s446 = scalar_lea.vmem %s8, %s445
      %s447 = smul.u32 32, %s24
      %v449 = vld [vmem:[%s402] sm:$0xf]
      %v450 = vld [vmem:[%s402 + $0x4] sm:$0xf]
      %v451 = vld [vmem:[%s402 + $0x8] sm:$0xf]
      %v452 = vld [vmem:[%s402 + $0xc] sm:$0xf]
      %v453 = vld [vmem:[%s402 + $0x10] sm:$0xf]
      %v454 = vld [vmem:[%s402 + $0x14] sm:$0xf]
      %v455 = vld [vmem:[%s402 + $0x18] sm:$0xf]
      %v456 = vld [vmem:[%s402 + $0x1c] sm:$0xf]
      %v457 = vld [vmem:[%s402 + $0x20] sm:$0xf]
      %v458 = vld [vmem:[%s402 + $0x24] sm:$0xf]
      %v459 = vld [vmem:[%s402 + $0x28] sm:$0xf]
      %v460 = vld [vmem:[%s402 + $0x2c] sm:$0xf]
      %v461 = vld [vmem:[%s402 + $0x30] sm:$0xf]
      %v462 = vld [vmem:[%s402 + $0x34] sm:$0xf]
      %v463 = vld [vmem:[%s402 + $0x38] sm:$0xf]
      %v464 = vld [vmem:[%s402 + $0x3c] sm:$0xf]
      %v465 = vld [vmem:[%s402 + $0x40] sm:$0xf]
      %v466 = vld [vmem:[%s402 + $0x44] sm:$0xf]
      %v467 = vld [vmem:[%s402 + $0x48] sm:$0xf]
      %v468 = vld [vmem:[%s402 + $0x4c] sm:$0xf]
      %v469 = vld [vmem:[%s402 + $0x50] sm:$0xf]
      %v470 = vld [vmem:[%s402 + $0x54] sm:$0xf]
      %v471 = vld [vmem:[%s402 + $0x58] sm:$0xf]
      %v472 = vld [vmem:[%s402 + $0x5c] sm:$0xf]
      %v473 = vld [vmem:[%s402 + $0x60] sm:$0xf]
      %v474 = vld [vmem:[%s402 + $0x64] sm:$0xf]
      %v475 = vld [vmem:[%s402 + $0x68] sm:$0xf]
      %v476 = vld [vmem:[%s402 + $0x6c] sm:$0xf]
      %v477 = vld [vmem:[%s402 + $0x70] sm:$0xf]
      %v478 = vld [vmem:[%s402 + $0x74] sm:$0xf]
      %v479 = vld [vmem:[%s402 + $0x78] sm:$0xf]
      %v480 = vld [vmem:[%s402 + $0x7c] sm:$0xf]
      %v481 = vld [vmem:[%s408] sm:$0xf]
      %v482 = vld [vmem:[%s408 + $0x4] sm:$0xf]
      %v483 = vld [vmem:[%s408 + $0x8] sm:$0xf]
      %v484 = vld [vmem:[%s408 + $0xc] sm:$0xf]
      %v485 = vld [vmem:[%s408 + $0x10] sm:$0xf]
      %v486 = vld [vmem:[%s408 + $0x14] sm:$0xf]
      %v487 = vld [vmem:[%s408 + $0x18] sm:$0xf]
      %v488 = vld [vmem:[%s408 + $0x1c] sm:$0xf]
      %v489 = vld [vmem:[%s411] sm:$0x1]
      %v490 = vunpack.c.l.bf16 %v489
      %v491 = vlaneseq
      %v492 = vshrl.u32 %v491, 7
      %v493 = vsub.s32 0, %v492
      %v494 = vrot.slane %v490, %v493
      %v527 = vunpack.c.l.b16 %v449
      %v528 = vunpack.c.l.b16 %v450
      %v529 = vunpack.c.l.b16 %v451
      %v530 = vunpack.c.l.b16 %v452
      %v531 = vunpack.c.l.b16 %v453
      %v532 = vunpack.c.l.b16 %v454
      %v533 = vunpack.c.l.b16 %v455
      %v534 = vunpack.c.l.b16 %v456
      %v535 = vunpack.c.l.b16 %v457
      %v536 = vunpack.c.l.b16 %v458
      %v537 = vunpack.c.l.b16 %v459
      %v538 = vunpack.c.l.b16 %v460
      %v539 = vunpack.c.l.b16 %v461
      %v540 = vunpack.c.l.b16 %v462
      %v541 = vunpack.c.l.b16 %v463
      %v542 = vunpack.c.l.b16 %v464
      %v543 = vunpack.c.l.b16 %v465
      %v544 = vunpack.c.l.b16 %v466
      %v545 = vunpack.c.l.b16 %v467
      %v546 = vunpack.c.l.b16 %v468
      %v547 = vunpack.c.l.b16 %v469
      %v548 = vunpack.c.l.b16 %v470
      %v549 = vunpack.c.l.b16 %v471
      %v550 = vunpack.c.l.b16 %v472
      %v551 = vunpack.c.l.b16 %v473
      %v552 = vunpack.c.l.b16 %v474
      %v553 = vunpack.c.l.b16 %v475
      %v554 = vunpack.c.l.b16 %v476
      %v555 = vunpack.c.l.b16 %v477
      %v556 = vunpack.c.l.b16 %v478
      %v557 = vunpack.c.l.b16 %v479
      %v558 = vunpack.c.l.b16 %v480
      %v559 = vpack.c.b16 %v528, %v527
      %v560 = vpack.c.b16 %v530, %v529
      %v561 = vpack.c.b16 %v532, %v531
      %v562 = vpack.c.b16 %v534, %v533
      %v563 = vpack.c.b16 %v536, %v535
      %v564 = vpack.c.b16 %v538, %v537
      %v565 = vpack.c.b16 %v540, %v539
      %v566 = vpack.c.b16 %v542, %v541
      %v567 = vpack.c.b16 %v544, %v543
      %v568 = vpack.c.b16 %v546, %v545
      %v569 = vpack.c.b16 %v548, %v547
      %v570 = vpack.c.b16 %v550, %v549
      %v571 = vpack.c.b16 %v552, %v551
      %v572 = vpack.c.b16 %v554, %v553
      %v573 = vpack.c.b16 %v556, %v555
      %v574 = vpack.c.b16 %v558, %v557
      %v583 = vunpack.c.l.b16 %v481
      %v584 = vunpack.c.l.b16 %v482
      %v585 = vunpack.c.l.b16 %v483
      %v586 = vunpack.c.l.b16 %v484
      %v587 = vunpack.c.l.b16 %v485
      %v588 = vunpack.c.l.b16 %v486
      %v589 = vunpack.c.l.b16 %v487
      %v590 = vunpack.c.l.b16 %v488
      %v591 = vpack.c.b16 %v584, %v583
      %v592 = vpack.c.b16 %v586, %v585
      %v593 = vpack.c.b16 %v588, %v587
      %v594 = vpack.c.b16 %v590, %v589
      %vm599 = vcmask 523264
      %v601 = vsel %vm599, %v559, 0
      %v604 = vsel %vm599, %v560, 0
      %v607 = vsel %vm599, %v561, 0
      %v610 = vsel %vm599, %v562, 0
      %v613 = vsel %vm599, %v563, 0
      %v616 = vsel %vm599, %v564, 0
      %v619 = vsel %vm599, %v565, 0
      %v622 = vsel %vm599, %v566, 0
      %v625 = vsel %vm599, %v567, 0
      %v628 = vsel %vm599, %v568, 0
      %v631 = vsel %vm599, %v569, 0
      %v634 = vsel %vm599, %v570, 0
      %v637 = vsel %vm599, %v571, 0
      %v640 = vsel %vm599, %v572, 0
      %v643 = vsel %vm599, %v573, 0
      %v646 = vsel %vm599, %v574, 0
      %648 = vmatprep.subr.bf16.mxu0 0
      %649 = vmatpush1.bf16.msra.mxu0 0
      %650 = vmatprep.subr.bf16.mxu0 0
      %651 = vmatpush1.bf16.msra.mxu0 0
      %652 = vmatprep.subr.bf16.mxu0 0
      %653 = vmatpush1.bf16.msra.mxu0 0
      %654 = vmatprep.subr.bf16.mxu0 0
      %655 = vmatpush1.bf16.msra.mxu0 0
      %656 = vmatprep.subr.bf16.mxu0 0
      %657 = vmatpush1.bf16.msra.mxu0 %v594
      %658 = vmatprep.subr.bf16.mxu0 0
      %659 = vmatpush1.bf16.msra.mxu0 %v593
      %660 = vmatprep.subr.bf16.mxu0 0
      %661 = vmatpush1.bf16.msra.mxu0 %v592
      %662 = vmatprep.subr.bf16.mxu0 0
      %663 = vmatpush1.bf16.msra.mxu0 %v591
      %664 = vmatprep.subr.bf16.mxu0 0
      %665 = vmatpush2.bf16.msra.mxu0 0
      %666 = vmatprep.subr.bf16.mxu0 0
      %667 = vmatpush2.bf16.msra.mxu0 0
      %668 = vmatprep.subr.bf16.mxu0 0
      %669 = vmatpush2.bf16.msra.mxu0 0
      %670 = vmatprep.subr.bf16.mxu0 0
      %671 = vmatpush2.bf16.msra.mxu0 0
      %672 = vmatprep.subr.bf16.mxu0 0
      %673 = vmatpush2.bf16.msra.mxu0 0
      %674 = vmatprep.subr.bf16.mxu0 0
      %675 = vmatpush2.bf16.msra.mxu0 0
      %676 = vmatprep.subr.bf16.mxu0 0
      %677 = vmatpush2.bf16.msra.mxu0 0
      %678 = vmatprep.subr.bf16.mxu0 0
      %679 = vmatpush2.bf16.msra.mxu0 0
      %680 = vmatprep.mubr.bf16.mxu0 0
      %681 = vmatmul.mubr.bf16.gmra.mxu0 %v601
      %v682 = vpop.f32.mrf.mxu0
      %v683 = vadd.f32 %v494, %v682
      %v684 = vpop.f32.mrf.mxu0
      %v685 = vpop.f32.mrf.mxu0
      %v686 = vadd.f32 %v494, %v685
      %v687 = vpop.f32.mrf.mxu0
      %688 = vmatprep.mubr.bf16.mxu0 0
      %689 = vmatmul.mubr.bf16.gmra.mxu0 %v604
      %v690 = vpop.f32.mrf.mxu0
      %v691 = vadd.f32 %v494, %v690
      %v692 = vpop.f32.mrf.mxu0
      %v693 = vpop.f32.mrf.mxu0
      %v694 = vadd.f32 %v494, %v693
      %v695 = vpop.f32.mrf.mxu0
      %696 = vmatprep.mubr.bf16.mxu0 0
      %697 = vmatmul.mubr.bf16.gmra.mxu0 %v607
      %v698 = vpop.f32.mrf.mxu0
      %v699 = vadd.f32 %v494, %v698
      %v700 = vpop.f32.mrf.mxu0
      %v701 = vpop.f32.mrf.mxu0
      %v702 = vadd.f32 %v494, %v701
      %v703 = vpop.f32.mrf.mxu0
      %704 = vmatprep.mubr.bf16.mxu0 0
      %705 = vmatmul.mubr.bf16.gmra.mxu0 %v610
      %v706 = vpop.f32.mrf.mxu0
      %v707 = vadd.f32 %v494, %v706
      %v708 = vpop.f32.mrf.mxu0
      %v709 = vpop.f32.mrf.mxu0
      %v710 = vadd.f32 %v494, %v709
      %v711 = vpop.f32.mrf.mxu0
      %712 = vmatprep.mubr.bf16.mxu0 0
      %713 = vmatmul.mubr.bf16.gmra.mxu0 %v613
      %v714 = vpop.f32.mrf.mxu0
      %v715 = vadd.f32 %v494, %v714
      %v716 = vpop.f32.mrf.mxu0
      %v717 = vpop.f32.mrf.mxu0
      %v718 = vadd.f32 %v494, %v717
      %v719 = vpop.f32.mrf.mxu0
      %720 = vmatprep.mubr.bf16.mxu0 0
      %721 = vmatmul.mubr.bf16.gmra.mxu0 %v616
      %v722 = vpop.f32.mrf.mxu0
      %v723 = vadd.f32 %v494, %v722
      %v724 = vpop.f32.mrf.mxu0
      %v725 = vpop.f32.mrf.mxu0
      %v726 = vadd.f32 %v494, %v725
      %v727 = vpop.f32.mrf.mxu0
      %728 = vmatprep.mubr.bf16.mxu0 0
      %729 = vmatmul.mubr.bf16.gmra.mxu0 %v619
      %v730 = vpop.f32.mrf.mxu0
      %v731 = vadd.f32 %v494, %v730
      %v732 = vpop.f32.mrf.mxu0
      %v733 = vpop.f32.mrf.mxu0
      %v734 = vadd.f32 %v494, %v733
      %v735 = vpop.f32.mrf.mxu0
      %736 = vmatprep.mubr.bf16.mxu0 0
      %737 = vmatmul.mubr.bf16.gmra.mxu0 %v622
      %v738 = vpop.f32.mrf.mxu0
      %v739 = vadd.f32 %v494, %v738
      %v740 = vpop.f32.mrf.mxu0
      %v741 = vpop.f32.mrf.mxu0
      %v742 = vadd.f32 %v494, %v741
      %v743 = vpop.f32.mrf.mxu0
      %744 = vmatprep.mubr.bf16.mxu0 0
      %745 = vmatmul.mubr.bf16.gmra.mxu0 %v625
      %v746 = vpop.f32.mrf.mxu0
      %v747 = vadd.f32 %v494, %v746
      %v748 = vpop.f32.mrf.mxu0
      %v749 = vpop.f32.mrf.mxu0
      %v750 = vadd.f32 %v494, %v749
      %v751 = vpop.f32.mrf.mxu0
      %752 = vmatprep.mubr.bf16.mxu0 0
      %753 = vmatmul.mubr.bf16.gmra.mxu0 %v628
      %v754 = vpop.f32.mrf.mxu0
      %v755 = vadd.f32 %v494, %v754
      %v756 = vpop.f32.mrf.mxu0
      %v757 = vpop.f32.mrf.mxu0
      %v758 = vadd.f32 %v494, %v757
      %v759 = vpop.f32.mrf.mxu0
      %760 = vmatprep.mubr.bf16.mxu0 0
      %761 = vmatmul.mubr.bf16.gmra.mxu0 %v631
      %v762 = vpop.f32.mrf.mxu0
      %v763 = vadd.f32 %v494, %v762
      %v764 = vpop.f32.mrf.mxu0
      %v765 = vpop.f32.mrf.mxu0
      %v766 = vadd.f32 %v494, %v765
      %v767 = vpop.f32.mrf.mxu0
      %768 = vmatprep.mubr.bf16.mxu0 0
      %769 = vmatmul.mubr.bf16.gmra.mxu0 %v634
      %v770 = vpop.f32.mrf.mxu0
      %v771 = vadd.f32 %v494, %v770
      %v772 = vpop.f32.mrf.mxu0
      %v773 = vpop.f32.mrf.mxu0
      %v774 = vadd.f32 %v494, %v773
      %v775 = vpop.f32.mrf.mxu0
      %776 = vmatprep.mubr.bf16.mxu0 0
      %777 = vmatmul.mubr.bf16.gmra.mxu0 %v637
      %v778 = vpop.f32.mrf.mxu0
      %v779 = vadd.f32 %v494, %v778
      %v780 = vpop.f32.mrf.mxu0
      %v781 = vpop.f32.mrf.mxu0
      %v782 = vadd.f32 %v494, %v781
      %v783 = vpop.f32.mrf.mxu0
      %784 = vmatprep.mubr.bf16.mxu0 0
      %785 = vmatmul.mubr.bf16.gmra.mxu0 %v640
      %v786 = vpop.f32.mrf.mxu0
      %v787 = vadd.f32 %v494, %v786
      %v788 = vpop.f32.mrf.mxu0
      %v789 = vpop.f32.mrf.mxu0
      %v790 = vadd.f32 %v494, %v789
      %v791 = vpop.f32.mrf.mxu0
      %792 = vmatprep.mubr.bf16.mxu0 0
      %793 = vmatmul.mubr.bf16.gmra.mxu0 %v643
      %v794 = vpop.f32.mrf.mxu0
      %v795 = vadd.f32 %v494, %v794
      %v796 = vpop.f32.mrf.mxu0
      %v797 = vpop.f32.mrf.mxu0
      %v798 = vadd.f32 %v494, %v797
      %v799 = vpop.f32.mrf.mxu0
      %800 = vmatprep.mubr.bf16.mxu0 0
      %801 = vmatmul.mubr.bf16.gmra.mxu0 %v646
      %v802 = vpop.f32.mrf.mxu0
      %v803 = vadd.f32 %v494, %v802
      %v804 = vpop.f32.mrf.mxu0
      %v805 = vpop.f32.mrf.mxu0
      %v806 = vadd.f32 %v494, %v805
      %v807 = vpop.f32.mrf.mxu0
      %808 = vdwg.mxu0
      %vm809 = vcmask 1048064
      %810 = vrot.lane.b32.xlu0 %v683, 64
      %v811 = vpop.permute.xlu0 %810
      %v812 = vsel %vm809, %v811, %v683
      %813 = vrot.lane.b32.xlu0 %v686, 64
      %v814 = vpop.permute.xlu0 %813
      %v815 = vsel %vm809, %v814, %v686
      %816 = vrot.lane.b32.xlu0 %v691, 64
      %v817 = vpop.permute.xlu0 %816
      %v818 = vsel %vm809, %v817, %v691
      %819 = vrot.lane.b32.xlu0 %v694, 64
      %v820 = vpop.permute.xlu0 %819
      %v821 = vsel %vm809, %v820, %v694
      %822 = vrot.lane.b32.xlu0 %v699, 64
      %v823 = vpop.permute.xlu0 %822
      %v824 = vsel %vm809, %v823, %v699
      %825 = vrot.lane.b32.xlu0 %v702, 64
      %v826 = vpop.permute.xlu0 %825
      %v827 = vsel %vm809, %v826, %v702
      %828 = vrot.lane.b32.xlu0 %v707, 64
      %v829 = vpop.permute.xlu0 %828
      %v830 = vsel %vm809, %v829, %v707
      %831 = vrot.lane.b32.xlu0 %v710, 64
      %v832 = vpop.permute.xlu0 %831
      %v833 = vsel %vm809, %v832, %v710
      %834 = vrot.lane.b32.xlu0 %v715, 64
      %v835 = vpop.permute.xlu0 %834
      %v836 = vsel %vm809, %v835, %v715
      %837 = vrot.lane.b32.xlu0 %v718, 64
      %v838 = vpop.permute.xlu0 %837
      %v839 = vsel %vm809, %v838, %v718
      %840 = vrot.lane.b32.xlu0 %v723, 64
      %v841 = vpop.permute.xlu0 %840
      %v842 = vsel %vm809, %v841, %v723
      %843 = vrot.lane.b32.xlu0 %v726, 64
      %v844 = vpop.permute.xlu0 %843
      %v845 = vsel %vm809, %v844, %v726
      %846 = vrot.lane.b32.xlu0 %v731, 64
      %v847 = vpop.permute.xlu0 %846
      %v848 = vsel %vm809, %v847, %v731
      %849 = vrot.lane.b32.xlu0 %v734, 64
      %v850 = vpop.permute.xlu0 %849
      %v851 = vsel %vm809, %v850, %v734
      %852 = vrot.lane.b32.xlu0 %v739, 64
      %v853 = vpop.permute.xlu0 %852
      %v854 = vsel %vm809, %v853, %v739
      %855 = vrot.lane.b32.xlu0 %v742, 64
      %v856 = vpop.permute.xlu0 %855
      %v857 = vsel %vm809, %v856, %v742
      %858 = vrot.lane.b32.xlu0 %v747, 64
      %v859 = vpop.permute.xlu0 %858
      %v860 = vsel %vm809, %v859, %v747
      %861 = vrot.lane.b32.xlu0 %v750, 64
      %v862 = vpop.permute.xlu0 %861
      %v863 = vsel %vm809, %v862, %v750
      %864 = vrot.lane.b32.xlu0 %v755, 64
      %v865 = vpop.permute.xlu0 %864
      %v866 = vsel %vm809, %v865, %v755
      %867 = vrot.lane.b32.xlu0 %v758, 64
      %v868 = vpop.permute.xlu0 %867
      %v869 = vsel %vm809, %v868, %v758
      %870 = vrot.lane.b32.xlu0 %v763, 64
      %v871 = vpop.permute.xlu0 %870
      %v872 = vsel %vm809, %v871, %v763
      %873 = vrot.lane.b32.xlu0 %v766, 64
      %v874 = vpop.permute.xlu0 %873
      %v875 = vsel %vm809, %v874, %v766
      %876 = vrot.lane.b32.xlu0 %v771, 64
      %v877 = vpop.permute.xlu0 %876
      %v878 = vsel %vm809, %v877, %v771
      %879 = vrot.lane.b32.xlu0 %v774, 64
      %v880 = vpop.permute.xlu0 %879
      %v881 = vsel %vm809, %v880, %v774
      %882 = vrot.lane.b32.xlu0 %v779, 64
      %v883 = vpop.permute.xlu0 %882
      %v884 = vsel %vm809, %v883, %v779
      %885 = vrot.lane.b32.xlu0 %v782, 64
      %v886 = vpop.permute.xlu0 %885
      %v887 = vsel %vm809, %v886, %v782
      %888 = vrot.lane.b32.xlu0 %v787, 64
      %v889 = vpop.permute.xlu0 %888
      %v890 = vsel %vm809, %v889, %v787
      %891 = vrot.lane.b32.xlu0 %v790, 64
      %v892 = vpop.permute.xlu0 %891
      %v893 = vsel %vm809, %v892, %v790
      %894 = vrot.lane.b32.xlu0 %v795, 64
      %v895 = vpop.permute.xlu0 %894
      %v896 = vsel %vm809, %v895, %v795
      %897 = vrot.lane.b32.xlu0 %v798, 64
      %v898 = vpop.permute.xlu0 %897
      %v899 = vsel %vm809, %v898, %v798
      %900 = vrot.lane.b32.xlu0 %v803, 64
      %v901 = vpop.permute.xlu0 %900
      %v902 = vsel %vm809, %v901, %v803
      %903 = vrot.lane.b32.xlu0 %v806, 64
      %v904 = vpop.permute.xlu0 %903
      %v905 = vsel %vm809, %v904, %v806
      %906 = vrot.lane.b32.xlu0 %v812, 64
      %v907 = vpop.permute.xlu0 %906
      %908 = vrot.lane.b32.xlu0 %v815, 64
      %v909 = vpop.permute.xlu0 %908
      %910 = vrot.lane.b32.xlu0 %v818, 64
      %v911 = vpop.permute.xlu0 %910
      %912 = vrot.lane.b32.xlu0 %v821, 64
      %v913 = vpop.permute.xlu0 %912
      %914 = vrot.lane.b32.xlu0 %v824, 64
      %v915 = vpop.permute.xlu0 %914
      %916 = vrot.lane.b32.xlu0 %v827, 64
      %v917 = vpop.permute.xlu0 %916
      %918 = vrot.lane.b32.xlu0 %v830, 64
      %v919 = vpop.permute.xlu0 %918
      %920 = vrot.lane.b32.xlu0 %v833, 64
      %v921 = vpop.permute.xlu0 %920
      %922 = vrot.lane.b32.xlu0 %v836, 64
      %v923 = vpop.permute.xlu0 %922
      %924 = vrot.lane.b32.xlu0 %v839, 64
      %v925 = vpop.permute.xlu0 %924
      %926 = vrot.lane.b32.xlu0 %v842, 64
      %v927 = vpop.permute.xlu0 %926
      %928 = vrot.lane.b32.xlu0 %v845, 64
      %v929 = vpop.permute.xlu0 %928
      %930 = vrot.lane.b32.xlu0 %v848, 64
      %v931 = vpop.permute.xlu0 %930
      %932 = vrot.lane.b32.xlu0 %v851, 64
      %v933 = vpop.permute.xlu0 %932
      %934 = vrot.lane.b32.xlu0 %v854, 64
      %v935 = vpop.permute.xlu0 %934
      %936 = vrot.lane.b32.xlu0 %v857, 64
      %v937 = vpop.permute.xlu0 %936
      %938 = vrot.lane.b32.xlu0 %v860, 64
      %v939 = vpop.permute.xlu0 %938
      %940 = vrot.lane.b32.xlu0 %v863, 64
      %v941 = vpop.permute.xlu0 %940
      %942 = vrot.lane.b32.xlu0 %v866, 64
      %v943 = vpop.permute.xlu0 %942
      %944 = vrot.lane.b32.xlu0 %v869, 64
      %v945 = vpop.permute.xlu0 %944
      %946 = vrot.lane.b32.xlu0 %v872, 64
      %v947 = vpop.permute.xlu0 %946
      %948 = vrot.lane.b32.xlu0 %v875, 64
      %v949 = vpop.permute.xlu0 %948
      %950 = vrot.lane.b32.xlu0 %v878, 64
      %v951 = vpop.permute.xlu0 %950
      %952 = vrot.lane.b32.xlu0 %v881, 64
      %v953 = vpop.permute.xlu0 %952
      %954 = vrot.lane.b32.xlu0 %v884, 64
      %v955 = vpop.permute.xlu0 %954
      %956 = vrot.lane.b32.xlu0 %v887, 64
      %v957 = vpop.permute.xlu0 %956
      %958 = vrot.lane.b32.xlu0 %v890, 64
      %v959 = vpop.permute.xlu0 %958
      %960 = vrot.lane.b32.xlu0 %v893, 64
      %v961 = vpop.permute.xlu0 %960
      %962 = vrot.lane.b32.xlu0 %v896, 64
      %v963 = vpop.permute.xlu0 %962
      %964 = vrot.lane.b32.xlu0 %v899, 64
      %v965 = vpop.permute.xlu0 %964
      %966 = vrot.lane.b32.xlu0 %v902, 64
      %v967 = vpop.permute.xlu0 %966
      %968 = vrot.lane.b32.xlu0 %v905, 64
      %v969 = vpop.permute.xlu0 %968
      %v970 = vsel %vm809, %v907, %v683
      %v971 = vsel %vm809, %v909, %v686
      %v972 = vsel %vm809, %v911, %v691
      %v973 = vsel %vm809, %v913, %v694
      %v974 = vsel %vm809, %v915, %v699
      %v975 = vsel %vm809, %v917, %v702
      %v976 = vsel %vm809, %v919, %v707
      %v977 = vsel %vm809, %v921, %v710
      %v978 = vsel %vm809, %v923, %v715
      %v979 = vsel %vm809, %v925, %v718
      %v980 = vsel %vm809, %v927, %v723
      %v981 = vsel %vm809, %v929, %v726
      %v982 = vsel %vm809, %v931, %v731
      %v983 = vsel %vm809, %v933, %v734
      %v984 = vsel %vm809, %v935, %v739
      %v985 = vsel %vm809, %v937, %v742
      %v986 = vsel %vm809, %v939, %v747
      %v987 = vsel %vm809, %v941, %v750
      %v988 = vsel %vm809, %v943, %v755
      %v989 = vsel %vm809, %v945, %v758
      %v990 = vsel %vm809, %v947, %v763
      %v991 = vsel %vm809, %v949, %v766
      %v992 = vsel %vm809, %v951, %v771
      %v993 = vsel %vm809, %v953, %v774
      %v994 = vsel %vm809, %v955, %v779
      %v995 = vsel %vm809, %v957, %v782
      %v996 = vsel %vm809, %v959, %v787
      %v997 = vsel %vm809, %v961, %v790
      %v998 = vsel %vm809, %v963, %v795
      %v999 = vsel %vm809, %v965, %v798
      %v1000 = vsel %vm809, %v967, %v803
      %v1001 = vsel %vm809, %v969, %v806
      %v1002 = vld [vmem:[%s416] sm:$0xf]
      %v1003 = vld [vmem:[%s416 + $0x4] sm:$0xf]
      %v1004 = vld [vmem:[%s416 + $0x8] sm:$0xf]
      %v1005 = vld [vmem:[%s416 + $0xc] sm:$0xf]
      %v1006 = vld [vmem:[%s416 + $0x10] sm:$0xf]
      %v1007 = vld [vmem:[%s416 + $0x14] sm:$0xf]
      %v1008 = vld [vmem:[%s416 + $0x18] sm:$0xf]
      %v1009 = vld [vmem:[%s416 + $0x1c] sm:$0xf]
      %v1010 = vld [vmem:[%s416 + $0x20] sm:$0xf]
      %v1011 = vld [vmem:[%s416 + $0x24] sm:$0xf]
      %v1012 = vld [vmem:[%s416 + $0x28] sm:$0xf]
      %v1013 = vld [vmem:[%s416 + $0x2c] sm:$0xf]
      %v1014 = vld [vmem:[%s416 + $0x30] sm:$0xf]
      %v1015 = vld [vmem:[%s416 + $0x34] sm:$0xf]
      %v1016 = vld [vmem:[%s416 + $0x38] sm:$0xf]
      %v1017 = vld [vmem:[%s416 + $0x3c] sm:$0xf]
      %v1018 = vld [vmem:[%s416 + $0x40] sm:$0xf]
      %v1019 = vld [vmem:[%s416 + $0x44] sm:$0xf]
      %v1020 = vld [vmem:[%s416 + $0x48] sm:$0xf]
      %v1021 = vld [vmem:[%s416 + $0x4c] sm:$0xf]
      %v1022 = vld [vmem:[%s416 + $0x50] sm:$0xf]
      %v1023 = vld [vmem:[%s416 + $0x54] sm:$0xf]
      %v1024 = vld [vmem:[%s416 + $0x58] sm:$0xf]
      %v1025 = vld [vmem:[%s416 + $0x5c] sm:$0xf]
      %v1026 = vld [vmem:[%s416 + $0x60] sm:$0xf]
      %v1027 = vld [vmem:[%s416 + $0x64] sm:$0xf]
      %v1028 = vld [vmem:[%s416 + $0x68] sm:$0xf]
      %v1029 = vld [vmem:[%s416 + $0x6c] sm:$0xf]
      %v1030 = vld [vmem:[%s416 + $0x70] sm:$0xf]
      %v1031 = vld [vmem:[%s416 + $0x74] sm:$0xf]
      %v1032 = vld [vmem:[%s416 + $0x78] sm:$0xf]
      %v1033 = vld [vmem:[%s416 + $0x7c] sm:$0xf]
      %v1034 = vunpack.c.l.bf16 %v1002
      %v1035 = vunpack.c.l.bf16 %v1003
      %v1036 = vunpack.c.l.bf16 %v1004
      %v1037 = vunpack.c.l.bf16 %v1005
      %v1038 = vunpack.c.l.bf16 %v1006
      %v1039 = vunpack.c.l.bf16 %v1007
      %v1040 = vunpack.c.l.bf16 %v1008
      %v1041 = vunpack.c.l.bf16 %v1009
      %v1042 = vunpack.c.l.bf16 %v1010
      %v1043 = vunpack.c.l.bf16 %v1011
      %v1044 = vunpack.c.l.bf16 %v1012
      %v1045 = vunpack.c.l.bf16 %v1013
      %v1046 = vunpack.c.l.bf16 %v1014
      %v1047 = vunpack.c.l.bf16 %v1015
      %v1048 = vunpack.c.l.bf16 %v1016
      %v1049 = vunpack.c.l.bf16 %v1017
      %v1050 = vunpack.c.l.bf16 %v1018
      %v1051 = vunpack.c.l.bf16 %v1019
      %v1052 = vunpack.c.l.bf16 %v1020
      %v1053 = vunpack.c.l.bf16 %v1021
      %v1054 = vunpack.c.l.bf16 %v1022
      %v1055 = vunpack.c.l.bf16 %v1023
      %v1056 = vunpack.c.l.bf16 %v1024
      %v1057 = vunpack.c.l.bf16 %v1025
      %v1058 = vunpack.c.l.bf16 %v1026
      %v1059 = vunpack.c.l.bf16 %v1027
      %v1060 = vunpack.c.l.bf16 %v1028
      %v1061 = vunpack.c.l.bf16 %v1029
      %v1062 = vunpack.c.l.bf16 %v1030
      %v1063 = vunpack.c.l.bf16 %v1031
      %v1064 = vunpack.c.l.bf16 %v1032
      %v1065 = vunpack.c.l.bf16 %v1033
      %v1066 = vmul.f32 %v683, %v1034
      %v1067 = vmul.f32 %v686, %v1035
      %v1068 = vmul.f32 %v691, %v1036
      %v1069 = vmul.f32 %v694, %v1037
      %v1070 = vmul.f32 %v699, %v1038
      %v1071 = vmul.f32 %v702, %v1039
      %v1072 = vmul.f32 %v707, %v1040
      %v1073 = vmul.f32 %v710, %v1041
      %v1074 = vmul.f32 %v715, %v1042
      %v1075 = vmul.f32 %v718, %v1043
      %v1076 = vmul.f32 %v723, %v1044
      %v1077 = vmul.f32 %v726, %v1045
      %v1078 = vmul.f32 %v731, %v1046
      %v1079 = vmul.f32 %v734, %v1047
      %v1080 = vmul.f32 %v739, %v1048
      %v1081 = vmul.f32 %v742, %v1049
      %v1082 = vmul.f32 %v747, %v1050
      %v1083 = vmul.f32 %v750, %v1051
      %v1084 = vmul.f32 %v755, %v1052
      %v1085 = vmul.f32 %v758, %v1053
      %v1086 = vmul.f32 %v763, %v1054
      %v1087 = vmul.f32 %v766, %v1055
      %v1088 = vmul.f32 %v771, %v1056
      %v1089 = vmul.f32 %v774, %v1057
      %v1090 = vmul.f32 %v779, %v1058
      %v1091 = vmul.f32 %v782, %v1059
      %v1092 = vmul.f32 %v787, %v1060
      %v1093 = vmul.f32 %v790, %v1061
      %v1094 = vmul.f32 %v795, %v1062
      %v1095 = vmul.f32 %v798, %v1063
      %v1096 = vmul.f32 %v803, %v1064
      %v1097 = vmul.f32 %v806, %v1065
      %v1098 = vld [vmem:[%s422] sm:$0xf]
      %v1099 = vld [vmem:[%s422 + $0x4] sm:$0xf]
      %v1100 = vld [vmem:[%s422 + $0x8] sm:$0xf]
      %v1101 = vld [vmem:[%s422 + $0xc] sm:$0xf]
      %v1102 = vld [vmem:[%s422 + $0x10] sm:$0xf]
      %v1103 = vld [vmem:[%s422 + $0x14] sm:$0xf]
      %v1104 = vld [vmem:[%s422 + $0x18] sm:$0xf]
      %v1105 = vld [vmem:[%s422 + $0x1c] sm:$0xf]
      %v1106 = vld [vmem:[%s422 + $0x20] sm:$0xf]
      %v1107 = vld [vmem:[%s422 + $0x24] sm:$0xf]
      %v1108 = vld [vmem:[%s422 + $0x28] sm:$0xf]
      %v1109 = vld [vmem:[%s422 + $0x2c] sm:$0xf]
      %v1110 = vld [vmem:[%s422 + $0x30] sm:$0xf]
      %v1111 = vld [vmem:[%s422 + $0x34] sm:$0xf]
      %v1112 = vld [vmem:[%s422 + $0x38] sm:$0xf]
      %v1113 = vld [vmem:[%s422 + $0x3c] sm:$0xf]
      %v1114 = vld [vmem:[%s422 + $0x40] sm:$0xf]
      %v1115 = vld [vmem:[%s422 + $0x44] sm:$0xf]
      %v1116 = vld [vmem:[%s422 + $0x48] sm:$0xf]
      %v1117 = vld [vmem:[%s422 + $0x4c] sm:$0xf]
      %v1118 = vld [vmem:[%s422 + $0x50] sm:$0xf]
      %v1119 = vld [vmem:[%s422 + $0x54] sm:$0xf]
      %v1120 = vld [vmem:[%s422 + $0x58] sm:$0xf]
      %v1121 = vld [vmem:[%s422 + $0x5c] sm:$0xf]
      %v1122 = vld [vmem:[%s422 + $0x60] sm:$0xf]
      %v1123 = vld [vmem:[%s422 + $0x64] sm:$0xf]
      %v1124 = vld [vmem:[%s422 + $0x68] sm:$0xf]
      %v1125 = vld [vmem:[%s422 + $0x6c] sm:$0xf]
      %v1126 = vld [vmem:[%s422 + $0x70] sm:$0xf]
      %v1127 = vld [vmem:[%s422 + $0x74] sm:$0xf]
      %v1128 = vld [vmem:[%s422 + $0x78] sm:$0xf]
      %v1129 = vld [vmem:[%s422 + $0x7c] sm:$0xf]
      %v1130 = vunpack.c.l.bf16 %v1098
      %v1131 = vunpack.c.l.bf16 %v1099
      %v1132 = vunpack.c.l.bf16 %v1100
      %v1133 = vunpack.c.l.bf16 %v1101
      %v1134 = vunpack.c.l.bf16 %v1102
      %v1135 = vunpack.c.l.bf16 %v1103
      %v1136 = vunpack.c.l.bf16 %v1104
      %v1137 = vunpack.c.l.bf16 %v1105
      %v1138 = vunpack.c.l.bf16 %v1106
      %v1139 = vunpack.c.l.bf16 %v1107
      %v1140 = vunpack.c.l.bf16 %v1108
      %v1141 = vunpack.c.l.bf16 %v1109
      %v1142 = vunpack.c.l.bf16 %v1110
      %v1143 = vunpack.c.l.bf16 %v1111
      %v1144 = vunpack.c.l.bf16 %v1112
      %v1145 = vunpack.c.l.bf16 %v1113
      %v1146 = vunpack.c.l.bf16 %v1114
      %v1147 = vunpack.c.l.bf16 %v1115
      %v1148 = vunpack.c.l.bf16 %v1116
      %v1149 = vunpack.c.l.bf16 %v1117
      %v1150 = vunpack.c.l.bf16 %v1118
      %v1151 = vunpack.c.l.bf16 %v1119
      %v1152 = vunpack.c.l.bf16 %v1120
      %v1153 = vunpack.c.l.bf16 %v1121
      %v1154 = vunpack.c.l.bf16 %v1122
      %v1155 = vunpack.c.l.bf16 %v1123
      %v1156 = vunpack.c.l.bf16 %v1124
      %v1157 = vunpack.c.l.bf16 %v1125
      %v1158 = vunpack.c.l.bf16 %v1126
      %v1159 = vunpack.c.l.bf16 %v1127
      %v1160 = vunpack.c.l.bf16 %v1128
      %v1161 = vunpack.c.l.bf16 %v1129
      %1194 = vrot.lane.b32.xlu0 %v1130, 16
      %v1195 = vpop.permute.xlu0 %1194
      %1196 = vrot.lane.b32.xlu0 %v1131, 16
      %v1197 = vpop.permute.xlu0 %1196
      %1198 = vrot.lane.b32.xlu0 %v1132, 16
      %v1199 = vpop.permute.xlu0 %1198
      %1200 = vrot.lane.b32.xlu0 %v1133, 16
      %v1201 = vpop.permute.xlu0 %1200
      %1202 = vrot.lane.b32.xlu0 %v1134, 16
      %v1203 = vpop.permute.xlu0 %1202
      %1204 = vrot.lane.b32.xlu0 %v1135, 16
      %v1205 = vpop.permute.xlu0 %1204
      %1206 = vrot.lane.b32.xlu0 %v1136, 16
      %v1207 = vpop.permute.xlu0 %1206
      %1208 = vrot.lane.b32.xlu0 %v1137, 16
      %v1209 = vpop.permute.xlu0 %1208
      %1210 = vrot.lane.b32.xlu0 %v1138, 16
      %v1211 = vpop.permute.xlu0 %1210
      %1212 = vrot.lane.b32.xlu0 %v1139, 16
      %v1213 = vpop.permute.xlu0 %1212
      %1214 = vrot.lane.b32.xlu0 %v1140, 16
      %v1215 = vpop.permute.xlu0 %1214
      %1216 = vrot.lane.b32.xlu0 %v1141, 16
      %v1217 = vpop.permute.xlu0 %1216
      %1218 = vrot.lane.b32.xlu0 %v1142, 16
      %v1219 = vpop.permute.xlu0 %1218
      %1220 = vrot.lane.b32.xlu0 %v1143, 16
      %v1221 = vpop.permute.xlu0 %1220
      %1222 = vrot.lane.b32.xlu0 %v1144, 16
      %v1223 = vpop.permute.xlu0 %1222
      %1224 = vrot.lane.b32.xlu0 %v1145, 16
      %v1225 = vpop.permute.xlu0 %1224
      %1226 = vrot.lane.b32.xlu0 %v1146, 16
      %v1227 = vpop.permute.xlu0 %1226
      %1228 = vrot.lane.b32.xlu0 %v1147, 16
      %v1229 = vpop.permute.xlu0 %1228
      %1230 = vrot.lane.b32.xlu0 %v1148, 16
      %v1231 = vpop.permute.xlu0 %1230
      %1232 = vrot.lane.b32.xlu0 %v1149, 16
      %v1233 = vpop.permute.xlu0 %1232
      %1234 = vrot.lane.b32.xlu0 %v1150, 16
      %v1235 = vpop.permute.xlu0 %1234
      %1236 = vrot.lane.b32.xlu0 %v1151, 16
      %v1237 = vpop.permute.xlu0 %1236
      %1238 = vrot.lane.b32.xlu0 %v1152, 16
      %v1239 = vpop.permute.xlu0 %1238
      %1240 = vrot.lane.b32.xlu0 %v1153, 16
      %v1241 = vpop.permute.xlu0 %1240
      %1242 = vrot.lane.b32.xlu0 %v1154, 16
      %v1243 = vpop.permute.xlu0 %1242
      %1244 = vrot.lane.b32.xlu0 %v1155, 16
      %v1245 = vpop.permute.xlu0 %1244
      %1246 = vrot.lane.b32.xlu0 %v1156, 16
      %v1247 = vpop.permute.xlu0 %1246
      %1248 = vrot.lane.b32.xlu0 %v1157, 16
      %v1249 = vpop.permute.xlu0 %1248
      %1250 = vrot.lane.b32.xlu0 %v1158, 16
      %v1251 = vpop.permute.xlu0 %1250
      %1252 = vrot.lane.b32.xlu0 %v1159, 16
      %v1253 = vpop.permute.xlu0 %1252
      %1254 = vrot.lane.b32.xlu0 %v1160, 16
      %v1255 = vpop.permute.xlu0 %1254
      %1256 = vrot.lane.b32.xlu0 %v1161, 16
      %v1257 = vpop.permute.xlu0 %1256
      %v1290 = vmul.f32 %v970, %v1195
      %v1291 = vmul.f32 %v971, %v1197
      %v1292 = vmul.f32 %v972, %v1199
      %v1293 = vmul.f32 %v973, %v1201
      %v1294 = vmul.f32 %v974, %v1203
      %v1295 = vmul.f32 %v975, %v1205
      %v1296 = vmul.f32 %v976, %v1207
      %v1297 = vmul.f32 %v977, %v1209
      %v1298 = vmul.f32 %v978, %v1211
      %v1299 = vmul.f32 %v979, %v1213
      %v1300 = vmul.f32 %v980, %v1215
      %v1301 = vmul.f32 %v981, %v1217
      %v1302 = vmul.f32 %v982, %v1219
      %v1303 = vmul.f32 %v983, %v1221
      %v1304 = vmul.f32 %v984, %v1223
      %v1305 = vmul.f32 %v985, %v1225
      %v1306 = vmul.f32 %v986, %v1227
      %v1307 = vmul.f32 %v987, %v1229
      %v1308 = vmul.f32 %v988, %v1231
      %v1309 = vmul.f32 %v989, %v1233
      %v1310 = vmul.f32 %v990, %v1235
      %v1311 = vmul.f32 %v991, %v1237
      %v1312 = vmul.f32 %v992, %v1239
      %v1313 = vmul.f32 %v993, %v1241
      %v1314 = vmul.f32 %v994, %v1243
      %v1315 = vmul.f32 %v995, %v1245
      %v1316 = vmul.f32 %v996, %v1247
      %v1317 = vmul.f32 %v997, %v1249
      %v1318 = vmul.f32 %v998, %v1251
      %v1319 = vmul.f32 %v999, %v1253
      %v1320 = vmul.f32 %v1000, %v1255
      %v1321 = vmul.f32 %v1001, %v1257
      %1354 = vrot.lane.b32.xlu0 %v1290, 112
      %v1355 = vpop.permute.xlu0 %1354
      %1356 = vrot.lane.b32.xlu0 %v1291, 112
      %v1357 = vpop.permute.xlu0 %1356
      %1358 = vrot.lane.b32.xlu0 %v1292, 112
      %v1359 = vpop.permute.xlu0 %1358
      %1360 = vrot.lane.b32.xlu0 %v1293, 112
      %v1361 = vpop.permute.xlu0 %1360
      %1362 = vrot.lane.b32.xlu0 %v1294, 112
      %v1363 = vpop.permute.xlu0 %1362
      %1364 = vrot.lane.b32.xlu0 %v1295, 112
      %v1365 = vpop.permute.xlu0 %1364
      %1366 = vrot.lane.b32.xlu0 %v1296, 112
      %v1367 = vpop.permute.xlu0 %1366
      %1368 = vrot.lane.b32.xlu0 %v1297, 112
      %v1369 = vpop.permute.xlu0 %1368
      %1370 = vrot.lane.b32.xlu0 %v1298, 112
      %v1371 = vpop.permute.xlu0 %1370
      %1372 = vrot.lane.b32.xlu0 %v1299, 112
      %v1373 = vpop.permute.xlu0 %1372
      %1374 = vrot.lane.b32.xlu0 %v1300, 112
      %v1375 = vpop.permute.xlu0 %1374
      %1376 = vrot.lane.b32.xlu0 %v1301, 112
      %v1377 = vpop.permute.xlu0 %1376
      %1378 = vrot.lane.b32.xlu0 %v1302, 112
      %v1379 = vpop.permute.xlu0 %1378
      %1380 = vrot.lane.b32.xlu0 %v1303, 112
      %v1381 = vpop.permute.xlu0 %1380
      %1382 = vrot.lane.b32.xlu0 %v1304, 112
      %v1383 = vpop.permute.xlu0 %1382
      %1384 = vrot.lane.b32.xlu0 %v1305, 112
      %v1385 = vpop.permute.xlu0 %1384
      %1386 = vrot.lane.b32.xlu0 %v1306, 112
      %v1387 = vpop.permute.xlu0 %1386
      %1388 = vrot.lane.b32.xlu0 %v1307, 112
      %v1389 = vpop.permute.xlu0 %1388
      %1390 = vrot.lane.b32.xlu0 %v1308, 112
      %v1391 = vpop.permute.xlu0 %1390
      %1392 = vrot.lane.b32.xlu0 %v1309, 112
      %v1393 = vpop.permute.xlu0 %1392
      %1394 = vrot.lane.b32.xlu0 %v1310, 112
      %v1395 = vpop.permute.xlu0 %1394
      %1396 = vrot.lane.b32.xlu0 %v1311, 112
      %v1397 = vpop.permute.xlu0 %1396
      %1398 = vrot.lane.b32.xlu0 %v1312, 112
      %v1399 = vpop.permute.xlu0 %1398
      %1400 = vrot.lane.b32.xlu0 %v1313, 112
      %v1401 = vpop.permute.xlu0 %1400
      %1402 = vrot.lane.b32.xlu0 %v1314, 112
      %v1403 = vpop.permute.xlu0 %1402
      %1404 = vrot.lane.b32.xlu0 %v1315, 112
      %v1405 = vpop.permute.xlu0 %1404
      %1406 = vrot.lane.b32.xlu0 %v1316, 112
      %v1407 = vpop.permute.xlu0 %1406
      %1408 = vrot.lane.b32.xlu0 %v1317, 112
      %v1409 = vpop.permute.xlu0 %1408
      %1410 = vrot.lane.b32.xlu0 %v1318, 112
      %v1411 = vpop.permute.xlu0 %1410
      %1412 = vrot.lane.b32.xlu0 %v1319, 112
      %v1413 = vpop.permute.xlu0 %1412
      %1414 = vrot.lane.b32.xlu0 %v1320, 112
      %v1415 = vpop.permute.xlu0 %1414
      %1416 = vrot.lane.b32.xlu0 %v1321, 112
      %v1417 = vpop.permute.xlu0 %1416
      %v1450 = vadd.f32 %v1066, %v1355
      %v1451 = vadd.f32 %v1067, %v1357
      %v1452 = vadd.f32 %v1068, %v1359
      %v1453 = vadd.f32 %v1069, %v1361
      %v1454 = vadd.f32 %v1070, %v1363
      %v1455 = vadd.f32 %v1071, %v1365
      %v1456 = vadd.f32 %v1072, %v1367
      %v1457 = vadd.f32 %v1073, %v1369
      %v1458 = vadd.f32 %v1074, %v1371
      %v1459 = vadd.f32 %v1075, %v1373
      %v1460 = vadd.f32 %v1076, %v1375
      %v1461 = vadd.f32 %v1077, %v1377
      %v1462 = vadd.f32 %v1078, %v1379
      %v1463 = vadd.f32 %v1079, %v1381
      %v1464 = vadd.f32 %v1080, %v1383
      %v1465 = vadd.f32 %v1081, %v1385
      %v1466 = vadd.f32 %v1082, %v1387
      %v1467 = vadd.f32 %v1083, %v1389
      %v1468 = vadd.f32 %v1084, %v1391
      %v1469 = vadd.f32 %v1085, %v1393
      %v1470 = vadd.f32 %v1086, %v1395
      %v1471 = vadd.f32 %v1087, %v1397
      %v1472 = vadd.f32 %v1088, %v1399
      %v1473 = vadd.f32 %v1089, %v1401
      %v1474 = vadd.f32 %v1090, %v1403
      %v1475 = vadd.f32 %v1091, %v1405
      %v1476 = vadd.f32 %v1092, %v1407
      %v1477 = vadd.f32 %v1093, %v1409
      %v1478 = vadd.f32 %v1094, %v1411
      %v1479 = vadd.f32 %v1095, %v1413
      %v1480 = vadd.f32 %v1096, %v1415
      %v1481 = vadd.f32 %v1097, %v1417
      %v1482 = vld [vmem:[%s428] sm:$0xf]
      %v1483 = vld [vmem:[%s428 + $0x4] sm:$0xf]
      %v1484 = vld [vmem:[%s428 + $0x8] sm:$0xf]
      %v1485 = vld [vmem:[%s428 + $0xc] sm:$0xf]
      %v1486 = vld [vmem:[%s428 + $0x10] sm:$0xf]
      %v1487 = vld [vmem:[%s428 + $0x14] sm:$0xf]
      %v1488 = vld [vmem:[%s428 + $0x18] sm:$0xf]
      %v1489 = vld [vmem:[%s428 + $0x1c] sm:$0xf]
      %v1490 = vld [vmem:[%s428 + $0x20] sm:$0xf]
      %v1491 = vld [vmem:[%s428 + $0x24] sm:$0xf]
      %v1492 = vld [vmem:[%s428 + $0x28] sm:$0xf]
      %v1493 = vld [vmem:[%s428 + $0x2c] sm:$0xf]
      %v1494 = vld [vmem:[%s428 + $0x30] sm:$0xf]
      %v1495 = vld [vmem:[%s428 + $0x34] sm:$0xf]
      %v1496 = vld [vmem:[%s428 + $0x38] sm:$0xf]
      %v1497 = vld [vmem:[%s428 + $0x3c] sm:$0xf]
      %v1498 = vld [vmem:[%s428 + $0x40] sm:$0xf]
      %v1499 = vld [vmem:[%s428 + $0x44] sm:$0xf]
      %v1500 = vld [vmem:[%s428 + $0x48] sm:$0xf]
      %v1501 = vld [vmem:[%s428 + $0x4c] sm:$0xf]
      %v1502 = vld [vmem:[%s428 + $0x50] sm:$0xf]
      %v1503 = vld [vmem:[%s428 + $0x54] sm:$0xf]
      %v1504 = vld [vmem:[%s428 + $0x58] sm:$0xf]
      %v1505 = vld [vmem:[%s428 + $0x5c] sm:$0xf]
      %v1506 = vld [vmem:[%s428 + $0x60] sm:$0xf]
      %v1507 = vld [vmem:[%s428 + $0x64] sm:$0xf]
      %v1508 = vld [vmem:[%s428 + $0x68] sm:$0xf]
      %v1509 = vld [vmem:[%s428 + $0x6c] sm:$0xf]
      %v1510 = vld [vmem:[%s428 + $0x70] sm:$0xf]
      %v1511 = vld [vmem:[%s428 + $0x74] sm:$0xf]
      %v1512 = vld [vmem:[%s428 + $0x78] sm:$0xf]
      %v1513 = vld [vmem:[%s428 + $0x7c] sm:$0xf]
      %v1514 = vunpack.c.l.bf16 %v1482
      %v1515 = vunpack.c.l.bf16 %v1483
      %v1516 = vunpack.c.l.bf16 %v1484
      %v1517 = vunpack.c.l.bf16 %v1485
      %v1518 = vunpack.c.l.bf16 %v1486
      %v1519 = vunpack.c.l.bf16 %v1487
      %v1520 = vunpack.c.l.bf16 %v1488
      %v1521 = vunpack.c.l.bf16 %v1489
      %v1522 = vunpack.c.l.bf16 %v1490
      %v1523 = vunpack.c.l.bf16 %v1491
      %v1524 = vunpack.c.l.bf16 %v1492
      %v1525 = vunpack.c.l.bf16 %v1493
      %v1526 = vunpack.c.l.bf16 %v1494
      %v1527 = vunpack.c.l.bf16 %v1495
      %v1528 = vunpack.c.l.bf16 %v1496
      %v1529 = vunpack.c.l.bf16 %v1497
      %v1530 = vunpack.c.l.bf16 %v1498
      %v1531 = vunpack.c.l.bf16 %v1499
      %v1532 = vunpack.c.l.bf16 %v1500
      %v1533 = vunpack.c.l.bf16 %v1501
      %v1534 = vunpack.c.l.bf16 %v1502
      %v1535 = vunpack.c.l.bf16 %v1503
      %v1536 = vunpack.c.l.bf16 %v1504
      %v1537 = vunpack.c.l.bf16 %v1505
      %v1538 = vunpack.c.l.bf16 %v1506
      %v1539 = vunpack.c.l.bf16 %v1507
      %v1540 = vunpack.c.l.bf16 %v1508
      %v1541 = vunpack.c.l.bf16 %v1509
      %v1542 = vunpack.c.l.bf16 %v1510
      %v1543 = vunpack.c.l.bf16 %v1511
      %v1544 = vunpack.c.l.bf16 %v1512
      %v1545 = vunpack.c.l.bf16 %v1513
      %1578 = vrot.lane.b32.xlu0 %v1514, 48
      %v1579 = vpop.permute.xlu0 %1578
      %1580 = vrot.lane.b32.xlu0 %v1515, 48
      %v1581 = vpop.permute.xlu0 %1580
      %1582 = vrot.lane.b32.xlu0 %v1516, 48
      %v1583 = vpop.permute.xlu0 %1582
      %1584 = vrot.lane.b32.xlu0 %v1517, 48
      %v1585 = vpop.permute.xlu0 %1584
      %1586 = vrot.lane.b32.xlu0 %v1518, 48
      %v1587 = vpop.permute.xlu0 %1586
      %1588 = vrot.lane.b32.xlu0 %v1519, 48
      %v1589 = vpop.permute.xlu0 %1588
      %1590 = vrot.lane.b32.xlu0 %v1520, 48
      %v1591 = vpop.permute.xlu0 %1590
      %1592 = vrot.lane.b32.xlu0 %v1521, 48
      %v1593 = vpop.permute.xlu0 %1592
      %1594 = vrot.lane.b32.xlu0 %v1522, 48
      %v1595 = vpop.permute.xlu0 %1594
      %1596 = vrot.lane.b32.xlu0 %v1523, 48
      %v1597 = vpop.permute.xlu0 %1596
      %1598 = vrot.lane.b32.xlu0 %v1524, 48
      %v1599 = vpop.permute.xlu0 %1598
      %1600 = vrot.lane.b32.xlu0 %v1525, 48
      %v1601 = vpop.permute.xlu0 %1600
      %1602 = vrot.lane.b32.xlu0 %v1526, 48
      %v1603 = vpop.permute.xlu0 %1602
      %1604 = vrot.lane.b32.xlu0 %v1527, 48
      %v1605 = vpop.permute.xlu0 %1604
      %1606 = vrot.lane.b32.xlu0 %v1528, 48
      %v1607 = vpop.permute.xlu0 %1606
      %1608 = vrot.lane.b32.xlu0 %v1529, 48
      %v1609 = vpop.permute.xlu0 %1608
      %1610 = vrot.lane.b32.xlu0 %v1530, 48
      %v1611 = vpop.permute.xlu0 %1610
      %1612 = vrot.lane.b32.xlu0 %v1531, 48
      %v1613 = vpop.permute.xlu0 %1612
      %1614 = vrot.lane.b32.xlu0 %v1532, 48
      %v1615 = vpop.permute.xlu0 %1614
      %1616 = vrot.lane.b32.xlu0 %v1533, 48
      %v1617 = vpop.permute.xlu0 %1616
      %1618 = vrot.lane.b32.xlu0 %v1534, 48
      %v1619 = vpop.permute.xlu0 %1618
      %1620 = vrot.lane.b32.xlu0 %v1535, 48
      %v1621 = vpop.permute.xlu0 %1620
      %1622 = vrot.lane.b32.xlu0 %v1536, 48
      %v1623 = vpop.permute.xlu0 %1622
      %1624 = vrot.lane.b32.xlu0 %v1537, 48
      %v1625 = vpop.permute.xlu0 %1624
      %1626 = vrot.lane.b32.xlu0 %v1538, 48
      %v1627 = vpop.permute.xlu0 %1626
      %1628 = vrot.lane.b32.xlu0 %v1539, 48
      %v1629 = vpop.permute.xlu0 %1628
      %1630 = vrot.lane.b32.xlu0 %v1540, 48
      %v1631 = vpop.permute.xlu0 %1630
      %1632 = vrot.lane.b32.xlu0 %v1541, 48
      %v1633 = vpop.permute.xlu0 %1632
      %1634 = vrot.lane.b32.xlu0 %v1542, 48
      %v1635 = vpop.permute.xlu0 %1634
      %1636 = vrot.lane.b32.xlu0 %v1543, 48
      %v1637 = vpop.permute.xlu0 %1636
      %1638 = vrot.lane.b32.xlu0 %v1544, 48
      %v1639 = vpop.permute.xlu0 %1638
      %1640 = vrot.lane.b32.xlu0 %v1545, 48
      %v1641 = vpop.permute.xlu0 %1640
      %v1674 = vmul.f32 %v970, %v1579
      %v1675 = vmul.f32 %v971, %v1581
      %v1676 = vmul.f32 %v972, %v1583
      %v1677 = vmul.f32 %v973, %v1585
      %v1678 = vmul.f32 %v974, %v1587
      %v1679 = vmul.f32 %v975, %v1589
      %v1680 = vmul.f32 %v976, %v1591
      %v1681 = vmul.f32 %v977, %v1593
      %v1682 = vmul.f32 %v978, %v1595
      %v1683 = vmul.f32 %v979, %v1597
      %v1684 = vmul.f32 %v980, %v1599
      %v1685 = vmul.f32 %v981, %v1601
      %v1686 = vmul.f32 %v982, %v1603
      %v1687 = vmul.f32 %v983, %v1605
      %v1688 = vmul.f32 %v984, %v1607
      %v1689 = vmul.f32 %v985, %v1609
      %v1690 = vmul.f32 %v986, %v1611
      %v1691 = vmul.f32 %v987, %v1613
      %v1692 = vmul.f32 %v988, %v1615
      %v1693 = vmul.f32 %v989, %v1617
      %v1694 = vmul.f32 %v990, %v1619
      %v1695 = vmul.f32 %v991, %v1621
      %v1696 = vmul.f32 %v992, %v1623
      %v1697 = vmul.f32 %v993, %v1625
      %v1698 = vmul.f32 %v994, %v1627
      %v1699 = vmul.f32 %v995, %v1629
      %v1700 = vmul.f32 %v996, %v1631
      %v1701 = vmul.f32 %v997, %v1633
      %v1702 = vmul.f32 %v998, %v1635
      %v1703 = vmul.f32 %v999, %v1637
      %v1704 = vmul.f32 %v1000, %v1639
      %v1705 = vmul.f32 %v1001, %v1641
      %1738 = vrot.lane.b32.xlu0 %v1674, 80
      %v1739 = vpop.permute.xlu0 %1738
      %1740 = vrot.lane.b32.xlu0 %v1675, 80
      %v1741 = vpop.permute.xlu0 %1740
      %1742 = vrot.lane.b32.xlu0 %v1676, 80
      %v1743 = vpop.permute.xlu0 %1742
      %1744 = vrot.lane.b32.xlu0 %v1677, 80
      %v1745 = vpop.permute.xlu0 %1744
      %1746 = vrot.lane.b32.xlu0 %v1678, 80
      %v1747 = vpop.permute.xlu0 %1746
      %1748 = vrot.lane.b32.xlu0 %v1679, 80
      %v1749 = vpop.permute.xlu0 %1748
      %1750 = vrot.lane.b32.xlu0 %v1680, 80
      %v1751 = vpop.permute.xlu0 %1750
      %1752 = vrot.lane.b32.xlu0 %v1681, 80
      %v1753 = vpop.permute.xlu0 %1752
      %1754 = vrot.lane.b32.xlu0 %v1682, 80
      %v1755 = vpop.permute.xlu0 %1754
      %1756 = vrot.lane.b32.xlu0 %v1683, 80
      %v1757 = vpop.permute.xlu0 %1756
      %1758 = vrot.lane.b32.xlu0 %v1684, 80
      %v1759 = vpop.permute.xlu0 %1758
      %1760 = vrot.lane.b32.xlu0 %v1685, 80
      %v1761 = vpop.permute.xlu0 %1760
      %1762 = vrot.lane.b32.xlu0 %v1686, 80
      %v1763 = vpop.permute.xlu0 %1762
      %1764 = vrot.lane.b32.xlu0 %v1687, 80
      %v1765 = vpop.permute.xlu0 %1764
      %1766 = vrot.lane.b32.xlu0 %v1688, 80
      %v1767 = vpop.permute.xlu0 %1766
      %1768 = vrot.lane.b32.xlu0 %v1689, 80
      %v1769 = vpop.permute.xlu0 %1768
      %1770 = vrot.lane.b32.xlu0 %v1690, 80
      %v1771 = vpop.permute.xlu0 %1770
      %1772 = vrot.lane.b32.xlu0 %v1691, 80
      %v1773 = vpop.permute.xlu0 %1772
      %1774 = vrot.lane.b32.xlu0 %v1692, 80
      %v1775 = vpop.permute.xlu0 %1774
      %1776 = vrot.lane.b32.xlu0 %v1693, 80
      %v1777 = vpop.permute.xlu0 %1776
      %1778 = vrot.lane.b32.xlu0 %v1694, 80
      %v1779 = vpop.permute.xlu0 %1778
      %1780 = vrot.lane.b32.xlu0 %v1695, 80
      %v1781 = vpop.permute.xlu0 %1780
      %1782 = vrot.lane.b32.xlu0 %v1696, 80
      %v1783 = vpop.permute.xlu0 %1782
      %1784 = vrot.lane.b32.xlu0 %v1697, 80
      %v1785 = vpop.permute.xlu0 %1784
      %1786 = vrot.lane.b32.xlu0 %v1698, 80
      %v1787 = vpop.permute.xlu0 %1786
      %1788 = vrot.lane.b32.xlu0 %v1699, 80
      %v1789 = vpop.permute.xlu0 %1788
      %1790 = vrot.lane.b32.xlu0 %v1700, 80
      %v1791 = vpop.permute.xlu0 %1790
      %1792 = vrot.lane.b32.xlu0 %v1701, 80
      %v1793 = vpop.permute.xlu0 %1792
      %1794 = vrot.lane.b32.xlu0 %v1702, 80
      %v1795 = vpop.permute.xlu0 %1794
      %1796 = vrot.lane.b32.xlu0 %v1703, 80
      %v1797 = vpop.permute.xlu0 %1796
      %1798 = vrot.lane.b32.xlu0 %v1704, 80
      %v1799 = vpop.permute.xlu0 %1798
      %1800 = vrot.lane.b32.xlu0 %v1705, 80
      %v1801 = vpop.permute.xlu0 %1800
      %v1834 = vadd.f32 %v1450, %v1739
      %v1835 = vadd.f32 %v1451, %v1741
      %v1836 = vadd.f32 %v1452, %v1743
      %v1837 = vadd.f32 %v1453, %v1745
      %v1838 = vadd.f32 %v1454, %v1747
      %v1839 = vadd.f32 %v1455, %v1749
      %v1840 = vadd.f32 %v1456, %v1751
      %v1841 = vadd.f32 %v1457, %v1753
      %v1842 = vadd.f32 %v1458, %v1755
      %v1843 = vadd.f32 %v1459, %v1757
      %v1844 = vadd.f32 %v1460, %v1759
      %v1845 = vadd.f32 %v1461, %v1761
      %v1846 = vadd.f32 %v1462, %v1763
      %v1847 = vadd.f32 %v1463, %v1765
      %v1848 = vadd.f32 %v1464, %v1767
      %v1849 = vadd.f32 %v1465, %v1769
      %v1850 = vadd.f32 %v1466, %v1771
      %v1851 = vadd.f32 %v1467, %v1773
      %v1852 = vadd.f32 %v1468, %v1775
      %v1853 = vadd.f32 %v1469, %v1777
      %v1854 = vadd.f32 %v1470, %v1779
      %v1855 = vadd.f32 %v1471, %v1781
      %v1856 = vadd.f32 %v1472, %v1783
      %v1857 = vadd.f32 %v1473, %v1785
      %v1858 = vadd.f32 %v1474, %v1787
      %v1859 = vadd.f32 %v1475, %v1789
      %v1860 = vadd.f32 %v1476, %v1791
      %v1861 = vadd.f32 %v1477, %v1793
      %v1862 = vadd.f32 %v1478, %v1795
      %v1863 = vadd.f32 %v1479, %v1797
      %v1864 = vadd.f32 %v1480, %v1799
      %v1865 = vadd.f32 %v1481, %v1801
      %p1866 = scmp.eq.s32.totalorder %s25, 0
      // Predicated region
      $region45: #{flash_mha_forward.3} parent=43 // pred_check
        %p1867 = pneg %p1866
      $region46: #{flash_mha_forward.3} parent=43 // pred_check_branch
        %1869 = sbr.rel (%p1867) target = $region48
      $region47: #{flash_mha_forward.3} parent=43 // pred_region
        %v1870 = vpack.c.bf16 %v1835, %v1834
        %v1871 = vpack.c.bf16 %v1837, %v1836
        %v1872 = vpack.c.bf16 %v1839, %v1838
        %v1873 = vpack.c.bf16 %v1841, %v1840
        %v1874 = vpack.c.bf16 %v1843, %v1842
        %v1875 = vpack.c.bf16 %v1845, %v1844
        %v1876 = vpack.c.bf16 %v1847, %v1846
        %v1877 = vpack.c.bf16 %v1849, %v1848
        %v1878 = vpack.c.bf16 %v1851, %v1850
        %v1879 = vpack.c.bf16 %v1853, %v1852
        %v1880 = vpack.c.bf16 %v1855, %v1854
        %v1881 = vpack.c.bf16 %v1857, %v1856
        %v1882 = vpack.c.bf16 %v1859, %v1858
        %v1883 = vpack.c.bf16 %v1861, %v1860
        %v1884 = vpack.c.bf16 %v1863, %v1862
        %v1885 = vpack.c.bf16 %v1865, %v1864
        %v1902 = vunpack.c.l.b16 %v1870
        %v1903 = vunpack.c.h.b16 %v1870
        %v1904 = vunpack.c.l.b16 %v1871
        %v1905 = vunpack.c.h.b16 %v1871
        %v1906 = vunpack.c.l.b16 %v1872
        %v1907 = vunpack.c.h.b16 %v1872
        %v1908 = vunpack.c.l.b16 %v1873
        %v1909 = vunpack.c.h.b16 %v1873
        %v1910 = vunpack.c.l.b16 %v1874
        %v1911 = vunpack.c.h.b16 %v1874
        %v1912 = vunpack.c.l.b16 %v1875
        %v1913 = vunpack.c.h.b16 %v1875
        %v1914 = vunpack.c.l.b16 %v1876
        %v1915 = vunpack.c.h.b16 %v1876
        %v1916 = vunpack.c.l.b16 %v1877
        %v1917 = vunpack.c.h.b16 %v1877
        %v1918 = vunpack.c.l.b16 %v1878
        %v1919 = vunpack.c.h.b16 %v1878
        %v1920 = vunpack.c.l.b16 %v1879
        %v1921 = vunpack.c.h.b16 %v1879
        %v1922 = vunpack.c.l.b16 %v1880
        %v1923 = vunpack.c.h.b16 %v1880
        %v1924 = vunpack.c.l.b16 %v1881
        %v1925 = vunpack.c.h.b16 %v1881
        %v1926 = vunpack.c.l.b16 %v1882
        %v1927 = vunpack.c.h.b16 %v1882
        %v1928 = vunpack.c.l.b16 %v1883
        %v1929 = vunpack.c.h.b16 %v1883
        %v1930 = vunpack.c.l.b16 %v1884
        %v1931 = vunpack.c.h.b16 %v1884
        %v1932 = vunpack.c.l.b16 %v1885
        %v1933 = vunpack.c.h.b16 %v1885
        %v1934 = vpack.c.b16 %v1902, %v1902
        %v1935 = vpack.c.b16 %v1903, %v1903
        %v1936 = vpack.c.b16 %v1904, %v1904
        %v1937 = vpack.c.b16 %v1905, %v1905
        %v1938 = vpack.c.b16 %v1906, %v1906
        %v1939 = vpack.c.b16 %v1907, %v1907
        %v1940 = vpack.c.b16 %v1908, %v1908
        %v1941 = vpack.c.b16 %v1909, %v1909
        %v1942 = vpack.c.b16 %v1910, %v1910
        %v1943 = vpack.c.b16 %v1911, %v1911
        %v1944 = vpack.c.b16 %v1912, %v1912
        %v1945 = vpack.c.b16 %v1913, %v1913
        %v1946 = vpack.c.b16 %v1914, %v1914
        %v1947 = vpack.c.b16 %v1915, %v1915
        %v1948 = vpack.c.b16 %v1916, %v1916
        %v1949 = vpack.c.b16 %v1917, %v1917
        %v1950 = vpack.c.b16 %v1918, %v1918
        %v1951 = vpack.c.b16 %v1919, %v1919
        %v1952 = vpack.c.b16 %v1920, %v1920
        %v1953 = vpack.c.b16 %v1921, %v1921
        %v1954 = vpack.c.b16 %v1922, %v1922
        %v1955 = vpack.c.b16 %v1923, %v1923
        %v1956 = vpack.c.b16 %v1924, %v1924
        %v1957 = vpack.c.b16 %v1925, %v1925
        %v1958 = vpack.c.b16 %v1926, %v1926
        %v1959 = vpack.c.b16 %v1927, %v1927
        %v1960 = vpack.c.b16 %v1928, %v1928
        %v1961 = vpack.c.b16 %v1929, %v1929
        %v1962 = vpack.c.b16 %v1930, %v1930
        %v1963 = vpack.c.b16 %v1931, %v1931
        %v1964 = vpack.c.b16 %v1932, %v1932
        %v1965 = vpack.c.b16 %v1933, %v1933
        %vm1998 = vcmask 519168
        %1999 = vst.msk [vmem:[%s434] sm:$0xf] %vm1998, %v1934
        %2000 = vst.msk [vmem:[%s434 + $0x4] sm:$0xf] %vm1998, %v1935
        %2001 = vst.msk [vmem:[%s434 + $0x8] sm:$0xf] %vm1998, %v1936
        %2002 = vst.msk [vmem:[%s434 + $0xc] sm:$0xf] %vm1998, %v1937
        %2003 = vst.msk [vmem:[%s434 + $0x10] sm:$0xf] %vm1998, %v1938
        %2004 = vst.msk [vmem:[%s434 + $0x14] sm:$0xf] %vm1998, %v1939
        %2005 = vst.msk [vmem:[%s434 + $0x18] sm:$0xf] %vm1998, %v1940
        %2006 = vst.msk [vmem:[%s434 + $0x1c] sm:$0xf] %vm1998, %v1941
        %2007 = vst.msk [vmem:[%s434 + $0x20] sm:$0xf] %vm1998, %v1942
        %2008 = vst.msk [vmem:[%s434 + $0x24] sm:$0xf] %vm1998, %v1943
        %2009 = vst.msk [vmem:[%s434 + $0x28] sm:$0xf] %vm1998, %v1944
        %2010 = vst.msk [vmem:[%s434 + $0x2c] sm:$0xf] %vm1998, %v1945
        %2011 = vst.msk [vmem:[%s434 + $0x30] sm:$0xf] %vm1998, %v1946
        %2012 = vst.msk [vmem:[%s434 + $0x34] sm:$0xf] %vm1998, %v1947
        %2013 = vst.msk [vmem:[%s434 + $0x38] sm:$0xf] %vm1998, %v1948
        %2014 = vst.msk [vmem:[%s434 + $0x3c] sm:$0xf] %vm1998, %v1949
        %2015 = vst.msk [vmem:[%s434 + $0x40] sm:$0xf] %vm1998, %v1950
        %2016 = vst.msk [vmem:[%s434 + $0x44] sm:$0xf] %vm1998, %v1951
        %2017 = vst.msk [vmem:[%s434 + $0x48] sm:$0xf] %vm1998, %v1952
        %2018 = vst.msk [vmem:[%s434 + $0x4c] sm:$0xf] %vm1998, %v1953
        %2019 = vst.msk [vmem:[%s434 + $0x50] sm:$0xf] %vm1998, %v1954
        %2020 = vst.msk [vmem:[%s434 + $0x54] sm:$0xf] %vm1998, %v1955
        %2021 = vst.msk [vmem:[%s434 + $0x58] sm:$0xf] %vm1998, %v1956
        %2022 = vst.msk [vmem:[%s434 + $0x5c] sm:$0xf] %vm1998, %v1957
        %2023 = vst.msk [vmem:[%s434 + $0x60] sm:$0xf] %vm1998, %v1958
        %2024 = vst.msk [vmem:[%s434 + $0x64] sm:$0xf] %vm1998, %v1959
        %2025 = vst.msk [vmem:[%s434 + $0x68] sm:$0xf] %vm1998, %v1960
        %2026 = vst.msk [vmem:[%s434 + $0x6c] sm:$0xf] %vm1998, %v1961
        %2027 = vst.msk [vmem:[%s434 + $0x70] sm:$0xf] %vm1998, %v1962
        %2028 = vst.msk [vmem:[%s434 + $0x74] sm:$0xf] %vm1998, %v1963
        %2029 = vst.msk [vmem:[%s434 + $0x78] sm:$0xf] %vm1998, %v1964
        %2030 = vst.msk [vmem:[%s434 + $0x7c] sm:$0xf] %vm1998, %v1965
      $region48: #{flash_mha_forward.3} parent=43 // pred_fallthru
        _
      %p2031 = scmp.eq.s32.totalorder %s25, 1
      // Predicated region
      $region49: #{flash_mha_forward.3} parent=43 // pred_check
        %p2032 = pneg %p2031
      $region50: #{flash_mha_forward.3} parent=43 // pred_check_branch
        %2034 = sbr.rel (%p2032) target = $region52
      $region51: #{flash_mha_forward.3} parent=43 // pred_region
        %v2035 = vpack.c.bf16 %v1835, %v1834
        %v2036 = vpack.c.bf16 %v1837, %v1836
        %v2037 = vpack.c.bf16 %v1839, %v1838
        %v2038 = vpack.c.bf16 %v1841, %v1840
        %v2039 = vpack.c.bf16 %v1843, %v1842
        %v2040 = vpack.c.bf16 %v1845, %v1844
        %v2041 = vpack.c.bf16 %v1847, %v1846
        %v2042 = vpack.c.bf16 %v1849, %v1848
        %v2043 = vpack.c.bf16 %v1851, %v1850
        %v2044 = vpack.c.bf16 %v1853, %v1852
        %v2045 = vpack.c.bf16 %v1855, %v1854
        %v2046 = vpack.c.bf16 %v1857, %v1856
        %v2047 = vpack.c.bf16 %v1859, %v1858
        %v2048 = vpack.c.bf16 %v1861, %v1860
        %v2049 = vpack.c.bf16 %v1863, %v1862
        %v2050 = vpack.c.bf16 %v1865, %v1864
        %v2067 = vunpack.c.l.b16 %v2035
        %v2068 = vunpack.c.h.b16 %v2035
        %v2069 = vunpack.c.l.b16 %v2036
        %v2070 = vunpack.c.h.b16 %v2036
        %v2071 = vunpack.c.l.b16 %v2037
        %v2072 = vunpack.c.h.b16 %v2037
        %v2073 = vunpack.c.l.b16 %v2038
        %v2074 = vunpack.c.h.b16 %v2038
        %v2075 = vunpack.c.l.b16 %v2039
        %v2076 = vunpack.c.h.b16 %v2039
        %v2077 = vunpack.c.l.b16 %v2040
        %v2078 = vunpack.c.h.b16 %v2040
        %v2079 = vunpack.c.l.b16 %v2041
        %v2080 = vunpack.c.h.b16 %v2041
        %v2081 = vunpack.c.l.b16 %v2042
        %v2082 = vunpack.c.h.b16 %v2042
        %v2083 = vunpack.c.l.b16 %v2043
        %v2084 = vunpack.c.h.b16 %v2043
        %v2085 = vunpack.c.l.b16 %v2044
        %v2086 = vunpack.c.h.b16 %v2044
        %v2087 = vunpack.c.l.b16 %v2045
        %v2088 = vunpack.c.h.b16 %v2045
        %v2089 = vunpack.c.l.b16 %v2046
        %v2090 = vunpack.c.h.b16 %v2046
        %v2091 = vunpack.c.l.b16 %v2047
        %v2092 = vunpack.c.h.b16 %v2047
        %v2093 = vunpack.c.l.b16 %v2048
        %v2094 = vunpack.c.h.b16 %v2048
        %v2095 = vunpack.c.l.b16 %v2049
        %v2096 = vunpack.c.h.b16 %v2049
        %v2097 = vunpack.c.l.b16 %v2050
        %v2098 = vunpack.c.h.b16 %v2050
        %v2099 = vpack.c.b16 %v2067, %v2067
        %v2100 = vpack.c.b16 %v2068, %v2068
        %v2101 = vpack.c.b16 %v2069, %v2069
        %v2102 = vpack.c.b16 %v2070, %v2070
        %v2103 = vpack.c.b16 %v2071, %v2071
        %v2104 = vpack.c.b16 %v2072, %v2072
        %v2105 = vpack.c.b16 %v2073, %v2073
        %v2106 = vpack.c.b16 %v2074, %v2074
        %v2107 = vpack.c.b16 %v2075, %v2075
        %v2108 = vpack.c.b16 %v2076, %v2076
        %v2109 = vpack.c.b16 %v2077, %v2077
        %v2110 = vpack.c.b16 %v2078, %v2078
        %v2111 = vpack.c.b16 %v2079, %v2079
        %v2112 = vpack.c.b16 %v2080, %v2080
        %v2113 = vpack.c.b16 %v2081, %v2081
        %v2114 = vpack.c.b16 %v2082, %v2082
        %v2115 = vpack.c.b16 %v2083, %v2083
        %v2116 = vpack.c.b16 %v2084, %v2084
        %v2117 = vpack.c.b16 %v2085, %v2085
        %v2118 = vpack.c.b16 %v2086, %v2086
        %v2119 = vpack.c.b16 %v2087, %v2087
        %v2120 = vpack.c.b16 %v2088, %v2088
        %v2121 = vpack.c.b16 %v2089, %v2089
        %v2122 = vpack.c.b16 %v2090, %v2090
        %v2123 = vpack.c.b16 %v2091, %v2091
        %v2124 = vpack.c.b16 %v2092, %v2092
        %v2125 = vpack.c.b16 %v2093, %v2093
        %v2126 = vpack.c.b16 %v2094, %v2094
        %v2127 = vpack.c.b16 %v2095, %v2095
        %v2128 = vpack.c.b16 %v2096, %v2096
        %v2129 = vpack.c.b16 %v2097, %v2097
        %v2130 = vpack.c.b16 %v2098, %v2098
        %vm2163 = vcmask 519168
        %2164 = vst.msk [vmem:[%s440] sm:$0xf] %vm2163, %v2099
        %2165 = vst.msk [vmem:[%s440 + $0x4] sm:$0xf] %vm2163, %v2100
        %2166 = vst.msk [vmem:[%s440 + $0x8] sm:$0xf] %vm2163, %v2101
        %2167 = vst.msk [vmem:[%s440 + $0xc] sm:$0xf] %vm2163, %v2102
        %2168 = vst.msk [vmem:[%s440 + $0x10] sm:$0xf] %vm2163, %v2103
        %2169 = vst.msk [vmem:[%s440 + $0x14] sm:$0xf] %vm2163, %v2104
        %2170 = vst.msk [vmem:[%s440 + $0x18] sm:$0xf] %vm2163, %v2105
        %2171 = vst.msk [vmem:[%s440 + $0x1c] sm:$0xf] %vm2163, %v2106
        %2172 = vst.msk [vmem:[%s440 + $0x20] sm:$0xf] %vm2163, %v2107
        %2173 = vst.msk [vmem:[%s440 + $0x24] sm:$0xf] %vm2163, %v2108
        %2174 = vst.msk [vmem:[%s440 + $0x28] sm:$0xf] %vm2163, %v2109
        %2175 = vst.msk [vmem:[%s440 + $0x2c] sm:$0xf] %vm2163, %v2110
        %2176 = vst.msk [vmem:[%s440 + $0x30] sm:$0xf] %vm2163, %v2111
        %2177 = vst.msk [vmem:[%s440 + $0x34] sm:$0xf] %vm2163, %v2112
        %2178 = vst.msk [vmem:[%s440 + $0x38] sm:$0xf] %vm2163, %v2113
        %2179 = vst.msk [vmem:[%s440 + $0x3c] sm:$0xf] %vm2163, %v2114
        %2180 = vst.msk [vmem:[%s440 + $0x40] sm:$0xf] %vm2163, %v2115
        %2181 = vst.msk [vmem:[%s440 + $0x44] sm:$0xf] %vm2163, %v2116
        %2182 = vst.msk [vmem:[%s440 + $0x48] sm:$0xf] %vm2163, %v2117
        %2183 = vst.msk [vmem:[%s440 + $0x4c] sm:$0xf] %vm2163, %v2118
        %2184 = vst.msk [vmem:[%s440 + $0x50] sm:$0xf] %vm2163, %v2119
        %2185 = vst.msk [vmem:[%s440 + $0x54] sm:$0xf] %vm2163, %v2120
        %2186 = vst.msk [vmem:[%s440 + $0x58] sm:$0xf] %vm2163, %v2121
        %2187 = vst.msk [vmem:[%s440 + $0x5c] sm:$0xf] %vm2163, %v2122
        %2188 = vst.msk [vmem:[%s440 + $0x60] sm:$0xf] %vm2163, %v2123
        %2189 = vst.msk [vmem:[%s440 + $0x64] sm:$0xf] %vm2163, %v2124
        %2190 = vst.msk [vmem:[%s440 + $0x68] sm:$0xf] %vm2163, %v2125
        %2191 = vst.msk [vmem:[%s440 + $0x6c] sm:$0xf] %vm2163, %v2126
        %2192 = vst.msk [vmem:[%s440 + $0x70] sm:$0xf] %vm2163, %v2127
        %2193 = vst.msk [vmem:[%s440 + $0x74] sm:$0xf] %vm2163, %v2128
        %2194 = vst.msk [vmem:[%s440 + $0x78] sm:$0xf] %vm2163, %v2129
        %2195 = vst.msk [vmem:[%s440 + $0x7c] sm:$0xf] %vm2163, %v2130
      $region52: #{flash_mha_forward.3} parent=43 // pred_fallthru
        _
      %p2196 = scmp.eq.s32.totalorder %s25, 2
      // Predicated region
      $region53: #{flash_mha_forward.3} parent=43 // pred_check
        %p2197 = pneg %p2196
      $region54: #{flash_mha_forward.3} parent=43 // pred_check_branch
        %2199 = sbr.rel (%p2197) target = $region56
      $region55: #{flash_mha_forward.3} parent=43 // pred_region
        %v2200 = vpack.c.bf16 %v686, %v683
        %v2201 = vpack.c.bf16 %v694, %v691
        %v2202 = vpack.c.bf16 %v702, %v699
        %v2203 = vpack.c.bf16 %v710, %v707
        %v2204 = vpack.c.bf16 %v718, %v715
        %v2205 = vpack.c.bf16 %v726, %v723
        %v2206 = vpack.c.bf16 %v734, %v731
        %v2207 = vpack.c.bf16 %v742, %v739
        %v2208 = vpack.c.bf16 %v750, %v747
        %v2209 = vpack.c.bf16 %v758, %v755
        %v2210 = vpack.c.bf16 %v766, %v763
        %v2211 = vpack.c.bf16 %v774, %v771
        %v2212 = vpack.c.bf16 %v782, %v779
        %v2213 = vpack.c.bf16 %v790, %v787
        %v2214 = vpack.c.bf16 %v798, %v795
        %v2215 = vpack.c.bf16 %v806, %v803
        %v2232 = vunpack.c.l.b16 %v2200
        %v2233 = vunpack.c.h.b16 %v2200
        %v2234 = vunpack.c.l.b16 %v2201
        %v2235 = vunpack.c.h.b16 %v2201
        %v2236 = vunpack.c.l.b16 %v2202
        %v2237 = vunpack.c.h.b16 %v2202
        %v2238 = vunpack.c.l.b16 %v2203
        %v2239 = vunpack.c.h.b16 %v2203
        %v2240 = vunpack.c.l.b16 %v2204
        %v2241 = vunpack.c.h.b16 %v2204
        %v2242 = vunpack.c.l.b16 %v2205
        %v2243 = vunpack.c.h.b16 %v2205
        %v2244 = vunpack.c.l.b16 %v2206
        %v2245 = vunpack.c.h.b16 %v2206
        %v2246 = vunpack.c.l.b16 %v2207
        %v2247 = vunpack.c.h.b16 %v2207
        %v2248 = vunpack.c.l.b16 %v2208
        %v2249 = vunpack.c.h.b16 %v2208
        %v2250 = vunpack.c.l.b16 %v2209
        %v2251 = vunpack.c.h.b16 %v2209
        %v2252 = vunpack.c.l.b16 %v2210
        %v2253 = vunpack.c.h.b16 %v2210
        %v2254 = vunpack.c.l.b16 %v2211
        %v2255 = vunpack.c.h.b16 %v2211
        %v2256 = vunpack.c.l.b16 %v2212
        %v2257 = vunpack.c.h.b16 %v2212
        %v2258 = vunpack.c.l.b16 %v2213
        %v2259 = vunpack.c.h.b16 %v2213
        %v2260 = vunpack.c.l.b16 %v2214
        %v2261 = vunpack.c.h.b16 %v2214
        %v2262 = vunpack.c.l.b16 %v2215
        %v2263 = vunpack.c.h.b16 %v2215
        %v2264 = vpack.c.b16 %v2232, %v2232
        %v2265 = vpack.c.b16 %v2233, %v2233
        %v2266 = vpack.c.b16 %v2234, %v2234
        %v2267 = vpack.c.b16 %v2235, %v2235
        %v2268 = vpack.c.b16 %v2236, %v2236
        %v2269 = vpack.c.b16 %v2237, %v2237
        %v2270 = vpack.c.b16 %v2238, %v2238
        %v2271 = vpack.c.b16 %v2239, %v2239
        %v2272 = vpack.c.b16 %v2240, %v2240
        %v2273 = vpack.c.b16 %v2241, %v2241
        %v2274 = vpack.c.b16 %v2242, %v2242
        %v2275 = vpack.c.b16 %v2243, %v2243
        %v2276 = vpack.c.b16 %v2244, %v2244
        %v2277 = vpack.c.b16 %v2245, %v2245
        %v2278 = vpack.c.b16 %v2246, %v2246
        %v2279 = vpack.c.b16 %v2247, %v2247
        %v2280 = vpack.c.b16 %v2248, %v2248
        %v2281 = vpack.c.b16 %v2249, %v2249
        %v2282 = vpack.c.b16 %v2250, %v2250
        %v2283 = vpack.c.b16 %v2251, %v2251
        %v2284 = vpack.c.b16 %v2252, %v2252
        %v2285 = vpack.c.b16 %v2253, %v2253
        %v2286 = vpack.c.b16 %v2254, %v2254
        %v2287 = vpack.c.b16 %v2255, %v2255
        %v2288 = vpack.c.b16 %v2256, %v2256
        %v2289 = vpack.c.b16 %v2257, %v2257
        %v2290 = vpack.c.b16 %v2258, %v2258
        %v2291 = vpack.c.b16 %v2259, %v2259
        %v2292 = vpack.c.b16 %v2260, %v2260
        %v2293 = vpack.c.b16 %v2261, %v2261
        %v2294 = vpack.c.b16 %v2262, %v2262
        %v2295 = vpack.c.b16 %v2263, %v2263
        %vm2328 = vcmask 519168
        %2329 = vst.msk [vmem:[%s446] sm:$0xf] %vm2328, %v2264
        %2330 = vst.msk [vmem:[%s446 + $0x4] sm:$0xf] %vm2328, %v2265
        %2331 = vst.msk [vmem:[%s446 + $0x8] sm:$0xf] %vm2328, %v2266
        %2332 = vst.msk [vmem:[%s446 + $0xc] sm:$0xf] %vm2328, %v2267
        %2333 = vst.msk [vmem:[%s446 + $0x10] sm:$0xf] %vm2328, %v2268
        %2334 = vst.msk [vmem:[%s446 + $0x14] sm:$0xf] %vm2328, %v2269
        %2335 = vst.msk [vmem:[%s446 + $0x18] sm:$0xf] %vm2328, %v2270
        %2336 = vst.msk [vmem:[%s446 + $0x1c] sm:$0xf] %vm2328, %v2271
        %2337 = vst.msk [vmem:[%s446 + $0x20] sm:$0xf] %vm2328, %v2272
        %2338 = vst.msk [vmem:[%s446 + $0x24] sm:$0xf] %vm2328, %v2273
        %2339 = vst.msk [vmem:[%s446 + $0x28] sm:$0xf] %vm2328, %v2274
        %2340 = vst.msk [vmem:[%s446 + $0x2c] sm:$0xf] %vm2328, %v2275
        %2341 = vst.msk [vmem:[%s446 + $0x30] sm:$0xf] %vm2328, %v2276
        %2342 = vst.msk [vmem:[%s446 + $0x34] sm:$0xf] %vm2328, %v2277
        %2343 = vst.msk [vmem:[%s446 + $0x38] sm:$0xf] %vm2328, %v2278
        %2344 = vst.msk [vmem:[%s446 + $0x3c] sm:$0xf] %vm2328, %v2279
        %2345 = vst.msk [vmem:[%s446 + $0x40] sm:$0xf] %vm2328, %v2280
        %2346 = vst.msk [vmem:[%s446 + $0x44] sm:$0xf] %vm2328, %v2281
        %2347 = vst.msk [vmem:[%s446 + $0x48] sm:$0xf] %vm2328, %v2282
        %2348 = vst.msk [vmem:[%s446 + $0x4c] sm:$0xf] %vm2328, %v2283
        %2349 = vst.msk [vmem:[%s446 + $0x50] sm:$0xf] %vm2328, %v2284
        %2350 = vst.msk [vmem:[%s446 + $0x54] sm:$0xf] %vm2328, %v2285
        %2351 = vst.msk [vmem:[%s446 + $0x58] sm:$0xf] %vm2328, %v2286
        %2352 = vst.msk [vmem:[%s446 + $0x5c] sm:$0xf] %vm2328, %v2287
        %2353 = vst.msk [vmem:[%s446 + $0x60] sm:$0xf] %vm2328, %v2288
        %2354 = vst.msk [vmem:[%s446 + $0x64] sm:$0xf] %vm2328, %v2289
        %2355 = vst.msk [vmem:[%s446 + $0x68] sm:$0xf] %vm2328, %v2290
        %2356 = vst.msk [vmem:[%s446 + $0x6c] sm:$0xf] %vm2328, %v2291
        %2357 = vst.msk [vmem:[%s446 + $0x70] sm:$0xf] %vm2328, %v2292
        %2358 = vst.msk [vmem:[%s446 + $0x74] sm:$0xf] %vm2328, %v2293
        %2359 = vst.msk [vmem:[%s446 + $0x78] sm:$0xf] %vm2328, %v2294
        %2360 = vst.msk [vmem:[%s446 + $0x7c] sm:$0xf] %vm2328, %v2295
      $region56: #{flash_mha_forward.3} parent=43 // pred_fallthru
        _
      %s2361 = smul.u32 32, %s24
      %p2362 = scmp.lt.s32.totalorder %s2361, 31
      %s2363 = scalar_select %p2362, %s2361, 31
      %s2364 = smul.addr %s2363, 4
      %s2365 = scalar_lea.vmem %s6, %s2364
      %s2366 = smul.u32 32, %s24
      %p2367 = scmp.lt.s32.totalorder %s2366, 31
      %s2368 = scalar_select %p2367, %s2366, 31
      %s2369 = smul.addr %s2368, 4
      %s2370 = scalar_lea.vmem %s7, %s2369
      %s2371 = smul.u32 32, %s24
      %p2372 = scmp.lt.s32.totalorder %s2371, 31
      %s2373 = scalar_select %p2372, %s2371, 31
      %s2374 = smul.addr %s2373, 4
      %s2375 = scalar_lea.vmem %s8, %s2374
      // Predicated region
      $region57: #{flash_mha_forward.3} parent=43 // pred_check
        %p2376 = pneg %p206
      $region58: #{flash_mha_forward.3} parent=43 // pred_check_branch
        %2378 = sbr.rel (%p2376) target = $region60
      $region59: #{flash_mha_forward.3} parent=43 // pred_region
        %s2379 = smul.u32 32, %s24
      $region60: #{flash_mha_forward.3} parent=43 // pred_fallthru
        _
      // Predicated region
      $region61: #{flash_mha_forward.3} parent=43 // pred_check
        %p2380 = pneg %p232
      $region62: #{flash_mha_forward.3} parent=43 // pred_check_branch
        %2382 = sbr.rel (%p2380) target = $region64
      $region63: #{flash_mha_forward.3} parent=43 // pred_region
        %s2383 = smul.u32 32, %s24
      $region64: #{flash_mha_forward.3} parent=43 // pred_fallthru
        _
      // Predicated region
      $region65: #{flash_mha_forward.3} parent=43 // pred_check
        %p2384 = pneg %p258
      $region66: #{flash_mha_forward.3} parent=43 // pred_check_branch
        %2386 = sbr.rel (%p2384) target = $region68
      $region67: #{flash_mha_forward.3} parent=43 // pred_region
        %s2387 = smul.u32 32, %s24
      $region68: #{flash_mha_forward.3} parent=43 // pred_fallthru
        _
      // Predicated region
      $region69: #{flash_mha_forward.3} parent=43 // pred_check
        %p2388 = pneg %p206
      $region70: #{flash_mha_forward.3} parent=43 // pred_check_branch
        %2390 = sbr.rel (%p2388) target = $region72
      $region71: #{flash_mha_forward.3} parent=43 // pred_region
        %s2391 = smul.u32 32, %s24
        %p2392 = scmp.lt.s32.totalorder %s2391, 31
        %s2393 = scalar_select %p2392, %s2391, 31
        %s2394 = smul.addr %s2393, 4
        %s2395 = scalar_lea.vmem %s6, %s2394
      $region72: #{flash_mha_forward.3} parent=43 // pred_fallthru
        _
      // Predicated region
      $region73: #{flash_mha_forward.3} parent=43 // pred_check
        %p2396 = pneg %p232
      $region74: #{flash_mha_forward.3} parent=43 // pred_check_branch
        %2398 = sbr.rel (%p2396) target = $region76
      $region75: #{flash_mha_forward.3} parent=43 // pred_region
        %s2399 = smul.u32 32, %s24
        %p2400 = scmp.lt.s32.totalorder %s2399, 31
        %s2401 = scalar_select %p2400, %s2399, 31
        %s2402 = smul.addr %s2401, 4
        %s2403 = scalar_lea.vmem %s7, %s2402
      $region76: #{flash_mha_forward.3} parent=43 // pred_fallthru
        _
      // Predicated region
      $region77: #{flash_mha_forward.3} parent=43 // pred_check
        %p2404 = pneg %p258
      $region78: #{flash_mha_forward.3} parent=43 // pred_check_branch
        %2406 = sbr.rel (%p2404) target = $region80
      $region79: #{flash_mha_forward.3} parent=43 // pred_region
        %s2407 = smul.u32 32, %s24
        %p2408 = scmp.lt.s32.totalorder %s2407, 31
        %s2409 = scalar_select %p2408, %s2407, 31
        %s2410 = smul.addr %s2409, 4
        %s2411 = scalar_lea.vmem %s8, %s2410
      $region80: #{flash_mha_forward.3} parent=43 // pred_fallthru
        _
    $region44: #{flash_mha_forward.3} parent=5 // pred_fallthru
      _
    %p2412 = scmp.le.s32.totalorder 2, %s15
    // Predicated region
    $region81: #{flash_mha_forward.3} parent=5 // pred_check
      %p2413 = pneg %p2412
    $region82: #{flash_mha_forward.3} parent=5 // pred_check_branch
      %2415 = sbr.rel (%p2413) target = $region84
    $region83: #{flash_mha_forward.3} parent=5 // pred_region
      %s2416 = ssub.s32 %s15, 2
    $region84: #{flash_mha_forward.3} parent=5 // pred_fallthru
      _
  $region6: #{flash_mha_forward.3} parent=0 // loop_footer
    %s19 = sadd.s32 1, %s15
  $region7: #{flash_mha_forward.3} parent=0 // loop_footer_branch
    %14 = sbr.rel target = $region3
  $region8: #{flash_mha_forward.3} parent=0 // loop_exit
    _

// kernel: flash_mha_forward.4
$region0: #{flash_mha_forward.4}
  #allocation0 [shape = 'u32[]', space=smem, size = 0x4, offset = 0x4, fixed_abs, tag = 'smem constant byte address 0x4 - core index']
  #allocation1 [shape = 'u32[144,128]{1,0:T(1,128)}', space=vmem, size = 0x12000, scoped, tag = 'internal scratch']
  #allocation2 [shape = 'f32[2,256,1]{2,1,0:T(8,128)}', space=vmem, size = 0x40000, scoped, tag = 'scratch operand']
  #allocation3 [shape = 'f32[2,256,1]{2,1,0:T(8,128)}', space=vmem, size = 0x40000, scoped, tag = 'scratch operand']
  #allocation4 [shape = 'f32[2,256,32]{2,1,0:T(8,128)}', space=vmem, size = 0x40000, scoped, tag = 'scratch operand']
  %s0 = inlined_call_operand.vmem [shape: s32[256,1], index: 0, kind: input, shape index: {}]
  %s1 = inlined_call_operand.vmem [shape: s32[1,256], index: 1, kind: input, shape index: {}]
  %s2 = inlined_call_operand.vmem [shape: bf16[256,64], index: 2, kind: input, shape index: {}]
  %s3 = inlined_call_operand.vmem [shape: bf16[256,64], index: 3, kind: input, shape index: {}]
  %s4 = inlined_call_operand.vmem [shape: bf16[256,64], index: 4, kind: input, shape index: {}]
  %s5 = inlined_call_operand.vmem [shape: bf16[256,64], index: 5, kind: output, shape index: {}]
  %s6 = sld [smem:[#allocation0]]
  $region38: #{flash_mha_forward.4} parent=0
    _
  %s8 = ssub.s32 1, %s6
  %s9 = scalar_select 0, %s8, %s6
  // Predicated region
  $region2: #{flash_mha_forward.4} parent=0 // pred_check
    _
  $region3: #{flash_mha_forward.4} parent=0 // pred_check_branch
    %11 = sbr.rel (0) target = $region5
  $region4: #{flash_mha_forward.4} parent=0 // pred_region
    _
  $region5: #{flash_mha_forward.4} parent=0 // pred_fallthru
    _
  // Predicated region
  $region6: #{flash_mha_forward.4} parent=0 // pred_check
    _
  $region7: #{flash_mha_forward.4} parent=0 // pred_check_branch
    %13 = sbr.rel (0) target = $region9
  $region8: #{flash_mha_forward.4} parent=0 // pred_region
    _
  $region9: #{flash_mha_forward.4} parent=0 // pred_fallthru
    _
  // Predicated region
  $region10: #{flash_mha_forward.4} parent=0 // pred_check
    _
  $region11: #{flash_mha_forward.4} parent=0 // pred_check_branch
    %15 = sbr.rel (0) target = $region13
  $region12: #{flash_mha_forward.4} parent=0 // pred_region
    _
  $region13: #{flash_mha_forward.4} parent=0 // pred_fallthru
    _
  // Predicated region
  $region14: #{flash_mha_forward.4} parent=0 // pred_check
    _
  $region15: #{flash_mha_forward.4} parent=0 // pred_check_branch
    %17 = sbr.rel (0) target = $region17
  $region16: #{flash_mha_forward.4} parent=0 // pred_region
    _
  $region17: #{flash_mha_forward.4} parent=0 // pred_fallthru
    _
  // Predicated region
  $region18: #{flash_mha_forward.4} parent=0 // pred_check
    _
  $region19: #{flash_mha_forward.4} parent=0 // pred_check_branch
    %19 = sbr.rel (0) target = $region21
  $region20: #{flash_mha_forward.4} parent=0 // pred_region
    _
  $region21: #{flash_mha_forward.4} parent=0 // pred_fallthru
    _
  %p21 = scmp.eq.s32.totalorder 0, 0
  // Predicated region
  $region22: #{flash_mha_forward.4} parent=0 // pred_check
    %p22 = pneg %p21
  $region23: #{flash_mha_forward.4} parent=0 // pred_check_branch
    %24 = sbr.rel (%p22) target = $region25
  $region24: #{flash_mha_forward.4} parent=0 // pred_region
    %vm25 = vcmask 7168
    %26 = vst.msk [vmem:[#allocation2] sm:$0xff] %vm25, -inf
    %27 = vst.msk [vmem:[#allocation2 + $0x8] sm:$0xff] %vm25, -inf
    %28 = vst.msk [vmem:[#allocation2 + $0x10] sm:$0xff] %vm25, -inf
    %29 = vst.msk [vmem:[#allocation2 + $0x18] sm:$0xff] %vm25, -inf
    %30 = vst.msk [vmem:[#allocation2 + $0x20] sm:$0xff] %vm25, -inf
    %31 = vst.msk [vmem:[#allocation2 + $0x28] sm:$0xff] %vm25, -inf
    %32 = vst.msk [vmem:[#allocation2 + $0x30] sm:$0xff] %vm25, -inf
    %33 = vst.msk [vmem:[#allocation2 + $0x38] sm:$0xff] %vm25, -inf
    %34 = vst.msk [vmem:[#allocation2 + $0x40] sm:$0xff] %vm25, -inf
    %35 = vst.msk [vmem:[#allocation2 + $0x48] sm:$0xff] %vm25, -inf
    %36 = vst.msk [vmem:[#allocation2 + $0x50] sm:$0xff] %vm25, -inf
    %37 = vst.msk [vmem:[#allocation2 + $0x58] sm:$0xff] %vm25, -inf
    %38 = vst.msk [vmem:[#allocation2 + $0x60] sm:$0xff] %vm25, -inf
    %39 = vst.msk [vmem:[#allocation2 + $0x68] sm:$0xff] %vm25, -inf
    %40 = vst.msk [vmem:[#allocation2 + $0x70] sm:$0xff] %vm25, -inf
    %41 = vst.msk [vmem:[#allocation2 + $0x78] sm:$0xff] %vm25, -inf
    %42 = vst.msk [vmem:[#allocation2 + $0x80] sm:$0xff] %vm25, -inf
    %43 = vst.msk [vmem:[#allocation2 + $0x88] sm:$0xff] %vm25, -inf
    %44 = vst.msk [vmem:[#allocation2 + $0x90] sm:$0xff] %vm25, -inf
    %45 = vst.msk [vmem:[#allocation2 + $0x98] sm:$0xff] %vm25, -inf
    %46 = vst.msk [vmem:[#allocation2 + $0xa0] sm:$0xff] %vm25, -inf
    %47 = vst.msk [vmem:[#allocation2 + $0xa8] sm:$0xff] %vm25, -inf
    %48 = vst.msk [vmem:[#allocation2 + $0xb0] sm:$0xff] %vm25, -inf
    %49 = vst.msk [vmem:[#allocation2 + $0xb8] sm:$0xff] %vm25, -inf
    %50 = vst.msk [vmem:[#allocation2 + $0xc0] sm:$0xff] %vm25, -inf
    %51 = vst.msk [vmem:[#allocation2 + $0xc8] sm:$0xff] %vm25, -inf
    %52 = vst.msk [vmem:[#allocation2 + $0xd0] sm:$0xff] %vm25, -inf
    %53 = vst.msk [vmem:[#allocation2 + $0xd8] sm:$0xff] %vm25, -inf
    %54 = vst.msk [vmem:[#allocation2 + $0xe0] sm:$0xff] %vm25, -inf
    %55 = vst.msk [vmem:[#allocation2 + $0xe8] sm:$0xff] %vm25, -inf
    %56 = vst.msk [vmem:[#allocation2 + $0xf0] sm:$0xff] %vm25, -inf
    %57 = vst.msk [vmem:[#allocation2 + $0xf8] sm:$0xff] %vm25, -inf
    %58 = vst.msk [vmem:[#allocation2 + $0x100] sm:$0xff] %vm25, -inf
    %59 = vst.msk [vmem:[#allocation2 + $0x108] sm:$0xff] %vm25, -inf
    %60 = vst.msk [vmem:[#allocation2 + $0x110] sm:$0xff] %vm25, -inf
    %61 = vst.msk [vmem:[#allocation2 + $0x118] sm:$0xff] %vm25, -inf
    %62 = vst.msk [vmem:[#allocation2 + $0x120] sm:$0xff] %vm25, -inf
    %63 = vst.msk [vmem:[#allocation2 + $0x128] sm:$0xff] %vm25, -inf
    %64 = vst.msk [vmem:[#allocation2 + $0x130] sm:$0xff] %vm25, -inf
    %65 = vst.msk [vmem:[#allocation2 + $0x138] sm:$0xff] %vm25, -inf
    %66 = vst.msk [vmem:[#allocation2 + $0x140] sm:$0xff] %vm25, -inf
    %67 = vst.msk [vmem:[#allocation2 + $0x148] sm:$0xff] %vm25, -inf
    %68 = vst.msk [vmem:[#allocation2 + $0x150] sm:$0xff] %vm25, -inf
    %69 = vst.msk [vmem:[#allocation2 + $0x158] sm:$0xff] %vm25, -inf
    %70 = vst.msk [vmem:[#allocation2 + $0x160] sm:$0xff] %vm25, -inf
    %71 = vst.msk [vmem:[#allocation2 + $0x168] sm:$0xff] %vm25, -inf
    %72 = vst.msk [vmem:[#allocation2 + $0x170] sm:$0xff] %vm25, -inf
    %73 = vst.msk [vmem:[#allocation2 + $0x178] sm:$0xff] %vm25, -inf
    %74 = vst.msk [vmem:[#allocation2 + $0x180] sm:$0xff] %vm25, -inf
    %75 = vst.msk [vmem:[#allocation2 + $0x188] sm:$0xff] %vm25, -inf
    %76 = vst.msk [vmem:[#allocation2 + $0x190] sm:$0xff] %vm25, -inf
    %77 = vst.msk [vmem:[#allocation2 + $0x198] sm:$0xff] %vm25, -inf
    %78 = vst.msk [vmem:[#allocation2 + $0x1a0] sm:$0xff] %vm25, -inf
    %79 = vst.msk [vmem:[#allocation2 + $0x1a8] sm:$0xff] %vm25, -inf
    %80 = vst.msk [vmem:[#allocation2 + $0x1b0] sm:$0xff] %vm25, -inf
    %81 = vst.msk [vmem:[#allocation2 + $0x1b8] sm:$0xff] %vm25, -inf
    %82 = vst.msk [vmem:[#allocation2 + $0x1c0] sm:$0xff] %vm25, -inf
    %83 = vst.msk [vmem:[#allocation2 + $0x1c8] sm:$0xff] %vm25, -inf
    %84 = vst.msk [vmem:[#allocation2 + $0x1d0] sm:$0xff] %vm25, -inf
    %85 = vst.msk [vmem:[#allocation2 + $0x1d8] sm:$0xff] %vm25, -inf
    %86 = vst.msk [vmem:[#allocation2 + $0x1e0] sm:$0xff] %vm25, -inf
    %87 = vst.msk [vmem:[#allocation2 + $0x1e8] sm:$0xff] %vm25, -inf
    %88 = vst.msk [vmem:[#allocation2 + $0x1f0] sm:$0xff] %vm25, -inf
    %89 = vst.msk [vmem:[#allocation2 + $0x1f8] sm:$0xff] %vm25, -inf
    %90 = vst.msk [vmem:[#allocation3] sm:$0xff] %vm25, 0.0
    %91 = vst.msk [vmem:[#allocation3 + $0x8] sm:$0xff] %vm25, 0.0
    %92 = vst.msk [vmem:[#allocation3 + $0x10] sm:$0xff] %vm25, 0.0
    %93 = vst.msk [vmem:[#allocation3 + $0x18] sm:$0xff] %vm25, 0.0
    %94 = vst.msk [vmem:[#allocation3 + $0x20] sm:$0xff] %vm25, 0.0
    %95 = vst.msk [vmem:[#allocation3 + $0x28] sm:$0xff] %vm25, 0.0
    %96 = vst.msk [vmem:[#allocation3 + $0x30] sm:$0xff] %vm25, 0.0
    %97 = vst.msk [vmem:[#allocation3 + $0x38] sm:$0xff] %vm25, 0.0
    %98 = vst.msk [vmem:[#allocation3 + $0x40] sm:$0xff] %vm25, 0.0
    %99 = vst.msk [vmem:[#allocation3 + $0x48] sm:$0xff] %vm25, 0.0
    %100 = vst.msk [vmem:[#allocation3 + $0x50] sm:$0xff] %vm25, 0.0
    %101 = vst.msk [vmem:[#allocation3 + $0x58] sm:$0xff] %vm25, 0.0
    %102 = vst.msk [vmem:[#allocation3 + $0x60] sm:$0xff] %vm25, 0.0
    %103 = vst.msk [vmem:[#allocation3 + $0x68] sm:$0xff] %vm25, 0.0
    %104 = vst.msk [vmem:[#allocation3 + $0x70] sm:$0xff] %vm25, 0.0
    %105 = vst.msk [vmem:[#allocation3 + $0x78] sm:$0xff] %vm25, 0.0
    %106 = vst.msk [vmem:[#allocation3 + $0x80] sm:$0xff] %vm25, 0.0
    %107 = vst.msk [vmem:[#allocation3 + $0x88] sm:$0xff] %vm25, 0.0
    %108 = vst.msk [vmem:[#allocation3 + $0x90] sm:$0xff] %vm25, 0.0
    %109 = vst.msk [vmem:[#allocation3 + $0x98] sm:$0xff] %vm25, 0.0
    %110 = vst.msk [vmem:[#allocation3 + $0xa0] sm:$0xff] %vm25, 0.0
    %111 = vst.msk [vmem:[#allocation3 + $0xa8] sm:$0xff] %vm25, 0.0
    %112 = vst.msk [vmem:[#allocation3 + $0xb0] sm:$0xff] %vm25, 0.0
    %113 = vst.msk [vmem:[#allocation3 + $0xb8] sm:$0xff] %vm25, 0.0
    %114 = vst.msk [vmem:[#allocation3 + $0xc0] sm:$0xff] %vm25, 0.0
    %115 = vst.msk [vmem:[#allocation3 + $0xc8] sm:$0xff] %vm25, 0.0
    %116 = vst.msk [vmem:[#allocation3 + $0xd0] sm:$0xff] %vm25, 0.0
    %117 = vst.msk [vmem:[#allocation3 + $0xd8] sm:$0xff] %vm25, 0.0
    %118 = vst.msk [vmem:[#allocation3 + $0xe0] sm:$0xff] %vm25, 0.0
    %119 = vst.msk [vmem:[#allocation3 + $0xe8] sm:$0xff] %vm25, 0.0
    %120 = vst.msk [vmem:[#allocation3 + $0xf0] sm:$0xff] %vm25, 0.0
    %121 = vst.msk [vmem:[#allocation3 + $0xf8] sm:$0xff] %vm25, 0.0
    %122 = vst.msk [vmem:[#allocation3 + $0x100] sm:$0xff] %vm25, 0.0
    %123 = vst.msk [vmem:[#allocation3 + $0x108] sm:$0xff] %vm25, 0.0
    %124 = vst.msk [vmem:[#allocation3 + $0x110] sm:$0xff] %vm25, 0.0
    %125 = vst.msk [vmem:[#allocation3 + $0x118] sm:$0xff] %vm25, 0.0
    %126 = vst.msk [vmem:[#allocation3 + $0x120] sm:$0xff] %vm25, 0.0
    %127 = vst.msk [vmem:[#allocation3 + $0x128] sm:$0xff] %vm25, 0.0
    %128 = vst.msk [vmem:[#allocation3 + $0x130] sm:$0xff] %vm25, 0.0
    %129 = vst.msk [vmem:[#allocation3 + $0x138] sm:$0xff] %vm25, 0.0
    %130 = vst.msk [vmem:[#allocation3 + $0x140] sm:$0xff] %vm25, 0.0
    %131 = vst.msk [vmem:[#allocation3 + $0x148] sm:$0xff] %vm25, 0.0
    %132 = vst.msk [vmem:[#allocation3 + $0x150] sm:$0xff] %vm25, 0.0
    %133 = vst.msk [vmem:[#allocation3 + $0x158] sm:$0xff] %vm25, 0.0
    %134 = vst.msk [vmem:[#allocation3 + $0x160] sm:$0xff] %vm25, 0.0
    %135 = vst.msk [vmem:[#allocation3 + $0x168] sm:$0xff] %vm25, 0.0
    %136 = vst.msk [vmem:[#allocation3 + $0x170] sm:$0xff] %vm25, 0.0
    %137 = vst.msk [vmem:[#allocation3 + $0x178] sm:$0xff] %vm25, 0.0
    %138 = vst.msk [vmem:[#allocation3 + $0x180] sm:$0xff] %vm25, 0.0
    %139 = vst.msk [vmem:[#allocation3 + $0x188] sm:$0xff] %vm25, 0.0
    %140 = vst.msk [vmem:[#allocation3 + $0x190] sm:$0xff] %vm25, 0.0
    %141 = vst.msk [vmem:[#allocation3 + $0x198] sm:$0xff] %vm25, 0.0
    %142 = vst.msk [vmem:[#allocation3 + $0x1a0] sm:$0xff] %vm25, 0.0
    %143 = vst.msk [vmem:[#allocation3 + $0x1a8] sm:$0xff] %vm25, 0.0
    %144 = vst.msk [vmem:[#allocation3 + $0x1b0] sm:$0xff] %vm25, 0.0
    %145 = vst.msk [vmem:[#allocation3 + $0x1b8] sm:$0xff] %vm25, 0.0
    %146 = vst.msk [vmem:[#allocation3 + $0x1c0] sm:$0xff] %vm25, 0.0
    %147 = vst.msk [vmem:[#allocation3 + $0x1c8] sm:$0xff] %vm25, 0.0
    %148 = vst.msk [vmem:[#allocation3 + $0x1d0] sm:$0xff] %vm25, 0.0
    %149 = vst.msk [vmem:[#allocation3 + $0x1d8] sm:$0xff] %vm25, 0.0
    %150 = vst.msk [vmem:[#allocation3 + $0x1e0] sm:$0xff] %vm25, 0.0
    %151 = vst.msk [vmem:[#allocation3 + $0x1e8] sm:$0xff] %vm25, 0.0
    %152 = vst.msk [vmem:[#allocation3 + $0x1f0] sm:$0xff] %vm25, 0.0
    %153 = vst.msk [vmem:[#allocation3 + $0x1f8] sm:$0xff] %vm25, 0.0
    %vm154 = vcmask 261120
    %155 = vst.msk [vmem:[#allocation4] sm:$0xff] %vm154, 0.0
    %156 = vst.msk [vmem:[#allocation4 + $0x8] sm:$0xff] %vm154, 0.0
    %157 = vst.msk [vmem:[#allocation4 + $0x10] sm:$0xff] %vm154, 0.0
    %158 = vst.msk [vmem:[#allocation4 + $0x18] sm:$0xff] %vm154, 0.0
    %159 = vst.msk [vmem:[#allocation4 + $0x20] sm:$0xff] %vm154, 0.0
    %160 = vst.msk [vmem:[#allocation4 + $0x28] sm:$0xff] %vm154, 0.0
    %161 = vst.msk [vmem:[#allocation4 + $0x30] sm:$0xff] %vm154, 0.0
    %162 = vst.msk [vmem:[#allocation4 + $0x38] sm:$0xff] %vm154, 0.0
    %163 = vst.msk [vmem:[#allocation4 + $0x40] sm:$0xff] %vm154, 0.0
    %164 = vst.msk [vmem:[#allocation4 + $0x48] sm:$0xff] %vm154, 0.0
    %165 = vst.msk [vmem:[#allocation4 + $0x50] sm:$0xff] %vm154, 0.0
    %166 = vst.msk [vmem:[#allocation4 + $0x58] sm:$0xff] %vm154, 0.0
    %167 = vst.msk [vmem:[#allocation4 + $0x60] sm:$0xff] %vm154, 0.0
    %168 = vst.msk [vmem:[#allocation4 + $0x68] sm:$0xff] %vm154, 0.0
    %169 = vst.msk [vmem:[#allocation4 + $0x70] sm:$0xff] %vm154, 0.0
    %170 = vst.msk [vmem:[#allocation4 + $0x78] sm:$0xff] %vm154, 0.0
    %171 = vst.msk [vmem:[#allocation4 + $0x80] sm:$0xff] %vm154, 0.0
    %172 = vst.msk [vmem:[#allocation4 + $0x88] sm:$0xff] %vm154, 0.0
    %173 = vst.msk [vmem:[#allocation4 + $0x90] sm:$0xff] %vm154, 0.0
    %174 = vst.msk [vmem:[#allocation4 + $0x98] sm:$0xff] %vm154, 0.0
    %175 = vst.msk [vmem:[#allocation4 + $0xa0] sm:$0xff] %vm154, 0.0
    %176 = vst.msk [vmem:[#allocation4 + $0xa8] sm:$0xff] %vm154, 0.0
    %177 = vst.msk [vmem:[#allocation4 + $0xb0] sm:$0xff] %vm154, 0.0
    %178 = vst.msk [vmem:[#allocation4 + $0xb8] sm:$0xff] %vm154, 0.0
    %179 = vst.msk [vmem:[#allocation4 + $0xc0] sm:$0xff] %vm154, 0.0
    %180 = vst.msk [vmem:[#allocation4 + $0xc8] sm:$0xff] %vm154, 0.0
    %181 = vst.msk [vmem:[#allocation4 + $0xd0] sm:$0xff] %vm154, 0.0
    %182 = vst.msk [vmem:[#allocation4 + $0xd8] sm:$0xff] %vm154, 0.0
    %183 = vst.msk [vmem:[#allocation4 + $0xe0] sm:$0xff] %vm154, 0.0
    %184 = vst.msk [vmem:[#allocation4 + $0xe8] sm:$0xff] %vm154, 0.0
    %185 = vst.msk [vmem:[#allocation4 + $0xf0] sm:$0xff] %vm154, 0.0
    %186 = vst.msk [vmem:[#allocation4 + $0xf8] sm:$0xff] %vm154, 0.0
    %187 = vst.msk [vmem:[#allocation4 + $0x100] sm:$0xff] %vm154, 0.0
    %188 = vst.msk [vmem:[#allocation4 + $0x108] sm:$0xff] %vm154, 0.0
    %189 = vst.msk [vmem:[#allocation4 + $0x110] sm:$0xff] %vm154, 0.0
    %190 = vst.msk [vmem:[#allocation4 + $0x118] sm:$0xff] %vm154, 0.0
    %191 = vst.msk [vmem:[#allocation4 + $0x120] sm:$0xff] %vm154, 0.0
    %192 = vst.msk [vmem:[#allocation4 + $0x128] sm:$0xff] %vm154, 0.0
    %193 = vst.msk [vmem:[#allocation4 + $0x130] sm:$0xff] %vm154, 0.0
    %194 = vst.msk [vmem:[#allocation4 + $0x138] sm:$0xff] %vm154, 0.0
    %195 = vst.msk [vmem:[#allocation4 + $0x140] sm:$0xff] %vm154, 0.0
    %196 = vst.msk [vmem:[#allocation4 + $0x148] sm:$0xff] %vm154, 0.0
    %197 = vst.msk [vmem:[#allocation4 + $0x150] sm:$0xff] %vm154, 0.0
    %198 = vst.msk [vmem:[#allocation4 + $0x158] sm:$0xff] %vm154, 0.0
    %199 = vst.msk [vmem:[#allocation4 + $0x160] sm:$0xff] %vm154, 0.0
    %200 = vst.msk [vmem:[#allocation4 + $0x168] sm:$0xff] %vm154, 0.0
    %201 = vst.msk [vmem:[#allocation4 + $0x170] sm:$0xff] %vm154, 0.0
    %202 = vst.msk [vmem:[#allocation4 + $0x178] sm:$0xff] %vm154, 0.0
    %203 = vst.msk [vmem:[#allocation4 + $0x180] sm:$0xff] %vm154, 0.0
    %204 = vst.msk [vmem:[#allocation4 + $0x188] sm:$0xff] %vm154, 0.0
    %205 = vst.msk [vmem:[#allocation4 + $0x190] sm:$0xff] %vm154, 0.0
    %206 = vst.msk [vmem:[#allocation4 + $0x198] sm:$0xff] %vm154, 0.0
    %207 = vst.msk [vmem:[#allocation4 + $0x1a0] sm:$0xff] %vm154, 0.0
    %208 = vst.msk [vmem:[#allocation4 + $0x1a8] sm:$0xff] %vm154, 0.0
    %209 = vst.msk [vmem:[#allocation4 + $0x1b0] sm:$0xff] %vm154, 0.0
    %210 = vst.msk [vmem:[#allocation4 + $0x1b8] sm:$0xff] %vm154, 0.0
    %211 = vst.msk [vmem:[#allocation4 + $0x1c0] sm:$0xff] %vm154, 0.0
    %212 = vst.msk [vmem:[#allocation4 + $0x1c8] sm:$0xff] %vm154, 0.0
    %213 = vst.msk [vmem:[#allocation4 + $0x1d0] sm:$0xff] %vm154, 0.0
    %214 = vst.msk [vmem:[#allocation4 + $0x1d8] sm:$0xff] %vm154, 0.0
    %215 = vst.msk [vmem:[#allocation4 + $0x1e0] sm:$0xff] %vm154, 0.0
    %216 = vst.msk [vmem:[#allocation4 + $0x1e8] sm:$0xff] %vm154, 0.0
    %217 = vst.msk [vmem:[#allocation4 + $0x1f0] sm:$0xff] %vm154, 0.0
    %218 = vst.msk [vmem:[#allocation4 + $0x1f8] sm:$0xff] %vm154, 0.0
  $region25: #{flash_mha_forward.4} parent=0 // pred_fallthru
    _
  %v219 = vld [vmem:[%s0] sm:$0xff]
  %v220 = vld [vmem:[%s0 + $0x8] sm:$0xff]
  %v221 = vld [vmem:[%s0 + $0x10] sm:$0xff]
  %v222 = vld [vmem:[%s0 + $0x18] sm:$0xff]
  %v223 = vld [vmem:[%s0 + $0x20] sm:$0xff]
  %v224 = vld [vmem:[%s0 + $0x28] sm:$0xff]
  %v225 = vld [vmem:[%s0 + $0x30] sm:$0xff]
  %v226 = vld [vmem:[%s0 + $0x38] sm:$0xff]
  %v227 = vld [vmem:[%s0 + $0x40] sm:$0xff]
  %v228 = vld [vmem:[%s0 + $0x48] sm:$0xff]
  %v229 = vld [vmem:[%s0 + $0x50] sm:$0xff]
  %v230 = vld [vmem:[%s0 + $0x58] sm:$0xff]
  %v231 = vld [vmem:[%s0 + $0x60] sm:$0xff]
  %v232 = vld [vmem:[%s0 + $0x68] sm:$0xff]
  %v233 = vld [vmem:[%s0 + $0x70] sm:$0xff]
  %v234 = vld [vmem:[%s0 + $0x78] sm:$0xff]
  %v235 = vld [vmem:[%s0 + $0x80] sm:$0xff]
  %v236 = vld [vmem:[%s0 + $0x88] sm:$0xff]
  %v237 = vld [vmem:[%s0 + $0x90] sm:$0xff]
  %v238 = vld [vmem:[%s0 + $0x98] sm:$0xff]
  %v239 = vld [vmem:[%s0 + $0xa0] sm:$0xff]
  %v240 = vld [vmem:[%s0 + $0xa8] sm:$0xff]
  %v241 = vld [vmem:[%s0 + $0xb0] sm:$0xff]
  %v242 = vld [vmem:[%s0 + $0xb8] sm:$0xff]
  %v243 = vld [vmem:[%s0 + $0xc0] sm:$0xff]
  %v244 = vld [vmem:[%s0 + $0xc8] sm:$0xff]
  %v245 = vld [vmem:[%s0 + $0xd0] sm:$0xff]
  %v246 = vld [vmem:[%s0 + $0xd8] sm:$0xff]
  %v247 = vld [vmem:[%s0 + $0xe0] sm:$0xff]
  %v248 = vld [vmem:[%s0 + $0xe8] sm:$0xff]
  %v249 = vld [vmem:[%s0 + $0xf0] sm:$0xff]
  %v250 = vld [vmem:[%s0 + $0xf8] sm:$0xff]
  %v251 = vld [vmem:[%s1] sm:$0x3]
  %252 = vset.pattern.permute.xlu0 0
  %253 = vperm.xlu0 %252, %v219
  %v254 = vpop.permute.xlu0 %253
  %255 = vset.pattern.permute.xlu0 0
  %256 = vperm.xlu0 %255, %v220
  %v257 = vpop.permute.xlu0 %256
  %258 = vset.pattern.permute.xlu0 0
  %259 = vperm.xlu0 %258, %v221
  %v260 = vpop.permute.xlu0 %259
  %261 = vset.pattern.permute.xlu0 0
  %262 = vperm.xlu0 %261, %v222
  %v263 = vpop.permute.xlu0 %262
  %264 = vset.pattern.permute.xlu0 0
  %265 = vperm.xlu0 %264, %v223
  %v266 = vpop.permute.xlu0 %265
  %267 = vset.pattern.permute.xlu0 0
  %268 = vperm.xlu0 %267, %v224
  %v269 = vpop.permute.xlu0 %268
  %270 = vset.pattern.permute.xlu0 0
  %271 = vperm.xlu0 %270, %v225
  %v272 = vpop.permute.xlu0 %271
  %273 = vset.pattern.permute.xlu0 0
  %274 = vperm.xlu0 %273, %v226
  %v275 = vpop.permute.xlu0 %274
  %276 = vset.pattern.permute.xlu0 0
  %277 = vperm.xlu0 %276, %v227
  %v278 = vpop.permute.xlu0 %277
  %279 = vset.pattern.permute.xlu0 0
  %280 = vperm.xlu0 %279, %v228
  %v281 = vpop.permute.xlu0 %280
  %282 = vset.pattern.permute.xlu0 0
  %283 = vperm.xlu0 %282, %v229
  %v284 = vpop.permute.xlu0 %283
  %285 = vset.pattern.permute.xlu0 0
  %286 = vperm.xlu0 %285, %v230
  %v287 = vpop.permute.xlu0 %286
  %288 = vset.pattern.permute.xlu0 0
  %289 = vperm.xlu0 %288, %v231
  %v290 = vpop.permute.xlu0 %289
  %291 = vset.pattern.permute.xlu0 0
  %292 = vperm.xlu0 %291, %v232
  %v293 = vpop.permute.xlu0 %292
  %294 = vset.pattern.permute.xlu0 0
  %295 = vperm.xlu0 %294, %v233
  %v296 = vpop.permute.xlu0 %295
  %297 = vset.pattern.permute.xlu0 0
  %298 = vperm.xlu0 %297, %v234
  %v299 = vpop.permute.xlu0 %298
  %300 = vset.pattern.permute.xlu0 0
  %301 = vperm.xlu0 %300, %v235
  %v302 = vpop.permute.xlu0 %301
  %303 = vset.pattern.permute.xlu0 0
  %304 = vperm.xlu0 %303, %v236
  %v305 = vpop.permute.xlu0 %304
  %306 = vset.pattern.permute.xlu0 0
  %307 = vperm.xlu0 %306, %v237
  %v308 = vpop.permute.xlu0 %307
  %309 = vset.pattern.permute.xlu0 0
  %310 = vperm.xlu0 %309, %v238
  %v311 = vpop.permute.xlu0 %310
  %312 = vset.pattern.permute.xlu0 0
  %313 = vperm.xlu0 %312, %v239
  %v314 = vpop.permute.xlu0 %313
  %315 = vset.pattern.permute.xlu0 0
  %316 = vperm.xlu0 %315, %v240
  %v317 = vpop.permute.xlu0 %316
  %318 = vset.pattern.permute.xlu0 0
  %319 = vperm.xlu0 %318, %v241
  %v320 = vpop.permute.xlu0 %319
  %321 = vset.pattern.permute.xlu0 0
  %322 = vperm.xlu0 %321, %v242
  %v323 = vpop.permute.xlu0 %322
  %324 = vset.pattern.permute.xlu0 0
  %325 = vperm.xlu0 %324, %v243
  %v326 = vpop.permute.xlu0 %325
  %327 = vset.pattern.permute.xlu0 0
  %328 = vperm.xlu0 %327, %v244
  %v329 = vpop.permute.xlu0 %328
  %330 = vset.pattern.permute.xlu0 0
  %331 = vperm.xlu0 %330, %v245
  %v332 = vpop.permute.xlu0 %331
  %333 = vset.pattern.permute.xlu0 0
  %334 = vperm.xlu0 %333, %v246
  %v335 = vpop.permute.xlu0 %334
  %336 = vset.pattern.permute.xlu0 0
  %337 = vperm.xlu0 %336, %v247
  %v338 = vpop.permute.xlu0 %337
  %339 = vset.pattern.permute.xlu0 0
  %340 = vperm.xlu0 %339, %v248
  %v341 = vpop.permute.xlu0 %340
  %342 = vset.pattern.permute.xlu0 0
  %343 = vperm.xlu0 %342, %v249
  %v344 = vpop.permute.xlu0 %343
  %345 = vset.pattern.permute.xlu0 0
  %346 = vperm.xlu0 %345, %v250
  %v347 = vpop.permute.xlu0 %346
  %v348 = vlaneseq
  %v349 = vshrl.u32 %v348, 7
  %v350 = vsub.s32 0, %v349
  %v351 = vrot.slane %v251, %v350
  %v352 = vlaneseq
  %v353 = vshrl.u32 %v352, 7
  %v354 = vsub.s32 1, %v353
  %v355 = vrot.slane %v251, %v354
  %vm356 = vcmp.eq.s32.totalorder %v254, %v351
  %vm357 = vcmp.eq.s32.totalorder %v254, %v355
  %vm358 = vcmp.eq.s32.totalorder %v257, %v351
  %vm359 = vcmp.eq.s32.totalorder %v257, %v355
  %vm360 = vcmp.eq.s32.totalorder %v260, %v351
  %vm361 = vcmp.eq.s32.totalorder %v260, %v355
  %vm362 = vcmp.eq.s32.totalorder %v263, %v351
  %vm363 = vcmp.eq.s32.totalorder %v263, %v355
  %vm364 = vcmp.eq.s32.totalorder %v266, %v351
  %vm365 = vcmp.eq.s32.totalorder %v266, %v355
  %vm366 = vcmp.eq.s32.totalorder %v269, %v351
  %vm367 = vcmp.eq.s32.totalorder %v269, %v355
  %vm368 = vcmp.eq.s32.totalorder %v272, %v351
  %vm369 = vcmp.eq.s32.totalorder %v272, %v355
  %vm370 = vcmp.eq.s32.totalorder %v275, %v351
  %vm371 = vcmp.eq.s32.totalorder %v275, %v355
  %vm372 = vcmp.eq.s32.totalorder %v278, %v351
  %vm373 = vcmp.eq.s32.totalorder %v278, %v355
  %vm374 = vcmp.eq.s32.totalorder %v281, %v351
  %vm375 = vcmp.eq.s32.totalorder %v281, %v355
  %vm376 = vcmp.eq.s32.totalorder %v284, %v351
  %vm377 = vcmp.eq.s32.totalorder %v284, %v355
  %vm378 = vcmp.eq.s32.totalorder %v287, %v351
  %vm379 = vcmp.eq.s32.totalorder %v287, %v355
  %vm380 = vcmp.eq.s32.totalorder %v290, %v351
  %vm381 = vcmp.eq.s32.totalorder %v290, %v355
  %vm382 = vcmp.eq.s32.totalorder %v293, %v351
  %vm383 = vcmp.eq.s32.totalorder %v293, %v355
  %vm384 = vcmp.eq.s32.totalorder %v296, %v351
  %vm385 = vcmp.eq.s32.totalorder %v296, %v355
  %vm386 = vcmp.eq.s32.totalorder %v299, %v351
  %vm387 = vcmp.eq.s32.totalorder %v299, %v355
  %vm388 = vcmp.eq.s32.totalorder %v302, %v351
  %vm389 = vcmp.eq.s32.totalorder %v302, %v355
  %vm390 = vcmp.eq.s32.totalorder %v305, %v351
  %vm391 = vcmp.eq.s32.totalorder %v305, %v355
  %vm392 = vcmp.eq.s32.totalorder %v308, %v351
  %vm393 = vcmp.eq.s32.totalorder %v308, %v355
  %vm394 = vcmp.eq.s32.totalorder %v311, %v351
  %vm395 = vcmp.eq.s32.totalorder %v311, %v355
  %vm396 = vcmp.eq.s32.totalorder %v314, %v351
  %vm397 = vcmp.eq.s32.totalorder %v314, %v355
  %vm398 = vcmp.eq.s32.totalorder %v317, %v351
  %vm399 = vcmp.eq.s32.totalorder %v317, %v355
  %vm400 = vcmp.eq.s32.totalorder %v320, %v351
  %vm401 = vcmp.eq.s32.totalorder %v320, %v355
  %vm402 = vcmp.eq.s32.totalorder %v323, %v351
  %vm403 = vcmp.eq.s32.totalorder %v323, %v355
  %vm404 = vcmp.eq.s32.totalorder %v326, %v351
  %vm405 = vcmp.eq.s32.totalorder %v326, %v355
  %vm406 = vcmp.eq.s32.totalorder %v329, %v351
  %vm407 = vcmp.eq.s32.totalorder %v329, %v355
  %vm408 = vcmp.eq.s32.totalorder %v332, %v351
  %vm409 = vcmp.eq.s32.totalorder %v332, %v355
  %vm410 = vcmp.eq.s32.totalorder %v335, %v351
  %vm411 = vcmp.eq.s32.totalorder %v335, %v355
  %vm412 = vcmp.eq.s32.totalorder %v338, %v351
  %vm413 = vcmp.eq.s32.totalorder %v338, %v355
  %vm414 = vcmp.eq.s32.totalorder %v341, %v351
  %vm415 = vcmp.eq.s32.totalorder %v341, %v355
  %vm416 = vcmp.eq.s32.totalorder %v344, %v351
  %vm417 = vcmp.eq.s32.totalorder %v344, %v355
  %vm418 = vcmp.eq.s32.totalorder %v347, %v351
  %vm419 = vcmp.eq.s32.totalorder %v347, %v355
  %v420 = vsel %vm356, 0.0, -1e+30
  %v421 = vsel %vm357, 0.0, -1e+30
  %v422 = vsel %vm358, 0.0, -1e+30
  %v423 = vsel %vm359, 0.0, -1e+30
  %v424 = vsel %vm360, 0.0, -1e+30
  %v425 = vsel %vm361, 0.0, -1e+30
  %v426 = vsel %vm362, 0.0, -1e+30
  %v427 = vsel %vm363, 0.0, -1e+30
  %v428 = vsel %vm364, 0.0, -1e+30
  %v429 = vsel %vm365, 0.0, -1e+30
  %v430 = vsel %vm366, 0.0, -1e+30
  %v431 = vsel %vm367, 0.0, -1e+30
  %v432 = vsel %vm368, 0.0, -1e+30
  %v433 = vsel %vm369, 0.0, -1e+30
  %v434 = vsel %vm370, 0.0, -1e+30
  %v435 = vsel %vm371, 0.0, -1e+30
  %v436 = vsel %vm372, 0.0, -1e+30
  %v437 = vsel %vm373, 0.0, -1e+30
  %v438 = vsel %vm374, 0.0, -1e+30
  %v439 = vsel %vm375, 0.0, -1e+30
  %v440 = vsel %vm376, 0.0, -1e+30
  %v441 = vsel %vm377, 0.0, -1e+30
  %v442 = vsel %vm378, 0.0, -1e+30
  %v443 = vsel %vm379, 0.0, -1e+30
  %v444 = vsel %vm380, 0.0, -1e+30
  %v445 = vsel %vm381, 0.0, -1e+30
  %v446 = vsel %vm382, 0.0, -1e+30
  %v447 = vsel %vm383, 0.0, -1e+30
  %v448 = vsel %vm384, 0.0, -1e+30
  %v449 = vsel %vm385, 0.0, -1e+30
  %v450 = vsel %vm386, 0.0, -1e+30
  %v451 = vsel %vm387, 0.0, -1e+30
  %v452 = vsel %vm388, 0.0, -1e+30
  %v453 = vsel %vm389, 0.0, -1e+30
  %v454 = vsel %vm390, 0.0, -1e+30
  %v455 = vsel %vm391, 0.0, -1e+30
  %v456 = vsel %vm392, 0.0, -1e+30
  %v457 = vsel %vm393, 0.0, -1e+30
  %v458 = vsel %vm394, 0.0, -1e+30
  %v459 = vsel %vm395, 0.0, -1e+30
  %v460 = vsel %vm396, 0.0, -1e+30
  %v461 = vsel %vm397, 0.0, -1e+30
  %v462 = vsel %vm398, 0.0, -1e+30
  %v463 = vsel %vm399, 0.0, -1e+30
  %v464 = vsel %vm400, 0.0, -1e+30
  %v465 = vsel %vm401, 0.0, -1e+30
  %v466 = vsel %vm402, 0.0, -1e+30
  %v467 = vsel %vm403, 0.0, -1e+30
  %v468 = vsel %vm404, 0.0, -1e+30
  %v469 = vsel %vm405, 0.0, -1e+30
  %v470 = vsel %vm406, 0.0, -1e+30
  %v471 = vsel %vm407, 0.0, -1e+30
  %v472 = vsel %vm408, 0.0, -1e+30
  %v473 = vsel %vm409, 0.0, -1e+30
  %v474 = vsel %vm410, 0.0, -1e+30
  %v475 = vsel %vm411, 0.0, -1e+30
  %v476 = vsel %vm412, 0.0, -1e+30
  %v477 = vsel %vm413, 0.0, -1e+30
  %v478 = vsel %vm414, 0.0, -1e+30
  %v479 = vsel %vm415, 0.0, -1e+30
  %v480 = vsel %vm416, 0.0, -1e+30
  %v481 = vsel %vm417, 0.0, -1e+30
  %v482 = vsel %vm418, 0.0, -1e+30
  %v483 = vsel %vm419, 0.0, -1e+30
  %v484 = vld [vmem:[%s2] sm:$0xf]
  %v485 = vld [vmem:[%s2 + $0x4] sm:$0xf]
  %v486 = vld [vmem:[%s2 + $0x8] sm:$0xf]
  %v487 = vld [vmem:[%s2 + $0xc] sm:$0xf]
  %v488 = vld [vmem:[%s2 + $0x10] sm:$0xf]
  %v489 = vld [vmem:[%s2 + $0x14] sm:$0xf]
  %v490 = vld [vmem:[%s2 + $0x18] sm:$0xf]
  %v491 = vld [vmem:[%s2 + $0x1c] sm:$0xf]
  %v492 = vld [vmem:[%s2 + $0x20] sm:$0xf]
  %v493 = vld [vmem:[%s2 + $0x24] sm:$0xf]
  %v494 = vld [vmem:[%s2 + $0x28] sm:$0xf]
  %v495 = vld [vmem:[%s2 + $0x2c] sm:$0xf]
  %v496 = vld [vmem:[%s2 + $0x30] sm:$0xf]
  %v497 = vld [vmem:[%s2 + $0x34] sm:$0xf]
  %v498 = vld [vmem:[%s2 + $0x38] sm:$0xf]
  %v499 = vld [vmem:[%s2 + $0x3c] sm:$0xf]
  %v500 = vld [vmem:[%s2 + $0x40] sm:$0xf]
  %v501 = vld [vmem:[%s2 + $0x44] sm:$0xf]
  %v502 = vld [vmem:[%s2 + $0x48] sm:$0xf]
  %v503 = vld [vmem:[%s2 + $0x4c] sm:$0xf]
  %v504 = vld [vmem:[%s2 + $0x50] sm:$0xf]
  %v505 = vld [vmem:[%s2 + $0x54] sm:$0xf]
  %v506 = vld [vmem:[%s2 + $0x58] sm:$0xf]
  %v507 = vld [vmem:[%s2 + $0x5c] sm:$0xf]
  %v508 = vld [vmem:[%s2 + $0x60] sm:$0xf]
  %v509 = vld [vmem:[%s2 + $0x64] sm:$0xf]
  %v510 = vld [vmem:[%s2 + $0x68] sm:$0xf]
  %v511 = vld [vmem:[%s2 + $0x6c] sm:$0xf]
  %v512 = vld [vmem:[%s2 + $0x70] sm:$0xf]
  %v513 = vld [vmem:[%s2 + $0x74] sm:$0xf]
  %v514 = vld [vmem:[%s2 + $0x78] sm:$0xf]
  %v515 = vld [vmem:[%s2 + $0x7c] sm:$0xf]
  %v516 = vld [vmem:[%s3] sm:$0xf]
  %v517 = vld [vmem:[%s3 + $0x4] sm:$0xf]
  %v518 = vld [vmem:[%s3 + $0x8] sm:$0xf]
  %v519 = vld [vmem:[%s3 + $0xc] sm:$0xf]
  %v520 = vld [vmem:[%s3 + $0x10] sm:$0xf]
  %v521 = vld [vmem:[%s3 + $0x14] sm:$0xf]
  %v522 = vld [vmem:[%s3 + $0x18] sm:$0xf]
  %v523 = vld [vmem:[%s3 + $0x1c] sm:$0xf]
  %v524 = vld [vmem:[%s3 + $0x20] sm:$0xf]
  %v525 = vld [vmem:[%s3 + $0x24] sm:$0xf]
  %v526 = vld [vmem:[%s3 + $0x28] sm:$0xf]
  %v527 = vld [vmem:[%s3 + $0x2c] sm:$0xf]
  %v528 = vld [vmem:[%s3 + $0x30] sm:$0xf]
  %v529 = vld [vmem:[%s3 + $0x34] sm:$0xf]
  %v530 = vld [vmem:[%s3 + $0x38] sm:$0xf]
  %v531 = vld [vmem:[%s3 + $0x3c] sm:$0xf]
  %v532 = vld [vmem:[%s3 + $0x40] sm:$0xf]
  %v533 = vld [vmem:[%s3 + $0x44] sm:$0xf]
  %v534 = vld [vmem:[%s3 + $0x48] sm:$0xf]
  %v535 = vld [vmem:[%s3 + $0x4c] sm:$0xf]
  %v536 = vld [vmem:[%s3 + $0x50] sm:$0xf]
  %v537 = vld [vmem:[%s3 + $0x54] sm:$0xf]
  %v538 = vld [vmem:[%s3 + $0x58] sm:$0xf]
  %v539 = vld [vmem:[%s3 + $0x5c] sm:$0xf]
  %v540 = vld [vmem:[%s3 + $0x60] sm:$0xf]
  %v541 = vld [vmem:[%s3 + $0x64] sm:$0xf]
  %v542 = vld [vmem:[%s3 + $0x68] sm:$0xf]
  %v543 = vld [vmem:[%s3 + $0x6c] sm:$0xf]
  %v544 = vld [vmem:[%s3 + $0x70] sm:$0xf]
  %v545 = vld [vmem:[%s3 + $0x74] sm:$0xf]
  %v546 = vld [vmem:[%s3 + $0x78] sm:$0xf]
  %v547 = vld [vmem:[%s3 + $0x7c] sm:$0xf]
  %v548 = vld [vmem:[%s4] sm:$0xf]
  %v549 = vld [vmem:[%s4 + $0x4] sm:$0xf]
  %v550 = vld [vmem:[%s4 + $0x8] sm:$0xf]
  %v551 = vld [vmem:[%s4 + $0xc] sm:$0xf]
  %v552 = vld [vmem:[%s4 + $0x10] sm:$0xf]
  %v553 = vld [vmem:[%s4 + $0x14] sm:$0xf]
  %v554 = vld [vmem:[%s4 + $0x18] sm:$0xf]
  %v555 = vld [vmem:[%s4 + $0x1c] sm:$0xf]
  %v556 = vld [vmem:[%s4 + $0x20] sm:$0xf]
  %v557 = vld [vmem:[%s4 + $0x24] sm:$0xf]
  %v558 = vld [vmem:[%s4 + $0x28] sm:$0xf]
  %v559 = vld [vmem:[%s4 + $0x2c] sm:$0xf]
  %v560 = vld [vmem:[%s4 + $0x30] sm:$0xf]
  %v561 = vld [vmem:[%s4 + $0x34] sm:$0xf]
  %v562 = vld [vmem:[%s4 + $0x38] sm:$0xf]
  %v563 = vld [vmem:[%s4 + $0x3c] sm:$0xf]
  %v564 = vld [vmem:[%s4 + $0x40] sm:$0xf]
  %v565 = vld [vmem:[%s4 + $0x44] sm:$0xf]
  %v566 = vld [vmem:[%s4 + $0x48] sm:$0xf]
  %v567 = vld [vmem:[%s4 + $0x4c] sm:$0xf]
  %v568 = vld [vmem:[%s4 + $0x50] sm:$0xf]
  %v569 = vld [vmem:[%s4 + $0x54] sm:$0xf]
  %v570 = vld [vmem:[%s4 + $0x58] sm:$0xf]
  %v571 = vld [vmem:[%s4 + $0x5c] sm:$0xf]
  %v572 = vld [vmem:[%s4 + $0x60] sm:$0xf]
  %v573 = vld [vmem:[%s4 + $0x64] sm:$0xf]
  %v574 = vld [vmem:[%s4 + $0x68] sm:$0xf]
  %v575 = vld [vmem:[%s4 + $0x6c] sm:$0xf]
  %v576 = vld [vmem:[%s4 + $0x70] sm:$0xf]
  %v577 = vld [vmem:[%s4 + $0x74] sm:$0xf]
  %v578 = vld [vmem:[%s4 + $0x78] sm:$0xf]
  %v579 = vld [vmem:[%s4 + $0x7c] sm:$0xf]
  %v612 = vunpack.c.l.b16 %v484
  %v613 = vunpack.c.l.b16 %v485
  %v614 = vunpack.c.l.b16 %v486
  %v615 = vunpack.c.l.b16 %v487
  %v616 = vunpack.c.l.b16 %v488
  %v617 = vunpack.c.l.b16 %v489
  %v618 = vunpack.c.l.b16 %v490
  %v619 = vunpack.c.l.b16 %v491
  %v620 = vunpack.c.l.b16 %v492
  %v621 = vunpack.c.l.b16 %v493
  %v622 = vunpack.c.l.b16 %v494
  %v623 = vunpack.c.l.b16 %v495
  %v624 = vunpack.c.l.b16 %v496
  %v625 = vunpack.c.l.b16 %v497
  %v626 = vunpack.c.l.b16 %v498
  %v627 = vunpack.c.l.b16 %v499
  %v628 = vunpack.c.l.b16 %v500
  %v629 = vunpack.c.l.b16 %v501
  %v630 = vunpack.c.l.b16 %v502
  %v631 = vunpack.c.l.b16 %v503
  %v632 = vunpack.c.l.b16 %v504
  %v633 = vunpack.c.l.b16 %v505
  %v634 = vunpack.c.l.b16 %v506
  %v635 = vunpack.c.l.b16 %v507
  %v636 = vunpack.c.l.b16 %v508
  %v637 = vunpack.c.l.b16 %v509
  %v638 = vunpack.c.l.b16 %v510
  %v639 = vunpack.c.l.b16 %v511
  %v640 = vunpack.c.l.b16 %v512
  %v641 = vunpack.c.l.b16 %v513
  %v642 = vunpack.c.l.b16 %v514
  %v643 = vunpack.c.l.b16 %v515
  %v644 = vpack.c.b16 %v613, %v612
  %v645 = vpack.c.b16 %v615, %v614
  %v646 = vpack.c.b16 %v617, %v616
  %v647 = vpack.c.b16 %v619, %v618
  %v648 = vpack.c.b16 %v621, %v620
  %v649 = vpack.c.b16 %v623, %v622
  %v650 = vpack.c.b16 %v625, %v624
  %v651 = vpack.c.b16 %v627, %v626
  %v652 = vpack.c.b16 %v629, %v628
  %v653 = vpack.c.b16 %v631, %v630
  %v654 = vpack.c.b16 %v633, %v632
  %v655 = vpack.c.b16 %v635, %v634
  %v656 = vpack.c.b16 %v637, %v636
  %v657 = vpack.c.b16 %v639, %v638
  %v658 = vpack.c.b16 %v641, %v640
  %v659 = vpack.c.b16 %v643, %v642
  %v692 = vunpack.c.l.b16 %v516
  %v693 = vunpack.c.l.b16 %v517
  %v694 = vunpack.c.l.b16 %v518
  %v695 = vunpack.c.l.b16 %v519
  %v696 = vunpack.c.l.b16 %v520
  %v697 = vunpack.c.l.b16 %v521
  %v698 = vunpack.c.l.b16 %v522
  %v699 = vunpack.c.l.b16 %v523
  %v700 = vunpack.c.l.b16 %v524
  %v701 = vunpack.c.l.b16 %v525
  %v702 = vunpack.c.l.b16 %v526
  %v703 = vunpack.c.l.b16 %v527
  %v704 = vunpack.c.l.b16 %v528
  %v705 = vunpack.c.l.b16 %v529
  %v706 = vunpack.c.l.b16 %v530
  %v707 = vunpack.c.l.b16 %v531
  %v708 = vunpack.c.l.b16 %v532
  %v709 = vunpack.c.l.b16 %v533
  %v710 = vunpack.c.l.b16 %v534
  %v711 = vunpack.c.l.b16 %v535
  %v712 = vunpack.c.l.b16 %v536
  %v713 = vunpack.c.l.b16 %v537
  %v714 = vunpack.c.l.b16 %v538
  %v715 = vunpack.c.l.b16 %v539
  %v716 = vunpack.c.l.b16 %v540
  %v717 = vunpack.c.l.b16 %v541
  %v718 = vunpack.c.l.b16 %v542
  %v719 = vunpack.c.l.b16 %v543
  %v720 = vunpack.c.l.b16 %v544
  %v721 = vunpack.c.l.b16 %v545
  %v722 = vunpack.c.l.b16 %v546
  %v723 = vunpack.c.l.b16 %v547
  %v724 = vpack.c.b16 %v693, %v692
  %v725 = vpack.c.b16 %v695, %v694
  %v726 = vpack.c.b16 %v697, %v696
  %v727 = vpack.c.b16 %v699, %v698
  %v728 = vpack.c.b16 %v701, %v700
  %v729 = vpack.c.b16 %v703, %v702
  %v730 = vpack.c.b16 %v705, %v704
  %v731 = vpack.c.b16 %v707, %v706
  %v732 = vpack.c.b16 %v709, %v708
  %v733 = vpack.c.b16 %v711, %v710
  %v734 = vpack.c.b16 %v713, %v712
  %v735 = vpack.c.b16 %v715, %v714
  %v736 = vpack.c.b16 %v717, %v716
  %v737 = vpack.c.b16 %v719, %v718
  %v738 = vpack.c.b16 %v721, %v720
  %v739 = vpack.c.b16 %v723, %v722
  %vm740 = vcmask 261120
  %v742 = vsel %vm740, %v644, 0
  %v745 = vsel %vm740, %v645, 0
  %v748 = vsel %vm740, %v646, 0
  %v751 = vsel %vm740, %v647, 0
  %v754 = vsel %vm740, %v648, 0
  %v757 = vsel %vm740, %v649, 0
  %v760 = vsel %vm740, %v650, 0
  %v763 = vsel %vm740, %v651, 0
  %v766 = vsel %vm740, %v652, 0
  %v769 = vsel %vm740, %v653, 0
  %v772 = vsel %vm740, %v654, 0
  %v775 = vsel %vm740, %v655, 0
  %v778 = vsel %vm740, %v656, 0
  %v781 = vsel %vm740, %v657, 0
  %v784 = vsel %vm740, %v658, 0
  %v787 = vsel %vm740, %v659, 0
  %v790 = vsel %vm740, %v724, 0
  %v793 = vsel %vm740, %v725, 0
  %v796 = vsel %vm740, %v726, 0
  %v799 = vsel %vm740, %v727, 0
  %v802 = vsel %vm740, %v728, 0
  %v805 = vsel %vm740, %v729, 0
  %v808 = vsel %vm740, %v730, 0
  %v811 = vsel %vm740, %v731, 0
  %v814 = vsel %vm740, %v732, 0
  %v817 = vsel %vm740, %v733, 0
  %v820 = vsel %vm740, %v734, 0
  %v823 = vsel %vm740, %v735, 0
  %v826 = vsel %vm740, %v736, 0
  %v829 = vsel %vm740, %v737, 0
  %v832 = vsel %vm740, %v738, 0
  %v835 = vsel %vm740, %v739, 0
  %837 = vmatprep.subr.bf16.mxu0 0
  %838 = vmatpush1.bf16.xpose.msra.mxu0 %v811
  %839 = vmatprep.subr.bf16.mxu0 0
  %840 = vmatpush1.bf16.xpose.msra.mxu0 %v808
  %841 = vmatprep.subr.bf16.mxu0 0
  %842 = vmatpush1.bf16.xpose.msra.mxu0 %v805
  %843 = vmatprep.subr.bf16.mxu0 0
  %844 = vmatpush1.bf16.xpose.msra.mxu0 %v802
  %845 = vmatprep.subr.bf16.mxu0 0
  %846 = vmatpush1.bf16.xpose.msra.mxu0 %v799
  %847 = vmatprep.subr.bf16.mxu0 0
  %848 = vmatpush1.bf16.xpose.msra.mxu0 %v796
  %849 = vmatprep.subr.bf16.mxu0 0
  %850 = vmatpush1.bf16.xpose.msra.mxu0 %v793
  %851 = vmatprep.subr.bf16.mxu0 0
  %852 = vmatpush1.bf16.xpose.msra.mxu0 %v790
  %853 = vmatprep.subr.bf16.mxu0 0
  %854 = vmatpush2.bf16.xpose.msra.mxu0 %v835
  %855 = vmatprep.subr.bf16.mxu0 0
  %856 = vmatpush2.bf16.xpose.msra.mxu0 %v832
  %857 = vmatprep.subr.bf16.mxu0 0
  %858 = vmatpush2.bf16.xpose.msra.mxu0 %v829
  %859 = vmatprep.subr.bf16.mxu0 0
  %860 = vmatpush2.bf16.xpose.msra.mxu0 %v826
  %861 = vmatprep.subr.bf16.mxu0 0
  %862 = vmatpush2.bf16.xpose.msra.mxu0 %v823
  %863 = vmatprep.subr.bf16.mxu0 0
  %864 = vmatpush2.bf16.xpose.msra.mxu0 %v820
  %865 = vmatprep.subr.bf16.mxu0 0
  %866 = vmatpush2.bf16.xpose.msra.mxu0 %v817
  %867 = vmatprep.subr.bf16.mxu0 0
  %868 = vmatpush2.bf16.xpose.msra.mxu0 %v814
  %869 = vmatprep.mubr.bf16.mxu0 0
  %870 = vmatmul.mubr.bf16.gmra.mxu0 %v742
  %v871 = vpop.f32.mrf.mxu0
  %v872 = vadd.f32 %v420, %v871
  %v873 = vpop.f32.mrf.mxu0
  %v874 = vadd.f32 %v421, %v873
  %v875 = vpop.f32.mrf.mxu0
  %v876 = vadd.f32 %v422, %v875
  %v877 = vpop.f32.mrf.mxu0
  %v878 = vadd.f32 %v423, %v877
  %879 = vmatprep.mubr.bf16.mxu0 0
  %880 = vmatmul.mubr.bf16.gmra.mxu0 %v745
  %v881 = vpop.f32.mrf.mxu0
  %v882 = vadd.f32 %v424, %v881
  %v883 = vpop.f32.mrf.mxu0
  %v884 = vadd.f32 %v425, %v883
  %v885 = vpop.f32.mrf.mxu0
  %v886 = vadd.f32 %v426, %v885
  %v887 = vpop.f32.mrf.mxu0
  %v888 = vadd.f32 %v427, %v887
  %889 = vmatprep.mubr.bf16.mxu0 0
  %890 = vmatmul.mubr.bf16.gmra.mxu0 %v748
  %v891 = vpop.f32.mrf.mxu0
  %v892 = vadd.f32 %v428, %v891
  %v893 = vpop.f32.mrf.mxu0
  %v894 = vadd.f32 %v429, %v893
  %v895 = vpop.f32.mrf.mxu0
  %v896 = vadd.f32 %v430, %v895
  %v897 = vpop.f32.mrf.mxu0
  %v898 = vadd.f32 %v431, %v897
  %899 = vmatprep.mubr.bf16.mxu0 0
  %900 = vmatmul.mubr.bf16.gmra.mxu0 %v751
  %v901 = vpop.f32.mrf.mxu0
  %v902 = vadd.f32 %v432, %v901
  %v903 = vpop.f32.mrf.mxu0
  %v904 = vadd.f32 %v433, %v903
  %v905 = vpop.f32.mrf.mxu0
  %v906 = vadd.f32 %v434, %v905
  %v907 = vpop.f32.mrf.mxu0
  %v908 = vadd.f32 %v435, %v907
  %909 = vmatprep.mubr.bf16.mxu0 0
  %910 = vmatmul.mubr.bf16.gmra.mxu0 %v754
  %v911 = vpop.f32.mrf.mxu0
  %v912 = vadd.f32 %v436, %v911
  %v913 = vpop.f32.mrf.mxu0
  %v914 = vadd.f32 %v437, %v913
  %v915 = vpop.f32.mrf.mxu0
  %v916 = vadd.f32 %v438, %v915
  %v917 = vpop.f32.mrf.mxu0
  %v918 = vadd.f32 %v439, %v917
  %919 = vmatprep.mubr.bf16.mxu0 0
  %920 = vmatmul.mubr.bf16.gmra.mxu0 %v757
  %v921 = vpop.f32.mrf.mxu0
  %v922 = vadd.f32 %v440, %v921
  %v923 = vpop.f32.mrf.mxu0
  %v924 = vadd.f32 %v441, %v923
  %v925 = vpop.f32.mrf.mxu0
  %v926 = vadd.f32 %v442, %v925
  %v927 = vpop.f32.mrf.mxu0
  %v928 = vadd.f32 %v443, %v927
  %929 = vmatprep.mubr.bf16.mxu0 0
  %930 = vmatmul.mubr.bf16.gmra.mxu0 %v760
  %v931 = vpop.f32.mrf.mxu0
  %v932 = vadd.f32 %v444, %v931
  %v933 = vpop.f32.mrf.mxu0
  %v934 = vadd.f32 %v445, %v933
  %v935 = vpop.f32.mrf.mxu0
  %v936 = vadd.f32 %v446, %v935
  %v937 = vpop.f32.mrf.mxu0
  %v938 = vadd.f32 %v447, %v937
  %939 = vmatprep.mubr.bf16.mxu0 0
  %940 = vmatmul.mubr.bf16.gmra.mxu0 %v763
  %v941 = vpop.f32.mrf.mxu0
  %v942 = vadd.f32 %v448, %v941
  %v943 = vpop.f32.mrf.mxu0
  %v944 = vadd.f32 %v449, %v943
  %v945 = vpop.f32.mrf.mxu0
  %v946 = vadd.f32 %v450, %v945
  %v947 = vpop.f32.mrf.mxu0
  %v948 = vadd.f32 %v451, %v947
  %949 = vmatprep.mubr.bf16.mxu0 0
  %950 = vmatmul.mubr.bf16.gmra.mxu0 %v766
  %v951 = vpop.f32.mrf.mxu0
  %v952 = vadd.f32 %v452, %v951
  %v953 = vpop.f32.mrf.mxu0
  %v954 = vadd.f32 %v453, %v953
  %v955 = vpop.f32.mrf.mxu0
  %v956 = vadd.f32 %v454, %v955
  %v957 = vpop.f32.mrf.mxu0
  %v958 = vadd.f32 %v455, %v957
  %959 = vmatprep.mubr.bf16.mxu0 0
  %960 = vmatmul.mubr.bf16.gmra.mxu0 %v769
  %v961 = vpop.f32.mrf.mxu0
  %v962 = vadd.f32 %v456, %v961
  %v963 = vpop.f32.mrf.mxu0
  %v964 = vadd.f32 %v457, %v963
  %v965 = vpop.f32.mrf.mxu0
  %v966 = vadd.f32 %v458, %v965
  %v967 = vpop.f32.mrf.mxu0
  %v968 = vadd.f32 %v459, %v967
  %969 = vmatprep.mubr.bf16.mxu0 0
  %970 = vmatmul.mubr.bf16.gmra.mxu0 %v772
  %v971 = vpop.f32.mrf.mxu0
  %v972 = vadd.f32 %v460, %v971
  %v973 = vpop.f32.mrf.mxu0
  %v974 = vadd.f32 %v461, %v973
  %v975 = vpop.f32.mrf.mxu0
  %v976 = vadd.f32 %v462, %v975
  %v977 = vpop.f32.mrf.mxu0
  %v978 = vadd.f32 %v463, %v977
  %979 = vmatprep.mubr.bf16.mxu0 0
  %980 = vmatmul.mubr.bf16.gmra.mxu0 %v775
  %v981 = vpop.f32.mrf.mxu0
  %v982 = vadd.f32 %v464, %v981
  %v983 = vpop.f32.mrf.mxu0
  %v984 = vadd.f32 %v465, %v983
  %v985 = vpop.f32.mrf.mxu0
  %v986 = vadd.f32 %v466, %v985
  %v987 = vpop.f32.mrf.mxu0
  %v988 = vadd.f32 %v467, %v987
  %989 = vmatprep.mubr.bf16.mxu0 0
  %990 = vmatmul.mubr.bf16.gmra.mxu0 %v778
  %v991 = vpop.f32.mrf.mxu0
  %v992 = vadd.f32 %v468, %v991
  %v993 = vpop.f32.mrf.mxu0
  %v994 = vadd.f32 %v469, %v993
  %v995 = vpop.f32.mrf.mxu0
  %v996 = vadd.f32 %v470, %v995
  %v997 = vpop.f32.mrf.mxu0
  %v998 = vadd.f32 %v471, %v997
  %999 = vmatprep.mubr.bf16.mxu0 0
  %1000 = vmatmul.mubr.bf16.gmra.mxu0 %v781
  %v1001 = vpop.f32.mrf.mxu0
  %v1002 = vadd.f32 %v472, %v1001
  %v1003 = vpop.f32.mrf.mxu0
  %v1004 = vadd.f32 %v473, %v1003
  %v1005 = vpop.f32.mrf.mxu0
  %v1006 = vadd.f32 %v474, %v1005
  %v1007 = vpop.f32.mrf.mxu0
  %v1008 = vadd.f32 %v475, %v1007
  %1009 = vmatprep.mubr.bf16.mxu0 0
  %1010 = vmatmul.mubr.bf16.gmra.mxu0 %v784
  %v1011 = vpop.f32.mrf.mxu0
  %v1012 = vadd.f32 %v476, %v1011
  %v1013 = vpop.f32.mrf.mxu0
  %v1014 = vadd.f32 %v477, %v1013
  %v1015 = vpop.f32.mrf.mxu0
  %v1016 = vadd.f32 %v478, %v1015
  %v1017 = vpop.f32.mrf.mxu0
  %v1018 = vadd.f32 %v479, %v1017
  %1019 = vmatprep.mubr.bf16.mxu0 0
  %1020 = vmatmul.mubr.bf16.gmra.mxu0 %v787
  %v1021 = vpop.f32.mrf.mxu0
  %v1022 = vadd.f32 %v480, %v1021
  %v1023 = vpop.f32.mrf.mxu0
  %v1024 = vadd.f32 %v481, %v1023
  %v1025 = vpop.f32.mrf.mxu0
  %v1026 = vadd.f32 %v482, %v1025
  %v1027 = vpop.f32.mrf.mxu0
  %v1028 = vadd.f32 %v483, %v1027
  %1029 = vdwg.mxu0
  %v1030 = vld [vmem:[#allocation2] sm:$0xff]
  %v1031 = vld [vmem:[#allocation2 + $0x8] sm:$0xff]
  %v1032 = vld [vmem:[#allocation2 + $0x10] sm:$0xff]
  %v1033 = vld [vmem:[#allocation2 + $0x18] sm:$0xff]
  %v1034 = vld [vmem:[#allocation2 + $0x20] sm:$0xff]
  %v1035 = vld [vmem:[#allocation2 + $0x28] sm:$0xff]
  %v1036 = vld [vmem:[#allocation2 + $0x30] sm:$0xff]
  %v1037 = vld [vmem:[#allocation2 + $0x38] sm:$0xff]
  %v1038 = vld [vmem:[#allocation2 + $0x40] sm:$0xff]
  %v1039 = vld [vmem:[#allocation2 + $0x48] sm:$0xff]
  %v1040 = vld [vmem:[#allocation2 + $0x50] sm:$0xff]
  %v1041 = vld [vmem:[#allocation2 + $0x58] sm:$0xff]
  %v1042 = vld [vmem:[#allocation2 + $0x60] sm:$0xff]
  %v1043 = vld [vmem:[#allocation2 + $0x68] sm:$0xff]
  %v1044 = vld [vmem:[#allocation2 + $0x70] sm:$0xff]
  %v1045 = vld [vmem:[#allocation2 + $0x78] sm:$0xff]
  %v1046 = vld [vmem:[#allocation2 + $0x80] sm:$0xff]
  %v1047 = vld [vmem:[#allocation2 + $0x88] sm:$0xff]
  %v1048 = vld [vmem:[#allocation2 + $0x90] sm:$0xff]
  %v1049 = vld [vmem:[#allocation2 + $0x98] sm:$0xff]
  %v1050 = vld [vmem:[#allocation2 + $0xa0] sm:$0xff]
  %v1051 = vld [vmem:[#allocation2 + $0xa8] sm:$0xff]
  %v1052 = vld [vmem:[#allocation2 + $0xb0] sm:$0xff]
  %v1053 = vld [vmem:[#allocation2 + $0xb8] sm:$0xff]
  %v1054 = vld [vmem:[#allocation2 + $0xc0] sm:$0xff]
  %v1055 = vld [vmem:[#allocation2 + $0xc8] sm:$0xff]
  %v1056 = vld [vmem:[#allocation2 + $0xd0] sm:$0xff]
  %v1057 = vld [vmem:[#allocation2 + $0xd8] sm:$0xff]
  %v1058 = vld [vmem:[#allocation2 + $0xe0] sm:$0xff]
  %v1059 = vld [vmem:[#allocation2 + $0xe8] sm:$0xff]
  %v1060 = vld [vmem:[#allocation2 + $0xf0] sm:$0xff]
  %v1061 = vld [vmem:[#allocation2 + $0xf8] sm:$0xff]
  %v1062 = vmax.f32 %v872, %v874
  %1063 = vmax.xlane.f32.xlu0 %v1062
  %v1064 = vpop.xlane.xlu0 %1063
  %v1065 = vmax.f32 %v876, %v878
  %1066 = vmax.xlane.f32.xlu0 %v1065
  %v1067 = vpop.xlane.xlu0 %1066
  %v1068 = vmax.f32 %v882, %v884
  %1069 = vmax.xlane.f32.xlu0 %v1068
  %v1070 = vpop.xlane.xlu0 %1069
  %v1071 = vmax.f32 %v886, %v888
  %1072 = vmax.xlane.f32.xlu0 %v1071
  %v1073 = vpop.xlane.xlu0 %1072
  %v1074 = vmax.f32 %v892, %v894
  %1075 = vmax.xlane.f32.xlu0 %v1074
  %v1076 = vpop.xlane.xlu0 %1075
  %v1077 = vmax.f32 %v896, %v898
  %1078 = vmax.xlane.f32.xlu0 %v1077
  %v1079 = vpop.xlane.xlu0 %1078
  %v1080 = vmax.f32 %v902, %v904
  %1081 = vmax.xlane.f32.xlu0 %v1080
  %v1082 = vpop.xlane.xlu0 %1081
  %v1083 = vmax.f32 %v906, %v908
  %1084 = vmax.xlane.f32.xlu0 %v1083
  %v1085 = vpop.xlane.xlu0 %1084
  %v1086 = vmax.f32 %v912, %v914
  %1087 = vmax.xlane.f32.xlu0 %v1086
  %v1088 = vpop.xlane.xlu0 %1087
  %v1089 = vmax.f32 %v916, %v918
  %1090 = vmax.xlane.f32.xlu0 %v1089
  %v1091 = vpop.xlane.xlu0 %1090
  %v1092 = vmax.f32 %v922, %v924
  %1093 = vmax.xlane.f32.xlu0 %v1092
  %v1094 = vpop.xlane.xlu0 %1093
  %v1095 = vmax.f32 %v926, %v928
  %1096 = vmax.xlane.f32.xlu0 %v1095
  %v1097 = vpop.xlane.xlu0 %1096
  %v1098 = vmax.f32 %v932, %v934
  %1099 = vmax.xlane.f32.xlu0 %v1098
  %v1100 = vpop.xlane.xlu0 %1099
  %v1101 = vmax.f32 %v936, %v938
  %1102 = vmax.xlane.f32.xlu0 %v1101
  %v1103 = vpop.xlane.xlu0 %1102
  %v1104 = vmax.f32 %v942, %v944
  %1105 = vmax.xlane.f32.xlu0 %v1104
  %v1106 = vpop.xlane.xlu0 %1105
  %v1107 = vmax.f32 %v946, %v948
  %1108 = vmax.xlane.f32.xlu0 %v1107
  %v1109 = vpop.xlane.xlu0 %1108
  %v1110 = vmax.f32 %v952, %v954
  %1111 = vmax.xlane.f32.xlu0 %v1110
  %v1112 = vpop.xlane.xlu0 %1111
  %v1113 = vmax.f32 %v956, %v958
  %1114 = vmax.xlane.f32.xlu0 %v1113
  %v1115 = vpop.xlane.xlu0 %1114
  %v1116 = vmax.f32 %v962, %v964
  %1117 = vmax.xlane.f32.xlu0 %v1116
  %v1118 = vpop.xlane.xlu0 %1117
  %v1119 = vmax.f32 %v966, %v968
  %1120 = vmax.xlane.f32.xlu0 %v1119
  %v1121 = vpop.xlane.xlu0 %1120
  %v1122 = vmax.f32 %v972, %v974
  %1123 = vmax.xlane.f32.xlu0 %v1122
  %v1124 = vpop.xlane.xlu0 %1123
  %v1125 = vmax.f32 %v976, %v978
  %1126 = vmax.xlane.f32.xlu0 %v1125
  %v1127 = vpop.xlane.xlu0 %1126
  %v1128 = vmax.f32 %v982, %v984
  %1129 = vmax.xlane.f32.xlu0 %v1128
  %v1130 = vpop.xlane.xlu0 %1129
  %v1131 = vmax.f32 %v986, %v988
  %1132 = vmax.xlane.f32.xlu0 %v1131
  %v1133 = vpop.xlane.xlu0 %1132
  %v1134 = vmax.f32 %v992, %v994
  %1135 = vmax.xlane.f32.xlu0 %v1134
  %v1136 = vpop.xlane.xlu0 %1135
  %v1137 = vmax.f32 %v996, %v998
  %1138 = vmax.xlane.f32.xlu0 %v1137
  %v1139 = vpop.xlane.xlu0 %1138
  %v1140 = vmax.f32 %v1002, %v1004
  %1141 = vmax.xlane.f32.xlu0 %v1140
  %v1142 = vpop.xlane.xlu0 %1141
  %v1143 = vmax.f32 %v1006, %v1008
  %1144 = vmax.xlane.f32.xlu0 %v1143
  %v1145 = vpop.xlane.xlu0 %1144
  %v1146 = vmax.f32 %v1012, %v1014
  %1147 = vmax.xlane.f32.xlu0 %v1146
  %v1148 = vpop.xlane.xlu0 %1147
  %v1149 = vmax.f32 %v1016, %v1018
  %1150 = vmax.xlane.f32.xlu0 %v1149
  %v1151 = vpop.xlane.xlu0 %1150
  %v1152 = vmax.f32 %v1022, %v1024
  %1153 = vmax.xlane.f32.xlu0 %v1152
  %v1154 = vpop.xlane.xlu0 %1153
  %v1155 = vmax.f32 %v1026, %v1028
  %1156 = vmax.xlane.f32.xlu0 %v1155
  %v1157 = vpop.xlane.xlu0 %1156
  %v1158 = vmax.f32 %v1030, %v1064
  %v1159 = vmax.f32 %v1031, %v1067
  %v1160 = vmax.f32 %v1032, %v1070
  %v1161 = vmax.f32 %v1033, %v1073
  %v1162 = vmax.f32 %v1034, %v1076
  %v1163 = vmax.f32 %v1035, %v1079
  %v1164 = vmax.f32 %v1036, %v1082
  %v1165 = vmax.f32 %v1037, %v1085
  %v1166 = vmax.f32 %v1038, %v1088
  %v1167 = vmax.f32 %v1039, %v1091
  %v1168 = vmax.f32 %v1040, %v1094
  %v1169 = vmax.f32 %v1041, %v1097
  %v1170 = vmax.f32 %v1042, %v1100
  %v1171 = vmax.f32 %v1043, %v1103
  %v1172 = vmax.f32 %v1044, %v1106
  %v1173 = vmax.f32 %v1045, %v1109
  %v1174 = vmax.f32 %v1046, %v1112
  %v1175 = vmax.f32 %v1047, %v1115
  %v1176 = vmax.f32 %v1048, %v1118
  %v1177 = vmax.f32 %v1049, %v1121
  %v1178 = vmax.f32 %v1050, %v1124
  %v1179 = vmax.f32 %v1051, %v1127
  %v1180 = vmax.f32 %v1052, %v1130
  %v1181 = vmax.f32 %v1053, %v1133
  %v1182 = vmax.f32 %v1054, %v1136
  %v1183 = vmax.f32 %v1055, %v1139
  %v1184 = vmax.f32 %v1056, %v1142
  %v1185 = vmax.f32 %v1057, %v1145
  %v1186 = vmax.f32 %v1058, %v1148
  %v1187 = vmax.f32 %v1059, %v1151
  %v1188 = vmax.f32 %v1060, %v1154
  %v1189 = vmax.f32 %v1061, %v1157
  %v1190 = vsub.f32 %v1030, %v1158
  %v1191 = vsub.f32 %v1031, %v1159
  %v1192 = vsub.f32 %v1032, %v1160
  %v1193 = vsub.f32 %v1033, %v1161
  %v1194 = vsub.f32 %v1034, %v1162
  %v1195 = vsub.f32 %v1035, %v1163
  %v1196 = vsub.f32 %v1036, %v1164
  %v1197 = vsub.f32 %v1037, %v1165
  %v1198 = vsub.f32 %v1038, %v1166
  %v1199 = vsub.f32 %v1039, %v1167
  %v1200 = vsub.f32 %v1040, %v1168
  %v1201 = vsub.f32 %v1041, %v1169
  %v1202 = vsub.f32 %v1042, %v1170
  %v1203 = vsub.f32 %v1043, %v1171
  %v1204 = vsub.f32 %v1044, %v1172
  %v1205 = vsub.f32 %v1045, %v1173
  %v1206 = vsub.f32 %v1046, %v1174
  %v1207 = vsub.f32 %v1047, %v1175
  %v1208 = vsub.f32 %v1048, %v1176
  %v1209 = vsub.f32 %v1049, %v1177
  %v1210 = vsub.f32 %v1050, %v1178
  %v1211 = vsub.f32 %v1051, %v1179
  %v1212 = vsub.f32 %v1052, %v1180
  %v1213 = vsub.f32 %v1053, %v1181
  %v1214 = vsub.f32 %v1054, %v1182
  %v1215 = vsub.f32 %v1055, %v1183
  %v1216 = vsub.f32 %v1056, %v1184
  %v1217 = vsub.f32 %v1057, %v1185
  %v1218 = vsub.f32 %v1058, %v1186
  %v1219 = vsub.f32 %v1059, %v1187
  %v1220 = vsub.f32 %v1060, %v1188
  %v1221 = vsub.f32 %v1061, %v1189
  %v1222 = vmul.f32 %v1190, 1.442695
  %v1223 = vpow.pop %v1222
  %v1224 = vmul.f32 %v1191, 1.442695
  %v1225 = vpow.pop %v1224
  %v1226 = vmul.f32 %v1192, 1.442695
  %v1227 = vpow.pop %v1226
  %v1228 = vmul.f32 %v1193, 1.442695
  %v1229 = vpow.pop %v1228
  %v1230 = vmul.f32 %v1194, 1.442695
  %v1231 = vpow.pop %v1230
  %v1232 = vmul.f32 %v1195, 1.442695
  %v1233 = vpow.pop %v1232
  %v1234 = vmul.f32 %v1196, 1.442695
  %v1235 = vpow.pop %v1234
  %v1236 = vmul.f32 %v1197, 1.442695
  %v1237 = vpow.pop %v1236
  %v1238 = vmul.f32 %v1198, 1.442695
  %v1239 = vpow.pop %v1238
  %v1240 = vmul.f32 %v1199, 1.442695
  %v1241 = vpow.pop %v1240
  %v1242 = vmul.f32 %v1200, 1.442695
  %v1243 = vpow.pop %v1242
  %v1244 = vmul.f32 %v1201, 1.442695
  %v1245 = vpow.pop %v1244
  %v1246 = vmul.f32 %v1202, 1.442695
  %v1247 = vpow.pop %v1246
  %v1248 = vmul.f32 %v1203, 1.442695
  %v1249 = vpow.pop %v1248
  %v1250 = vmul.f32 %v1204, 1.442695
  %v1251 = vpow.pop %v1250
  %v1252 = vmul.f32 %v1205, 1.442695
  %v1253 = vpow.pop %v1252
  %v1254 = vmul.f32 %v1206, 1.442695
  %v1255 = vpow.pop %v1254
  %v1256 = vmul.f32 %v1207, 1.442695
  %v1257 = vpow.pop %v1256
  %v1258 = vmul.f32 %v1208, 1.442695
  %v1259 = vpow.pop %v1258
  %v1260 = vmul.f32 %v1209, 1.442695
  %v1261 = vpow.pop %v1260
  %v1262 = vmul.f32 %v1210, 1.442695
  %v1263 = vpow.pop %v1262
  %v1264 = vmul.f32 %v1211, 1.442695
  %v1265 = vpow.pop %v1264
  %v1266 = vmul.f32 %v1212, 1.442695
  %v1267 = vpow.pop %v1266
  %v1268 = vmul.f32 %v1213, 1.442695
  %v1269 = vpow.pop %v1268
  %v1270 = vmul.f32 %v1214, 1.442695
  %v1271 = vpow.pop %v1270
  %v1272 = vmul.f32 %v1215, 1.442695
  %v1273 = vpow.pop %v1272
  %v1274 = vmul.f32 %v1216, 1.442695
  %v1275 = vpow.pop %v1274
  %v1276 = vmul.f32 %v1217, 1.442695
  %v1277 = vpow.pop %v1276
  %v1278 = vmul.f32 %v1218, 1.442695
  %v1279 = vpow.pop %v1278
  %v1280 = vmul.f32 %v1219, 1.442695
  %v1281 = vpow.pop %v1280
  %v1282 = vmul.f32 %v1220, 1.442695
  %v1283 = vpow.pop %v1282
  %v1284 = vmul.f32 %v1221, 1.442695
  %v1285 = vpow.pop %v1284
  %1287 = vset.pattern.permute.xlu0 0
  %1288 = vperm.xlu0 %1287, %v1158
  %v1289 = vpop.permute.xlu0 %1288
  %1292 = vset.pattern.permute.xlu0 0
  %1293 = vperm.xlu0 %1292, %v1159
  %v1294 = vpop.permute.xlu0 %1293
  %1297 = vset.pattern.permute.xlu0 0
  %1298 = vperm.xlu0 %1297, %v1160
  %v1299 = vpop.permute.xlu0 %1298
  %1302 = vset.pattern.permute.xlu0 0
  %1303 = vperm.xlu0 %1302, %v1161
  %v1304 = vpop.permute.xlu0 %1303
  %1307 = vset.pattern.permute.xlu0 0
  %1308 = vperm.xlu0 %1307, %v1162
  %v1309 = vpop.permute.xlu0 %1308
  %1312 = vset.pattern.permute.xlu0 0
  %1313 = vperm.xlu0 %1312, %v1163
  %v1314 = vpop.permute.xlu0 %1313
  %1317 = vset.pattern.permute.xlu0 0
  %1318 = vperm.xlu0 %1317, %v1164
  %v1319 = vpop.permute.xlu0 %1318
  %1322 = vset.pattern.permute.xlu0 0
  %1323 = vperm.xlu0 %1322, %v1165
  %v1324 = vpop.permute.xlu0 %1323
  %1327 = vset.pattern.permute.xlu0 0
  %1328 = vperm.xlu0 %1327, %v1166
  %v1329 = vpop.permute.xlu0 %1328
  %1332 = vset.pattern.permute.xlu0 0
  %1333 = vperm.xlu0 %1332, %v1167
  %v1334 = vpop.permute.xlu0 %1333
  %1337 = vset.pattern.permute.xlu0 0
  %1338 = vperm.xlu0 %1337, %v1168
  %v1339 = vpop.permute.xlu0 %1338
  %1342 = vset.pattern.permute.xlu0 0
  %1343 = vperm.xlu0 %1342, %v1169
  %v1344 = vpop.permute.xlu0 %1343
  %1347 = vset.pattern.permute.xlu0 0
  %1348 = vperm.xlu0 %1347, %v1170
  %v1349 = vpop.permute.xlu0 %1348
  %1352 = vset.pattern.permute.xlu0 0
  %1353 = vperm.xlu0 %1352, %v1171
  %v1354 = vpop.permute.xlu0 %1353
  %1357 = vset.pattern.permute.xlu0 0
  %1358 = vperm.xlu0 %1357, %v1172
  %v1359 = vpop.permute.xlu0 %1358
  %1362 = vset.pattern.permute.xlu0 0
  %1363 = vperm.xlu0 %1362, %v1173
  %v1364 = vpop.permute.xlu0 %1363
  %1367 = vset.pattern.permute.xlu0 0
  %1368 = vperm.xlu0 %1367, %v1174
  %v1369 = vpop.permute.xlu0 %1368
  %1372 = vset.pattern.permute.xlu0 0
  %1373 = vperm.xlu0 %1372, %v1175
  %v1374 = vpop.permute.xlu0 %1373
  %1377 = vset.pattern.permute.xlu0 0
  %1378 = vperm.xlu0 %1377, %v1176
  %v1379 = vpop.permute.xlu0 %1378
  %1382 = vset.pattern.permute.xlu0 0
  %1383 = vperm.xlu0 %1382, %v1177
  %v1384 = vpop.permute.xlu0 %1383
  %1387 = vset.pattern.permute.xlu0 0
  %1388 = vperm.xlu0 %1387, %v1178
  %v1389 = vpop.permute.xlu0 %1388
  %1392 = vset.pattern.permute.xlu0 0
  %1393 = vperm.xlu0 %1392, %v1179
  %v1394 = vpop.permute.xlu0 %1393
  %1397 = vset.pattern.permute.xlu0 0
  %1398 = vperm.xlu0 %1397, %v1180
  %v1399 = vpop.permute.xlu0 %1398
  %1402 = vset.pattern.permute.xlu0 0
  %1403 = vperm.xlu0 %1402, %v1181
  %v1404 = vpop.permute.xlu0 %1403
  %1407 = vset.pattern.permute.xlu0 0
  %1408 = vperm.xlu0 %1407, %v1182
  %v1409 = vpop.permute.xlu0 %1408
  %1412 = vset.pattern.permute.xlu0 0
  %1413 = vperm.xlu0 %1412, %v1183
  %v1414 = vpop.permute.xlu0 %1413
  %1417 = vset.pattern.permute.xlu0 0
  %1418 = vperm.xlu0 %1417, %v1184
  %v1419 = vpop.permute.xlu0 %1418
  %1422 = vset.pattern.permute.xlu0 0
  %1423 = vperm.xlu0 %1422, %v1185
  %v1424 = vpop.permute.xlu0 %1423
  %1427 = vset.pattern.permute.xlu0 0
  %1428 = vperm.xlu0 %1427, %v1186
  %v1429 = vpop.permute.xlu0 %1428
  %1432 = vset.pattern.permute.xlu0 0
  %1433 = vperm.xlu0 %1432, %v1187
  %v1434 = vpop.permute.xlu0 %1433
  %1437 = vset.pattern.permute.xlu0 0
  %1438 = vperm.xlu0 %1437, %v1188
  %v1439 = vpop.permute.xlu0 %1438
  %1442 = vset.pattern.permute.xlu0 0
  %1443 = vperm.xlu0 %1442, %v1189
  %v1444 = vpop.permute.xlu0 %1443
  %v1446 = vsub.f32 %v872, %v1289
  %v1447 = vsub.f32 %v874, %v1289
  %v1448 = vsub.f32 %v876, %v1294
  %v1449 = vsub.f32 %v878, %v1294
  %v1450 = vsub.f32 %v882, %v1299
  %v1451 = vsub.f32 %v884, %v1299
  %v1452 = vsub.f32 %v886, %v1304
  %v1453 = vsub.f32 %v888, %v1304
  %v1454 = vsub.f32 %v892, %v1309
  %v1455 = vsub.f32 %v894, %v1309
  %v1456 = vsub.f32 %v896, %v1314
  %v1457 = vsub.f32 %v898, %v1314
  %v1458 = vsub.f32 %v902, %v1319
  %v1459 = vsub.f32 %v904, %v1319
  %v1460 = vsub.f32 %v906, %v1324
  %v1461 = vsub.f32 %v908, %v1324
  %v1462 = vsub.f32 %v912, %v1329
  %v1463 = vsub.f32 %v914, %v1329
  %v1464 = vsub.f32 %v916, %v1334
  %v1465 = vsub.f32 %v918, %v1334
  %v1466 = vsub.f32 %v922, %v1339
  %v1467 = vsub.f32 %v924, %v1339
  %v1468 = vsub.f32 %v926, %v1344
  %v1469 = vsub.f32 %v928, %v1344
  %v1470 = vsub.f32 %v932, %v1349
  %v1471 = vsub.f32 %v934, %v1349
  %v1472 = vsub.f32 %v936, %v1354
  %v1473 = vsub.f32 %v938, %v1354
  %v1474 = vsub.f32 %v942, %v1359
  %v1475 = vsub.f32 %v944, %v1359
  %v1476 = vsub.f32 %v946, %v1364
  %v1477 = vsub.f32 %v948, %v1364
  %v1478 = vsub.f32 %v952, %v1369
  %v1479 = vsub.f32 %v954, %v1369
  %v1480 = vsub.f32 %v956, %v1374
  %v1481 = vsub.f32 %v958, %v1374
  %v1482 = vsub.f32 %v962, %v1379
  %v1483 = vsub.f32 %v964, %v1379
  %v1484 = vsub.f32 %v966, %v1384
  %v1485 = vsub.f32 %v968, %v1384
  %v1486 = vsub.f32 %v972, %v1389
  %v1487 = vsub.f32 %v974, %v1389
  %v1488 = vsub.f32 %v976, %v1394
  %v1489 = vsub.f32 %v978, %v1394
  %v1490 = vsub.f32 %v982, %v1399
  %v1491 = vsub.f32 %v984, %v1399
  %v1492 = vsub.f32 %v986, %v1404
  %v1493 = vsub.f32 %v988, %v1404
  %v1494 = vsub.f32 %v992, %v1409
  %v1495 = vsub.f32 %v994, %v1409
  %v1496 = vsub.f32 %v996, %v1414
  %v1497 = vsub.f32 %v998, %v1414
  %v1498 = vsub.f32 %v1002, %v1419
  %v1499 = vsub.f32 %v1004, %v1419
  %v1500 = vsub.f32 %v1006, %v1424
  %v1501 = vsub.f32 %v1008, %v1424
  %v1502 = vsub.f32 %v1012, %v1429
  %v1503 = vsub.f32 %v1014, %v1429
  %v1504 = vsub.f32 %v1016, %v1434
  %v1505 = vsub.f32 %v1018, %v1434
  %v1506 = vsub.f32 %v1022, %v1439
  %v1507 = vsub.f32 %v1024, %v1439
  %v1508 = vsub.f32 %v1026, %v1444
  %v1509 = vsub.f32 %v1028, %v1444
  %v1510 = vmul.f32 %v1446, 1.442695
  %v1511 = vpow.pop %v1510
  %v1512 = vmul.f32 %v1447, 1.442695
  %v1513 = vpow.pop %v1512
  %v1514 = vmul.f32 %v1448, 1.442695
  %v1515 = vpow.pop %v1514
  %v1516 = vmul.f32 %v1449, 1.442695
  %v1517 = vpow.pop %v1516
  %v1518 = vmul.f32 %v1450, 1.442695
  %v1519 = vpow.pop %v1518
  %v1520 = vmul.f32 %v1451, 1.442695
  %v1521 = vpow.pop %v1520
  %v1522 = vmul.f32 %v1452, 1.442695
  %v1523 = vpow.pop %v1522
  %v1524 = vmul.f32 %v1453, 1.442695
  %v1525 = vpow.pop %v1524
  %v1526 = vmul.f32 %v1454, 1.442695
  %v1527 = vpow.pop %v1526
  %v1528 = vmul.f32 %v1455, 1.442695
  %v1529 = vpow.pop %v1528
  %v1530 = vmul.f32 %v1456, 1.442695
  %v1531 = vpow.pop %v1530
  %v1532 = vmul.f32 %v1457, 1.442695
  %v1533 = vpow.pop %v1532
  %v1534 = vmul.f32 %v1458, 1.442695
  %v1535 = vpow.pop %v1534
  %v1536 = vmul.f32 %v1459, 1.442695
  %v1537 = vpow.pop %v1536
  %v1538 = vmul.f32 %v1460, 1.442695
  %v1539 = vpow.pop %v1538
  %v1540 = vmul.f32 %v1461, 1.442695
  %v1541 = vpow.pop %v1540
  %v1542 = vmul.f32 %v1462, 1.442695
  %v1543 = vpow.pop %v1542
  %v1544 = vmul.f32 %v1463, 1.442695
  %v1545 = vpow.pop %v1544
  %v1546 = vmul.f32 %v1464, 1.442695
  %v1547 = vpow.pop %v1546
  %v1548 = vmul.f32 %v1465, 1.442695
  %v1549 = vpow.pop %v1548
  %v1550 = vmul.f32 %v1466, 1.442695
  %v1551 = vpow.pop %v1550
  %v1552 = vmul.f32 %v1467, 1.442695
  %v1553 = vpow.pop %v1552
  %v1554 = vmul.f32 %v1468, 1.442695
  %v1555 = vpow.pop %v1554
  %v1556 = vmul.f32 %v1469, 1.442695
  %v1557 = vpow.pop %v1556
  %v1558 = vmul.f32 %v1470, 1.442695
  %v1559 = vpow.pop %v1558
  %v1560 = vmul.f32 %v1471, 1.442695
  %v1561 = vpow.pop %v1560
  %v1562 = vmul.f32 %v1472, 1.442695
  %v1563 = vpow.pop %v1562
  %v1564 = vmul.f32 %v1473, 1.442695
  %v1565 = vpow.pop %v1564
  %v1566 = vmul.f32 %v1474, 1.442695
  %v1567 = vpow.pop %v1566
  %v1568 = vmul.f32 %v1475, 1.442695
  %v1569 = vpow.pop %v1568
  %v1570 = vmul.f32 %v1476, 1.442695
  %v1571 = vpow.pop %v1570
  %v1572 = vmul.f32 %v1477, 1.442695
  %v1573 = vpow.pop %v1572
  %v1574 = vmul.f32 %v1478, 1.442695
  %v1575 = vpow.pop %v1574
  %v1576 = vmul.f32 %v1479, 1.442695
  %v1577 = vpow.pop %v1576
  %v1578 = vmul.f32 %v1480, 1.442695
  %v1579 = vpow.pop %v1578
  %v1580 = vmul.f32 %v1481, 1.442695
  %v1581 = vpow.pop %v1580
  %v1582 = vmul.f32 %v1482, 1.442695
  %v1583 = vpow.pop %v1582
  %v1584 = vmul.f32 %v1483, 1.442695
  %v1585 = vpow.pop %v1584
  %v1586 = vmul.f32 %v1484, 1.442695
  %v1587 = vpow.pop %v1586
  %v1588 = vmul.f32 %v1485, 1.442695
  %v1589 = vpow.pop %v1588
  %v1590 = vmul.f32 %v1486, 1.442695
  %v1591 = vpow.pop %v1590
  %v1592 = vmul.f32 %v1487, 1.442695
  %v1593 = vpow.pop %v1592
  %v1594 = vmul.f32 %v1488, 1.442695
  %v1595 = vpow.pop %v1594
  %v1596 = vmul.f32 %v1489, 1.442695
  %v1597 = vpow.pop %v1596
  %v1598 = vmul.f32 %v1490, 1.442695
  %v1599 = vpow.pop %v1598
  %v1600 = vmul.f32 %v1491, 1.442695
  %v1601 = vpow.pop %v1600
  %v1602 = vmul.f32 %v1492, 1.442695
  %v1603 = vpow.pop %v1602
  %v1604 = vmul.f32 %v1493, 1.442695
  %v1605 = vpow.pop %v1604
  %v1606 = vmul.f32 %v1494, 1.442695
  %v1607 = vpow.pop %v1606
  %v1608 = vmul.f32 %v1495, 1.442695
  %v1609 = vpow.pop %v1608
  %v1610 = vmul.f32 %v1496, 1.442695
  %v1611 = vpow.pop %v1610
  %v1612 = vmul.f32 %v1497, 1.442695
  %v1613 = vpow.pop %v1612
  %v1614 = vmul.f32 %v1498, 1.442695
  %v1615 = vpow.pop %v1614
  %v1616 = vmul.f32 %v1499, 1.442695
  %v1617 = vpow.pop %v1616
  %v1618 = vmul.f32 %v1500, 1.442695
  %v1619 = vpow.pop %v1618
  %v1620 = vmul.f32 %v1501, 1.442695
  %v1621 = vpow.pop %v1620
  %v1622 = vmul.f32 %v1502, 1.442695
  %v1623 = vpow.pop %v1622
  %v1624 = vmul.f32 %v1503, 1.442695
  %v1625 = vpow.pop %v1624
  %v1626 = vmul.f32 %v1504, 1.442695
  %v1627 = vpow.pop %v1626
  %v1628 = vmul.f32 %v1505, 1.442695
  %v1629 = vpow.pop %v1628
  %v1630 = vmul.f32 %v1506, 1.442695
  %v1631 = vpow.pop %v1630
  %v1632 = vmul.f32 %v1507, 1.442695
  %v1633 = vpow.pop %v1632
  %v1634 = vmul.f32 %v1508, 1.442695
  %v1635 = vpow.pop %v1634
  %v1636 = vmul.f32 %v1509, 1.442695
  %v1637 = vpow.pop %v1636
  %v1638 = vld [vmem:[#allocation3] sm:$0xff]
  %v1639 = vld [vmem:[#allocation3 + $0x8] sm:$0xff]
  %v1640 = vld [vmem:[#allocation3 + $0x10] sm:$0xff]
  %v1641 = vld [vmem:[#allocation3 + $0x18] sm:$0xff]
  %v1642 = vld [vmem:[#allocation3 + $0x20] sm:$0xff]
  %v1643 = vld [vmem:[#allocation3 + $0x28] sm:$0xff]
  %v1644 = vld [vmem:[#allocation3 + $0x30] sm:$0xff]
  %v1645 = vld [vmem:[#allocation3 + $0x38] sm:$0xff]
  %v1646 = vld [vmem:[#allocation3 + $0x40] sm:$0xff]
  %v1647 = vld [vmem:[#allocation3 + $0x48] sm:$0xff]
  %v1648 = vld [vmem:[#allocation3 + $0x50] sm:$0xff]
  %v1649 = vld [vmem:[#allocation3 + $0x58] sm:$0xff]
  %v1650 = vld [vmem:[#allocation3 + $0x60] sm:$0xff]
  %v1651 = vld [vmem:[#allocation3 + $0x68] sm:$0xff]
  %v1652 = vld [vmem:[#allocation3 + $0x70] sm:$0xff]
  %v1653 = vld [vmem:[#allocation3 + $0x78] sm:$0xff]
  %v1654 = vld [vmem:[#allocation3 + $0x80] sm:$0xff]
  %v1655 = vld [vmem:[#allocation3 + $0x88] sm:$0xff]
  %v1656 = vld [vmem:[#allocation3 + $0x90] sm:$0xff]
  %v1657 = vld [vmem:[#allocation3 + $0x98] sm:$0xff]
  %v1658 = vld [vmem:[#allocation3 + $0xa0] sm:$0xff]
  %v1659 = vld [vmem:[#allocation3 + $0xa8] sm:$0xff]
  %v1660 = vld [vmem:[#allocation3 + $0xb0] sm:$0xff]
  %v1661 = vld [vmem:[#allocation3 + $0xb8] sm:$0xff]
  %v1662 = vld [vmem:[#allocation3 + $0xc0] sm:$0xff]
  %v1663 = vld [vmem:[#allocation3 + $0xc8] sm:$0xff]
  %v1664 = vld [vmem:[#allocation3 + $0xd0] sm:$0xff]
  %v1665 = vld [vmem:[#allocation3 + $0xd8] sm:$0xff]
  %v1666 = vld [vmem:[#allocation3 + $0xe0] sm:$0xff]
  %v1667 = vld [vmem:[#allocation3 + $0xe8] sm:$0xff]
  %v1668 = vld [vmem:[#allocation3 + $0xf0] sm:$0xff]
  %v1669 = vld [vmem:[#allocation3 + $0xf8] sm:$0xff]
  %v1670 = vmul.f32 %v1223, %v1638
  %v1671 = vmul.f32 %v1225, %v1639
  %v1672 = vmul.f32 %v1227, %v1640
  %v1673 = vmul.f32 %v1229, %v1641
  %v1674 = vmul.f32 %v1231, %v1642
  %v1675 = vmul.f32 %v1233, %v1643
  %v1676 = vmul.f32 %v1235, %v1644
  %v1677 = vmul.f32 %v1237, %v1645
  %v1678 = vmul.f32 %v1239, %v1646
  %v1679 = vmul.f32 %v1241, %v1647
  %v1680 = vmul.f32 %v1243, %v1648
  %v1681 = vmul.f32 %v1245, %v1649
  %v1682 = vmul.f32 %v1247, %v1650
  %v1683 = vmul.f32 %v1249, %v1651
  %v1684 = vmul.f32 %v1251, %v1652
  %v1685 = vmul.f32 %v1253, %v1653
  %v1686 = vmul.f32 %v1255, %v1654
  %v1687 = vmul.f32 %v1257, %v1655
  %v1688 = vmul.f32 %v1259, %v1656
  %v1689 = vmul.f32 %v1261, %v1657
  %v1690 = vmul.f32 %v1263, %v1658
  %v1691 = vmul.f32 %v1265, %v1659
  %v1692 = vmul.f32 %v1267, %v1660
  %v1693 = vmul.f32 %v1269, %v1661
  %v1694 = vmul.f32 %v1271, %v1662
  %v1695 = vmul.f32 %v1273, %v1663
  %v1696 = vmul.f32 %v1275, %v1664
  %v1697 = vmul.f32 %v1277, %v1665
  %v1698 = vmul.f32 %v1279, %v1666
  %v1699 = vmul.f32 %v1281, %v1667
  %v1700 = vmul.f32 %v1283, %v1668
  %v1701 = vmul.f32 %v1285, %v1669
  %v1702 = vadd.f32 %v1511, %v1513
  %1703 = vadd.xlane.f32.xlu0 %v1702
  %v1704 = vpop.xlane.xlu0 %1703
  %v1705 = vadd.f32 %v1515, %v1517
  %1706 = vadd.xlane.f32.xlu0 %v1705
  %v1707 = vpop.xlane.xlu0 %1706
  %v1708 = vadd.f32 %v1519, %v1521
  %1709 = vadd.xlane.f32.xlu0 %v1708
  %v1710 = vpop.xlane.xlu0 %1709
  %v1711 = vadd.f32 %v1523, %v1525
  %1712 = vadd.xlane.f32.xlu0 %v1711
  %v1713 = vpop.xlane.xlu0 %1712
  %v1714 = vadd.f32 %v1527, %v1529
  %1715 = vadd.xlane.f32.xlu0 %v1714
  %v1716 = vpop.xlane.xlu0 %1715
  %v1717 = vadd.f32 %v1531, %v1533
  %1718 = vadd.xlane.f32.xlu0 %v1717
  %v1719 = vpop.xlane.xlu0 %1718
  %v1720 = vadd.f32 %v1535, %v1537
  %1721 = vadd.xlane.f32.xlu0 %v1720
  %v1722 = vpop.xlane.xlu0 %1721
  %v1723 = vadd.f32 %v1539, %v1541
  %1724 = vadd.xlane.f32.xlu0 %v1723
  %v1725 = vpop.xlane.xlu0 %1724
  %v1726 = vadd.f32 %v1543, %v1545
  %1727 = vadd.xlane.f32.xlu0 %v1726
  %v1728 = vpop.xlane.xlu0 %1727
  %v1729 = vadd.f32 %v1547, %v1549
  %1730 = vadd.xlane.f32.xlu0 %v1729
  %v1731 = vpop.xlane.xlu0 %1730
  %v1732 = vadd.f32 %v1551, %v1553
  %1733 = vadd.xlane.f32.xlu0 %v1732
  %v1734 = vpop.xlane.xlu0 %1733
  %v1735 = vadd.f32 %v1555, %v1557
  %1736 = vadd.xlane.f32.xlu0 %v1735
  %v1737 = vpop.xlane.xlu0 %1736
  %v1738 = vadd.f32 %v1559, %v1561
  %1739 = vadd.xlane.f32.xlu0 %v1738
  %v1740 = vpop.xlane.xlu0 %1739
  %v1741 = vadd.f32 %v1563, %v1565
  %1742 = vadd.xlane.f32.xlu0 %v1741
  %v1743 = vpop.xlane.xlu0 %1742
  %v1744 = vadd.f32 %v1567, %v1569
  %1745 = vadd.xlane.f32.xlu0 %v1744
  %v1746 = vpop.xlane.xlu0 %1745
  %v1747 = vadd.f32 %v1571, %v1573
  %1748 = vadd.xlane.f32.xlu0 %v1747
  %v1749 = vpop.xlane.xlu0 %1748
  %v1750 = vadd.f32 %v1575, %v1577
  %1751 = vadd.xlane.f32.xlu0 %v1750
  %v1752 = vpop.xlane.xlu0 %1751
  %v1753 = vadd.f32 %v1579, %v1581
  %1754 = vadd.xlane.f32.xlu0 %v1753
  %v1755 = vpop.xlane.xlu0 %1754
  %v1756 = vadd.f32 %v1583, %v1585
  %1757 = vadd.xlane.f32.xlu0 %v1756
  %v1758 = vpop.xlane.xlu0 %1757
  %v1759 = vadd.f32 %v1587, %v1589
  %1760 = vadd.xlane.f32.xlu0 %v1759
  %v1761 = vpop.xlane.xlu0 %1760
  %v1762 = vadd.f32 %v1591, %v1593
  %1763 = vadd.xlane.f32.xlu0 %v1762
  %v1764 = vpop.xlane.xlu0 %1763
  %v1765 = vadd.f32 %v1595, %v1597
  %1766 = vadd.xlane.f32.xlu0 %v1765
  %v1767 = vpop.xlane.xlu0 %1766
  %v1768 = vadd.f32 %v1599, %v1601
  %1769 = vadd.xlane.f32.xlu0 %v1768
  %v1770 = vpop.xlane.xlu0 %1769
  %v1771 = vadd.f32 %v1603, %v1605
  %1772 = vadd.xlane.f32.xlu0 %v1771
  %v1773 = vpop.xlane.xlu0 %1772
  %v1774 = vadd.f32 %v1607, %v1609
  %1775 = vadd.xlane.f32.xlu0 %v1774
  %v1776 = vpop.xlane.xlu0 %1775
  %v1777 = vadd.f32 %v1611, %v1613
  %1778 = vadd.xlane.f32.xlu0 %v1777
  %v1779 = vpop.xlane.xlu0 %1778
  %v1780 = vadd.f32 %v1615, %v1617
  %1781 = vadd.xlane.f32.xlu0 %v1780
  %v1782 = vpop.xlane.xlu0 %1781
  %v1783 = vadd.f32 %v1619, %v1621
  %1784 = vadd.xlane.f32.xlu0 %v1783
  %v1785 = vpop.xlane.xlu0 %1784
  %v1786 = vadd.f32 %v1623, %v1625
  %1787 = vadd.xlane.f32.xlu0 %v1786
  %v1788 = vpop.xlane.xlu0 %1787
  %v1789 = vadd.f32 %v1627, %v1629
  %1790 = vadd.xlane.f32.xlu0 %v1789
  %v1791 = vpop.xlane.xlu0 %1790
  %v1792 = vadd.f32 %v1631, %v1633
  %1793 = vadd.xlane.f32.xlu0 %v1792
  %v1794 = vpop.xlane.xlu0 %1793
  %v1795 = vadd.f32 %v1635, %v1637
  %1796 = vadd.xlane.f32.xlu0 %v1795
  %v1797 = vpop.xlane.xlu0 %1796
  %v1798 = vadd.f32 %v1670, %v1704
  %v1799 = vadd.f32 %v1671, %v1707
  %v1800 = vadd.f32 %v1672, %v1710
  %v1801 = vadd.f32 %v1673, %v1713
  %v1802 = vadd.f32 %v1674, %v1716
  %v1803 = vadd.f32 %v1675, %v1719
  %v1804 = vadd.f32 %v1676, %v1722
  %v1805 = vadd.f32 %v1677, %v1725
  %v1806 = vadd.f32 %v1678, %v1728
  %v1807 = vadd.f32 %v1679, %v1731
  %v1808 = vadd.f32 %v1680, %v1734
  %v1809 = vadd.f32 %v1681, %v1737
  %v1810 = vadd.f32 %v1682, %v1740
  %v1811 = vadd.f32 %v1683, %v1743
  %v1812 = vadd.f32 %v1684, %v1746
  %v1813 = vadd.f32 %v1685, %v1749
  %v1814 = vadd.f32 %v1686, %v1752
  %v1815 = vadd.f32 %v1687, %v1755
  %v1816 = vadd.f32 %v1688, %v1758
  %v1817 = vadd.f32 %v1689, %v1761
  %v1818 = vadd.f32 %v1690, %v1764
  %v1819 = vadd.f32 %v1691, %v1767
  %v1820 = vadd.f32 %v1692, %v1770
  %v1821 = vadd.f32 %v1693, %v1773
  %v1822 = vadd.f32 %v1694, %v1776
  %v1823 = vadd.f32 %v1695, %v1779
  %v1824 = vadd.f32 %v1696, %v1782
  %v1825 = vadd.f32 %v1697, %v1785
  %v1826 = vadd.f32 %v1698, %v1788
  %v1827 = vadd.f32 %v1699, %v1791
  %v1828 = vadd.f32 %v1700, %v1794
  %v1829 = vadd.f32 %v1701, %v1797
  %vm1830 = vcmask 7168
  %1831 = vst.msk [vmem:[#allocation3] sm:$0xff] %vm1830, %v1798
  %1832 = vst.msk [vmem:[#allocation3 + $0x8] sm:$0xff] %vm1830, %v1799
  %1833 = vst.msk [vmem:[#allocation3 + $0x10] sm:$0xff] %vm1830, %v1800
  %1834 = vst.msk [vmem:[#allocation3 + $0x18] sm:$0xff] %vm1830, %v1801
  %1835 = vst.msk [vmem:[#allocation3 + $0x20] sm:$0xff] %vm1830, %v1802
  %1836 = vst.msk [vmem:[#allocation3 + $0x28] sm:$0xff] %vm1830, %v1803
  %1837 = vst.msk [vmem:[#allocation3 + $0x30] sm:$0xff] %vm1830, %v1804
  %1838 = vst.msk [vmem:[#allocation3 + $0x38] sm:$0xff] %vm1830, %v1805
  %1839 = vst.msk [vmem:[#allocation3 + $0x40] sm:$0xff] %vm1830, %v1806
  %1840 = vst.msk [vmem:[#allocation3 + $0x48] sm:$0xff] %vm1830, %v1807
  %1841 = vst.msk [vmem:[#allocation3 + $0x50] sm:$0xff] %vm1830, %v1808
  %1842 = vst.msk [vmem:[#allocation3 + $0x58] sm:$0xff] %vm1830, %v1809
  %1843 = vst.msk [vmem:[#allocation3 + $0x60] sm:$0xff] %vm1830, %v1810
  %1844 = vst.msk [vmem:[#allocation3 + $0x68] sm:$0xff] %vm1830, %v1811
  %1845 = vst.msk [vmem:[#allocation3 + $0x70] sm:$0xff] %vm1830, %v1812
  %1846 = vst.msk [vmem:[#allocation3 + $0x78] sm:$0xff] %vm1830, %v1813
  %1847 = vst.msk [vmem:[#allocation3 + $0x80] sm:$0xff] %vm1830, %v1814
  %1848 = vst.msk [vmem:[#allocation3 + $0x88] sm:$0xff] %vm1830, %v1815
  %1849 = vst.msk [vmem:[#allocation3 + $0x90] sm:$0xff] %vm1830, %v1816
  %1850 = vst.msk [vmem:[#allocation3 + $0x98] sm:$0xff] %vm1830, %v1817
  %1851 = vst.msk [vmem:[#allocation3 + $0xa0] sm:$0xff] %vm1830, %v1818
  %1852 = vst.msk [vmem:[#allocation3 + $0xa8] sm:$0xff] %vm1830, %v1819
  %1853 = vst.msk [vmem:[#allocation3 + $0xb0] sm:$0xff] %vm1830, %v1820
  %1854 = vst.msk [vmem:[#allocation3 + $0xb8] sm:$0xff] %vm1830, %v1821
  %1855 = vst.msk [vmem:[#allocation3 + $0xc0] sm:$0xff] %vm1830, %v1822
  %1856 = vst.msk [vmem:[#allocation3 + $0xc8] sm:$0xff] %vm1830, %v1823
  %1857 = vst.msk [vmem:[#allocation3 + $0xd0] sm:$0xff] %vm1830, %v1824
  %1858 = vst.msk [vmem:[#allocation3 + $0xd8] sm:$0xff] %vm1830, %v1825
  %1859 = vst.msk [vmem:[#allocation3 + $0xe0] sm:$0xff] %vm1830, %v1826
  %1860 = vst.msk [vmem:[#allocation3 + $0xe8] sm:$0xff] %vm1830, %v1827
  %1861 = vst.msk [vmem:[#allocation3 + $0xf0] sm:$0xff] %vm1830, %v1828
  %1862 = vst.msk [vmem:[#allocation3 + $0xf8] sm:$0xff] %vm1830, %v1829
  %v1863 = vld [vmem:[#allocation4] sm:$0xff]
  %v1864 = vld [vmem:[#allocation4 + $0x8] sm:$0xff]
  %v1865 = vld [vmem:[#allocation4 + $0x10] sm:$0xff]
  %v1866 = vld [vmem:[#allocation4 + $0x18] sm:$0xff]
  %v1867 = vld [vmem:[#allocation4 + $0x20] sm:$0xff]
  %v1868 = vld [vmem:[#allocation4 + $0x28] sm:$0xff]
  %v1869 = vld [vmem:[#allocation4 + $0x30] sm:$0xff]
  %v1870 = vld [vmem:[#allocation4 + $0x38] sm:$0xff]
  %v1871 = vld [vmem:[#allocation4 + $0x40] sm:$0xff]
  %v1872 = vld [vmem:[#allocation4 + $0x48] sm:$0xff]
  %v1873 = vld [vmem:[#allocation4 + $0x50] sm:$0xff]
  %v1874 = vld [vmem:[#allocation4 + $0x58] sm:$0xff]
  %v1875 = vld [vmem:[#allocation4 + $0x60] sm:$0xff]
  %v1876 = vld [vmem:[#allocation4 + $0x68] sm:$0xff]
  %v1877 = vld [vmem:[#allocation4 + $0x70] sm:$0xff]
  %v1878 = vld [vmem:[#allocation4 + $0x78] sm:$0xff]
  %v1879 = vld [vmem:[#allocation4 + $0x80] sm:$0xff]
  %v1880 = vld [vmem:[#allocation4 + $0x88] sm:$0xff]
  %v1881 = vld [vmem:[#allocation4 + $0x90] sm:$0xff]
  %v1882 = vld [vmem:[#allocation4 + $0x98] sm:$0xff]
  %v1883 = vld [vmem:[#allocation4 + $0xa0] sm:$0xff]
  %v1884 = vld [vmem:[#allocation4 + $0xa8] sm:$0xff]
  %v1885 = vld [vmem:[#allocation4 + $0xb0] sm:$0xff]
  %v1886 = vld [vmem:[#allocation4 + $0xb8] sm:$0xff]
  %v1887 = vld [vmem:[#allocation4 + $0xc0] sm:$0xff]
  %v1888 = vld [vmem:[#allocation4 + $0xc8] sm:$0xff]
  %v1889 = vld [vmem:[#allocation4 + $0xd0] sm:$0xff]
  %v1890 = vld [vmem:[#allocation4 + $0xd8] sm:$0xff]
  %v1891 = vld [vmem:[#allocation4 + $0xe0] sm:$0xff]
  %v1892 = vld [vmem:[#allocation4 + $0xe8] sm:$0xff]
  %v1893 = vld [vmem:[#allocation4 + $0xf0] sm:$0xff]
  %v1894 = vld [vmem:[#allocation4 + $0xf8] sm:$0xff]
  %1896 = vset.pattern.permute.xlu0 0
  %1897 = vperm.xlu0 %1896, %v1223
  %v1898 = vpop.permute.xlu0 %1897
  %1901 = vset.pattern.permute.xlu0 0
  %1902 = vperm.xlu0 %1901, %v1225
  %v1903 = vpop.permute.xlu0 %1902
  %1906 = vset.pattern.permute.xlu0 0
  %1907 = vperm.xlu0 %1906, %v1227
  %v1908 = vpop.permute.xlu0 %1907
  %1911 = vset.pattern.permute.xlu0 0
  %1912 = vperm.xlu0 %1911, %v1229
  %v1913 = vpop.permute.xlu0 %1912
  %1916 = vset.pattern.permute.xlu0 0
  %1917 = vperm.xlu0 %1916, %v1231
  %v1918 = vpop.permute.xlu0 %1917
  %1921 = vset.pattern.permute.xlu0 0
  %1922 = vperm.xlu0 %1921, %v1233
  %v1923 = vpop.permute.xlu0 %1922
  %1926 = vset.pattern.permute.xlu0 0
  %1927 = vperm.xlu0 %1926, %v1235
  %v1928 = vpop.permute.xlu0 %1927
  %1931 = vset.pattern.permute.xlu0 0
  %1932 = vperm.xlu0 %1931, %v1237
  %v1933 = vpop.permute.xlu0 %1932
  %1936 = vset.pattern.permute.xlu0 0
  %1937 = vperm.xlu0 %1936, %v1239
  %v1938 = vpop.permute.xlu0 %1937
  %1941 = vset.pattern.permute.xlu0 0
  %1942 = vperm.xlu0 %1941, %v1241
  %v1943 = vpop.permute.xlu0 %1942
  %1946 = vset.pattern.permute.xlu0 0
  %1947 = vperm.xlu0 %1946, %v1243
  %v1948 = vpop.permute.xlu0 %1947
  %1951 = vset.pattern.permute.xlu0 0
  %1952 = vperm.xlu0 %1951, %v1245
  %v1953 = vpop.permute.xlu0 %1952
  %1956 = vset.pattern.permute.xlu0 0
  %1957 = vperm.xlu0 %1956, %v1247
  %v1958 = vpop.permute.xlu0 %1957
  %1961 = vset.pattern.permute.xlu0 0
  %1962 = vperm.xlu0 %1961, %v1249
  %v1963 = vpop.permute.xlu0 %1962
  %1966 = vset.pattern.permute.xlu0 0
  %1967 = vperm.xlu0 %1966, %v1251
  %v1968 = vpop.permute.xlu0 %1967
  %1971 = vset.pattern.permute.xlu0 0
  %1972 = vperm.xlu0 %1971, %v1253
  %v1973 = vpop.permute.xlu0 %1972
  %1976 = vset.pattern.permute.xlu0 0
  %1977 = vperm.xlu0 %1976, %v1255
  %v1978 = vpop.permute.xlu0 %1977
  %1981 = vset.pattern.permute.xlu0 0
  %1982 = vperm.xlu0 %1981, %v1257
  %v1983 = vpop.permute.xlu0 %1982
  %1986 = vset.pattern.permute.xlu0 0
  %1987 = vperm.xlu0 %1986, %v1259
  %v1988 = vpop.permute.xlu0 %1987
  %1991 = vset.pattern.permute.xlu0 0
  %1992 = vperm.xlu0 %1991, %v1261
  %v1993 = vpop.permute.xlu0 %1992
  %1996 = vset.pattern.permute.xlu0 0
  %1997 = vperm.xlu0 %1996, %v1263
  %v1998 = vpop.permute.xlu0 %1997
  %2001 = vset.pattern.permute.xlu0 0
  %2002 = vperm.xlu0 %2001, %v1265
  %v2003 = vpop.permute.xlu0 %2002
  %2006 = vset.pattern.permute.xlu0 0
  %2007 = vperm.xlu0 %2006, %v1267
  %v2008 = vpop.permute.xlu0 %2007
  %2011 = vset.pattern.permute.xlu0 0
  %2012 = vperm.xlu0 %2011, %v1269
  %v2013 = vpop.permute.xlu0 %2012
  %2016 = vset.pattern.permute.xlu0 0
  %2017 = vperm.xlu0 %2016, %v1271
  %v2018 = vpop.permute.xlu0 %2017
  %2021 = vset.pattern.permute.xlu0 0
  %2022 = vperm.xlu0 %2021, %v1273
  %v2023 = vpop.permute.xlu0 %2022
  %2026 = vset.pattern.permute.xlu0 0
  %2027 = vperm.xlu0 %2026, %v1275
  %v2028 = vpop.permute.xlu0 %2027
  %2031 = vset.pattern.permute.xlu0 0
  %2032 = vperm.xlu0 %2031, %v1277
  %v2033 = vpop.permute.xlu0 %2032
  %2036 = vset.pattern.permute.xlu0 0
  %2037 = vperm.xlu0 %2036, %v1279
  %v2038 = vpop.permute.xlu0 %2037
  %2041 = vset.pattern.permute.xlu0 0
  %2042 = vperm.xlu0 %2041, %v1281
  %v2043 = vpop.permute.xlu0 %2042
  %2046 = vset.pattern.permute.xlu0 0
  %2047 = vperm.xlu0 %2046, %v1283
  %v2048 = vpop.permute.xlu0 %2047
  %2051 = vset.pattern.permute.xlu0 0
  %2052 = vperm.xlu0 %2051, %v1285
  %v2053 = vpop.permute.xlu0 %2052
  %v2055 = vmul.f32 %v1898, %v1863
  %v2056 = vmul.f32 %v1903, %v1864
  %v2057 = vmul.f32 %v1908, %v1865
  %v2058 = vmul.f32 %v1913, %v1866
  %v2059 = vmul.f32 %v1918, %v1867
  %v2060 = vmul.f32 %v1923, %v1868
  %v2061 = vmul.f32 %v1928, %v1869
  %v2062 = vmul.f32 %v1933, %v1870
  %v2063 = vmul.f32 %v1938, %v1871
  %v2064 = vmul.f32 %v1943, %v1872
  %v2065 = vmul.f32 %v1948, %v1873
  %v2066 = vmul.f32 %v1953, %v1874
  %v2067 = vmul.f32 %v1958, %v1875
  %v2068 = vmul.f32 %v1963, %v1876
  %v2069 = vmul.f32 %v1968, %v1877
  %v2070 = vmul.f32 %v1973, %v1878
  %v2071 = vmul.f32 %v1978, %v1879
  %v2072 = vmul.f32 %v1983, %v1880
  %v2073 = vmul.f32 %v1988, %v1881
  %v2074 = vmul.f32 %v1993, %v1882
  %v2075 = vmul.f32 %v1998, %v1883
  %v2076 = vmul.f32 %v2003, %v1884
  %v2077 = vmul.f32 %v2008, %v1885
  %v2078 = vmul.f32 %v2013, %v1886
  %v2079 = vmul.f32 %v2018, %v1887
  %v2080 = vmul.f32 %v2023, %v1888
  %v2081 = vmul.f32 %v2028, %v1889
  %v2082 = vmul.f32 %v2033, %v1890
  %v2083 = vmul.f32 %v2038, %v1891
  %v2084 = vmul.f32 %v2043, %v1892
  %v2085 = vmul.f32 %v2048, %v1893
  %v2086 = vmul.f32 %v2053, %v1894
  %v2087 = vpack.c.bf16 %v1515, %v1511
  %v2088 = vpack.c.bf16 %v1517, %v1513
  %v2089 = vpack.c.bf16 %v1523, %v1519
  %v2090 = vpack.c.bf16 %v1525, %v1521
  %v2091 = vpack.c.bf16 %v1531, %v1527
  %v2092 = vpack.c.bf16 %v1533, %v1529
  %v2093 = vpack.c.bf16 %v1539, %v1535
  %v2094 = vpack.c.bf16 %v1541, %v1537
  %v2095 = vpack.c.bf16 %v1547, %v1543
  %v2096 = vpack.c.bf16 %v1549, %v1545
  %v2097 = vpack.c.bf16 %v1555, %v1551
  %v2098 = vpack.c.bf16 %v1557, %v1553
  %v2099 = vpack.c.bf16 %v1563, %v1559
  %v2100 = vpack.c.bf16 %v1565, %v1561
  %v2101 = vpack.c.bf16 %v1571, %v1567
  %v2102 = vpack.c.bf16 %v1573, %v1569
  %v2103 = vpack.c.bf16 %v1579, %v1575
  %v2104 = vpack.c.bf16 %v1581, %v1577
  %v2105 = vpack.c.bf16 %v1587, %v1583
  %v2106 = vpack.c.bf16 %v1589, %v1585
  %v2107 = vpack.c.bf16 %v1595, %v1591
  %v2108 = vpack.c.bf16 %v1597, %v1593
  %v2109 = vpack.c.bf16 %v1603, %v1599
  %v2110 = vpack.c.bf16 %v1605, %v1601
  %v2111 = vpack.c.bf16 %v1611, %v1607
  %v2112 = vpack.c.bf16 %v1613, %v1609
  %v2113 = vpack.c.bf16 %v1619, %v1615
  %v2114 = vpack.c.bf16 %v1621, %v1617
  %v2115 = vpack.c.bf16 %v1627, %v1623
  %v2116 = vpack.c.bf16 %v1629, %v1625
  %v2117 = vpack.c.bf16 %v1635, %v1631
  %v2118 = vpack.c.bf16 %v1637, %v1633
  %v2151 = vunpack.c.l.b16 %v548
  %v2152 = vunpack.c.l.b16 %v549
  %v2153 = vunpack.c.l.b16 %v550
  %v2154 = vunpack.c.l.b16 %v551
  %v2155 = vunpack.c.l.b16 %v552
  %v2156 = vunpack.c.l.b16 %v553
  %v2157 = vunpack.c.l.b16 %v554
  %v2158 = vunpack.c.l.b16 %v555
  %v2159 = vunpack.c.l.b16 %v556
  %v2160 = vunpack.c.l.b16 %v557
  %v2161 = vunpack.c.l.b16 %v558
  %v2162 = vunpack.c.l.b16 %v559
  %v2163 = vunpack.c.l.b16 %v560
  %v2164 = vunpack.c.l.b16 %v561
  %v2165 = vunpack.c.l.b16 %v562
  %v2166 = vunpack.c.l.b16 %v563
  %v2167 = vunpack.c.l.b16 %v564
  %v2168 = vunpack.c.l.b16 %v565
  %v2169 = vunpack.c.l.b16 %v566
  %v2170 = vunpack.c.l.b16 %v567
  %v2171 = vunpack.c.l.b16 %v568
  %v2172 = vunpack.c.l.b16 %v569
  %v2173 = vunpack.c.l.b16 %v570
  %v2174 = vunpack.c.l.b16 %v571
  %v2175 = vunpack.c.l.b16 %v572
  %v2176 = vunpack.c.l.b16 %v573
  %v2177 = vunpack.c.l.b16 %v574
  %v2178 = vunpack.c.l.b16 %v575
  %v2179 = vunpack.c.l.b16 %v576
  %v2180 = vunpack.c.l.b16 %v577
  %v2181 = vunpack.c.l.b16 %v578
  %v2182 = vunpack.c.l.b16 %v579
  %v2183 = vpack.c.b16 %v2152, %v2151
  %v2184 = vpack.c.b16 %v2154, %v2153
  %v2185 = vpack.c.b16 %v2156, %v2155
  %v2186 = vpack.c.b16 %v2158, %v2157
  %v2187 = vpack.c.b16 %v2160, %v2159
  %v2188 = vpack.c.b16 %v2162, %v2161
  %v2189 = vpack.c.b16 %v2164, %v2163
  %v2190 = vpack.c.b16 %v2166, %v2165
  %v2191 = vpack.c.b16 %v2168, %v2167
  %v2192 = vpack.c.b16 %v2170, %v2169
  %v2193 = vpack.c.b16 %v2172, %v2171
  %v2194 = vpack.c.b16 %v2174, %v2173
  %v2195 = vpack.c.b16 %v2176, %v2175
  %v2196 = vpack.c.b16 %v2178, %v2177
  %v2197 = vpack.c.b16 %v2180, %v2179
  %v2198 = vpack.c.b16 %v2182, %v2181
  %2215 = vmatprep.subr.bf16.mxu0 0
  %2216 = vmatpush1.bf16.msra.mxu0 %v2190
  %2217 = vmatprep.subr.bf16.mxu0 0
  %2218 = vmatpush1.bf16.msra.mxu0 %v2189
  %2219 = vmatprep.subr.bf16.mxu0 0
  %2220 = vmatpush1.bf16.msra.mxu0 %v2188
  %2221 = vmatprep.subr.bf16.mxu0 0
  %2222 = vmatpush1.bf16.msra.mxu0 %v2187
  %2223 = vmatprep.subr.bf16.mxu0 0
  %2224 = vmatpush1.bf16.msra.mxu0 %v2186
  %2225 = vmatprep.subr.bf16.mxu0 0
  %2226 = vmatpush1.bf16.msra.mxu0 %v2185
  %2227 = vmatprep.subr.bf16.mxu0 0
  %2228 = vmatpush1.bf16.msra.mxu0 %v2184
  %2229 = vmatprep.subr.bf16.mxu0 0
  %2230 = vmatpush1.bf16.msra.mxu0 %v2183
  %2231 = vmatprep.subr.bf16.mxu0 0
  %2232 = vmatpush2.bf16.msra.mxu0 %v2198
  %2233 = vmatprep.subr.bf16.mxu0 0
  %2234 = vmatpush2.bf16.msra.mxu0 %v2197
  %2235 = vmatprep.subr.bf16.mxu0 0
  %2236 = vmatpush2.bf16.msra.mxu0 %v2196
  %2237 = vmatprep.subr.bf16.mxu0 0
  %2238 = vmatpush2.bf16.msra.mxu0 %v2195
  %2239 = vmatprep.subr.bf16.mxu0 0
  %2240 = vmatpush2.bf16.msra.mxu0 %v2194
  %2241 = vmatprep.subr.bf16.mxu0 0
  %2242 = vmatpush2.bf16.msra.mxu0 %v2193
  %2243 = vmatprep.subr.bf16.mxu0 0
  %2244 = vmatpush2.bf16.msra.mxu0 %v2192
  %2245 = vmatprep.subr.bf16.mxu0 0
  %2246 = vmatpush2.bf16.msra.mxu0 %v2191
  %2247 = vmatprep.mubr.bf16.mxu0 %v2088
  %2248 = vmatmul.mubr.bf16.gmra.mxu0 %v2087
  %v2249 = vpop.f32.mrf.mxu0
  %v2250 = vadd.f32 0.0, %v2249
  %v2251 = vpop.f32.mrf.mxu0
  %v2252 = vpop.f32.mrf.mxu0
  %v2253 = vadd.f32 0.0, %v2252
  %v2254 = vpop.f32.mrf.mxu0
  %2255 = vmatprep.mubr.bf16.mxu0 %v2090
  %2256 = vmatmul.mubr.bf16.gmra.mxu0 %v2089
  %v2257 = vpop.f32.mrf.mxu0
  %v2258 = vadd.f32 0.0, %v2257
  %v2259 = vpop.f32.mrf.mxu0
  %v2260 = vpop.f32.mrf.mxu0
  %v2261 = vadd.f32 0.0, %v2260
  %v2262 = vpop.f32.mrf.mxu0
  %2263 = vmatprep.mubr.bf16.mxu0 %v2092
  %2264 = vmatmul.mubr.bf16.gmra.mxu0 %v2091
  %v2265 = vpop.f32.mrf.mxu0
  %v2266 = vadd.f32 0.0, %v2265
  %v2267 = vpop.f32.mrf.mxu0
  %v2268 = vpop.f32.mrf.mxu0
  %v2269 = vadd.f32 0.0, %v2268
  %v2270 = vpop.f32.mrf.mxu0
  %2271 = vmatprep.mubr.bf16.mxu0 %v2094
  %2272 = vmatmul.mubr.bf16.gmra.mxu0 %v2093
  %v2273 = vpop.f32.mrf.mxu0
  %v2274 = vadd.f32 0.0, %v2273
  %v2275 = vpop.f32.mrf.mxu0
  %v2276 = vpop.f32.mrf.mxu0
  %v2277 = vadd.f32 0.0, %v2276
  %v2278 = vpop.f32.mrf.mxu0
  %2279 = vmatprep.mubr.bf16.mxu0 %v2096
  %2280 = vmatmul.mubr.bf16.gmra.mxu0 %v2095
  %v2281 = vpop.f32.mrf.mxu0
  %v2282 = vadd.f32 0.0, %v2281
  %v2283 = vpop.f32.mrf.mxu0
  %v2284 = vpop.f32.mrf.mxu0
  %v2285 = vadd.f32 0.0, %v2284
  %v2286 = vpop.f32.mrf.mxu0
  %2287 = vmatprep.mubr.bf16.mxu0 %v2098
  %2288 = vmatmul.mubr.bf16.gmra.mxu0 %v2097
  %v2289 = vpop.f32.mrf.mxu0
  %v2290 = vadd.f32 0.0, %v2289
  %v2291 = vpop.f32.mrf.mxu0
  %v2292 = vpop.f32.mrf.mxu0
  %v2293 = vadd.f32 0.0, %v2292
  %v2294 = vpop.f32.mrf.mxu0
  %2295 = vmatprep.mubr.bf16.mxu0 %v2100
  %2296 = vmatmul.mubr.bf16.gmra.mxu0 %v2099
  %v2297 = vpop.f32.mrf.mxu0
  %v2298 = vadd.f32 0.0, %v2297
  %v2299 = vpop.f32.mrf.mxu0
  %v2300 = vpop.f32.mrf.mxu0
  %v2301 = vadd.f32 0.0, %v2300
  %v2302 = vpop.f32.mrf.mxu0
  %2303 = vmatprep.mubr.bf16.mxu0 %v2102
  %2304 = vmatmul.mubr.bf16.gmra.mxu0 %v2101
  %v2305 = vpop.f32.mrf.mxu0
  %v2306 = vadd.f32 0.0, %v2305
  %v2307 = vpop.f32.mrf.mxu0
  %v2308 = vpop.f32.mrf.mxu0
  %v2309 = vadd.f32 0.0, %v2308
  %v2310 = vpop.f32.mrf.mxu0
  %2311 = vmatprep.mubr.bf16.mxu0 %v2104
  %2312 = vmatmul.mubr.bf16.gmra.mxu0 %v2103
  %v2313 = vpop.f32.mrf.mxu0
  %v2314 = vadd.f32 0.0, %v2313
  %v2315 = vpop.f32.mrf.mxu0
  %v2316 = vpop.f32.mrf.mxu0
  %v2317 = vadd.f32 0.0, %v2316
  %v2318 = vpop.f32.mrf.mxu0
  %2319 = vmatprep.mubr.bf16.mxu0 %v2106
  %2320 = vmatmul.mubr.bf16.gmra.mxu0 %v2105
  %v2321 = vpop.f32.mrf.mxu0
  %v2322 = vadd.f32 0.0, %v2321
  %v2323 = vpop.f32.mrf.mxu0
  %v2324 = vpop.f32.mrf.mxu0
  %v2325 = vadd.f32 0.0, %v2324
  %v2326 = vpop.f32.mrf.mxu0
  %2327 = vmatprep.mubr.bf16.mxu0 %v2108
  %2328 = vmatmul.mubr.bf16.gmra.mxu0 %v2107
  %v2329 = vpop.f32.mrf.mxu0
  %v2330 = vadd.f32 0.0, %v2329
  %v2331 = vpop.f32.mrf.mxu0
  %v2332 = vpop.f32.mrf.mxu0
  %v2333 = vadd.f32 0.0, %v2332
  %v2334 = vpop.f32.mrf.mxu0
  %2335 = vmatprep.mubr.bf16.mxu0 %v2110
  %2336 = vmatmul.mubr.bf16.gmra.mxu0 %v2109
  %v2337 = vpop.f32.mrf.mxu0
  %v2338 = vadd.f32 0.0, %v2337
  %v2339 = vpop.f32.mrf.mxu0
  %v2340 = vpop.f32.mrf.mxu0
  %v2341 = vadd.f32 0.0, %v2340
  %v2342 = vpop.f32.mrf.mxu0
  %2343 = vmatprep.mubr.bf16.mxu0 %v2112
  %2344 = vmatmul.mubr.bf16.gmra.mxu0 %v2111
  %v2345 = vpop.f32.mrf.mxu0
  %v2346 = vadd.f32 0.0, %v2345
  %v2347 = vpop.f32.mrf.mxu0
  %v2348 = vpop.f32.mrf.mxu0
  %v2349 = vadd.f32 0.0, %v2348
  %v2350 = vpop.f32.mrf.mxu0
  %2351 = vmatprep.mubr.bf16.mxu0 %v2114
  %2352 = vmatmul.mubr.bf16.gmra.mxu0 %v2113
  %v2353 = vpop.f32.mrf.mxu0
  %v2354 = vadd.f32 0.0, %v2353
  %v2355 = vpop.f32.mrf.mxu0
  %v2356 = vpop.f32.mrf.mxu0
  %v2357 = vadd.f32 0.0, %v2356
  %v2358 = vpop.f32.mrf.mxu0
  %2359 = vmatprep.mubr.bf16.mxu0 %v2116
  %2360 = vmatmul.mubr.bf16.gmra.mxu0 %v2115
  %v2361 = vpop.f32.mrf.mxu0
  %v2362 = vadd.f32 0.0, %v2361
  %v2363 = vpop.f32.mrf.mxu0
  %v2364 = vpop.f32.mrf.mxu0
  %v2365 = vadd.f32 0.0, %v2364
  %v2366 = vpop.f32.mrf.mxu0
  %2367 = vmatprep.mubr.bf16.mxu0 %v2118
  %2368 = vmatmul.mubr.bf16.gmra.mxu0 %v2117
  %v2369 = vpop.f32.mrf.mxu0
  %v2370 = vadd.f32 0.0, %v2369
  %v2371 = vpop.f32.mrf.mxu0
  %v2372 = vpop.f32.mrf.mxu0
  %v2373 = vadd.f32 0.0, %v2372
  %v2374 = vpop.f32.mrf.mxu0
  %2375 = vdwg.mxu0
  %v2376 = vadd.f32 %v2055, %v2250
  %v2377 = vadd.f32 %v2056, %v2253
  %v2378 = vadd.f32 %v2057, %v2258
  %v2379 = vadd.f32 %v2058, %v2261
  %v2380 = vadd.f32 %v2059, %v2266
  %v2381 = vadd.f32 %v2060, %v2269
  %v2382 = vadd.f32 %v2061, %v2274
  %v2383 = vadd.f32 %v2062, %v2277
  %v2384 = vadd.f32 %v2063, %v2282
  %v2385 = vadd.f32 %v2064, %v2285
  %v2386 = vadd.f32 %v2065, %v2290
  %v2387 = vadd.f32 %v2066, %v2293
  %v2388 = vadd.f32 %v2067, %v2298
  %v2389 = vadd.f32 %v2068, %v2301
  %v2390 = vadd.f32 %v2069, %v2306
  %v2391 = vadd.f32 %v2070, %v2309
  %v2392 = vadd.f32 %v2071, %v2314
  %v2393 = vadd.f32 %v2072, %v2317
  %v2394 = vadd.f32 %v2073, %v2322
  %v2395 = vadd.f32 %v2074, %v2325
  %v2396 = vadd.f32 %v2075, %v2330
  %v2397 = vadd.f32 %v2076, %v2333
  %v2398 = vadd.f32 %v2077, %v2338
  %v2399 = vadd.f32 %v2078, %v2341
  %v2400 = vadd.f32 %v2079, %v2346
  %v2401 = vadd.f32 %v2080, %v2349
  %v2402 = vadd.f32 %v2081, %v2354
  %v2403 = vadd.f32 %v2082, %v2357
  %v2404 = vadd.f32 %v2083, %v2362
  %v2405 = vadd.f32 %v2084, %v2365
  %v2406 = vadd.f32 %v2085, %v2370
  %v2407 = vadd.f32 %v2086, %v2373
  %2408 = vst.msk [vmem:[#allocation4] sm:$0xff] %vm740, %v2376
  %2409 = vst.msk [vmem:[#allocation4 + $0x8] sm:$0xff] %vm740, %v2377
  %2410 = vst.msk [vmem:[#allocation4 + $0x10] sm:$0xff] %vm740, %v2378
  %2411 = vst.msk [vmem:[#allocation4 + $0x18] sm:$0xff] %vm740, %v2379
  %2412 = vst.msk [vmem:[#allocation4 + $0x20] sm:$0xff] %vm740, %v2380
  %2413 = vst.msk [vmem:[#allocation4 + $0x28] sm:$0xff] %vm740, %v2381
  %2414 = vst.msk [vmem:[#allocation4 + $0x30] sm:$0xff] %vm740, %v2382
  %2415 = vst.msk [vmem:[#allocation4 + $0x38] sm:$0xff] %vm740, %v2383
  %2416 = vst.msk [vmem:[#allocation4 + $0x40] sm:$0xff] %vm740, %v2384
  %2417 = vst.msk [vmem:[#allocation4 + $0x48] sm:$0xff] %vm740, %v2385
  %2418 = vst.msk [vmem:[#allocation4 + $0x50] sm:$0xff] %vm740, %v2386
  %2419 = vst.msk [vmem:[#allocation4 + $0x58] sm:$0xff] %vm740, %v2387
  %2420 = vst.msk [vmem:[#allocation4 + $0x60] sm:$0xff] %vm740, %v2388
  %2421 = vst.msk [vmem:[#allocation4 + $0x68] sm:$0xff] %vm740, %v2389
  %2422 = vst.msk [vmem:[#allocation4 + $0x70] sm:$0xff] %vm740, %v2390
  %2423 = vst.msk [vmem:[#allocation4 + $0x78] sm:$0xff] %vm740, %v2391
  %2424 = vst.msk [vmem:[#allocation4 + $0x80] sm:$0xff] %vm740, %v2392
  %2425 = vst.msk [vmem:[#allocation4 + $0x88] sm:$0xff] %vm740, %v2393
  %2426 = vst.msk [vmem:[#allocation4 + $0x90] sm:$0xff] %vm740, %v2394
  %2427 = vst.msk [vmem:[#allocation4 + $0x98] sm:$0xff] %vm740, %v2395
  %2428 = vst.msk [vmem:[#allocation4 + $0xa0] sm:$0xff] %vm740, %v2396
  %2429 = vst.msk [vmem:[#allocation4 + $0xa8] sm:$0xff] %vm740, %v2397
  %2430 = vst.msk [vmem:[#allocation4 + $0xb0] sm:$0xff] %vm740, %v2398
  %2431 = vst.msk [vmem:[#allocation4 + $0xb8] sm:$0xff] %vm740, %v2399
  %2432 = vst.msk [vmem:[#allocation4 + $0xc0] sm:$0xff] %vm740, %v2400
  %2433 = vst.msk [vmem:[#allocation4 + $0xc8] sm:$0xff] %vm740, %v2401
  %2434 = vst.msk [vmem:[#allocation4 + $0xd0] sm:$0xff] %vm740, %v2402
  %2435 = vst.msk [vmem:[#allocation4 + $0xd8] sm:$0xff] %vm740, %v2403
  %2436 = vst.msk [vmem:[#allocation4 + $0xe0] sm:$0xff] %vm740, %v2404
  %2437 = vst.msk [vmem:[#allocation4 + $0xe8] sm:$0xff] %vm740, %v2405
  %2438 = vst.msk [vmem:[#allocation4 + $0xf0] sm:$0xff] %vm740, %v2406
  %2439 = vst.msk [vmem:[#allocation4 + $0xf8] sm:$0xff] %vm740, %v2407
  %2440 = vst.msk [vmem:[#allocation2] sm:$0xff] %vm1830, %v1158
  %2441 = vst.msk [vmem:[#allocation2 + $0x8] sm:$0xff] %vm1830, %v1159
  %2442 = vst.msk [vmem:[#allocation2 + $0x10] sm:$0xff] %vm1830, %v1160
  %2443 = vst.msk [vmem:[#allocation2 + $0x18] sm:$0xff] %vm1830, %v1161
  %2444 = vst.msk [vmem:[#allocation2 + $0x20] sm:$0xff] %vm1830, %v1162
  %2445 = vst.msk [vmem:[#allocation2 + $0x28] sm:$0xff] %vm1830, %v1163
  %2446 = vst.msk [vmem:[#allocation2 + $0x30] sm:$0xff] %vm1830, %v1164
  %2447 = vst.msk [vmem:[#allocation2 + $0x38] sm:$0xff] %vm1830, %v1165
  %2448 = vst.msk [vmem:[#allocation2 + $0x40] sm:$0xff] %vm1830, %v1166
  %2449 = vst.msk [vmem:[#allocation2 + $0x48] sm:$0xff] %vm1830, %v1167
  %2450 = vst.msk [vmem:[#allocation2 + $0x50] sm:$0xff] %vm1830, %v1168
  %2451 = vst.msk [vmem:[#allocation2 + $0x58] sm:$0xff] %vm1830, %v1169
  %2452 = vst.msk [vmem:[#allocation2 + $0x60] sm:$0xff] %vm1830, %v1170
  %2453 = vst.msk [vmem:[#allocation2 + $0x68] sm:$0xff] %vm1830, %v1171
  %2454 = vst.msk [vmem:[#allocation2 + $0x70] sm:$0xff] %vm1830, %v1172
  %2455 = vst.msk [vmem:[#allocation2 + $0x78] sm:$0xff] %vm1830, %v1173
  %2456 = vst.msk [vmem:[#allocation2 + $0x80] sm:$0xff] %vm1830, %v1174
  %2457 = vst.msk [vmem:[#allocation2 + $0x88] sm:$0xff] %vm1830, %v1175
  %2458 = vst.msk [vmem:[#allocation2 + $0x90] sm:$0xff] %vm1830, %v1176
  %2459 = vst.msk [vmem:[#allocation2 + $0x98] sm:$0xff] %vm1830, %v1177
  %2460 = vst.msk [vmem:[#allocation2 + $0xa0] sm:$0xff] %vm1830, %v1178
  %2461 = vst.msk [vmem:[#allocation2 + $0xa8] sm:$0xff] %vm1830, %v1179
  %2462 = vst.msk [vmem:[#allocation2 + $0xb0] sm:$0xff] %vm1830, %v1180
  %2463 = vst.msk [vmem:[#allocation2 + $0xb8] sm:$0xff] %vm1830, %v1181
  %2464 = vst.msk [vmem:[#allocation2 + $0xc0] sm:$0xff] %vm1830, %v1182
  %2465 = vst.msk [vmem:[#allocation2 + $0xc8] sm:$0xff] %vm1830, %v1183
  %2466 = vst.msk [vmem:[#allocation2 + $0xd0] sm:$0xff] %vm1830, %v1184
  %2467 = vst.msk [vmem:[#allocation2 + $0xd8] sm:$0xff] %vm1830, %v1185
  %2468 = vst.msk [vmem:[#allocation2 + $0xe0] sm:$0xff] %vm1830, %v1186
  %2469 = vst.msk [vmem:[#allocation2 + $0xe8] sm:$0xff] %vm1830, %v1187
  %2470 = vst.msk [vmem:[#allocation2 + $0xf0] sm:$0xff] %vm1830, %v1188
  %2471 = vst.msk [vmem:[#allocation2 + $0xf8] sm:$0xff] %vm1830, %v1189
  %v2472 = vld [vmem:[%s2] sm:$0xf]
  %v2473 = vld [vmem:[%s2 + $0x4] sm:$0xf]
  %v2474 = vld [vmem:[%s2 + $0x8] sm:$0xf]
  %v2475 = vld [vmem:[%s2 + $0xc] sm:$0xf]
  %v2476 = vld [vmem:[%s2 + $0x10] sm:$0xf]
  %v2477 = vld [vmem:[%s2 + $0x14] sm:$0xf]
  %v2478 = vld [vmem:[%s2 + $0x18] sm:$0xf]
  %v2479 = vld [vmem:[%s2 + $0x1c] sm:$0xf]
  %v2480 = vld [vmem:[%s2 + $0x20] sm:$0xf]
  %v2481 = vld [vmem:[%s2 + $0x24] sm:$0xf]
  %v2482 = vld [vmem:[%s2 + $0x28] sm:$0xf]
  %v2483 = vld [vmem:[%s2 + $0x2c] sm:$0xf]
  %v2484 = vld [vmem:[%s2 + $0x30] sm:$0xf]
  %v2485 = vld [vmem:[%s2 + $0x34] sm:$0xf]
  %v2486 = vld [vmem:[%s2 + $0x38] sm:$0xf]
  %v2487 = vld [vmem:[%s2 + $0x3c] sm:$0xf]
  %v2488 = vld [vmem:[%s2 + $0x40] sm:$0xf]
  %v2489 = vld [vmem:[%s2 + $0x44] sm:$0xf]
  %v2490 = vld [vmem:[%s2 + $0x48] sm:$0xf]
  %v2491 = vld [vmem:[%s2 + $0x4c] sm:$0xf]
  %v2492 = vld [vmem:[%s2 + $0x50] sm:$0xf]
  %v2493 = vld [vmem:[%s2 + $0x54] sm:$0xf]
  %v2494 = vld [vmem:[%s2 + $0x58] sm:$0xf]
  %v2495 = vld [vmem:[%s2 + $0x5c] sm:$0xf]
  %v2496 = vld [vmem:[%s2 + $0x60] sm:$0xf]
  %v2497 = vld [vmem:[%s2 + $0x64] sm:$0xf]
  %v2498 = vld [vmem:[%s2 + $0x68] sm:$0xf]
  %v2499 = vld [vmem:[%s2 + $0x6c] sm:$0xf]
  %v2500 = vld [vmem:[%s2 + $0x70] sm:$0xf]
  %v2501 = vld [vmem:[%s2 + $0x74] sm:$0xf]
  %v2502 = vld [vmem:[%s2 + $0x78] sm:$0xf]
  %v2503 = vld [vmem:[%s2 + $0x7c] sm:$0xf]
  %v2504 = vld [vmem:[%s3] sm:$0xf]
  %v2505 = vld [vmem:[%s3 + $0x4] sm:$0xf]
  %v2506 = vld [vmem:[%s3 + $0x8] sm:$0xf]
  %v2507 = vld [vmem:[%s3 + $0xc] sm:$0xf]
  %v2508 = vld [vmem:[%s3 + $0x10] sm:$0xf]
  %v2509 = vld [vmem:[%s3 + $0x14] sm:$0xf]
  %v2510 = vld [vmem:[%s3 + $0x18] sm:$0xf]
  %v2511 = vld [vmem:[%s3 + $0x1c] sm:$0xf]
  %v2512 = vld [vmem:[%s3 + $0x20] sm:$0xf]
  %v2513 = vld [vmem:[%s3 + $0x24] sm:$0xf]
  %v2514 = vld [vmem:[%s3 + $0x28] sm:$0xf]
  %v2515 = vld [vmem:[%s3 + $0x2c] sm:$0xf]
  %v2516 = vld [vmem:[%s3 + $0x30] sm:$0xf]
  %v2517 = vld [vmem:[%s3 + $0x34] sm:$0xf]
  %v2518 = vld [vmem:[%s3 + $0x38] sm:$0xf]
  %v2519 = vld [vmem:[%s3 + $0x3c] sm:$0xf]
  %v2520 = vld [vmem:[%s3 + $0x40] sm:$0xf]
  %v2521 = vld [vmem:[%s3 + $0x44] sm:$0xf]
  %v2522 = vld [vmem:[%s3 + $0x48] sm:$0xf]
  %v2523 = vld [vmem:[%s3 + $0x4c] sm:$0xf]
  %v2524 = vld [vmem:[%s3 + $0x50] sm:$0xf]
  %v2525 = vld [vmem:[%s3 + $0x54] sm:$0xf]
  %v2526 = vld [vmem:[%s3 + $0x58] sm:$0xf]
  %v2527 = vld [vmem:[%s3 + $0x5c] sm:$0xf]
  %v2528 = vld [vmem:[%s3 + $0x60] sm:$0xf]
  %v2529 = vld [vmem:[%s3 + $0x64] sm:$0xf]
  %v2530 = vld [vmem:[%s3 + $0x68] sm:$0xf]
  %v2531 = vld [vmem:[%s3 + $0x6c] sm:$0xf]
  %v2532 = vld [vmem:[%s3 + $0x70] sm:$0xf]
  %v2533 = vld [vmem:[%s3 + $0x74] sm:$0xf]
  %v2534 = vld [vmem:[%s3 + $0x78] sm:$0xf]
  %v2535 = vld [vmem:[%s3 + $0x7c] sm:$0xf]
  %v2536 = vld [vmem:[%s4] sm:$0xf]
  %v2537 = vld [vmem:[%s4 + $0x4] sm:$0xf]
  %v2538 = vld [vmem:[%s4 + $0x8] sm:$0xf]
  %v2539 = vld [vmem:[%s4 + $0xc] sm:$0xf]
  %v2540 = vld [vmem:[%s4 + $0x10] sm:$0xf]
  %v2541 = vld [vmem:[%s4 + $0x14] sm:$0xf]
  %v2542 = vld [vmem:[%s4 + $0x18] sm:$0xf]
  %v2543 = vld [vmem:[%s4 + $0x1c] sm:$0xf]
  %v2544 = vld [vmem:[%s4 + $0x20] sm:$0xf]
  %v2545 = vld [vmem:[%s4 + $0x24] sm:$0xf]
  %v2546 = vld [vmem:[%s4 + $0x28] sm:$0xf]
  %v2547 = vld [vmem:[%s4 + $0x2c] sm:$0xf]
  %v2548 = vld [vmem:[%s4 + $0x30] sm:$0xf]
  %v2549 = vld [vmem:[%s4 + $0x34] sm:$0xf]
  %v2550 = vld [vmem:[%s4 + $0x38] sm:$0xf]
  %v2551 = vld [vmem:[%s4 + $0x3c] sm:$0xf]
  %v2552 = vld [vmem:[%s4 + $0x40] sm:$0xf]
  %v2553 = vld [vmem:[%s4 + $0x44] sm:$0xf]
  %v2554 = vld [vmem:[%s4 + $0x48] sm:$0xf]
  %v2555 = vld [vmem:[%s4 + $0x4c] sm:$0xf]
  %v2556 = vld [vmem:[%s4 + $0x50] sm:$0xf]
  %v2557 = vld [vmem:[%s4 + $0x54] sm:$0xf]
  %v2558 = vld [vmem:[%s4 + $0x58] sm:$0xf]
  %v2559 = vld [vmem:[%s4 + $0x5c] sm:$0xf]
  %v2560 = vld [vmem:[%s4 + $0x60] sm:$0xf]
  %v2561 = vld [vmem:[%s4 + $0x64] sm:$0xf]
  %v2562 = vld [vmem:[%s4 + $0x68] sm:$0xf]
  %v2563 = vld [vmem:[%s4 + $0x6c] sm:$0xf]
  %v2564 = vld [vmem:[%s4 + $0x70] sm:$0xf]
  %v2565 = vld [vmem:[%s4 + $0x74] sm:$0xf]
  %v2566 = vld [vmem:[%s4 + $0x78] sm:$0xf]
  %v2567 = vld [vmem:[%s4 + $0x7c] sm:$0xf]
  %v2600 = vunpack.c.l.b16 %v2472
  %v2601 = vunpack.c.l.b16 %v2473
  %v2602 = vunpack.c.l.b16 %v2474
  %v2603 = vunpack.c.l.b16 %v2475
  %v2604 = vunpack.c.l.b16 %v2476
  %v2605 = vunpack.c.l.b16 %v2477
  %v2606 = vunpack.c.l.b16 %v2478
  %v2607 = vunpack.c.l.b16 %v2479
  %v2608 = vunpack.c.l.b16 %v2480
  %v2609 = vunpack.c.l.b16 %v2481
  %v2610 = vunpack.c.l.b16 %v2482
  %v2611 = vunpack.c.l.b16 %v2483
  %v2612 = vunpack.c.l.b16 %v2484
  %v2613 = vunpack.c.l.b16 %v2485
  %v2614 = vunpack.c.l.b16 %v2486
  %v2615 = vunpack.c.l.b16 %v2487
  %v2616 = vunpack.c.l.b16 %v2488
  %v2617 = vunpack.c.l.b16 %v2489
  %v2618 = vunpack.c.l.b16 %v2490
  %v2619 = vunpack.c.l.b16 %v2491
  %v2620 = vunpack.c.l.b16 %v2492
  %v2621 = vunpack.c.l.b16 %v2493
  %v2622 = vunpack.c.l.b16 %v2494
  %v2623 = vunpack.c.l.b16 %v2495
  %v2624 = vunpack.c.l.b16 %v2496
  %v2625 = vunpack.c.l.b16 %v2497
  %v2626 = vunpack.c.l.b16 %v2498
  %v2627 = vunpack.c.l.b16 %v2499
  %v2628 = vunpack.c.l.b16 %v2500
  %v2629 = vunpack.c.l.b16 %v2501
  %v2630 = vunpack.c.l.b16 %v2502
  %v2631 = vunpack.c.l.b16 %v2503
  %v2632 = vpack.c.b16 %v2601, %v2600
  %v2633 = vpack.c.b16 %v2603, %v2602
  %v2634 = vpack.c.b16 %v2605, %v2604
  %v2635 = vpack.c.b16 %v2607, %v2606
  %v2636 = vpack.c.b16 %v2609, %v2608
  %v2637 = vpack.c.b16 %v2611, %v2610
  %v2638 = vpack.c.b16 %v2613, %v2612
  %v2639 = vpack.c.b16 %v2615, %v2614
  %v2640 = vpack.c.b16 %v2617, %v2616
  %v2641 = vpack.c.b16 %v2619, %v2618
  %v2642 = vpack.c.b16 %v2621, %v2620
  %v2643 = vpack.c.b16 %v2623, %v2622
  %v2644 = vpack.c.b16 %v2625, %v2624
  %v2645 = vpack.c.b16 %v2627, %v2626
  %v2646 = vpack.c.b16 %v2629, %v2628
  %v2647 = vpack.c.b16 %v2631, %v2630
  %2648 = vrot.lane.b32.xlu0 %v2632, 96
  %v2649 = vpop.permute.xlu0 %2648
  %2650 = vrot.lane.b32.xlu0 %v2633, 96
  %v2651 = vpop.permute.xlu0 %2650
  %2652 = vrot.lane.b32.xlu0 %v2634, 96
  %v2653 = vpop.permute.xlu0 %2652
  %2654 = vrot.lane.b32.xlu0 %v2635, 96
  %v2655 = vpop.permute.xlu0 %2654
  %2656 = vrot.lane.b32.xlu0 %v2636, 96
  %v2657 = vpop.permute.xlu0 %2656
  %2658 = vrot.lane.b32.xlu0 %v2637, 96
  %v2659 = vpop.permute.xlu0 %2658
  %2660 = vrot.lane.b32.xlu0 %v2638, 96
  %v2661 = vpop.permute.xlu0 %2660
  %2662 = vrot.lane.b32.xlu0 %v2639, 96
  %v2663 = vpop.permute.xlu0 %2662
  %2664 = vrot.lane.b32.xlu0 %v2640, 96
  %v2665 = vpop.permute.xlu0 %2664
  %2666 = vrot.lane.b32.xlu0 %v2641, 96
  %v2667 = vpop.permute.xlu0 %2666
  %2668 = vrot.lane.b32.xlu0 %v2642, 96
  %v2669 = vpop.permute.xlu0 %2668
  %2670 = vrot.lane.b32.xlu0 %v2643, 96
  %v2671 = vpop.permute.xlu0 %2670
  %2672 = vrot.lane.b32.xlu0 %v2644, 96
  %v2673 = vpop.permute.xlu0 %2672
  %2674 = vrot.lane.b32.xlu0 %v2645, 96
  %v2675 = vpop.permute.xlu0 %2674
  %2676 = vrot.lane.b32.xlu0 %v2646, 96
  %v2677 = vpop.permute.xlu0 %2676
  %2678 = vrot.lane.b32.xlu0 %v2647, 96
  %v2679 = vpop.permute.xlu0 %2678
  %v2712 = vunpack.c.l.b16 %v2504
  %v2713 = vunpack.c.l.b16 %v2505
  %v2714 = vunpack.c.l.b16 %v2506
  %v2715 = vunpack.c.l.b16 %v2507
  %v2716 = vunpack.c.l.b16 %v2508
  %v2717 = vunpack.c.l.b16 %v2509
  %v2718 = vunpack.c.l.b16 %v2510
  %v2719 = vunpack.c.l.b16 %v2511
  %v2720 = vunpack.c.l.b16 %v2512
  %v2721 = vunpack.c.l.b16 %v2513
  %v2722 = vunpack.c.l.b16 %v2514
  %v2723 = vunpack.c.l.b16 %v2515
  %v2724 = vunpack.c.l.b16 %v2516
  %v2725 = vunpack.c.l.b16 %v2517
  %v2726 = vunpack.c.l.b16 %v2518
  %v2727 = vunpack.c.l.b16 %v2519
  %v2728 = vunpack.c.l.b16 %v2520
  %v2729 = vunpack.c.l.b16 %v2521
  %v2730 = vunpack.c.l.b16 %v2522
  %v2731 = vunpack.c.l.b16 %v2523
  %v2732 = vunpack.c.l.b16 %v2524
  %v2733 = vunpack.c.l.b16 %v2525
  %v2734 = vunpack.c.l.b16 %v2526
  %v2735 = vunpack.c.l.b16 %v2527
  %v2736 = vunpack.c.l.b16 %v2528
  %v2737 = vunpack.c.l.b16 %v2529
  %v2738 = vunpack.c.l.b16 %v2530
  %v2739 = vunpack.c.l.b16 %v2531
  %v2740 = vunpack.c.l.b16 %v2532
  %v2741 = vunpack.c.l.b16 %v2533
  %v2742 = vunpack.c.l.b16 %v2534
  %v2743 = vunpack.c.l.b16 %v2535
  %v2744 = vpack.c.b16 %v2713, %v2712
  %v2745 = vpack.c.b16 %v2715, %v2714
  %v2746 = vpack.c.b16 %v2717, %v2716
  %v2747 = vpack.c.b16 %v2719, %v2718
  %v2748 = vpack.c.b16 %v2721, %v2720
  %v2749 = vpack.c.b16 %v2723, %v2722
  %v2750 = vpack.c.b16 %v2725, %v2724
  %v2751 = vpack.c.b16 %v2727, %v2726
  %v2752 = vpack.c.b16 %v2729, %v2728
  %v2753 = vpack.c.b16 %v2731, %v2730
  %v2754 = vpack.c.b16 %v2733, %v2732
  %v2755 = vpack.c.b16 %v2735, %v2734
  %v2756 = vpack.c.b16 %v2737, %v2736
  %v2757 = vpack.c.b16 %v2739, %v2738
  %v2758 = vpack.c.b16 %v2741, %v2740
  %v2759 = vpack.c.b16 %v2743, %v2742
  %2760 = vrot.lane.b32.xlu0 %v2744, 96
  %v2761 = vpop.permute.xlu0 %2760
  %2762 = vrot.lane.b32.xlu0 %v2745, 96
  %v2763 = vpop.permute.xlu0 %2762
  %2764 = vrot.lane.b32.xlu0 %v2746, 96
  %v2765 = vpop.permute.xlu0 %2764
  %2766 = vrot.lane.b32.xlu0 %v2747, 96
  %v2767 = vpop.permute.xlu0 %2766
  %2768 = vrot.lane.b32.xlu0 %v2748, 96
  %v2769 = vpop.permute.xlu0 %2768
  %2770 = vrot.lane.b32.xlu0 %v2749, 96
  %v2771 = vpop.permute.xlu0 %2770
  %2772 = vrot.lane.b32.xlu0 %v2750, 96
  %v2773 = vpop.permute.xlu0 %2772
  %2774 = vrot.lane.b32.xlu0 %v2751, 96
  %v2775 = vpop.permute.xlu0 %2774
  %2776 = vrot.lane.b32.xlu0 %v2752, 96
  %v2777 = vpop.permute.xlu0 %2776
  %2778 = vrot.lane.b32.xlu0 %v2753, 96
  %v2779 = vpop.permute.xlu0 %2778
  %2780 = vrot.lane.b32.xlu0 %v2754, 96
  %v2781 = vpop.permute.xlu0 %2780
  %2782 = vrot.lane.b32.xlu0 %v2755, 96
  %v2783 = vpop.permute.xlu0 %2782
  %2784 = vrot.lane.b32.xlu0 %v2756, 96
  %v2785 = vpop.permute.xlu0 %2784
  %2786 = vrot.lane.b32.xlu0 %v2757, 96
  %v2787 = vpop.permute.xlu0 %2786
  %2788 = vrot.lane.b32.xlu0 %v2758, 96
  %v2789 = vpop.permute.xlu0 %2788
  %2790 = vrot.lane.b32.xlu0 %v2759, 96
  %v2791 = vpop.permute.xlu0 %2790
  %v2793 = vsel %vm740, %v2649, 0
  %v2796 = vsel %vm740, %v2651, 0
  %v2799 = vsel %vm740, %v2653, 0
  %v2802 = vsel %vm740, %v2655, 0
  %v2805 = vsel %vm740, %v2657, 0
  %v2808 = vsel %vm740, %v2659, 0
  %v2811 = vsel %vm740, %v2661, 0
  %v2814 = vsel %vm740, %v2663, 0
  %v2817 = vsel %vm740, %v2665, 0
  %v2820 = vsel %vm740, %v2667, 0
  %v2823 = vsel %vm740, %v2669, 0
  %v2826 = vsel %vm740, %v2671, 0
  %v2829 = vsel %vm740, %v2673, 0
  %v2832 = vsel %vm740, %v2675, 0
  %v2835 = vsel %vm740, %v2677, 0
  %v2838 = vsel %vm740, %v2679, 0
  %v2841 = vsel %vm740, %v2761, 0
  %v2844 = vsel %vm740, %v2763, 0
  %v2847 = vsel %vm740, %v2765, 0
  %v2850 = vsel %vm740, %v2767, 0
  %v2853 = vsel %vm740, %v2769, 0
  %v2856 = vsel %vm740, %v2771, 0
  %v2859 = vsel %vm740, %v2773, 0
  %v2862 = vsel %vm740, %v2775, 0
  %v2865 = vsel %vm740, %v2777, 0
  %v2868 = vsel %vm740, %v2779, 0
  %v2871 = vsel %vm740, %v2781, 0
  %v2874 = vsel %vm740, %v2783, 0
  %v2877 = vsel %vm740, %v2785, 0
  %v2880 = vsel %vm740, %v2787, 0
  %v2883 = vsel %vm740, %v2789, 0
  %v2886 = vsel %vm740, %v2791, 0
  %2888 = vmatprep.subr.bf16.mxu0 0
  %2889 = vmatpush1.bf16.xpose.msra.mxu0 %v2862
  %2890 = vmatprep.subr.bf16.mxu0 0
  %2891 = vmatpush1.bf16.xpose.msra.mxu0 %v2859
  %2892 = vmatprep.subr.bf16.mxu0 0
  %2893 = vmatpush1.bf16.xpose.msra.mxu0 %v2856
  %2894 = vmatprep.subr.bf16.mxu0 0
  %2895 = vmatpush1.bf16.xpose.msra.mxu0 %v2853
  %2896 = vmatprep.subr.bf16.mxu0 0
  %2897 = vmatpush1.bf16.xpose.msra.mxu0 %v2850
  %2898 = vmatprep.subr.bf16.mxu0 0
  %2899 = vmatpush1.bf16.xpose.msra.mxu0 %v2847
  %2900 = vmatprep.subr.bf16.mxu0 0
  %2901 = vmatpush1.bf16.xpose.msra.mxu0 %v2844
  %2902 = vmatprep.subr.bf16.mxu0 0
  %2903 = vmatpush1.bf16.xpose.msra.mxu0 %v2841
  %2904 = vmatprep.subr.bf16.mxu0 0
  %2905 = vmatpush2.bf16.xpose.msra.mxu0 %v2886
  %2906 = vmatprep.subr.bf16.mxu0 0
  %2907 = vmatpush2.bf16.xpose.msra.mxu0 %v2883
  %2908 = vmatprep.subr.bf16.mxu0 0
  %2909 = vmatpush2.bf16.xpose.msra.mxu0 %v2880
  %2910 = vmatprep.subr.bf16.mxu0 0
  %2911 = vmatpush2.bf16.xpose.msra.mxu0 %v2877
  %2912 = vmatprep.subr.bf16.mxu0 0
  %2913 = vmatpush2.bf16.xpose.msra.mxu0 %v2874
  %2914 = vmatprep.subr.bf16.mxu0 0
  %2915 = vmatpush2.bf16.xpose.msra.mxu0 %v2871
  %2916 = vmatprep.subr.bf16.mxu0 0
  %2917 = vmatpush2.bf16.xpose.msra.mxu0 %v2868
  %2918 = vmatprep.subr.bf16.mxu0 0
  %2919 = vmatpush2.bf16.xpose.msra.mxu0 %v2865
  %2920 = vmatprep.mubr.bf16.mxu0 0
  %2921 = vmatmul.mubr.bf16.gmra.mxu0 %v2793
  %v2922 = vpop.f32.mrf.mxu0
  %v2923 = vadd.f32 %v420, %v2922
  %v2924 = vpop.f32.mrf.mxu0
  %v2925 = vadd.f32 %v421, %v2924
  %v2926 = vpop.f32.mrf.mxu0
  %v2927 = vadd.f32 %v422, %v2926
  %v2928 = vpop.f32.mrf.mxu0
  %v2929 = vadd.f32 %v423, %v2928
  %2930 = vmatprep.mubr.bf16.mxu0 0
  %2931 = vmatmul.mubr.bf16.gmra.mxu0 %v2796
  %v2932 = vpop.f32.mrf.mxu0
  %v2933 = vadd.f32 %v424, %v2932
  %v2934 = vpop.f32.mrf.mxu0
  %v2935 = vadd.f32 %v425, %v2934
  %v2936 = vpop.f32.mrf.mxu0
  %v2937 = vadd.f32 %v426, %v2936
  %v2938 = vpop.f32.mrf.mxu0
  %v2939 = vadd.f32 %v427, %v2938
  %2940 = vmatprep.mubr.bf16.mxu0 0
  %2941 = vmatmul.mubr.bf16.gmra.mxu0 %v2799
  %v2942 = vpop.f32.mrf.mxu0
  %v2943 = vadd.f32 %v428, %v2942
  %v2944 = vpop.f32.mrf.mxu0
  %v2945 = vadd.f32 %v429, %v2944
  %v2946 = vpop.f32.mrf.mxu0
  %v2947 = vadd.f32 %v430, %v2946
  %v2948 = vpop.f32.mrf.mxu0
  %v2949 = vadd.f32 %v431, %v2948
  %2950 = vmatprep.mubr.bf16.mxu0 0
  %2951 = vmatmul.mubr.bf16.gmra.mxu0 %v2802
  %v2952 = vpop.f32.mrf.mxu0
  %v2953 = vadd.f32 %v432, %v2952
  %v2954 = vpop.f32.mrf.mxu0
  %v2955 = vadd.f32 %v433, %v2954
  %v2956 = vpop.f32.mrf.mxu0
  %v2957 = vadd.f32 %v434, %v2956
  %v2958 = vpop.f32.mrf.mxu0
  %v2959 = vadd.f32 %v435, %v2958
  %2960 = vmatprep.mubr.bf16.mxu0 0
  %2961 = vmatmul.mubr.bf16.gmra.mxu0 %v2805
  %v2962 = vpop.f32.mrf.mxu0
  %v2963 = vadd.f32 %v436, %v2962
  %v2964 = vpop.f32.mrf.mxu0
  %v2965 = vadd.f32 %v437, %v2964
  %v2966 = vpop.f32.mrf.mxu0
  %v2967 = vadd.f32 %v438, %v2966
  %v2968 = vpop.f32.mrf.mxu0
  %v2969 = vadd.f32 %v439, %v2968
  %2970 = vmatprep.mubr.bf16.mxu0 0
  %2971 = vmatmul.mubr.bf16.gmra.mxu0 %v2808
  %v2972 = vpop.f32.mrf.mxu0
  %v2973 = vadd.f32 %v440, %v2972
  %v2974 = vpop.f32.mrf.mxu0
  %v2975 = vadd.f32 %v441, %v2974
  %v2976 = vpop.f32.mrf.mxu0
  %v2977 = vadd.f32 %v442, %v2976
  %v2978 = vpop.f32.mrf.mxu0
  %v2979 = vadd.f32 %v443, %v2978
  %2980 = vmatprep.mubr.bf16.mxu0 0
  %2981 = vmatmul.mubr.bf16.gmra.mxu0 %v2811
  %v2982 = vpop.f32.mrf.mxu0
  %v2983 = vadd.f32 %v444, %v2982
  %v2984 = vpop.f32.mrf.mxu0
  %v2985 = vadd.f32 %v445, %v2984
  %v2986 = vpop.f32.mrf.mxu0
  %v2987 = vadd.f32 %v446, %v2986
  %v2988 = vpop.f32.mrf.mxu0
  %v2989 = vadd.f32 %v447, %v2988
  %2990 = vmatprep.mubr.bf16.mxu0 0
  %2991 = vmatmul.mubr.bf16.gmra.mxu0 %v2814
  %v2992 = vpop.f32.mrf.mxu0
  %v2993 = vadd.f32 %v448, %v2992
  %v2994 = vpop.f32.mrf.mxu0
  %v2995 = vadd.f32 %v449, %v2994
  %v2996 = vpop.f32.mrf.mxu0
  %v2997 = vadd.f32 %v450, %v2996
  %v2998 = vpop.f32.mrf.mxu0
  %v2999 = vadd.f32 %v451, %v2998
  %3000 = vmatprep.mubr.bf16.mxu0 0
  %3001 = vmatmul.mubr.bf16.gmra.mxu0 %v2817
  %v3002 = vpop.f32.mrf.mxu0
  %v3003 = vadd.f32 %v452, %v3002
  %v3004 = vpop.f32.mrf.mxu0
  %v3005 = vadd.f32 %v453, %v3004
  %v3006 = vpop.f32.mrf.mxu0
  %v3007 = vadd.f32 %v454, %v3006
  %v3008 = vpop.f32.mrf.mxu0
  %v3009 = vadd.f32 %v455, %v3008
  %3010 = vmatprep.mubr.bf16.mxu0 0
  %3011 = vmatmul.mubr.bf16.gmra.mxu0 %v2820
  %v3012 = vpop.f32.mrf.mxu0
  %v3013 = vadd.f32 %v456, %v3012
  %v3014 = vpop.f32.mrf.mxu0
  %v3015 = vadd.f32 %v457, %v3014
  %v3016 = vpop.f32.mrf.mxu0
  %v3017 = vadd.f32 %v458, %v3016
  %v3018 = vpop.f32.mrf.mxu0
  %v3019 = vadd.f32 %v459, %v3018
  %3020 = vmatprep.mubr.bf16.mxu0 0
  %3021 = vmatmul.mubr.bf16.gmra.mxu0 %v2823
  %v3022 = vpop.f32.mrf.mxu0
  %v3023 = vadd.f32 %v460, %v3022
  %v3024 = vpop.f32.mrf.mxu0
  %v3025 = vadd.f32 %v461, %v3024
  %v3026 = vpop.f32.mrf.mxu0
  %v3027 = vadd.f32 %v462, %v3026
  %v3028 = vpop.f32.mrf.mxu0
  %v3029 = vadd.f32 %v463, %v3028
  %3030 = vmatprep.mubr.bf16.mxu0 0
  %3031 = vmatmul.mubr.bf16.gmra.mxu0 %v2826
  %v3032 = vpop.f32.mrf.mxu0
  %v3033 = vadd.f32 %v464, %v3032
  %v3034 = vpop.f32.mrf.mxu0
  %v3035 = vadd.f32 %v465, %v3034
  %v3036 = vpop.f32.mrf.mxu0
  %v3037 = vadd.f32 %v466, %v3036
  %v3038 = vpop.f32.mrf.mxu0
  %v3039 = vadd.f32 %v467, %v3038
  %3040 = vmatprep.mubr.bf16.mxu0 0
  %3041 = vmatmul.mubr.bf16.gmra.mxu0 %v2829
  %v3042 = vpop.f32.mrf.mxu0
  %v3043 = vadd.f32 %v468, %v3042
  %v3044 = vpop.f32.mrf.mxu0
  %v3045 = vadd.f32 %v469, %v3044
  %v3046 = vpop.f32.mrf.mxu0
  %v3047 = vadd.f32 %v470, %v3046
  %v3048 = vpop.f32.mrf.mxu0
  %v3049 = vadd.f32 %v471, %v3048
  %3050 = vmatprep.mubr.bf16.mxu0 0
  %3051 = vmatmul.mubr.bf16.gmra.mxu0 %v2832
  %v3052 = vpop.f32.mrf.mxu0
  %v3053 = vadd.f32 %v472, %v3052
  %v3054 = vpop.f32.mrf.mxu0
  %v3055 = vadd.f32 %v473, %v3054
  %v3056 = vpop.f32.mrf.mxu0
  %v3057 = vadd.f32 %v474, %v3056
  %v3058 = vpop.f32.mrf.mxu0
  %v3059 = vadd.f32 %v475, %v3058
  %3060 = vmatprep.mubr.bf16.mxu0 0
  %3061 = vmatmul.mubr.bf16.gmra.mxu0 %v2835
  %v3062 = vpop.f32.mrf.mxu0
  %v3063 = vadd.f32 %v476, %v3062
  %v3064 = vpop.f32.mrf.mxu0
  %v3065 = vadd.f32 %v477, %v3064
  %v3066 = vpop.f32.mrf.mxu0
  %v3067 = vadd.f32 %v478, %v3066
  %v3068 = vpop.f32.mrf.mxu0
  %v3069 = vadd.f32 %v479, %v3068
  %3070 = vmatprep.mubr.bf16.mxu0 0
  %3071 = vmatmul.mubr.bf16.gmra.mxu0 %v2838
  %v3072 = vpop.f32.mrf.mxu0
  %v3073 = vadd.f32 %v480, %v3072
  %v3074 = vpop.f32.mrf.mxu0
  %v3075 = vadd.f32 %v481, %v3074
  %v3076 = vpop.f32.mrf.mxu0
  %v3077 = vadd.f32 %v482, %v3076
  %v3078 = vpop.f32.mrf.mxu0
  %v3079 = vadd.f32 %v483, %v3078
  %3080 = vdwg.mxu0
  %s3081 = scalar_lea.vmem [#allocation2], 256
  %v3082 = vld [vmem:[%s3081] sm:$0xff]
  %v3083 = vld [vmem:[%s3081 + $0x8] sm:$0xff]
  %v3084 = vld [vmem:[%s3081 + $0x10] sm:$0xff]
  %v3085 = vld [vmem:[%s3081 + $0x18] sm:$0xff]
  %v3086 = vld [vmem:[%s3081 + $0x20] sm:$0xff]
  %v3087 = vld [vmem:[%s3081 + $0x28] sm:$0xff]
  %v3088 = vld [vmem:[%s3081 + $0x30] sm:$0xff]
  %v3089 = vld [vmem:[%s3081 + $0x38] sm:$0xff]
  %v3090 = vld [vmem:[%s3081 + $0x40] sm:$0xff]
  %v3091 = vld [vmem:[%s3081 + $0x48] sm:$0xff]
  %v3092 = vld [vmem:[%s3081 + $0x50] sm:$0xff]
  %v3093 = vld [vmem:[%s3081 + $0x58] sm:$0xff]
  %v3094 = vld [vmem:[%s3081 + $0x60] sm:$0xff]
  %v3095 = vld [vmem:[%s3081 + $0x68] sm:$0xff]
  %v3096 = vld [vmem:[%s3081 + $0x70] sm:$0xff]
  %v3097 = vld [vmem:[%s3081 + $0x78] sm:$0xff]
  %v3098 = vld [vmem:[%s3081 + $0x80] sm:$0xff]
  %v3099 = vld [vmem:[%s3081 + $0x88] sm:$0xff]
  %v3100 = vld [vmem:[%s3081 + $0x90] sm:$0xff]
  %v3101 = vld [vmem:[%s3081 + $0x98] sm:$0xff]
  %v3102 = vld [vmem:[%s3081 + $0xa0] sm:$0xff]
  %v3103 = vld [vmem:[%s3081 + $0xa8] sm:$0xff]
  %v3104 = vld [vmem:[%s3081 + $0xb0] sm:$0xff]
  %v3105 = vld [vmem:[%s3081 + $0xb8] sm:$0xff]
  %v3106 = vld [vmem:[%s3081 + $0xc0] sm:$0xff]
  %v3107 = vld [vmem:[%s3081 + $0xc8] sm:$0xff]
  %v3108 = vld [vmem:[%s3081 + $0xd0] sm:$0xff]
  %v3109 = vld [vmem:[%s3081 + $0xd8] sm:$0xff]
  %v3110 = vld [vmem:[%s3081 + $0xe0] sm:$0xff]
  %v3111 = vld [vmem:[%s3081 + $0xe8] sm:$0xff]
  %v3112 = vld [vmem:[%s3081 + $0xf0] sm:$0xff]
  %v3113 = vld [vmem:[%s3081 + $0xf8] sm:$0xff]
  %v3114 = vmax.f32 %v2923, %v2925
  %3115 = vmax.xlane.f32.xlu0 %v3114
  %v3116 = vpop.xlane.xlu0 %3115
  %v3117 = vmax.f32 %v2927, %v2929
  %3118 = vmax.xlane.f32.xlu0 %v3117
  %v3119 = vpop.xlane.xlu0 %3118
  %v3120 = vmax.f32 %v2933, %v2935
  %3121 = vmax.xlane.f32.xlu0 %v3120
  %v3122 = vpop.xlane.xlu0 %3121
  %v3123 = vmax.f32 %v2937, %v2939
  %3124 = vmax.xlane.f32.xlu0 %v3123
  %v3125 = vpop.xlane.xlu0 %3124
  %v3126 = vmax.f32 %v2943, %v2945
  %3127 = vmax.xlane.f32.xlu0 %v3126
  %v3128 = vpop.xlane.xlu0 %3127
  %v3129 = vmax.f32 %v2947, %v2949
  %3130 = vmax.xlane.f32.xlu0 %v3129
  %v3131 = vpop.xlane.xlu0 %3130
  %v3132 = vmax.f32 %v2953, %v2955
  %3133 = vmax.xlane.f32.xlu0 %v3132
  %v3134 = vpop.xlane.xlu0 %3133
  %v3135 = vmax.f32 %v2957, %v2959
  %3136 = vmax.xlane.f32.xlu0 %v3135
  %v3137 = vpop.xlane.xlu0 %3136
  %v3138 = vmax.f32 %v2963, %v2965
  %3139 = vmax.xlane.f32.xlu0 %v3138
  %v3140 = vpop.xlane.xlu0 %3139
  %v3141 = vmax.f32 %v2967, %v2969
  %3142 = vmax.xlane.f32.xlu0 %v3141
  %v3143 = vpop.xlane.xlu0 %3142
  %v3144 = vmax.f32 %v2973, %v2975
  %3145 = vmax.xlane.f32.xlu0 %v3144
  %v3146 = vpop.xlane.xlu0 %3145
  %v3147 = vmax.f32 %v2977, %v2979
  %3148 = vmax.xlane.f32.xlu0 %v3147
  %v3149 = vpop.xlane.xlu0 %3148
  %v3150 = vmax.f32 %v2983, %v2985
  %3151 = vmax.xlane.f32.xlu0 %v3150
  %v3152 = vpop.xlane.xlu0 %3151
  %v3153 = vmax.f32 %v2987, %v2989
  %3154 = vmax.xlane.f32.xlu0 %v3153
  %v3155 = vpop.xlane.xlu0 %3154
  %v3156 = vmax.f32 %v2993, %v2995
  %3157 = vmax.xlane.f32.xlu0 %v3156
  %v3158 = vpop.xlane.xlu0 %3157
  %v3159 = vmax.f32 %v2997, %v2999
  %3160 = vmax.xlane.f32.xlu0 %v3159
  %v3161 = vpop.xlane.xlu0 %3160
  %v3162 = vmax.f32 %v3003, %v3005
  %3163 = vmax.xlane.f32.xlu0 %v3162
  %v3164 = vpop.xlane.xlu0 %3163
  %v3165 = vmax.f32 %v3007, %v3009
  %3166 = vmax.xlane.f32.xlu0 %v3165
  %v3167 = vpop.xlane.xlu0 %3166
  %v3168 = vmax.f32 %v3013, %v3015
  %3169 = vmax.xlane.f32.xlu0 %v3168
  %v3170 = vpop.xlane.xlu0 %3169
  %v3171 = vmax.f32 %v3017, %v3019
  %3172 = vmax.xlane.f32.xlu0 %v3171
  %v3173 = vpop.xlane.xlu0 %3172
  %v3174 = vmax.f32 %v3023, %v3025
  %3175 = vmax.xlane.f32.xlu0 %v3174
  %v3176 = vpop.xlane.xlu0 %3175
  %v3177 = vmax.f32 %v3027, %v3029
  %3178 = vmax.xlane.f32.xlu0 %v3177
  %v3179 = vpop.xlane.xlu0 %3178
  %v3180 = vmax.f32 %v3033, %v3035
  %3181 = vmax.xlane.f32.xlu0 %v3180
  %v3182 = vpop.xlane.xlu0 %3181
  %v3183 = vmax.f32 %v3037, %v3039
  %3184 = vmax.xlane.f32.xlu0 %v3183
  %v3185 = vpop.xlane.xlu0 %3184
  %v3186 = vmax.f32 %v3043, %v3045
  %3187 = vmax.xlane.f32.xlu0 %v3186
  %v3188 = vpop.xlane.xlu0 %3187
  %v3189 = vmax.f32 %v3047, %v3049
  %3190 = vmax.xlane.f32.xlu0 %v3189
  %v3191 = vpop.xlane.xlu0 %3190
  %v3192 = vmax.f32 %v3053, %v3055
  %3193 = vmax.xlane.f32.xlu0 %v3192
  %v3194 = vpop.xlane.xlu0 %3193
  %v3195 = vmax.f32 %v3057, %v3059
  %3196 = vmax.xlane.f32.xlu0 %v3195
  %v3197 = vpop.xlane.xlu0 %3196
  %v3198 = vmax.f32 %v3063, %v3065
  %3199 = vmax.xlane.f32.xlu0 %v3198
  %v3200 = vpop.xlane.xlu0 %3199
  %v3201 = vmax.f32 %v3067, %v3069
  %3202 = vmax.xlane.f32.xlu0 %v3201
  %v3203 = vpop.xlane.xlu0 %3202
  %v3204 = vmax.f32 %v3073, %v3075
  %3205 = vmax.xlane.f32.xlu0 %v3204
  %v3206 = vpop.xlane.xlu0 %3205
  %v3207 = vmax.f32 %v3077, %v3079
  %3208 = vmax.xlane.f32.xlu0 %v3207
  %v3209 = vpop.xlane.xlu0 %3208
  %v3210 = vmax.f32 %v3082, %v3116
  %v3211 = vmax.f32 %v3083, %v3119
  %v3212 = vmax.f32 %v3084, %v3122
  %v3213 = vmax.f32 %v3085, %v3125
  %v3214 = vmax.f32 %v3086, %v3128
  %v3215 = vmax.f32 %v3087, %v3131
  %v3216 = vmax.f32 %v3088, %v3134
  %v3217 = vmax.f32 %v3089, %v3137
  %v3218 = vmax.f32 %v3090, %v3140
  %v3219 = vmax.f32 %v3091, %v3143
  %v3220 = vmax.f32 %v3092, %v3146
  %v3221 = vmax.f32 %v3093, %v3149
  %v3222 = vmax.f32 %v3094, %v3152
  %v3223 = vmax.f32 %v3095, %v3155
  %v3224 = vmax.f32 %v3096, %v3158
  %v3225 = vmax.f32 %v3097, %v3161
  %v3226 = vmax.f32 %v3098, %v3164
  %v3227 = vmax.f32 %v3099, %v3167
  %v3228 = vmax.f32 %v3100, %v3170
  %v3229 = vmax.f32 %v3101, %v3173
  %v3230 = vmax.f32 %v3102, %v3176
  %v3231 = vmax.f32 %v3103, %v3179
  %v3232 = vmax.f32 %v3104, %v3182
  %v3233 = vmax.f32 %v3105, %v3185
  %v3234 = vmax.f32 %v3106, %v3188
  %v3235 = vmax.f32 %v3107, %v3191
  %v3236 = vmax.f32 %v3108, %v3194
  %v3237 = vmax.f32 %v3109, %v3197
  %v3238 = vmax.f32 %v3110, %v3200
  %v3239 = vmax.f32 %v3111, %v3203
  %v3240 = vmax.f32 %v3112, %v3206
  %v3241 = vmax.f32 %v3113, %v3209
  %v3242 = vsub.f32 %v3082, %v3210
  %v3243 = vsub.f32 %v3083, %v3211
  %v3244 = vsub.f32 %v3084, %v3212
  %v3245 = vsub.f32 %v3085, %v3213
  %v3246 = vsub.f32 %v3086, %v3214
  %v3247 = vsub.f32 %v3087, %v3215
  %v3248 = vsub.f32 %v3088, %v3216
  %v3249 = vsub.f32 %v3089, %v3217
  %v3250 = vsub.f32 %v3090, %v3218
  %v3251 = vsub.f32 %v3091, %v3219
  %v3252 = vsub.f32 %v3092, %v3220
  %v3253 = vsub.f32 %v3093, %v3221
  %v3254 = vsub.f32 %v3094, %v3222
  %v3255 = vsub.f32 %v3095, %v3223
  %v3256 = vsub.f32 %v3096, %v3224
  %v3257 = vsub.f32 %v3097, %v3225
  %v3258 = vsub.f32 %v3098, %v3226
  %v3259 = vsub.f32 %v3099, %v3227
  %v3260 = vsub.f32 %v3100, %v3228
  %v3261 = vsub.f32 %v3101, %v3229
  %v3262 = vsub.f32 %v3102, %v3230
  %v3263 = vsub.f32 %v3103, %v3231
  %v3264 = vsub.f32 %v3104, %v3232
  %v3265 = vsub.f32 %v3105, %v3233
  %v3266 = vsub.f32 %v3106, %v3234
  %v3267 = vsub.f32 %v3107, %v3235
  %v3268 = vsub.f32 %v3108, %v3236
  %v3269 = vsub.f32 %v3109, %v3237
  %v3270 = vsub.f32 %v3110, %v3238
  %v3271 = vsub.f32 %v3111, %v3239
  %v3272 = vsub.f32 %v3112, %v3240
  %v3273 = vsub.f32 %v3113, %v3241
  %v3274 = vmul.f32 %v3242, 1.442695
  %v3275 = vpow.pop %v3274
  %v3276 = vmul.f32 %v3243, 1.442695
  %v3277 = vpow.pop %v3276
  %v3278 = vmul.f32 %v3244, 1.442695
  %v3279 = vpow.pop %v3278
  %v3280 = vmul.f32 %v3245, 1.442695
  %v3281 = vpow.pop %v3280
  %v3282 = vmul.f32 %v3246, 1.442695
  %v3283 = vpow.pop %v3282
  %v3284 = vmul.f32 %v3247, 1.442695
  %v3285 = vpow.pop %v3284
  %v3286 = vmul.f32 %v3248, 1.442695
  %v3287 = vpow.pop %v3286
  %v3288 = vmul.f32 %v3249, 1.442695
  %v3289 = vpow.pop %v3288
  %v3290 = vmul.f32 %v3250, 1.442695
  %v3291 = vpow.pop %v3290
  %v3292 = vmul.f32 %v3251, 1.442695
  %v3293 = vpow.pop %v3292
  %v3294 = vmul.f32 %v3252, 1.442695
  %v3295 = vpow.pop %v3294
  %v3296 = vmul.f32 %v3253, 1.442695
  %v3297 = vpow.pop %v3296
  %v3298 = vmul.f32 %v3254, 1.442695
  %v3299 = vpow.pop %v3298
  %v3300 = vmul.f32 %v3255, 1.442695
  %v3301 = vpow.pop %v3300
  %v3302 = vmul.f32 %v3256, 1.442695
  %v3303 = vpow.pop %v3302
  %v3304 = vmul.f32 %v3257, 1.442695
  %v3305 = vpow.pop %v3304
  %v3306 = vmul.f32 %v3258, 1.442695
  %v3307 = vpow.pop %v3306
  %v3308 = vmul.f32 %v3259, 1.442695
  %v3309 = vpow.pop %v3308
  %v3310 = vmul.f32 %v3260, 1.442695
  %v3311 = vpow.pop %v3310
  %v3312 = vmul.f32 %v3261, 1.442695
  %v3313 = vpow.pop %v3312
  %v3314 = vmul.f32 %v3262, 1.442695
  %v3315 = vpow.pop %v3314
  %v3316 = vmul.f32 %v3263, 1.442695
  %v3317 = vpow.pop %v3316
  %v3318 = vmul.f32 %v3264, 1.442695
  %v3319 = vpow.pop %v3318
  %v3320 = vmul.f32 %v3265, 1.442695
  %v3321 = vpow.pop %v3320
  %v3322 = vmul.f32 %v3266, 1.442695
  %v3323 = vpow.pop %v3322
  %v3324 = vmul.f32 %v3267, 1.442695
  %v3325 = vpow.pop %v3324
  %v3326 = vmul.f32 %v3268, 1.442695
  %v3327 = vpow.pop %v3326
  %v3328 = vmul.f32 %v3269, 1.442695
  %v3329 = vpow.pop %v3328
  %v3330 = vmul.f32 %v3270, 1.442695
  %v3331 = vpow.pop %v3330
  %v3332 = vmul.f32 %v3271, 1.442695
  %v3333 = vpow.pop %v3332
  %v3334 = vmul.f32 %v3272, 1.442695
  %v3335 = vpow.pop %v3334
  %v3336 = vmul.f32 %v3273, 1.442695
  %v3337 = vpow.pop %v3336
  %3339 = vset.pattern.permute.xlu0 0
  %3340 = vperm.xlu0 %3339, %v3210
  %v3341 = vpop.permute.xlu0 %3340
  %3344 = vset.pattern.permute.xlu0 0
  %3345 = vperm.xlu0 %3344, %v3211
  %v3346 = vpop.permute.xlu0 %3345
  %3349 = vset.pattern.permute.xlu0 0
  %3350 = vperm.xlu0 %3349, %v3212
  %v3351 = vpop.permute.xlu0 %3350
  %3354 = vset.pattern.permute.xlu0 0
  %3355 = vperm.xlu0 %3354, %v3213
  %v3356 = vpop.permute.xlu0 %3355
  %3359 = vset.pattern.permute.xlu0 0
  %3360 = vperm.xlu0 %3359, %v3214
  %v3361 = vpop.permute.xlu0 %3360
  %3364 = vset.pattern.permute.xlu0 0
  %3365 = vperm.xlu0 %3364, %v3215
  %v3366 = vpop.permute.xlu0 %3365
  %3369 = vset.pattern.permute.xlu0 0
  %3370 = vperm.xlu0 %3369, %v3216
  %v3371 = vpop.permute.xlu0 %3370
  %3374 = vset.pattern.permute.xlu0 0
  %3375 = vperm.xlu0 %3374, %v3217
  %v3376 = vpop.permute.xlu0 %3375
  %3379 = vset.pattern.permute.xlu0 0
  %3380 = vperm.xlu0 %3379, %v3218
  %v3381 = vpop.permute.xlu0 %3380
  %3384 = vset.pattern.permute.xlu0 0
  %3385 = vperm.xlu0 %3384, %v3219
  %v3386 = vpop.permute.xlu0 %3385
  %3389 = vset.pattern.permute.xlu0 0
  %3390 = vperm.xlu0 %3389, %v3220
  %v3391 = vpop.permute.xlu0 %3390
  %3394 = vset.pattern.permute.xlu0 0
  %3395 = vperm.xlu0 %3394, %v3221
  %v3396 = vpop.permute.xlu0 %3395
  %3399 = vset.pattern.permute.xlu0 0
  %3400 = vperm.xlu0 %3399, %v3222
  %v3401 = vpop.permute.xlu0 %3400
  %3404 = vset.pattern.permute.xlu0 0
  %3405 = vperm.xlu0 %3404, %v3223
  %v3406 = vpop.permute.xlu0 %3405
  %3409 = vset.pattern.permute.xlu0 0
  %3410 = vperm.xlu0 %3409, %v3224
  %v3411 = vpop.permute.xlu0 %3410
  %3414 = vset.pattern.permute.xlu0 0
  %3415 = vperm.xlu0 %3414, %v3225
  %v3416 = vpop.permute.xlu0 %3415
  %3419 = vset.pattern.permute.xlu0 0
  %3420 = vperm.xlu0 %3419, %v3226
  %v3421 = vpop.permute.xlu0 %3420
  %3424 = vset.pattern.permute.xlu0 0
  %3425 = vperm.xlu0 %3424, %v3227
  %v3426 = vpop.permute.xlu0 %3425
  %3429 = vset.pattern.permute.xlu0 0
  %3430 = vperm.xlu0 %3429, %v3228
  %v3431 = vpop.permute.xlu0 %3430
  %3434 = vset.pattern.permute.xlu0 0
  %3435 = vperm.xlu0 %3434, %v3229
  %v3436 = vpop.permute.xlu0 %3435
  %3439 = vset.pattern.permute.xlu0 0
  %3440 = vperm.xlu0 %3439, %v3230
  %v3441 = vpop.permute.xlu0 %3440
  %3444 = vset.pattern.permute.xlu0 0
  %3445 = vperm.xlu0 %3444, %v3231
  %v3446 = vpop.permute.xlu0 %3445
  %3449 = vset.pattern.permute.xlu0 0
  %3450 = vperm.xlu0 %3449, %v3232
  %v3451 = vpop.permute.xlu0 %3450
  %3454 = vset.pattern.permute.xlu0 0
  %3455 = vperm.xlu0 %3454, %v3233
  %v3456 = vpop.permute.xlu0 %3455
  %3459 = vset.pattern.permute.xlu0 0
  %3460 = vperm.xlu0 %3459, %v3234
  %v3461 = vpop.permute.xlu0 %3460
  %3464 = vset.pattern.permute.xlu0 0
  %3465 = vperm.xlu0 %3464, %v3235
  %v3466 = vpop.permute.xlu0 %3465
  %3469 = vset.pattern.permute.xlu0 0
  %3470 = vperm.xlu0 %3469, %v3236
  %v3471 = vpop.permute.xlu0 %3470
  %3474 = vset.pattern.permute.xlu0 0
  %3475 = vperm.xlu0 %3474, %v3237
  %v3476 = vpop.permute.xlu0 %3475
  %3479 = vset.pattern.permute.xlu0 0
  %3480 = vperm.xlu0 %3479, %v3238
  %v3481 = vpop.permute.xlu0 %3480
  %3484 = vset.pattern.permute.xlu0 0
  %3485 = vperm.xlu0 %3484, %v3239
  %v3486 = vpop.permute.xlu0 %3485
  %3489 = vset.pattern.permute.xlu0 0
  %3490 = vperm.xlu0 %3489, %v3240
  %v3491 = vpop.permute.xlu0 %3490
  %3494 = vset.pattern.permute.xlu0 0
  %3495 = vperm.xlu0 %3494, %v3241
  %v3496 = vpop.permute.xlu0 %3495
  %v3498 = vsub.f32 %v2923, %v3341
  %v3499 = vsub.f32 %v2925, %v3341
  %v3500 = vsub.f32 %v2927, %v3346
  %v3501 = vsub.f32 %v2929, %v3346
  %v3502 = vsub.f32 %v2933, %v3351
  %v3503 = vsub.f32 %v2935, %v3351
  %v3504 = vsub.f32 %v2937, %v3356
  %v3505 = vsub.f32 %v2939, %v3356
  %v3506 = vsub.f32 %v2943, %v3361
  %v3507 = vsub.f32 %v2945, %v3361
  %v3508 = vsub.f32 %v2947, %v3366
  %v3509 = vsub.f32 %v2949, %v3366
  %v3510 = vsub.f32 %v2953, %v3371
  %v3511 = vsub.f32 %v2955, %v3371
  %v3512 = vsub.f32 %v2957, %v3376
  %v3513 = vsub.f32 %v2959, %v3376
  %v3514 = vsub.f32 %v2963, %v3381
  %v3515 = vsub.f32 %v2965, %v3381
  %v3516 = vsub.f32 %v2967, %v3386
  %v3517 = vsub.f32 %v2969, %v3386
  %v3518 = vsub.f32 %v2973, %v3391
  %v3519 = vsub.f32 %v2975, %v3391
  %v3520 = vsub.f32 %v2977, %v3396
  %v3521 = vsub.f32 %v2979, %v3396
  %v3522 = vsub.f32 %v2983, %v3401
  %v3523 = vsub.f32 %v2985, %v3401
  %v3524 = vsub.f32 %v2987, %v3406
  %v3525 = vsub.f32 %v2989, %v3406
  %v3526 = vsub.f32 %v2993, %v3411
  %v3527 = vsub.f32 %v2995, %v3411
  %v3528 = vsub.f32 %v2997, %v3416
  %v3529 = vsub.f32 %v2999, %v3416
  %v3530 = vsub.f32 %v3003, %v3421
  %v3531 = vsub.f32 %v3005, %v3421
  %v3532 = vsub.f32 %v3007, %v3426
  %v3533 = vsub.f32 %v3009, %v3426
  %v3534 = vsub.f32 %v3013, %v3431
  %v3535 = vsub.f32 %v3015, %v3431
  %v3536 = vsub.f32 %v3017, %v3436
  %v3537 = vsub.f32 %v3019, %v3436
  %v3538 = vsub.f32 %v3023, %v3441
  %v3539 = vsub.f32 %v3025, %v3441
  %v3540 = vsub.f32 %v3027, %v3446
  %v3541 = vsub.f32 %v3029, %v3446
  %v3542 = vsub.f32 %v3033, %v3451
  %v3543 = vsub.f32 %v3035, %v3451
  %v3544 = vsub.f32 %v3037, %v3456
  %v3545 = vsub.f32 %v3039, %v3456
  %v3546 = vsub.f32 %v3043, %v3461
  %v3547 = vsub.f32 %v3045, %v3461
  %v3548 = vsub.f32 %v3047, %v3466
  %v3549 = vsub.f32 %v3049, %v3466
  %v3550 = vsub.f32 %v3053, %v3471
  %v3551 = vsub.f32 %v3055, %v3471
  %v3552 = vsub.f32 %v3057, %v3476
  %v3553 = vsub.f32 %v3059, %v3476
  %v3554 = vsub.f32 %v3063, %v3481
  %v3555 = vsub.f32 %v3065, %v3481
  %v3556 = vsub.f32 %v3067, %v3486
  %v3557 = vsub.f32 %v3069, %v3486
  %v3558 = vsub.f32 %v3073, %v3491
  %v3559 = vsub.f32 %v3075, %v3491
  %v3560 = vsub.f32 %v3077, %v3496
  %v3561 = vsub.f32 %v3079, %v3496
  %v3562 = vmul.f32 %v3498, 1.442695
  %v3563 = vpow.pop %v3562
  %v3564 = vmul.f32 %v3499, 1.442695
  %v3565 = vpow.pop %v3564
  %v3566 = vmul.f32 %v3500, 1.442695
  %v3567 = vpow.pop %v3566
  %v3568 = vmul.f32 %v3501, 1.442695
  %v3569 = vpow.pop %v3568
  %v3570 = vmul.f32 %v3502, 1.442695
  %v3571 = vpow.pop %v3570
  %v3572 = vmul.f32 %v3503, 1.442695
  %v3573 = vpow.pop %v3572
  %v3574 = vmul.f32 %v3504, 1.442695
  %v3575 = vpow.pop %v3574
  %v3576 = vmul.f32 %v3505, 1.442695
  %v3577 = vpow.pop %v3576
  %v3578 = vmul.f32 %v3506, 1.442695
  %v3579 = vpow.pop %v3578
  %v3580 = vmul.f32 %v3507, 1.442695
  %v3581 = vpow.pop %v3580
  %v3582 = vmul.f32 %v3508, 1.442695
  %v3583 = vpow.pop %v3582
  %v3584 = vmul.f32 %v3509, 1.442695
  %v3585 = vpow.pop %v3584
  %v3586 = vmul.f32 %v3510, 1.442695
  %v3587 = vpow.pop %v3586
  %v3588 = vmul.f32 %v3511, 1.442695
  %v3589 = vpow.pop %v3588
  %v3590 = vmul.f32 %v3512, 1.442695
  %v3591 = vpow.pop %v3590
  %v3592 = vmul.f32 %v3513, 1.442695
  %v3593 = vpow.pop %v3592
  %v3594 = vmul.f32 %v3514, 1.442695
  %v3595 = vpow.pop %v3594
  %v3596 = vmul.f32 %v3515, 1.442695
  %v3597 = vpow.pop %v3596
  %v3598 = vmul.f32 %v3516, 1.442695
  %v3599 = vpow.pop %v3598
  %v3600 = vmul.f32 %v3517, 1.442695
  %v3601 = vpow.pop %v3600
  %v3602 = vmul.f32 %v3518, 1.442695
  %v3603 = vpow.pop %v3602
  %v3604 = vmul.f32 %v3519, 1.442695
  %v3605 = vpow.pop %v3604
  %v3606 = vmul.f32 %v3520, 1.442695
  %v3607 = vpow.pop %v3606
  %v3608 = vmul.f32 %v3521, 1.442695
  %v3609 = vpow.pop %v3608
  %v3610 = vmul.f32 %v3522, 1.442695
  %v3611 = vpow.pop %v3610
  %v3612 = vmul.f32 %v3523, 1.442695
  %v3613 = vpow.pop %v3612
  %v3614 = vmul.f32 %v3524, 1.442695
  %v3615 = vpow.pop %v3614
  %v3616 = vmul.f32 %v3525, 1.442695
  %v3617 = vpow.pop %v3616
  %v3618 = vmul.f32 %v3526, 1.442695
  %v3619 = vpow.pop %v3618
  %v3620 = vmul.f32 %v3527, 1.442695
  %v3621 = vpow.pop %v3620
  %v3622 = vmul.f32 %v3528, 1.442695
  %v3623 = vpow.pop %v3622
  %v3624 = vmul.f32 %v3529, 1.442695
  %v3625 = vpow.pop %v3624
  %v3626 = vmul.f32 %v3530, 1.442695
  %v3627 = vpow.pop %v3626
  %v3628 = vmul.f32 %v3531, 1.442695
  %v3629 = vpow.pop %v3628
  %v3630 = vmul.f32 %v3532, 1.442695
  %v3631 = vpow.pop %v3630
  %v3632 = vmul.f32 %v3533, 1.442695
  %v3633 = vpow.pop %v3632
  %v3634 = vmul.f32 %v3534, 1.442695
  %v3635 = vpow.pop %v3634
  %v3636 = vmul.f32 %v3535, 1.442695
  %v3637 = vpow.pop %v3636
  %v3638 = vmul.f32 %v3536, 1.442695
  %v3639 = vpow.pop %v3638
  %v3640 = vmul.f32 %v3537, 1.442695
  %v3641 = vpow.pop %v3640
  %v3642 = vmul.f32 %v3538, 1.442695
  %v3643 = vpow.pop %v3642
  %v3644 = vmul.f32 %v3539, 1.442695
  %v3645 = vpow.pop %v3644
  %v3646 = vmul.f32 %v3540, 1.442695
  %v3647 = vpow.pop %v3646
  %v3648 = vmul.f32 %v3541, 1.442695
  %v3649 = vpow.pop %v3648
  %v3650 = vmul.f32 %v3542, 1.442695
  %v3651 = vpow.pop %v3650
  %v3652 = vmul.f32 %v3543, 1.442695
  %v3653 = vpow.pop %v3652
  %v3654 = vmul.f32 %v3544, 1.442695
  %v3655 = vpow.pop %v3654
  %v3656 = vmul.f32 %v3545, 1.442695
  %v3657 = vpow.pop %v3656
  %v3658 = vmul.f32 %v3546, 1.442695
  %v3659 = vpow.pop %v3658
  %v3660 = vmul.f32 %v3547, 1.442695
  %v3661 = vpow.pop %v3660
  %v3662 = vmul.f32 %v3548, 1.442695
  %v3663 = vpow.pop %v3662
  %v3664 = vmul.f32 %v3549, 1.442695
  %v3665 = vpow.pop %v3664
  %v3666 = vmul.f32 %v3550, 1.442695
  %v3667 = vpow.pop %v3666
  %v3668 = vmul.f32 %v3551, 1.442695
  %v3669 = vpow.pop %v3668
  %v3670 = vmul.f32 %v3552, 1.442695
  %v3671 = vpow.pop %v3670
  %v3672 = vmul.f32 %v3553, 1.442695
  %v3673 = vpow.pop %v3672
  %v3674 = vmul.f32 %v3554, 1.442695
  %v3675 = vpow.pop %v3674
  %v3676 = vmul.f32 %v3555, 1.442695
  %v3677 = vpow.pop %v3676
  %v3678 = vmul.f32 %v3556, 1.442695
  %v3679 = vpow.pop %v3678
  %v3680 = vmul.f32 %v3557, 1.442695
  %v3681 = vpow.pop %v3680
  %v3682 = vmul.f32 %v3558, 1.442695
  %v3683 = vpow.pop %v3682
  %v3684 = vmul.f32 %v3559, 1.442695
  %v3685 = vpow.pop %v3684
  %v3686 = vmul.f32 %v3560, 1.442695
  %v3687 = vpow.pop %v3686
  %v3688 = vmul.f32 %v3561, 1.442695
  %v3689 = vpow.pop %v3688
  %s3690 = scalar_lea.vmem [#allocation3], 256
  %v3691 = vld [vmem:[%s3690] sm:$0xff]
  %v3692 = vld [vmem:[%s3690 + $0x8] sm:$0xff]
  %v3693 = vld [vmem:[%s3690 + $0x10] sm:$0xff]
  %v3694 = vld [vmem:[%s3690 + $0x18] sm:$0xff]
  %v3695 = vld [vmem:[%s3690 + $0x20] sm:$0xff]
  %v3696 = vld [vmem:[%s3690 + $0x28] sm:$0xff]
  %v3697 = vld [vmem:[%s3690 + $0x30] sm:$0xff]
  %v3698 = vld [vmem:[%s3690 + $0x38] sm:$0xff]
  %v3699 = vld [vmem:[%s3690 + $0x40] sm:$0xff]
  %v3700 = vld [vmem:[%s3690 + $0x48] sm:$0xff]
  %v3701 = vld [vmem:[%s3690 + $0x50] sm:$0xff]
  %v3702 = vld [vmem:[%s3690 + $0x58] sm:$0xff]
  %v3703 = vld [vmem:[%s3690 + $0x60] sm:$0xff]
  %v3704 = vld [vmem:[%s3690 + $0x68] sm:$0xff]
  %v3705 = vld [vmem:[%s3690 + $0x70] sm:$0xff]
  %v3706 = vld [vmem:[%s3690 + $0x78] sm:$0xff]
  %v3707 = vld [vmem:[%s3690 + $0x80] sm:$0xff]
  %v3708 = vld [vmem:[%s3690 + $0x88] sm:$0xff]
  %v3709 = vld [vmem:[%s3690 + $0x90] sm:$0xff]
  %v3710 = vld [vmem:[%s3690 + $0x98] sm:$0xff]
  %v3711 = vld [vmem:[%s3690 + $0xa0] sm:$0xff]
  %v3712 = vld [vmem:[%s3690 + $0xa8] sm:$0xff]
  %v3713 = vld [vmem:[%s3690 + $0xb0] sm:$0xff]
  %v3714 = vld [vmem:[%s3690 + $0xb8] sm:$0xff]
  %v3715 = vld [vmem:[%s3690 + $0xc0] sm:$0xff]
  %v3716 = vld [vmem:[%s3690 + $0xc8] sm:$0xff]
  %v3717 = vld [vmem:[%s3690 + $0xd0] sm:$0xff]
  %v3718 = vld [vmem:[%s3690 + $0xd8] sm:$0xff]
  %v3719 = vld [vmem:[%s3690 + $0xe0] sm:$0xff]
  %v3720 = vld [vmem:[%s3690 + $0xe8] sm:$0xff]
  %v3721 = vld [vmem:[%s3690 + $0xf0] sm:$0xff]
  %v3722 = vld [vmem:[%s3690 + $0xf8] sm:$0xff]
  %v3723 = vmul.f32 %v3275, %v3691
  %v3724 = vmul.f32 %v3277, %v3692
  %v3725 = vmul.f32 %v3279, %v3693
  %v3726 = vmul.f32 %v3281, %v3694
  %v3727 = vmul.f32 %v3283, %v3695
  %v3728 = vmul.f32 %v3285, %v3696
  %v3729 = vmul.f32 %v3287, %v3697
  %v3730 = vmul.f32 %v3289, %v3698
  %v3731 = vmul.f32 %v3291, %v3699
  %v3732 = vmul.f32 %v3293, %v3700
  %v3733 = vmul.f32 %v3295, %v3701
  %v3734 = vmul.f32 %v3297, %v3702
  %v3735 = vmul.f32 %v3299, %v3703
  %v3736 = vmul.f32 %v3301, %v3704
  %v3737 = vmul.f32 %v3303, %v3705
  %v3738 = vmul.f32 %v3305, %v3706
  %v3739 = vmul.f32 %v3307, %v3707
  %v3740 = vmul.f32 %v3309, %v3708
  %v3741 = vmul.f32 %v3311, %v3709
  %v3742 = vmul.f32 %v3313, %v3710
  %v3743 = vmul.f32 %v3315, %v3711
  %v3744 = vmul.f32 %v3317, %v3712
  %v3745 = vmul.f32 %v3319, %v3713
  %v3746 = vmul.f32 %v3321, %v3714
  %v3747 = vmul.f32 %v3323, %v3715
  %v3748 = vmul.f32 %v3325, %v3716
  %v3749 = vmul.f32 %v3327, %v3717
  %v3750 = vmul.f32 %v3329, %v3718
  %v3751 = vmul.f32 %v3331, %v3719
  %v3752 = vmul.f32 %v3333, %v3720
  %v3753 = vmul.f32 %v3335, %v3721
  %v3754 = vmul.f32 %v3337, %v3722
  %v3755 = vadd.f32 %v3563, %v3565
  %3756 = vadd.xlane.f32.xlu0 %v3755
  %v3757 = vpop.xlane.xlu0 %3756
  %v3758 = vadd.f32 %v3567, %v3569
  %3759 = vadd.xlane.f32.xlu0 %v3758
  %v3760 = vpop.xlane.xlu0 %3759
  %v3761 = vadd.f32 %v3571, %v3573
  %3762 = vadd.xlane.f32.xlu0 %v3761
  %v3763 = vpop.xlane.xlu0 %3762
  %v3764 = vadd.f32 %v3575, %v3577
  %3765 = vadd.xlane.f32.xlu0 %v3764
  %v3766 = vpop.xlane.xlu0 %3765
  %v3767 = vadd.f32 %v3579, %v3581
  %3768 = vadd.xlane.f32.xlu0 %v3767
  %v3769 = vpop.xlane.xlu0 %3768
  %v3770 = vadd.f32 %v3583, %v3585
  %3771 = vadd.xlane.f32.xlu0 %v3770
  %v3772 = vpop.xlane.xlu0 %3771
  %v3773 = vadd.f32 %v3587, %v3589
  %3774 = vadd.xlane.f32.xlu0 %v3773
  %v3775 = vpop.xlane.xlu0 %3774
  %v3776 = vadd.f32 %v3591, %v3593
  %3777 = vadd.xlane.f32.xlu0 %v3776
  %v3778 = vpop.xlane.xlu0 %3777
  %v3779 = vadd.f32 %v3595, %v3597
  %3780 = vadd.xlane.f32.xlu0 %v3779
  %v3781 = vpop.xlane.xlu0 %3780
  %v3782 = vadd.f32 %v3599, %v3601
  %3783 = vadd.xlane.f32.xlu0 %v3782
  %v3784 = vpop.xlane.xlu0 %3783
  %v3785 = vadd.f32 %v3603, %v3605
  %3786 = vadd.xlane.f32.xlu0 %v3785
  %v3787 = vpop.xlane.xlu0 %3786
  %v3788 = vadd.f32 %v3607, %v3609
  %3789 = vadd.xlane.f32.xlu0 %v3788
  %v3790 = vpop.xlane.xlu0 %3789
  %v3791 = vadd.f32 %v3611, %v3613
  %3792 = vadd.xlane.f32.xlu0 %v3791
  %v3793 = vpop.xlane.xlu0 %3792
  %v3794 = vadd.f32 %v3615, %v3617
  %3795 = vadd.xlane.f32.xlu0 %v3794
  %v3796 = vpop.xlane.xlu0 %3795
  %v3797 = vadd.f32 %v3619, %v3621
  %3798 = vadd.xlane.f32.xlu0 %v3797
  %v3799 = vpop.xlane.xlu0 %3798
  %v3800 = vadd.f32 %v3623, %v3625
  %3801 = vadd.xlane.f32.xlu0 %v3800
  %v3802 = vpop.xlane.xlu0 %3801
  %v3803 = vadd.f32 %v3627, %v3629
  %3804 = vadd.xlane.f32.xlu0 %v3803
  %v3805 = vpop.xlane.xlu0 %3804
  %v3806 = vadd.f32 %v3631, %v3633
  %3807 = vadd.xlane.f32.xlu0 %v3806
  %v3808 = vpop.xlane.xlu0 %3807
  %v3809 = vadd.f32 %v3635, %v3637
  %3810 = vadd.xlane.f32.xlu0 %v3809
  %v3811 = vpop.xlane.xlu0 %3810
  %v3812 = vadd.f32 %v3639, %v3641
  %3813 = vadd.xlane.f32.xlu0 %v3812
  %v3814 = vpop.xlane.xlu0 %3813
  %v3815 = vadd.f32 %v3643, %v3645
  %3816 = vadd.xlane.f32.xlu0 %v3815
  %v3817 = vpop.xlane.xlu0 %3816
  %v3818 = vadd.f32 %v3647, %v3649
  %3819 = vadd.xlane.f32.xlu0 %v3818
  %v3820 = vpop.xlane.xlu0 %3819
  %v3821 = vadd.f32 %v3651, %v3653
  %3822 = vadd.xlane.f32.xlu0 %v3821
  %v3823 = vpop.xlane.xlu0 %3822
  %v3824 = vadd.f32 %v3655, %v3657
  %3825 = vadd.xlane.f32.xlu0 %v3824
  %v3826 = vpop.xlane.xlu0 %3825
  %v3827 = vadd.f32 %v3659, %v3661
  %3828 = vadd.xlane.f32.xlu0 %v3827
  %v3829 = vpop.xlane.xlu0 %3828
  %v3830 = vadd.f32 %v3663, %v3665
  %3831 = vadd.xlane.f32.xlu0 %v3830
  %v3832 = vpop.xlane.xlu0 %3831
  %v3833 = vadd.f32 %v3667, %v3669
  %3834 = vadd.xlane.f32.xlu0 %v3833
  %v3835 = vpop.xlane.xlu0 %3834
  %v3836 = vadd.f32 %v3671, %v3673
  %3837 = vadd.xlane.f32.xlu0 %v3836
  %v3838 = vpop.xlane.xlu0 %3837
  %v3839 = vadd.f32 %v3675, %v3677
  %3840 = vadd.xlane.f32.xlu0 %v3839
  %v3841 = vpop.xlane.xlu0 %3840
  %v3842 = vadd.f32 %v3679, %v3681
  %3843 = vadd.xlane.f32.xlu0 %v3842
  %v3844 = vpop.xlane.xlu0 %3843
  %v3845 = vadd.f32 %v3683, %v3685
  %3846 = vadd.xlane.f32.xlu0 %v3845
  %v3847 = vpop.xlane.xlu0 %3846
  %v3848 = vadd.f32 %v3687, %v3689
  %3849 = vadd.xlane.f32.xlu0 %v3848
  %v3850 = vpop.xlane.xlu0 %3849
  %v3851 = vadd.f32 %v3723, %v3757
  %v3852 = vadd.f32 %v3724, %v3760
  %v3853 = vadd.f32 %v3725, %v3763
  %v3854 = vadd.f32 %v3726, %v3766
  %v3855 = vadd.f32 %v3727, %v3769
  %v3856 = vadd.f32 %v3728, %v3772
  %v3857 = vadd.f32 %v3729, %v3775
  %v3858 = vadd.f32 %v3730, %v3778
  %v3859 = vadd.f32 %v3731, %v3781
  %v3860 = vadd.f32 %v3732, %v3784
  %v3861 = vadd.f32 %v3733, %v3787
  %v3862 = vadd.f32 %v3734, %v3790
  %v3863 = vadd.f32 %v3735, %v3793
  %v3864 = vadd.f32 %v3736, %v3796
  %v3865 = vadd.f32 %v3737, %v3799
  %v3866 = vadd.f32 %v3738, %v3802
  %v3867 = vadd.f32 %v3739, %v3805
  %v3868 = vadd.f32 %v3740, %v3808
  %v3869 = vadd.f32 %v3741, %v3811
  %v3870 = vadd.f32 %v3742, %v3814
  %v3871 = vadd.f32 %v3743, %v3817
  %v3872 = vadd.f32 %v3744, %v3820
  %v3873 = vadd.f32 %v3745, %v3823
  %v3874 = vadd.f32 %v3746, %v3826
  %v3875 = vadd.f32 %v3747, %v3829
  %v3876 = vadd.f32 %v3748, %v3832
  %v3877 = vadd.f32 %v3749, %v3835
  %v3878 = vadd.f32 %v3750, %v3838
  %v3879 = vadd.f32 %v3751, %v3841
  %v3880 = vadd.f32 %v3752, %v3844
  %v3881 = vadd.f32 %v3753, %v3847
  %v3882 = vadd.f32 %v3754, %v3850
  %3883 = vst.msk [vmem:[%s3690] sm:$0xff] %vm1830, %v3851
  %3884 = vst.msk [vmem:[%s3690 + $0x8] sm:$0xff] %vm1830, %v3852
  %3885 = vst.msk [vmem:[%s3690 + $0x10] sm:$0xff] %vm1830, %v3853
  %3886 = vst.msk [vmem:[%s3690 + $0x18] sm:$0xff] %vm1830, %v3854
  %3887 = vst.msk [vmem:[%s3690 + $0x20] sm:$0xff] %vm1830, %v3855
  %3888 = vst.msk [vmem:[%s3690 + $0x28] sm:$0xff] %vm1830, %v3856
  %3889 = vst.msk [vmem:[%s3690 + $0x30] sm:$0xff] %vm1830, %v3857
  %3890 = vst.msk [vmem:[%s3690 + $0x38] sm:$0xff] %vm1830, %v3858
  %3891 = vst.msk [vmem:[%s3690 + $0x40] sm:$0xff] %vm1830, %v3859
  %3892 = vst.msk [vmem:[%s3690 + $0x48] sm:$0xff] %vm1830, %v3860
  %3893 = vst.msk [vmem:[%s3690 + $0x50] sm:$0xff] %vm1830, %v3861
  %3894 = vst.msk [vmem:[%s3690 + $0x58] sm:$0xff] %vm1830, %v3862
  %3895 = vst.msk [vmem:[%s3690 + $0x60] sm:$0xff] %vm1830, %v3863
  %3896 = vst.msk [vmem:[%s3690 + $0x68] sm:$0xff] %vm1830, %v3864
  %3897 = vst.msk [vmem:[%s3690 + $0x70] sm:$0xff] %vm1830, %v3865
  %3898 = vst.msk [vmem:[%s3690 + $0x78] sm:$0xff] %vm1830, %v3866
  %3899 = vst.msk [vmem:[%s3690 + $0x80] sm:$0xff] %vm1830, %v3867
  %3900 = vst.msk [vmem:[%s3690 + $0x88] sm:$0xff] %vm1830, %v3868
  %3901 = vst.msk [vmem:[%s3690 + $0x90] sm:$0xff] %vm1830, %v3869
  %3902 = vst.msk [vmem:[%s3690 + $0x98] sm:$0xff] %vm1830, %v3870
  %3903 = vst.msk [vmem:[%s3690 + $0xa0] sm:$0xff] %vm1830, %v3871
  %3904 = vst.msk [vmem:[%s3690 + $0xa8] sm:$0xff] %vm1830, %v3872
  %3905 = vst.msk [vmem:[%s3690 + $0xb0] sm:$0xff] %vm1830, %v3873
  %3906 = vst.msk [vmem:[%s3690 + $0xb8] sm:$0xff] %vm1830, %v3874
  %3907 = vst.msk [vmem:[%s3690 + $0xc0] sm:$0xff] %vm1830, %v3875
  %3908 = vst.msk [vmem:[%s3690 + $0xc8] sm:$0xff] %vm1830, %v3876
  %3909 = vst.msk [vmem:[%s3690 + $0xd0] sm:$0xff] %vm1830, %v3877
  %3910 = vst.msk [vmem:[%s3690 + $0xd8] sm:$0xff] %vm1830, %v3878
  %3911 = vst.msk [vmem:[%s3690 + $0xe0] sm:$0xff] %vm1830, %v3879
  %3912 = vst.msk [vmem:[%s3690 + $0xe8] sm:$0xff] %vm1830, %v3880
  %3913 = vst.msk [vmem:[%s3690 + $0xf0] sm:$0xff] %vm1830, %v3881
  %3914 = vst.msk [vmem:[%s3690 + $0xf8] sm:$0xff] %vm1830, %v3882
  %s3915 = scalar_lea.vmem [#allocation4], 256
  %v3916 = vld [vmem:[%s3915] sm:$0xff]
  %v3917 = vld [vmem:[%s3915 + $0x8] sm:$0xff]
  %v3918 = vld [vmem:[%s3915 + $0x10] sm:$0xff]
  %v3919 = vld [vmem:[%s3915 + $0x18] sm:$0xff]
  %v3920 = vld [vmem:[%s3915 + $0x20] sm:$0xff]
  %v3921 = vld [vmem:[%s3915 + $0x28] sm:$0xff]
  %v3922 = vld [vmem:[%s3915 + $0x30] sm:$0xff]
  %v3923 = vld [vmem:[%s3915 + $0x38] sm:$0xff]
  %v3924 = vld [vmem:[%s3915 + $0x40] sm:$0xff]
  %v3925 = vld [vmem:[%s3915 + $0x48] sm:$0xff]
  %v3926 = vld [vmem:[%s3915 + $0x50] sm:$0xff]
  %v3927 = vld [vmem:[%s3915 + $0x58] sm:$0xff]
  %v3928 = vld [vmem:[%s3915 + $0x60] sm:$0xff]
  %v3929 = vld [vmem:[%s3915 + $0x68] sm:$0xff]
  %v3930 = vld [vmem:[%s3915 + $0x70] sm:$0xff]
  %v3931 = vld [vmem:[%s3915 + $0x78] sm:$0xff]
  %v3932 = vld [vmem:[%s3915 + $0x80] sm:$0xff]
  %v3933 = vld [vmem:[%s3915 + $0x88] sm:$0xff]
  %v3934 = vld [vmem:[%s3915 + $0x90] sm:$0xff]
  %v3935 = vld [vmem:[%s3915 + $0x98] sm:$0xff]
  %v3936 = vld [vmem:[%s3915 + $0xa0] sm:$0xff]
  %v3937 = vld [vmem:[%s3915 + $0xa8] sm:$0xff]
  %v3938 = vld [vmem:[%s3915 + $0xb0] sm:$0xff]
  %v3939 = vld [vmem:[%s3915 + $0xb8] sm:$0xff]
  %v3940 = vld [vmem:[%s3915 + $0xc0] sm:$0xff]
  %v3941 = vld [vmem:[%s3915 + $0xc8] sm:$0xff]
  %v3942 = vld [vmem:[%s3915 + $0xd0] sm:$0xff]
  %v3943 = vld [vmem:[%s3915 + $0xd8] sm:$0xff]
  %v3944 = vld [vmem:[%s3915 + $0xe0] sm:$0xff]
  %v3945 = vld [vmem:[%s3915 + $0xe8] sm:$0xff]
  %v3946 = vld [vmem:[%s3915 + $0xf0] sm:$0xff]
  %v3947 = vld [vmem:[%s3915 + $0xf8] sm:$0xff]
  %3949 = vset.pattern.permute.xlu0 0
  %3950 = vperm.xlu0 %3949, %v3275
  %v3951 = vpop.permute.xlu0 %3950
  %3954 = vset.pattern.permute.xlu0 0
  %3955 = vperm.xlu0 %3954, %v3277
  %v3956 = vpop.permute.xlu0 %3955
  %3959 = vset.pattern.permute.xlu0 0
  %3960 = vperm.xlu0 %3959, %v3279
  %v3961 = vpop.permute.xlu0 %3960
  %3964 = vset.pattern.permute.xlu0 0
  %3965 = vperm.xlu0 %3964, %v3281
  %v3966 = vpop.permute.xlu0 %3965
  %3969 = vset.pattern.permute.xlu0 0
  %3970 = vperm.xlu0 %3969, %v3283
  %v3971 = vpop.permute.xlu0 %3970
  %3974 = vset.pattern.permute.xlu0 0
  %3975 = vperm.xlu0 %3974, %v3285
  %v3976 = vpop.permute.xlu0 %3975
  %3979 = vset.pattern.permute.xlu0 0
  %3980 = vperm.xlu0 %3979, %v3287
  %v3981 = vpop.permute.xlu0 %3980
  %3984 = vset.pattern.permute.xlu0 0
  %3985 = vperm.xlu0 %3984, %v3289
  %v3986 = vpop.permute.xlu0 %3985
  %3989 = vset.pattern.permute.xlu0 0
  %3990 = vperm.xlu0 %3989, %v3291
  %v3991 = vpop.permute.xlu0 %3990
  %3994 = vset.pattern.permute.xlu0 0
  %3995 = vperm.xlu0 %3994, %v3293
  %v3996 = vpop.permute.xlu0 %3995
  %3999 = vset.pattern.permute.xlu0 0
  %4000 = vperm.xlu0 %3999, %v3295
  %v4001 = vpop.permute.xlu0 %4000
  %4004 = vset.pattern.permute.xlu0 0
  %4005 = vperm.xlu0 %4004, %v3297
  %v4006 = vpop.permute.xlu0 %4005
  %4009 = vset.pattern.permute.xlu0 0
  %4010 = vperm.xlu0 %4009, %v3299
  %v4011 = vpop.permute.xlu0 %4010
  %4014 = vset.pattern.permute.xlu0 0
  %4015 = vperm.xlu0 %4014, %v3301
  %v4016 = vpop.permute.xlu0 %4015
  %4019 = vset.pattern.permute.xlu0 0
  %4020 = vperm.xlu0 %4019, %v3303
  %v4021 = vpop.permute.xlu0 %4020
  %4024 = vset.pattern.permute.xlu0 0
  %4025 = vperm.xlu0 %4024, %v3305
  %v4026 = vpop.permute.xlu0 %4025
  %4029 = vset.pattern.permute.xlu0 0
  %4030 = vperm.xlu0 %4029, %v3307
  %v4031 = vpop.permute.xlu0 %4030
  %4034 = vset.pattern.permute.xlu0 0
  %4035 = vperm.xlu0 %4034, %v3309
  %v4036 = vpop.permute.xlu0 %4035
  %4039 = vset.pattern.permute.xlu0 0
  %4040 = vperm.xlu0 %4039, %v3311
  %v4041 = vpop.permute.xlu0 %4040
  %4044 = vset.pattern.permute.xlu0 0
  %4045 = vperm.xlu0 %4044, %v3313
  %v4046 = vpop.permute.xlu0 %4045
  %4049 = vset.pattern.permute.xlu0 0
  %4050 = vperm.xlu0 %4049, %v3315
  %v4051 = vpop.permute.xlu0 %4050
  %4054 = vset.pattern.permute.xlu0 0
  %4055 = vperm.xlu0 %4054, %v3317
  %v4056 = vpop.permute.xlu0 %4055
  %4059 = vset.pattern.permute.xlu0 0
  %4060 = vperm.xlu0 %4059, %v3319
  %v4061 = vpop.permute.xlu0 %4060
  %4064 = vset.pattern.permute.xlu0 0
  %4065 = vperm.xlu0 %4064, %v3321
  %v4066 = vpop.permute.xlu0 %4065
  %4069 = vset.pattern.permute.xlu0 0
  %4070 = vperm.xlu0 %4069, %v3323
  %v4071 = vpop.permute.xlu0 %4070
  %4074 = vset.pattern.permute.xlu0 0
  %4075 = vperm.xlu0 %4074, %v3325
  %v4076 = vpop.permute.xlu0 %4075
  %4079 = vset.pattern.permute.xlu0 0
  %4080 = vperm.xlu0 %4079, %v3327
  %v4081 = vpop.permute.xlu0 %4080
  %4084 = vset.pattern.permute.xlu0 0
  %4085 = vperm.xlu0 %4084, %v3329
  %v4086 = vpop.permute.xlu0 %4085
  %4089 = vset.pattern.permute.xlu0 0
  %4090 = vperm.xlu0 %4089, %v3331
  %v4091 = vpop.permute.xlu0 %4090
  %4094 = vset.pattern.permute.xlu0 0
  %4095 = vperm.xlu0 %4094, %v3333
  %v4096 = vpop.permute.xlu0 %4095
  %4099 = vset.pattern.permute.xlu0 0
  %4100 = vperm.xlu0 %4099, %v3335
  %v4101 = vpop.permute.xlu0 %4100
  %4104 = vset.pattern.permute.xlu0 0
  %4105 = vperm.xlu0 %4104, %v3337
  %v4106 = vpop.permute.xlu0 %4105
  %v4108 = vmul.f32 %v3951, %v3916
  %v4109 = vmul.f32 %v3956, %v3917
  %v4110 = vmul.f32 %v3961, %v3918
  %v4111 = vmul.f32 %v3966, %v3919
  %v4112 = vmul.f32 %v3971, %v3920
  %v4113 = vmul.f32 %v3976, %v3921
  %v4114 = vmul.f32 %v3981, %v3922
  %v4115 = vmul.f32 %v3986, %v3923
  %v4116 = vmul.f32 %v3991, %v3924
  %v4117 = vmul.f32 %v3996, %v3925
  %v4118 = vmul.f32 %v4001, %v3926
  %v4119 = vmul.f32 %v4006, %v3927
  %v4120 = vmul.f32 %v4011, %v3928
  %v4121 = vmul.f32 %v4016, %v3929
  %v4122 = vmul.f32 %v4021, %v3930
  %v4123 = vmul.f32 %v4026, %v3931
  %v4124 = vmul.f32 %v4031, %v3932
  %v4125 = vmul.f32 %v4036, %v3933
  %v4126 = vmul.f32 %v4041, %v3934
  %v4127 = vmul.f32 %v4046, %v3935
  %v4128 = vmul.f32 %v4051, %v3936
  %v4129 = vmul.f32 %v4056, %v3937
  %v4130 = vmul.f32 %v4061, %v3938
  %v4131 = vmul.f32 %v4066, %v3939
  %v4132 = vmul.f32 %v4071, %v3940
  %v4133 = vmul.f32 %v4076, %v3941
  %v4134 = vmul.f32 %v4081, %v3942
  %v4135 = vmul.f32 %v4086, %v3943
  %v4136 = vmul.f32 %v4091, %v3944
  %v4137 = vmul.f32 %v4096, %v3945
  %v4138 = vmul.f32 %v4101, %v3946
  %v4139 = vmul.f32 %v4106, %v3947
  %v4140 = vpack.c.bf16 %v3567, %v3563
  %v4141 = vpack.c.bf16 %v3569, %v3565
  %v4142 = vpack.c.bf16 %v3575, %v3571
  %v4143 = vpack.c.bf16 %v3577, %v3573
  %v4144 = vpack.c.bf16 %v3583, %v3579
  %v4145 = vpack.c.bf16 %v3585, %v3581
  %v4146 = vpack.c.bf16 %v3591, %v3587
  %v4147 = vpack.c.bf16 %v3593, %v3589
  %v4148 = vpack.c.bf16 %v3599, %v3595
  %v4149 = vpack.c.bf16 %v3601, %v3597
  %v4150 = vpack.c.bf16 %v3607, %v3603
  %v4151 = vpack.c.bf16 %v3609, %v3605
  %v4152 = vpack.c.bf16 %v3615, %v3611
  %v4153 = vpack.c.bf16 %v3617, %v3613
  %v4154 = vpack.c.bf16 %v3623, %v3619
  %v4155 = vpack.c.bf16 %v3625, %v3621
  %v4156 = vpack.c.bf16 %v3631, %v3627
  %v4157 = vpack.c.bf16 %v3633, %v3629
  %v4158 = vpack.c.bf16 %v3639, %v3635
  %v4159 = vpack.c.bf16 %v3641, %v3637
  %v4160 = vpack.c.bf16 %v3647, %v3643
  %v4161 = vpack.c.bf16 %v3649, %v3645
  %v4162 = vpack.c.bf16 %v3655, %v3651
  %v4163 = vpack.c.bf16 %v3657, %v3653
  %v4164 = vpack.c.bf16 %v3663, %v3659
  %v4165 = vpack.c.bf16 %v3665, %v3661
  %v4166 = vpack.c.bf16 %v3671, %v3667
  %v4167 = vpack.c.bf16 %v3673, %v3669
  %v4168 = vpack.c.bf16 %v3679, %v3675
  %v4169 = vpack.c.bf16 %v3681, %v3677
  %v4170 = vpack.c.bf16 %v3687, %v3683
  %v4171 = vpack.c.bf16 %v3689, %v3685
  %v4204 = vunpack.c.l.b16 %v2536
  %v4205 = vunpack.c.l.b16 %v2537
  %v4206 = vunpack.c.l.b16 %v2538
  %v4207 = vunpack.c.l.b16 %v2539
  %v4208 = vunpack.c.l.b16 %v2540
  %v4209 = vunpack.c.l.b16 %v2541
  %v4210 = vunpack.c.l.b16 %v2542
  %v4211 = vunpack.c.l.b16 %v2543
  %v4212 = vunpack.c.l.b16 %v2544
  %v4213 = vunpack.c.l.b16 %v2545
  %v4214 = vunpack.c.l.b16 %v2546
  %v4215 = vunpack.c.l.b16 %v2547
  %v4216 = vunpack.c.l.b16 %v2548
  %v4217 = vunpack.c.l.b16 %v2549
  %v4218 = vunpack.c.l.b16 %v2550
  %v4219 = vunpack.c.l.b16 %v2551
  %v4220 = vunpack.c.l.b16 %v2552
  %v4221 = vunpack.c.l.b16 %v2553
  %v4222 = vunpack.c.l.b16 %v2554
  %v4223 = vunpack.c.l.b16 %v2555
  %v4224 = vunpack.c.l.b16 %v2556
  %v4225 = vunpack.c.l.b16 %v2557
  %v4226 = vunpack.c.l.b16 %v2558
  %v4227 = vunpack.c.l.b16 %v2559
  %v4228 = vunpack.c.l.b16 %v2560
  %v4229 = vunpack.c.l.b16 %v2561
  %v4230 = vunpack.c.l.b16 %v2562
  %v4231 = vunpack.c.l.b16 %v2563
  %v4232 = vunpack.c.l.b16 %v2564
  %v4233 = vunpack.c.l.b16 %v2565
  %v4234 = vunpack.c.l.b16 %v2566
  %v4235 = vunpack.c.l.b16 %v2567
  %v4236 = vpack.c.b16 %v4205, %v4204
  %v4237 = vpack.c.b16 %v4207, %v4206
  %v4238 = vpack.c.b16 %v4209, %v4208
  %v4239 = vpack.c.b16 %v4211, %v4210
  %v4240 = vpack.c.b16 %v4213, %v4212
  %v4241 = vpack.c.b16 %v4215, %v4214
  %v4242 = vpack.c.b16 %v4217, %v4216
  %v4243 = vpack.c.b16 %v4219, %v4218
  %v4244 = vpack.c.b16 %v4221, %v4220
  %v4245 = vpack.c.b16 %v4223, %v4222
  %v4246 = vpack.c.b16 %v4225, %v4224
  %v4247 = vpack.c.b16 %v4227, %v4226
  %v4248 = vpack.c.b16 %v4229, %v4228
  %v4249 = vpack.c.b16 %v4231, %v4230
  %v4250 = vpack.c.b16 %v4233, %v4232
  %v4251 = vpack.c.b16 %v4235, %v4234
  %4252 = vrot.lane.b32.xlu0 %v4236, 96
  %v4253 = vpop.permute.xlu0 %4252
  %4254 = vrot.lane.b32.xlu0 %v4237, 96
  %v4255 = vpop.permute.xlu0 %4254
  %4256 = vrot.lane.b32.xlu0 %v4238, 96
  %v4257 = vpop.permute.xlu0 %4256
  %4258 = vrot.lane.b32.xlu0 %v4239, 96
  %v4259 = vpop.permute.xlu0 %4258
  %4260 = vrot.lane.b32.xlu0 %v4240, 96
  %v4261 = vpop.permute.xlu0 %4260
  %4262 = vrot.lane.b32.xlu0 %v4241, 96
  %v4263 = vpop.permute.xlu0 %4262
  %4264 = vrot.lane.b32.xlu0 %v4242, 96
  %v4265 = vpop.permute.xlu0 %4264
  %4266 = vrot.lane.b32.xlu0 %v4243, 96
  %v4267 = vpop.permute.xlu0 %4266
  %4268 = vrot.lane.b32.xlu0 %v4244, 96
  %v4269 = vpop.permute.xlu0 %4268
  %4270 = vrot.lane.b32.xlu0 %v4245, 96
  %v4271 = vpop.permute.xlu0 %4270
  %4272 = vrot.lane.b32.xlu0 %v4246, 96
  %v4273 = vpop.permute.xlu0 %4272
  %4274 = vrot.lane.b32.xlu0 %v4247, 96
  %v4275 = vpop.permute.xlu0 %4274
  %4276 = vrot.lane.b32.xlu0 %v4248, 96
  %v4277 = vpop.permute.xlu0 %4276
  %4278 = vrot.lane.b32.xlu0 %v4249, 96
  %v4279 = vpop.permute.xlu0 %4278
  %4280 = vrot.lane.b32.xlu0 %v4250, 96
  %v4281 = vpop.permute.xlu0 %4280
  %4282 = vrot.lane.b32.xlu0 %v4251, 96
  %v4283 = vpop.permute.xlu0 %4282
  %4300 = vmatprep.subr.bf16.mxu0 0
  %4301 = vmatpush1.bf16.msra.mxu0 %v4267
  %4302 = vmatprep.subr.bf16.mxu0 0
  %4303 = vmatpush1.bf16.msra.mxu0 %v4265
  %4304 = vmatprep.subr.bf16.mxu0 0
  %4305 = vmatpush1.bf16.msra.mxu0 %v4263
  %4306 = vmatprep.subr.bf16.mxu0 0
  %4307 = vmatpush1.bf16.msra.mxu0 %v4261
  %4308 = vmatprep.subr.bf16.mxu0 0
  %4309 = vmatpush1.bf16.msra.mxu0 %v4259
  %4310 = vmatprep.subr.bf16.mxu0 0
  %4311 = vmatpush1.bf16.msra.mxu0 %v4257
  %4312 = vmatprep.subr.bf16.mxu0 0
  %4313 = vmatpush1.bf16.msra.mxu0 %v4255
  %4314 = vmatprep.subr.bf16.mxu0 0
  %4315 = vmatpush1.bf16.msra.mxu0 %v4253
  %4316 = vmatprep.subr.bf16.mxu0 0
  %4317 = vmatpush2.bf16.msra.mxu0 %v4283
  %4318 = vmatprep.subr.bf16.mxu0 0
  %4319 = vmatpush2.bf16.msra.mxu0 %v4281
  %4320 = vmatprep.subr.bf16.mxu0 0
  %4321 = vmatpush2.bf16.msra.mxu0 %v4279
  %4322 = vmatprep.subr.bf16.mxu0 0
  %4323 = vmatpush2.bf16.msra.mxu0 %v4277
  %4324 = vmatprep.subr.bf16.mxu0 0
  %4325 = vmatpush2.bf16.msra.mxu0 %v4275
  %4326 = vmatprep.subr.bf16.mxu0 0
  %4327 = vmatpush2.bf16.msra.mxu0 %v4273
  %4328 = vmatprep.subr.bf16.mxu0 0
  %4329 = vmatpush2.bf16.msra.mxu0 %v4271
  %4330 = vmatprep.subr.bf16.mxu0 0
  %4331 = vmatpush2.bf16.msra.mxu0 %v4269
  %4332 = vmatprep.mubr.bf16.mxu0 %v4141
  %4333 = vmatmul.mubr.bf16.gmra.mxu0 %v4140
  %v4334 = vpop.f32.mrf.mxu0
  %v4335 = vadd.f32 0.0, %v4334
  %v4336 = vpop.f32.mrf.mxu0
  %v4337 = vpop.f32.mrf.mxu0
  %v4338 = vadd.f32 0.0, %v4337
  %v4339 = vpop.f32.mrf.mxu0
  %4340 = vmatprep.mubr.bf16.mxu0 %v4143
  %4341 = vmatmul.mubr.bf16.gmra.mxu0 %v4142
  %v4342 = vpop.f32.mrf.mxu0
  %v4343 = vadd.f32 0.0, %v4342
  %v4344 = vpop.f32.mrf.mxu0
  %v4345 = vpop.f32.mrf.mxu0
  %v4346 = vadd.f32 0.0, %v4345
  %v4347 = vpop.f32.mrf.mxu0
  %4348 = vmatprep.mubr.bf16.mxu0 %v4145
  %4349 = vmatmul.mubr.bf16.gmra.mxu0 %v4144
  %v4350 = vpop.f32.mrf.mxu0
  %v4351 = vadd.f32 0.0, %v4350
  %v4352 = vpop.f32.mrf.mxu0
  %v4353 = vpop.f32.mrf.mxu0
  %v4354 = vadd.f32 0.0, %v4353
  %v4355 = vpop.f32.mrf.mxu0
  %4356 = vmatprep.mubr.bf16.mxu0 %v4147
  %4357 = vmatmul.mubr.bf16.gmra.mxu0 %v4146
  %v4358 = vpop.f32.mrf.mxu0
  %v4359 = vadd.f32 0.0, %v4358
  %v4360 = vpop.f32.mrf.mxu0
  %v4361 = vpop.f32.mrf.mxu0
  %v4362 = vadd.f32 0.0, %v4361
  %v4363 = vpop.f32.mrf.mxu0
  %4364 = vmatprep.mubr.bf16.mxu0 %v4149
  %4365 = vmatmul.mubr.bf16.gmra.mxu0 %v4148
  %v4366 = vpop.f32.mrf.mxu0
  %v4367 = vadd.f32 0.0, %v4366
  %v4368 = vpop.f32.mrf.mxu0
  %v4369 = vpop.f32.mrf.mxu0
  %v4370 = vadd.f32 0.0, %v4369
  %v4371 = vpop.f32.mrf.mxu0
  %4372 = vmatprep.mubr.bf16.mxu0 %v4151
  %4373 = vmatmul.mubr.bf16.gmra.mxu0 %v4150
  %v4374 = vpop.f32.mrf.mxu0
  %v4375 = vadd.f32 0.0, %v4374
  %v4376 = vpop.f32.mrf.mxu0
  %v4377 = vpop.f32.mrf.mxu0
  %v4378 = vadd.f32 0.0, %v4377
  %v4379 = vpop.f32.mrf.mxu0
  %4380 = vmatprep.mubr.bf16.mxu0 %v4153
  %4381 = vmatmul.mubr.bf16.gmra.mxu0 %v4152
  %v4382 = vpop.f32.mrf.mxu0
  %v4383 = vadd.f32 0.0, %v4382
  %v4384 = vpop.f32.mrf.mxu0
  %v4385 = vpop.f32.mrf.mxu0
  %v4386 = vadd.f32 0.0, %v4385
  %v4387 = vpop.f32.mrf.mxu0
  %4388 = vmatprep.mubr.bf16.mxu0 %v4155
  %4389 = vmatmul.mubr.bf16.gmra.mxu0 %v4154
  %v4390 = vpop.f32.mrf.mxu0
  %v4391 = vadd.f32 0.0, %v4390
  %v4392 = vpop.f32.mrf.mxu0
  %v4393 = vpop.f32.mrf.mxu0
  %v4394 = vadd.f32 0.0, %v4393
  %v4395 = vpop.f32.mrf.mxu0
  %4396 = vmatprep.mubr.bf16.mxu0 %v4157
  %4397 = vmatmul.mubr.bf16.gmra.mxu0 %v4156
  %v4398 = vpop.f32.mrf.mxu0
  %v4399 = vadd.f32 0.0, %v4398
  %v4400 = vpop.f32.mrf.mxu0
  %v4401 = vpop.f32.mrf.mxu0
  %v4402 = vadd.f32 0.0, %v4401
  %v4403 = vpop.f32.mrf.mxu0
  %4404 = vmatprep.mubr.bf16.mxu0 %v4159
  %4405 = vmatmul.mubr.bf16.gmra.mxu0 %v4158
  %v4406 = vpop.f32.mrf.mxu0
  %v4407 = vadd.f32 0.0, %v4406
  %v4408 = vpop.f32.mrf.mxu0
  %v4409 = vpop.f32.mrf.mxu0
  %v4410 = vadd.f32 0.0, %v4409
  %v4411 = vpop.f32.mrf.mxu0
  %4412 = vmatprep.mubr.bf16.mxu0 %v4161
  %4413 = vmatmul.mubr.bf16.gmra.mxu0 %v4160
  %v4414 = vpop.f32.mrf.mxu0
  %v4415 = vadd.f32 0.0, %v4414
  %v4416 = vpop.f32.mrf.mxu0
  %v4417 = vpop.f32.mrf.mxu0
  %v4418 = vadd.f32 0.0, %v4417
  %v4419 = vpop.f32.mrf.mxu0
  %4420 = vmatprep.mubr.bf16.mxu0 %v4163
  %4421 = vmatmul.mubr.bf16.gmra.mxu0 %v4162
  %v4422 = vpop.f32.mrf.mxu0
  %v4423 = vadd.f32 0.0, %v4422
  %v4424 = vpop.f32.mrf.mxu0
  %v4425 = vpop.f32.mrf.mxu0
  %v4426 = vadd.f32 0.0, %v4425
  %v4427 = vpop.f32.mrf.mxu0
  %4428 = vmatprep.mubr.bf16.mxu0 %v4165
  %4429 = vmatmul.mubr.bf16.gmra.mxu0 %v4164
  %v4430 = vpop.f32.mrf.mxu0
  %v4431 = vadd.f32 0.0, %v4430
  %v4432 = vpop.f32.mrf.mxu0
  %v4433 = vpop.f32.mrf.mxu0
  %v4434 = vadd.f32 0.0, %v4433
  %v4435 = vpop.f32.mrf.mxu0
  %4436 = vmatprep.mubr.bf16.mxu0 %v4167
  %4437 = vmatmul.mubr.bf16.gmra.mxu0 %v4166
  %v4438 = vpop.f32.mrf.mxu0
  %v4439 = vadd.f32 0.0, %v4438
  %v4440 = vpop.f32.mrf.mxu0
  %v4441 = vpop.f32.mrf.mxu0
  %v4442 = vadd.f32 0.0, %v4441
  %v4443 = vpop.f32.mrf.mxu0
  %4444 = vmatprep.mubr.bf16.mxu0 %v4169
  %4445 = vmatmul.mubr.bf16.gmra.mxu0 %v4168
  %v4446 = vpop.f32.mrf.mxu0
  %v4447 = vadd.f32 0.0, %v4446
  %v4448 = vpop.f32.mrf.mxu0
  %v4449 = vpop.f32.mrf.mxu0
  %v4450 = vadd.f32 0.0, %v4449
  %v4451 = vpop.f32.mrf.mxu0
  %4452 = vmatprep.mubr.bf16.mxu0 %v4171
  %4453 = vmatmul.mubr.bf16.gmra.mxu0 %v4170
  %v4454 = vpop.f32.mrf.mxu0
  %v4455 = vadd.f32 0.0, %v4454
  %v4456 = vpop.f32.mrf.mxu0
  %v4457 = vpop.f32.mrf.mxu0
  %v4458 = vadd.f32 0.0, %v4457
  %v4459 = vpop.f32.mrf.mxu0
  %4460 = vdwg.mxu0
  %v4461 = vadd.f32 %v4108, %v4335
  %v4462 = vadd.f32 %v4109, %v4338
  %v4463 = vadd.f32 %v4110, %v4343
  %v4464 = vadd.f32 %v4111, %v4346
  %v4465 = vadd.f32 %v4112, %v4351
  %v4466 = vadd.f32 %v4113, %v4354
  %v4467 = vadd.f32 %v4114, %v4359
  %v4468 = vadd.f32 %v4115, %v4362
  %v4469 = vadd.f32 %v4116, %v4367
  %v4470 = vadd.f32 %v4117, %v4370
  %v4471 = vadd.f32 %v4118, %v4375
  %v4472 = vadd.f32 %v4119, %v4378
  %v4473 = vadd.f32 %v4120, %v4383
  %v4474 = vadd.f32 %v4121, %v4386
  %v4475 = vadd.f32 %v4122, %v4391
  %v4476 = vadd.f32 %v4123, %v4394
  %v4477 = vadd.f32 %v4124, %v4399
  %v4478 = vadd.f32 %v4125, %v4402
  %v4479 = vadd.f32 %v4126, %v4407
  %v4480 = vadd.f32 %v4127, %v4410
  %v4481 = vadd.f32 %v4128, %v4415
  %v4482 = vadd.f32 %v4129, %v4418
  %v4483 = vadd.f32 %v4130, %v4423
  %v4484 = vadd.f32 %v4131, %v4426
  %v4485 = vadd.f32 %v4132, %v4431
  %v4486 = vadd.f32 %v4133, %v4434
  %v4487 = vadd.f32 %v4134, %v4439
  %v4488 = vadd.f32 %v4135, %v4442
  %v4489 = vadd.f32 %v4136, %v4447
  %v4490 = vadd.f32 %v4137, %v4450
  %v4491 = vadd.f32 %v4138, %v4455
  %v4492 = vadd.f32 %v4139, %v4458
  %4493 = vst.msk [vmem:[%s3915] sm:$0xff] %vm740, %v4461
  %4494 = vst.msk [vmem:[%s3915 + $0x8] sm:$0xff] %vm740, %v4462
  %4495 = vst.msk [vmem:[%s3915 + $0x10] sm:$0xff] %vm740, %v4463
  %4496 = vst.msk [vmem:[%s3915 + $0x18] sm:$0xff] %vm740, %v4464
  %4497 = vst.msk [vmem:[%s3915 + $0x20] sm:$0xff] %vm740, %v4465
  %4498 = vst.msk [vmem:[%s3915 + $0x28] sm:$0xff] %vm740, %v4466
  %4499 = vst.msk [vmem:[%s3915 + $0x30] sm:$0xff] %vm740, %v4467
  %4500 = vst.msk [vmem:[%s3915 + $0x38] sm:$0xff] %vm740, %v4468
  %4501 = vst.msk [vmem:[%s3915 + $0x40] sm:$0xff] %vm740, %v4469
  %4502 = vst.msk [vmem:[%s3915 + $0x48] sm:$0xff] %vm740, %v4470
  %4503 = vst.msk [vmem:[%s3915 + $0x50] sm:$0xff] %vm740, %v4471
  %4504 = vst.msk [vmem:[%s3915 + $0x58] sm:$0xff] %vm740, %v4472
  %4505 = vst.msk [vmem:[%s3915 + $0x60] sm:$0xff] %vm740, %v4473
  %4506 = vst.msk [vmem:[%s3915 + $0x68] sm:$0xff] %vm740, %v4474
  %4507 = vst.msk [vmem:[%s3915 + $0x70] sm:$0xff] %vm740, %v4475
  %4508 = vst.msk [vmem:[%s3915 + $0x78] sm:$0xff] %vm740, %v4476
  %4509 = vst.msk [vmem:[%s3915 + $0x80] sm:$0xff] %vm740, %v4477
  %4510 = vst.msk [vmem:[%s3915 + $0x88] sm:$0xff] %vm740, %v4478
  %4511 = vst.msk [vmem:[%s3915 + $0x90] sm:$0xff] %vm740, %v4479
  %4512 = vst.msk [vmem:[%s3915 + $0x98] sm:$0xff] %vm740, %v4480
  %4513 = vst.msk [vmem:[%s3915 + $0xa0] sm:$0xff] %vm740, %v4481
  %4514 = vst.msk [vmem:[%s3915 + $0xa8] sm:$0xff] %vm740, %v4482
  %4515 = vst.msk [vmem:[%s3915 + $0xb0] sm:$0xff] %vm740, %v4483
  %4516 = vst.msk [vmem:[%s3915 + $0xb8] sm:$0xff] %vm740, %v4484
  %4517 = vst.msk [vmem:[%s3915 + $0xc0] sm:$0xff] %vm740, %v4485
  %4518 = vst.msk [vmem:[%s3915 + $0xc8] sm:$0xff] %vm740, %v4486
  %4519 = vst.msk [vmem:[%s3915 + $0xd0] sm:$0xff] %vm740, %v4487
  %4520 = vst.msk [vmem:[%s3915 + $0xd8] sm:$0xff] %vm740, %v4488
  %4521 = vst.msk [vmem:[%s3915 + $0xe0] sm:$0xff] %vm740, %v4489
  %4522 = vst.msk [vmem:[%s3915 + $0xe8] sm:$0xff] %vm740, %v4490
  %4523 = vst.msk [vmem:[%s3915 + $0xf0] sm:$0xff] %vm740, %v4491
  %4524 = vst.msk [vmem:[%s3915 + $0xf8] sm:$0xff] %vm740, %v4492
  %4525 = vst.msk [vmem:[%s3081] sm:$0xff] %vm1830, %v3210
  %4526 = vst.msk [vmem:[%s3081 + $0x8] sm:$0xff] %vm1830, %v3211
  %4527 = vst.msk [vmem:[%s3081 + $0x10] sm:$0xff] %vm1830, %v3212
  %4528 = vst.msk [vmem:[%s3081 + $0x18] sm:$0xff] %vm1830, %v3213
  %4529 = vst.msk [vmem:[%s3081 + $0x20] sm:$0xff] %vm1830, %v3214
  %4530 = vst.msk [vmem:[%s3081 + $0x28] sm:$0xff] %vm1830, %v3215
  %4531 = vst.msk [vmem:[%s3081 + $0x30] sm:$0xff] %vm1830, %v3216
  %4532 = vst.msk [vmem:[%s3081 + $0x38] sm:$0xff] %vm1830, %v3217
  %4533 = vst.msk [vmem:[%s3081 + $0x40] sm:$0xff] %vm1830, %v3218
  %4534 = vst.msk [vmem:[%s3081 + $0x48] sm:$0xff] %vm1830, %v3219
  %4535 = vst.msk [vmem:[%s3081 + $0x50] sm:$0xff] %vm1830, %v3220
  %4536 = vst.msk [vmem:[%s3081 + $0x58] sm:$0xff] %vm1830, %v3221
  %4537 = vst.msk [vmem:[%s3081 + $0x60] sm:$0xff] %vm1830, %v3222
  %4538 = vst.msk [vmem:[%s3081 + $0x68] sm:$0xff] %vm1830, %v3223
  %4539 = vst.msk [vmem:[%s3081 + $0x70] sm:$0xff] %vm1830, %v3224
  %4540 = vst.msk [vmem:[%s3081 + $0x78] sm:$0xff] %vm1830, %v3225
  %4541 = vst.msk [vmem:[%s3081 + $0x80] sm:$0xff] %vm1830, %v3226
  %4542 = vst.msk [vmem:[%s3081 + $0x88] sm:$0xff] %vm1830, %v3227
  %4543 = vst.msk [vmem:[%s3081 + $0x90] sm:$0xff] %vm1830, %v3228
  %4544 = vst.msk [vmem:[%s3081 + $0x98] sm:$0xff] %vm1830, %v3229
  %4545 = vst.msk [vmem:[%s3081 + $0xa0] sm:$0xff] %vm1830, %v3230
  %4546 = vst.msk [vmem:[%s3081 + $0xa8] sm:$0xff] %vm1830, %v3231
  %4547 = vst.msk [vmem:[%s3081 + $0xb0] sm:$0xff] %vm1830, %v3232
  %4548 = vst.msk [vmem:[%s3081 + $0xb8] sm:$0xff] %vm1830, %v3233
  %4549 = vst.msk [vmem:[%s3081 + $0xc0] sm:$0xff] %vm1830, %v3234
  %4550 = vst.msk [vmem:[%s3081 + $0xc8] sm:$0xff] %vm1830, %v3235
  %4551 = vst.msk [vmem:[%s3081 + $0xd0] sm:$0xff] %vm1830, %v3236
  %4552 = vst.msk [vmem:[%s3081 + $0xd8] sm:$0xff] %vm1830, %v3237
  %4553 = vst.msk [vmem:[%s3081 + $0xe0] sm:$0xff] %vm1830, %v3238
  %4554 = vst.msk [vmem:[%s3081 + $0xe8] sm:$0xff] %vm1830, %v3239
  %4555 = vst.msk [vmem:[%s3081 + $0xf0] sm:$0xff] %vm1830, %v3240
  %4556 = vst.msk [vmem:[%s3081 + $0xf8] sm:$0xff] %vm1830, %v3241
  // Predicated region
  $region26: #{flash_mha_forward.4} parent=0 // pred_check
    %p4557 = pneg %p21
  $region27: #{flash_mha_forward.4} parent=0 // pred_check_branch
    %4559 = sbr.rel (%p4557) target = $region29
  $region28: #{flash_mha_forward.4} parent=0 // pred_region
    %v4560 = vld [vmem:[#allocation3] sm:$0xff]
    %v4561 = vld [vmem:[#allocation3 + $0x8] sm:$0xff]
    %v4562 = vld [vmem:[#allocation3 + $0x10] sm:$0xff]
    %v4563 = vld [vmem:[#allocation3 + $0x18] sm:$0xff]
    %v4564 = vld [vmem:[#allocation3 + $0x20] sm:$0xff]
    %v4565 = vld [vmem:[#allocation3 + $0x28] sm:$0xff]
    %v4566 = vld [vmem:[#allocation3 + $0x30] sm:$0xff]
    %v4567 = vld [vmem:[#allocation3 + $0x38] sm:$0xff]
    %v4568 = vld [vmem:[#allocation3 + $0x40] sm:$0xff]
    %v4569 = vld [vmem:[#allocation3 + $0x48] sm:$0xff]
    %v4570 = vld [vmem:[#allocation3 + $0x50] sm:$0xff]
    %v4571 = vld [vmem:[#allocation3 + $0x58] sm:$0xff]
    %v4572 = vld [vmem:[#allocation3 + $0x60] sm:$0xff]
    %v4573 = vld [vmem:[#allocation3 + $0x68] sm:$0xff]
    %v4574 = vld [vmem:[#allocation3 + $0x70] sm:$0xff]
    %v4575 = vld [vmem:[#allocation3 + $0x78] sm:$0xff]
    %v4576 = vld [vmem:[#allocation3 + $0x80] sm:$0xff]
    %v4577 = vld [vmem:[#allocation3 + $0x88] sm:$0xff]
    %v4578 = vld [vmem:[#allocation3 + $0x90] sm:$0xff]
    %v4579 = vld [vmem:[#allocation3 + $0x98] sm:$0xff]
    %v4580 = vld [vmem:[#allocation3 + $0xa0] sm:$0xff]
    %v4581 = vld [vmem:[#allocation3 + $0xa8] sm:$0xff]
    %v4582 = vld [vmem:[#allocation3 + $0xb0] sm:$0xff]
    %v4583 = vld [vmem:[#allocation3 + $0xb8] sm:$0xff]
    %v4584 = vld [vmem:[#allocation3 + $0xc0] sm:$0xff]
    %v4585 = vld [vmem:[#allocation3 + $0xc8] sm:$0xff]
    %v4586 = vld [vmem:[#allocation3 + $0xd0] sm:$0xff]
    %v4587 = vld [vmem:[#allocation3 + $0xd8] sm:$0xff]
    %v4588 = vld [vmem:[#allocation3 + $0xe0] sm:$0xff]
    %v4589 = vld [vmem:[#allocation3 + $0xe8] sm:$0xff]
    %v4590 = vld [vmem:[#allocation3 + $0xf0] sm:$0xff]
    %v4591 = vld [vmem:[#allocation3 + $0xf8] sm:$0xff]
    %v4592 = vrcp.pop %v4560
    %v4593 = vrcp.pop %v4561
    %v4594 = vrcp.pop %v4562
    %v4595 = vrcp.pop %v4563
    %v4596 = vrcp.pop %v4564
    %v4597 = vrcp.pop %v4565
    %v4598 = vrcp.pop %v4566
    %v4599 = vrcp.pop %v4567
    %v4600 = vrcp.pop %v4568
    %v4601 = vrcp.pop %v4569
    %v4602 = vrcp.pop %v4570
    %v4603 = vrcp.pop %v4571
    %v4604 = vrcp.pop %v4572
    %v4605 = vrcp.pop %v4573
    %v4606 = vrcp.pop %v4574
    %v4607 = vrcp.pop %v4575
    %v4608 = vrcp.pop %v4576
    %v4609 = vrcp.pop %v4577
    %v4610 = vrcp.pop %v4578
    %v4611 = vrcp.pop %v4579
    %v4612 = vrcp.pop %v4580
    %v4613 = vrcp.pop %v4581
    %v4614 = vrcp.pop %v4582
    %v4615 = vrcp.pop %v4583
    %v4616 = vrcp.pop %v4584
    %v4617 = vrcp.pop %v4585
    %v4618 = vrcp.pop %v4586
    %v4619 = vrcp.pop %v4587
    %v4620 = vrcp.pop %v4588
    %v4621 = vrcp.pop %v4589
    %v4622 = vrcp.pop %v4590
    %v4623 = vrcp.pop %v4591
    %v4624 = vld [vmem:[#allocation4] sm:$0xff]
    %v4625 = vld [vmem:[#allocation4 + $0x8] sm:$0xff]
    %v4626 = vld [vmem:[#allocation4 + $0x10] sm:$0xff]
    %v4627 = vld [vmem:[#allocation4 + $0x18] sm:$0xff]
    %v4628 = vld [vmem:[#allocation4 + $0x20] sm:$0xff]
    %v4629 = vld [vmem:[#allocation4 + $0x28] sm:$0xff]
    %v4630 = vld [vmem:[#allocation4 + $0x30] sm:$0xff]
    %v4631 = vld [vmem:[#allocation4 + $0x38] sm:$0xff]
    %v4632 = vld [vmem:[#allocation4 + $0x40] sm:$0xff]
    %v4633 = vld [vmem:[#allocation4 + $0x48] sm:$0xff]
    %v4634 = vld [vmem:[#allocation4 + $0x50] sm:$0xff]
    %v4635 = vld [vmem:[#allocation4 + $0x58] sm:$0xff]
    %v4636 = vld [vmem:[#allocation4 + $0x60] sm:$0xff]
    %v4637 = vld [vmem:[#allocation4 + $0x68] sm:$0xff]
    %v4638 = vld [vmem:[#allocation4 + $0x70] sm:$0xff]
    %v4639 = vld [vmem:[#allocation4 + $0x78] sm:$0xff]
    %v4640 = vld [vmem:[#allocation4 + $0x80] sm:$0xff]
    %v4641 = vld [vmem:[#allocation4 + $0x88] sm:$0xff]
    %v4642 = vld [vmem:[#allocation4 + $0x90] sm:$0xff]
    %v4643 = vld [vmem:[#allocation4 + $0x98] sm:$0xff]
    %v4644 = vld [vmem:[#allocation4 + $0xa0] sm:$0xff]
    %v4645 = vld [vmem:[#allocation4 + $0xa8] sm:$0xff]
    %v4646 = vld [vmem:[#allocation4 + $0xb0] sm:$0xff]
    %v4647 = vld [vmem:[#allocation4 + $0xb8] sm:$0xff]
    %v4648 = vld [vmem:[#allocation4 + $0xc0] sm:$0xff]
    %v4649 = vld [vmem:[#allocation4 + $0xc8] sm:$0xff]
    %v4650 = vld [vmem:[#allocation4 + $0xd0] sm:$0xff]
    %v4651 = vld [vmem:[#allocation4 + $0xd8] sm:$0xff]
    %v4652 = vld [vmem:[#allocation4 + $0xe0] sm:$0xff]
    %v4653 = vld [vmem:[#allocation4 + $0xe8] sm:$0xff]
    %v4654 = vld [vmem:[#allocation4 + $0xf0] sm:$0xff]
    %v4655 = vld [vmem:[#allocation4 + $0xf8] sm:$0xff]
    %4657 = vset.pattern.permute.xlu0 0
    %4658 = vperm.xlu0 %4657, %v4592
    %v4659 = vpop.permute.xlu0 %4658
    %4662 = vset.pattern.permute.xlu0 0
    %4663 = vperm.xlu0 %4662, %v4593
    %v4664 = vpop.permute.xlu0 %4663
    %4667 = vset.pattern.permute.xlu0 0
    %4668 = vperm.xlu0 %4667, %v4594
    %v4669 = vpop.permute.xlu0 %4668
    %4672 = vset.pattern.permute.xlu0 0
    %4673 = vperm.xlu0 %4672, %v4595
    %v4674 = vpop.permute.xlu0 %4673
    %4677 = vset.pattern.permute.xlu0 0
    %4678 = vperm.xlu0 %4677, %v4596
    %v4679 = vpop.permute.xlu0 %4678
    %4682 = vset.pattern.permute.xlu0 0
    %4683 = vperm.xlu0 %4682, %v4597
    %v4684 = vpop.permute.xlu0 %4683
    %4687 = vset.pattern.permute.xlu0 0
    %4688 = vperm.xlu0 %4687, %v4598
    %v4689 = vpop.permute.xlu0 %4688
    %4692 = vset.pattern.permute.xlu0 0
    %4693 = vperm.xlu0 %4692, %v4599
    %v4694 = vpop.permute.xlu0 %4693
    %4697 = vset.pattern.permute.xlu0 0
    %4698 = vperm.xlu0 %4697, %v4600
    %v4699 = vpop.permute.xlu0 %4698
    %4702 = vset.pattern.permute.xlu0 0
    %4703 = vperm.xlu0 %4702, %v4601
    %v4704 = vpop.permute.xlu0 %4703
    %4707 = vset.pattern.permute.xlu0 0
    %4708 = vperm.xlu0 %4707, %v4602
    %v4709 = vpop.permute.xlu0 %4708
    %4712 = vset.pattern.permute.xlu0 0
    %4713 = vperm.xlu0 %4712, %v4603
    %v4714 = vpop.permute.xlu0 %4713
    %4717 = vset.pattern.permute.xlu0 0
    %4718 = vperm.xlu0 %4717, %v4604
    %v4719 = vpop.permute.xlu0 %4718
    %4722 = vset.pattern.permute.xlu0 0
    %4723 = vperm.xlu0 %4722, %v4605
    %v4724 = vpop.permute.xlu0 %4723
    %4727 = vset.pattern.permute.xlu0 0
    %4728 = vperm.xlu0 %4727, %v4606
    %v4729 = vpop.permute.xlu0 %4728
    %4732 = vset.pattern.permute.xlu0 0
    %4733 = vperm.xlu0 %4732, %v4607
    %v4734 = vpop.permute.xlu0 %4733
    %4737 = vset.pattern.permute.xlu0 0
    %4738 = vperm.xlu0 %4737, %v4608
    %v4739 = vpop.permute.xlu0 %4738
    %4742 = vset.pattern.permute.xlu0 0
    %4743 = vperm.xlu0 %4742, %v4609
    %v4744 = vpop.permute.xlu0 %4743
    %4747 = vset.pattern.permute.xlu0 0
    %4748 = vperm.xlu0 %4747, %v4610
    %v4749 = vpop.permute.xlu0 %4748
    %4752 = vset.pattern.permute.xlu0 0
    %4753 = vperm.xlu0 %4752, %v4611
    %v4754 = vpop.permute.xlu0 %4753
    %4757 = vset.pattern.permute.xlu0 0
    %4758 = vperm.xlu0 %4757, %v4612
    %v4759 = vpop.permute.xlu0 %4758
    %4762 = vset.pattern.permute.xlu0 0
    %4763 = vperm.xlu0 %4762, %v4613
    %v4764 = vpop.permute.xlu0 %4763
    %4767 = vset.pattern.permute.xlu0 0
    %4768 = vperm.xlu0 %4767, %v4614
    %v4769 = vpop.permute.xlu0 %4768
    %4772 = vset.pattern.permute.xlu0 0
    %4773 = vperm.xlu0 %4772, %v4615
    %v4774 = vpop.permute.xlu0 %4773
    %4777 = vset.pattern.permute.xlu0 0
    %4778 = vperm.xlu0 %4777, %v4616
    %v4779 = vpop.permute.xlu0 %4778
    %4782 = vset.pattern.permute.xlu0 0
    %4783 = vperm.xlu0 %4782, %v4617
    %v4784 = vpop.permute.xlu0 %4783
    %4787 = vset.pattern.permute.xlu0 0
    %4788 = vperm.xlu0 %4787, %v4618
    %v4789 = vpop.permute.xlu0 %4788
    %4792 = vset.pattern.permute.xlu0 0
    %4793 = vperm.xlu0 %4792, %v4619
    %v4794 = vpop.permute.xlu0 %4793
    %4797 = vset.pattern.permute.xlu0 0
    %4798 = vperm.xlu0 %4797, %v4620
    %v4799 = vpop.permute.xlu0 %4798
    %4802 = vset.pattern.permute.xlu0 0
    %4803 = vperm.xlu0 %4802, %v4621
    %v4804 = vpop.permute.xlu0 %4803
    %4807 = vset.pattern.permute.xlu0 0
    %4808 = vperm.xlu0 %4807, %v4622
    %v4809 = vpop.permute.xlu0 %4808
    %4812 = vset.pattern.permute.xlu0 0
    %4813 = vperm.xlu0 %4812, %v4623
    %v4814 = vpop.permute.xlu0 %4813
    %v4816 = vmul.f32 %v4624, %v4659
    %v4817 = vmul.f32 %v4625, %v4664
    %v4818 = vmul.f32 %v4626, %v4669
    %v4819 = vmul.f32 %v4627, %v4674
    %v4820 = vmul.f32 %v4628, %v4679
    %v4821 = vmul.f32 %v4629, %v4684
    %v4822 = vmul.f32 %v4630, %v4689
    %v4823 = vmul.f32 %v4631, %v4694
    %v4824 = vmul.f32 %v4632, %v4699
    %v4825 = vmul.f32 %v4633, %v4704
    %v4826 = vmul.f32 %v4634, %v4709
    %v4827 = vmul.f32 %v4635, %v4714
    %v4828 = vmul.f32 %v4636, %v4719
    %v4829 = vmul.f32 %v4637, %v4724
    %v4830 = vmul.f32 %v4638, %v4729
    %v4831 = vmul.f32 %v4639, %v4734
    %v4832 = vmul.f32 %v4640, %v4739
    %v4833 = vmul.f32 %v4641, %v4744
    %v4834 = vmul.f32 %v4642, %v4749
    %v4835 = vmul.f32 %v4643, %v4754
    %v4836 = vmul.f32 %v4644, %v4759
    %v4837 = vmul.f32 %v4645, %v4764
    %v4838 = vmul.f32 %v4646, %v4769
    %v4839 = vmul.f32 %v4647, %v4774
    %v4840 = vmul.f32 %v4648, %v4779
    %v4841 = vmul.f32 %v4649, %v4784
    %v4842 = vmul.f32 %v4650, %v4789
    %v4843 = vmul.f32 %v4651, %v4794
    %v4844 = vmul.f32 %v4652, %v4799
    %v4845 = vmul.f32 %v4653, %v4804
    %v4846 = vmul.f32 %v4654, %v4809
    %v4847 = vmul.f32 %v4655, %v4814
    %v4848 = vpack.c.bf16 %v4817, %v4816
    %v4849 = vpack.c.bf16 %v4819, %v4818
    %v4850 = vpack.c.bf16 %v4821, %v4820
    %v4851 = vpack.c.bf16 %v4823, %v4822
    %v4852 = vpack.c.bf16 %v4825, %v4824
    %v4853 = vpack.c.bf16 %v4827, %v4826
    %v4854 = vpack.c.bf16 %v4829, %v4828
    %v4855 = vpack.c.bf16 %v4831, %v4830
    %v4856 = vpack.c.bf16 %v4833, %v4832
    %v4857 = vpack.c.bf16 %v4835, %v4834
    %v4858 = vpack.c.bf16 %v4837, %v4836
    %v4859 = vpack.c.bf16 %v4839, %v4838
    %v4860 = vpack.c.bf16 %v4841, %v4840
    %v4861 = vpack.c.bf16 %v4843, %v4842
    %v4862 = vpack.c.bf16 %v4845, %v4844
    %v4863 = vpack.c.bf16 %v4847, %v4846
    %v4880 = vunpack.c.l.b16 %v4848
    %v4881 = vunpack.c.h.b16 %v4848
    %v4882 = vunpack.c.l.b16 %v4849
    %v4883 = vunpack.c.h.b16 %v4849
    %v4884 = vunpack.c.l.b16 %v4850
    %v4885 = vunpack.c.h.b16 %v4850
    %v4886 = vunpack.c.l.b16 %v4851
    %v4887 = vunpack.c.h.b16 %v4851
    %v4888 = vunpack.c.l.b16 %v4852
    %v4889 = vunpack.c.h.b16 %v4852
    %v4890 = vunpack.c.l.b16 %v4853
    %v4891 = vunpack.c.h.b16 %v4853
    %v4892 = vunpack.c.l.b16 %v4854
    %v4893 = vunpack.c.h.b16 %v4854
    %v4894 = vunpack.c.l.b16 %v4855
    %v4895 = vunpack.c.h.b16 %v4855
    %v4896 = vunpack.c.l.b16 %v4856
    %v4897 = vunpack.c.h.b16 %v4856
    %v4898 = vunpack.c.l.b16 %v4857
    %v4899 = vunpack.c.h.b16 %v4857
    %v4900 = vunpack.c.l.b16 %v4858
    %v4901 = vunpack.c.h.b16 %v4858
    %v4902 = vunpack.c.l.b16 %v4859
    %v4903 = vunpack.c.h.b16 %v4859
    %v4904 = vunpack.c.l.b16 %v4860
    %v4905 = vunpack.c.h.b16 %v4860
    %v4906 = vunpack.c.l.b16 %v4861
    %v4907 = vunpack.c.h.b16 %v4861
    %v4908 = vunpack.c.l.b16 %v4862
    %v4909 = vunpack.c.h.b16 %v4862
    %v4910 = vunpack.c.l.b16 %v4863
    %v4911 = vunpack.c.h.b16 %v4863
    %v4912 = vpack.c.b16 %v4880, %v4880
    %v4913 = vpack.c.b16 %v4881, %v4881
    %v4914 = vpack.c.b16 %v4882, %v4882
    %v4915 = vpack.c.b16 %v4883, %v4883
    %v4916 = vpack.c.b16 %v4884, %v4884
    %v4917 = vpack.c.b16 %v4885, %v4885
    %v4918 = vpack.c.b16 %v4886, %v4886
    %v4919 = vpack.c.b16 %v4887, %v4887
    %v4920 = vpack.c.b16 %v4888, %v4888
    %v4921 = vpack.c.b16 %v4889, %v4889
    %v4922 = vpack.c.b16 %v4890, %v4890
    %v4923 = vpack.c.b16 %v4891, %v4891
    %v4924 = vpack.c.b16 %v4892, %v4892
    %v4925 = vpack.c.b16 %v4893, %v4893
    %v4926 = vpack.c.b16 %v4894, %v4894
    %v4927 = vpack.c.b16 %v4895, %v4895
    %v4928 = vpack.c.b16 %v4896, %v4896
    %v4929 = vpack.c.b16 %v4897, %v4897
    %v4930 = vpack.c.b16 %v4898, %v4898
    %v4931 = vpack.c.b16 %v4899, %v4899
    %v4932 = vpack.c.b16 %v4900, %v4900
    %v4933 = vpack.c.b16 %v4901, %v4901
    %v4934 = vpack.c.b16 %v4902, %v4902
    %v4935 = vpack.c.b16 %v4903, %v4903
    %v4936 = vpack.c.b16 %v4904, %v4904
    %v4937 = vpack.c.b16 %v4905, %v4905
    %v4938 = vpack.c.b16 %v4906, %v4906
    %v4939 = vpack.c.b16 %v4907, %v4907
    %v4940 = vpack.c.b16 %v4908, %v4908
    %v4941 = vpack.c.b16 %v4909, %v4909
    %v4942 = vpack.c.b16 %v4910, %v4910
    %v4943 = vpack.c.b16 %v4911, %v4911
    %vm4976 = vcmask 257024
    %4977 = vst.msk [vmem:[%s5] sm:$0xf] %vm4976, %v4912
    %4978 = vst.msk [vmem:[%s5 + $0x4] sm:$0xf] %vm4976, %v4913
    %4979 = vst.msk [vmem:[%s5 + $0x8] sm:$0xf] %vm4976, %v4914
    %4980 = vst.msk [vmem:[%s5 + $0xc] sm:$0xf] %vm4976, %v4915
    %4981 = vst.msk [vmem:[%s5 + $0x10] sm:$0xf] %vm4976, %v4916
    %4982 = vst.msk [vmem:[%s5 + $0x14] sm:$0xf] %vm4976, %v4917
    %4983 = vst.msk [vmem:[%s5 + $0x18] sm:$0xf] %vm4976, %v4918
    %4984 = vst.msk [vmem:[%s5 + $0x1c] sm:$0xf] %vm4976, %v4919
    %4985 = vst.msk [vmem:[%s5 + $0x20] sm:$0xf] %vm4976, %v4920
    %4986 = vst.msk [vmem:[%s5 + $0x24] sm:$0xf] %vm4976, %v4921
    %4987 = vst.msk [vmem:[%s5 + $0x28] sm:$0xf] %vm4976, %v4922
    %4988 = vst.msk [vmem:[%s5 + $0x2c] sm:$0xf] %vm4976, %v4923
    %4989 = vst.msk [vmem:[%s5 + $0x30] sm:$0xf] %vm4976, %v4924
    %4990 = vst.msk [vmem:[%s5 + $0x34] sm:$0xf] %vm4976, %v4925
    %4991 = vst.msk [vmem:[%s5 + $0x38] sm:$0xf] %vm4976, %v4926
    %4992 = vst.msk [vmem:[%s5 + $0x3c] sm:$0xf] %vm4976, %v4927
    %4993 = vst.msk [vmem:[%s5 + $0x40] sm:$0xf] %vm4976, %v4928
    %4994 = vst.msk [vmem:[%s5 + $0x44] sm:$0xf] %vm4976, %v4929
    %4995 = vst.msk [vmem:[%s5 + $0x48] sm:$0xf] %vm4976, %v4930
    %4996 = vst.msk [vmem:[%s5 + $0x4c] sm:$0xf] %vm4976, %v4931
    %4997 = vst.msk [vmem:[%s5 + $0x50] sm:$0xf] %vm4976, %v4932
    %4998 = vst.msk [vmem:[%s5 + $0x54] sm:$0xf] %vm4976, %v4933
    %4999 = vst.msk [vmem:[%s5 + $0x58] sm:$0xf] %vm4976, %v4934
    %5000 = vst.msk [vmem:[%s5 + $0x5c] sm:$0xf] %vm4976, %v4935
    %5001 = vst.msk [vmem:[%s5 + $0x60] sm:$0xf] %vm4976, %v4936
    %5002 = vst.msk [vmem:[%s5 + $0x64] sm:$0xf] %vm4976, %v4937
    %5003 = vst.msk [vmem:[%s5 + $0x68] sm:$0xf] %vm4976, %v4938
    %5004 = vst.msk [vmem:[%s5 + $0x6c] sm:$0xf] %vm4976, %v4939
    %5005 = vst.msk [vmem:[%s5 + $0x70] sm:$0xf] %vm4976, %v4940
    %5006 = vst.msk [vmem:[%s5 + $0x74] sm:$0xf] %vm4976, %v4941
    %5007 = vst.msk [vmem:[%s5 + $0x78] sm:$0xf] %vm4976, %v4942
    %5008 = vst.msk [vmem:[%s5 + $0x7c] sm:$0xf] %vm4976, %v4943
    %v5009 = vld [vmem:[%s3690] sm:$0xff]
    %v5010 = vld [vmem:[%s3690 + $0x8] sm:$0xff]
    %v5011 = vld [vmem:[%s3690 + $0x10] sm:$0xff]
    %v5012 = vld [vmem:[%s3690 + $0x18] sm:$0xff]
    %v5013 = vld [vmem:[%s3690 + $0x20] sm:$0xff]
    %v5014 = vld [vmem:[%s3690 + $0x28] sm:$0xff]
    %v5015 = vld [vmem:[%s3690 + $0x30] sm:$0xff]
    %v5016 = vld [vmem:[%s3690 + $0x38] sm:$0xff]
    %v5017 = vld [vmem:[%s3690 + $0x40] sm:$0xff]
    %v5018 = vld [vmem:[%s3690 + $0x48] sm:$0xff]
    %v5019 = vld [vmem:[%s3690 + $0x50] sm:$0xff]
    %v5020 = vld [vmem:[%s3690 + $0x58] sm:$0xff]
    %v5021 = vld [vmem:[%s3690 + $0x60] sm:$0xff]
    %v5022 = vld [vmem:[%s3690 + $0x68] sm:$0xff]
    %v5023 = vld [vmem:[%s3690 + $0x70] sm:$0xff]
    %v5024 = vld [vmem:[%s3690 + $0x78] sm:$0xff]
    %v5025 = vld [vmem:[%s3690 + $0x80] sm:$0xff]
    %v5026 = vld [vmem:[%s3690 + $0x88] sm:$0xff]
    %v5027 = vld [vmem:[%s3690 + $0x90] sm:$0xff]
    %v5028 = vld [vmem:[%s3690 + $0x98] sm:$0xff]
    %v5029 = vld [vmem:[%s3690 + $0xa0] sm:$0xff]
    %v5030 = vld [vmem:[%s3690 + $0xa8] sm:$0xff]
    %v5031 = vld [vmem:[%s3690 + $0xb0] sm:$0xff]
    %v5032 = vld [vmem:[%s3690 + $0xb8] sm:$0xff]
    %v5033 = vld [vmem:[%s3690 + $0xc0] sm:$0xff]
    %v5034 = vld [vmem:[%s3690 + $0xc8] sm:$0xff]
    %v5035 = vld [vmem:[%s3690 + $0xd0] sm:$0xff]
    %v5036 = vld [vmem:[%s3690 + $0xd8] sm:$0xff]
    %v5037 = vld [vmem:[%s3690 + $0xe0] sm:$0xff]
    %v5038 = vld [vmem:[%s3690 + $0xe8] sm:$0xff]
    %v5039 = vld [vmem:[%s3690 + $0xf0] sm:$0xff]
    %v5040 = vld [vmem:[%s3690 + $0xf8] sm:$0xff]
    %v5041 = vrcp.pop %v5009
    %v5042 = vrcp.pop %v5010
    %v5043 = vrcp.pop %v5011
    %v5044 = vrcp.pop %v5012
    %v5045 = vrcp.pop %v5013
    %v5046 = vrcp.pop %v5014
    %v5047 = vrcp.pop %v5015
    %v5048 = vrcp.pop %v5016
    %v5049 = vrcp.pop %v5017
    %v5050 = vrcp.pop %v5018
    %v5051 = vrcp.pop %v5019
    %v5052 = vrcp.pop %v5020
    %v5053 = vrcp.pop %v5021
    %v5054 = vrcp.pop %v5022
    %v5055 = vrcp.pop %v5023
    %v5056 = vrcp.pop %v5024
    %v5057 = vrcp.pop %v5025
    %v5058 = vrcp.pop %v5026
    %v5059 = vrcp.pop %v5027
    %v5060 = vrcp.pop %v5028
    %v5061 = vrcp.pop %v5029
    %v5062 = vrcp.pop %v5030
    %v5063 = vrcp.pop %v5031
    %v5064 = vrcp.pop %v5032
    %v5065 = vrcp.pop %v5033
    %v5066 = vrcp.pop %v5034
    %v5067 = vrcp.pop %v5035
    %v5068 = vrcp.pop %v5036
    %v5069 = vrcp.pop %v5037
    %v5070 = vrcp.pop %v5038
    %v5071 = vrcp.pop %v5039
    %v5072 = vrcp.pop %v5040
    %v5073 = vld [vmem:[%s3915] sm:$0xff]
    %v5074 = vld [vmem:[%s3915 + $0x8] sm:$0xff]
    %v5075 = vld [vmem:[%s3915 + $0x10] sm:$0xff]
    %v5076 = vld [vmem:[%s3915 + $0x18] sm:$0xff]
    %v5077 = vld [vmem:[%s3915 + $0x20] sm:$0xff]
    %v5078 = vld [vmem:[%s3915 + $0x28] sm:$0xff]
    %v5079 = vld [vmem:[%s3915 + $0x30] sm:$0xff]
    %v5080 = vld [vmem:[%s3915 + $0x38] sm:$0xff]
    %v5081 = vld [vmem:[%s3915 + $0x40] sm:$0xff]
    %v5082 = vld [vmem:[%s3915 + $0x48] sm:$0xff]
    %v5083 = vld [vmem:[%s3915 + $0x50] sm:$0xff]
    %v5084 = vld [vmem:[%s3915 + $0x58] sm:$0xff]
    %v5085 = vld [vmem:[%s3915 + $0x60] sm:$0xff]
    %v5086 = vld [vmem:[%s3915 + $0x68] sm:$0xff]
    %v5087 = vld [vmem:[%s3915 + $0x70] sm:$0xff]
    %v5088 = vld [vmem:[%s3915 + $0x78] sm:$0xff]
    %v5089 = vld [vmem:[%s3915 + $0x80] sm:$0xff]
    %v5090 = vld [vmem:[%s3915 + $0x88] sm:$0xff]
    %v5091 = vld [vmem:[%s3915 + $0x90] sm:$0xff]
    %v5092 = vld [vmem:[%s3915 + $0x98] sm:$0xff]
    %v5093 = vld [vmem:[%s3915 + $0xa0] sm:$0xff]
    %v5094 = vld [vmem:[%s3915 + $0xa8] sm:$0xff]
    %v5095 = vld [vmem:[%s3915 + $0xb0] sm:$0xff]
    %v5096 = vld [vmem:[%s3915 + $0xb8] sm:$0xff]
    %v5097 = vld [vmem:[%s3915 + $0xc0] sm:$0xff]
    %v5098 = vld [vmem:[%s3915 + $0xc8] sm:$0xff]
    %v5099 = vld [vmem:[%s3915 + $0xd0] sm:$0xff]
    %v5100 = vld [vmem:[%s3915 + $0xd8] sm:$0xff]
    %v5101 = vld [vmem:[%s3915 + $0xe0] sm:$0xff]
    %v5102 = vld [vmem:[%s3915 + $0xe8] sm:$0xff]
    %v5103 = vld [vmem:[%s3915 + $0xf0] sm:$0xff]
    %v5104 = vld [vmem:[%s3915 + $0xf8] sm:$0xff]
    %5106 = vset.pattern.permute.xlu0 0
    %5107 = vperm.xlu0 %5106, %v5041
    %v5108 = vpop.permute.xlu0 %5107
    %5111 = vset.pattern.permute.xlu0 0
    %5112 = vperm.xlu0 %5111, %v5042
    %v5113 = vpop.permute.xlu0 %5112
    %5116 = vset.pattern.permute.xlu0 0
    %5117 = vperm.xlu0 %5116, %v5043
    %v5118 = vpop.permute.xlu0 %5117
    %5121 = vset.pattern.permute.xlu0 0
    %5122 = vperm.xlu0 %5121, %v5044
    %v5123 = vpop.permute.xlu0 %5122
    %5126 = vset.pattern.permute.xlu0 0
    %5127 = vperm.xlu0 %5126, %v5045
    %v5128 = vpop.permute.xlu0 %5127
    %5131 = vset.pattern.permute.xlu0 0
    %5132 = vperm.xlu0 %5131, %v5046
    %v5133 = vpop.permute.xlu0 %5132
    %5136 = vset.pattern.permute.xlu0 0
    %5137 = vperm.xlu0 %5136, %v5047
    %v5138 = vpop.permute.xlu0 %5137
    %5141 = vset.pattern.permute.xlu0 0
    %5142 = vperm.xlu0 %5141, %v5048
    %v5143 = vpop.permute.xlu0 %5142
    %5146 = vset.pattern.permute.xlu0 0
    %5147 = vperm.xlu0 %5146, %v5049
    %v5148 = vpop.permute.xlu0 %5147
    %5151 = vset.pattern.permute.xlu0 0
    %5152 = vperm.xlu0 %5151, %v5050
    %v5153 = vpop.permute.xlu0 %5152
    %5156 = vset.pattern.permute.xlu0 0
    %5157 = vperm.xlu0 %5156, %v5051
    %v5158 = vpop.permute.xlu0 %5157
    %5161 = vset.pattern.permute.xlu0 0
    %5162 = vperm.xlu0 %5161, %v5052
    %v5163 = vpop.permute.xlu0 %5162
    %5166 = vset.pattern.permute.xlu0 0
    %5167 = vperm.xlu0 %5166, %v5053
    %v5168 = vpop.permute.xlu0 %5167
    %5171 = vset.pattern.permute.xlu0 0
    %5172 = vperm.xlu0 %5171, %v5054
    %v5173 = vpop.permute.xlu0 %5172
    %5176 = vset.pattern.permute.xlu0 0
    %5177 = vperm.xlu0 %5176, %v5055
    %v5178 = vpop.permute.xlu0 %5177
    %5181 = vset.pattern.permute.xlu0 0
    %5182 = vperm.xlu0 %5181, %v5056
    %v5183 = vpop.permute.xlu0 %5182
    %5186 = vset.pattern.permute.xlu0 0
    %5187 = vperm.xlu0 %5186, %v5057
    %v5188 = vpop.permute.xlu0 %5187
    %5191 = vset.pattern.permute.xlu0 0
    %5192 = vperm.xlu0 %5191, %v5058
    %v5193 = vpop.permute.xlu0 %5192
    %5196 = vset.pattern.permute.xlu0 0
    %5197 = vperm.xlu0 %5196, %v5059
    %v5198 = vpop.permute.xlu0 %5197
    %5201 = vset.pattern.permute.xlu0 0
    %5202 = vperm.xlu0 %5201, %v5060
    %v5203 = vpop.permute.xlu0 %5202
    %5206 = vset.pattern.permute.xlu0 0
    %5207 = vperm.xlu0 %5206, %v5061
    %v5208 = vpop.permute.xlu0 %5207
    %5211 = vset.pattern.permute.xlu0 0
    %5212 = vperm.xlu0 %5211, %v5062
    %v5213 = vpop.permute.xlu0 %5212
    %5216 = vset.pattern.permute.xlu0 0
    %5217 = vperm.xlu0 %5216, %v5063
    %v5218 = vpop.permute.xlu0 %5217
    %5221 = vset.pattern.permute.xlu0 0
    %5222 = vperm.xlu0 %5221, %v5064
    %v5223 = vpop.permute.xlu0 %5222
    %5226 = vset.pattern.permute.xlu0 0
    %5227 = vperm.xlu0 %5226, %v5065
    %v5228 = vpop.permute.xlu0 %5227
    %5231 = vset.pattern.permute.xlu0 0
    %5232 = vperm.xlu0 %5231, %v5066
    %v5233 = vpop.permute.xlu0 %5232
    %5236 = vset.pattern.permute.xlu0 0
    %5237 = vperm.xlu0 %5236, %v5067
    %v5238 = vpop.permute.xlu0 %5237
    %5241 = vset.pattern.permute.xlu0 0
    %5242 = vperm.xlu0 %5241, %v5068
    %v5243 = vpop.permute.xlu0 %5242
    %5246 = vset.pattern.permute.xlu0 0
    %5247 = vperm.xlu0 %5246, %v5069
    %v5248 = vpop.permute.xlu0 %5247
    %5251 = vset.pattern.permute.xlu0 0
    %5252 = vperm.xlu0 %5251, %v5070
    %v5253 = vpop.permute.xlu0 %5252
    %5256 = vset.pattern.permute.xlu0 0
    %5257 = vperm.xlu0 %5256, %v5071
    %v5258 = vpop.permute.xlu0 %5257
    %5261 = vset.pattern.permute.xlu0 0
    %5262 = vperm.xlu0 %5261, %v5072
    %v5263 = vpop.permute.xlu0 %5262
    %v5265 = vmul.f32 %v5073, %v5108
    %v5266 = vmul.f32 %v5074, %v5113
    %v5267 = vmul.f32 %v5075, %v5118
    %v5268 = vmul.f32 %v5076, %v5123
    %v5269 = vmul.f32 %v5077, %v5128
    %v5270 = vmul.f32 %v5078, %v5133
    %v5271 = vmul.f32 %v5079, %v5138
    %v5272 = vmul.f32 %v5080, %v5143
    %v5273 = vmul.f32 %v5081, %v5148
    %v5274 = vmul.f32 %v5082, %v5153
    %v5275 = vmul.f32 %v5083, %v5158
    %v5276 = vmul.f32 %v5084, %v5163
    %v5277 = vmul.f32 %v5085, %v5168
    %v5278 = vmul.f32 %v5086, %v5173
    %v5279 = vmul.f32 %v5087, %v5178
    %v5280 = vmul.f32 %v5088, %v5183
    %v5281 = vmul.f32 %v5089, %v5188
    %v5282 = vmul.f32 %v5090, %v5193
    %v5283 = vmul.f32 %v5091, %v5198
    %v5284 = vmul.f32 %v5092, %v5203
    %v5285 = vmul.f32 %v5093, %v5208
    %v5286 = vmul.f32 %v5094, %v5213
    %v5287 = vmul.f32 %v5095, %v5218
    %v5288 = vmul.f32 %v5096, %v5223
    %v5289 = vmul.f32 %v5097, %v5228
    %v5290 = vmul.f32 %v5098, %v5233
    %v5291 = vmul.f32 %v5099, %v5238
    %v5292 = vmul.f32 %v5100, %v5243
    %v5293 = vmul.f32 %v5101, %v5248
    %v5294 = vmul.f32 %v5102, %v5253
    %v5295 = vmul.f32 %v5103, %v5258
    %v5296 = vmul.f32 %v5104, %v5263
    %v5297 = vpack.c.bf16 %v5266, %v5265
    %v5298 = vpack.c.bf16 %v5268, %v5267
    %v5299 = vpack.c.bf16 %v5270, %v5269
    %v5300 = vpack.c.bf16 %v5272, %v5271
    %v5301 = vpack.c.bf16 %v5274, %v5273
    %v5302 = vpack.c.bf16 %v5276, %v5275
    %v5303 = vpack.c.bf16 %v5278, %v5277
    %v5304 = vpack.c.bf16 %v5280, %v5279
    %v5305 = vpack.c.bf16 %v5282, %v5281
    %v5306 = vpack.c.bf16 %v5284, %v5283
    %v5307 = vpack.c.bf16 %v5286, %v5285
    %v5308 = vpack.c.bf16 %v5288, %v5287
    %v5309 = vpack.c.bf16 %v5290, %v5289
    %v5310 = vpack.c.bf16 %v5292, %v5291
    %v5311 = vpack.c.bf16 %v5294, %v5293
    %v5312 = vpack.c.bf16 %v5296, %v5295
    %v5329 = vunpack.c.l.b16 %v5297
    %v5330 = vunpack.c.h.b16 %v5297
    %v5331 = vunpack.c.l.b16 %v5298
    %v5332 = vunpack.c.h.b16 %v5298
    %v5333 = vunpack.c.l.b16 %v5299
    %v5334 = vunpack.c.h.b16 %v5299
    %v5335 = vunpack.c.l.b16 %v5300
    %v5336 = vunpack.c.h.b16 %v5300
    %v5337 = vunpack.c.l.b16 %v5301
    %v5338 = vunpack.c.h.b16 %v5301
    %v5339 = vunpack.c.l.b16 %v5302
    %v5340 = vunpack.c.h.b16 %v5302
    %v5341 = vunpack.c.l.b16 %v5303
    %v5342 = vunpack.c.h.b16 %v5303
    %v5343 = vunpack.c.l.b16 %v5304
    %v5344 = vunpack.c.h.b16 %v5304
    %v5345 = vunpack.c.l.b16 %v5305
    %v5346 = vunpack.c.h.b16 %v5305
    %v5347 = vunpack.c.l.b16 %v5306
    %v5348 = vunpack.c.h.b16 %v5306
    %v5349 = vunpack.c.l.b16 %v5307
    %v5350 = vunpack.c.h.b16 %v5307
    %v5351 = vunpack.c.l.b16 %v5308
    %v5352 = vunpack.c.h.b16 %v5308
    %v5353 = vunpack.c.l.b16 %v5309
    %v5354 = vunpack.c.h.b16 %v5309
    %v5355 = vunpack.c.l.b16 %v5310
    %v5356 = vunpack.c.h.b16 %v5310
    %v5357 = vunpack.c.l.b16 %v5311
    %v5358 = vunpack.c.h.b16 %v5311
    %v5359 = vunpack.c.l.b16 %v5312
    %v5360 = vunpack.c.h.b16 %v5312
    %v5361 = vpack.c.b16 %v5329, %v5329
    %v5362 = vpack.c.b16 %v5330, %v5330
    %v5363 = vpack.c.b16 %v5331, %v5331
    %v5364 = vpack.c.b16 %v5332, %v5332
    %v5365 = vpack.c.b16 %v5333, %v5333
    %v5366 = vpack.c.b16 %v5334, %v5334
    %v5367 = vpack.c.b16 %v5335, %v5335
    %v5368 = vpack.c.b16 %v5336, %v5336
    %v5369 = vpack.c.b16 %v5337, %v5337
    %v5370 = vpack.c.b16 %v5338, %v5338
    %v5371 = vpack.c.b16 %v5339, %v5339
    %v5372 = vpack.c.b16 %v5340, %v5340
    %v5373 = vpack.c.b16 %v5341, %v5341
    %v5374 = vpack.c.b16 %v5342, %v5342
    %v5375 = vpack.c.b16 %v5343, %v5343
    %v5376 = vpack.c.b16 %v5344, %v5344
    %v5377 = vpack.c.b16 %v5345, %v5345
    %v5378 = vpack.c.b16 %v5346, %v5346
    %v5379 = vpack.c.b16 %v5347, %v5347
    %v5380 = vpack.c.b16 %v5348, %v5348
    %v5381 = vpack.c.b16 %v5349, %v5349
    %v5382 = vpack.c.b16 %v5350, %v5350
    %v5383 = vpack.c.b16 %v5351, %v5351
    %v5384 = vpack.c.b16 %v5352, %v5352
    %v5385 = vpack.c.b16 %v5353, %v5353
    %v5386 = vpack.c.b16 %v5354, %v5354
    %v5387 = vpack.c.b16 %v5355, %v5355
    %v5388 = vpack.c.b16 %v5356, %v5356
    %v5389 = vpack.c.b16 %v5357, %v5357
    %v5390 = vpack.c.b16 %v5358, %v5358
    %v5391 = vpack.c.b16 %v5359, %v5359
    %v5392 = vpack.c.b16 %v5360, %v5360
    %5393 = vrot.lane.b32.xlu0 %v5361, 32
    %v5394 = vpop.permute.xlu0 %5393
    %5395 = vrot.lane.b32.xlu0 %v5362, 32
    %v5396 = vpop.permute.xlu0 %5395
    %5397 = vrot.lane.b32.xlu0 %v5363, 32
    %v5398 = vpop.permute.xlu0 %5397
    %5399 = vrot.lane.b32.xlu0 %v5364, 32
    %v5400 = vpop.permute.xlu0 %5399
    %5401 = vrot.lane.b32.xlu0 %v5365, 32
    %v5402 = vpop.permute.xlu0 %5401
    %5403 = vrot.lane.b32.xlu0 %v5366, 32
    %v5404 = vpop.permute.xlu0 %5403
    %5405 = vrot.lane.b32.xlu0 %v5367, 32
    %v5406 = vpop.permute.xlu0 %5405
    %5407 = vrot.lane.b32.xlu0 %v5368, 32
    %v5408 = vpop.permute.xlu0 %5407
    %5409 = vrot.lane.b32.xlu0 %v5369, 32
    %v5410 = vpop.permute.xlu0 %5409
    %5411 = vrot.lane.b32.xlu0 %v5370, 32
    %v5412 = vpop.permute.xlu0 %5411
    %5413 = vrot.lane.b32.xlu0 %v5371, 32
    %v5414 = vpop.permute.xlu0 %5413
    %5415 = vrot.lane.b32.xlu0 %v5372, 32
    %v5416 = vpop.permute.xlu0 %5415
    %5417 = vrot.lane.b32.xlu0 %v5373, 32
    %v5418 = vpop.permute.xlu0 %5417
    %5419 = vrot.lane.b32.xlu0 %v5374, 32
    %v5420 = vpop.permute.xlu0 %5419
    %5421 = vrot.lane.b32.xlu0 %v5375, 32
    %v5422 = vpop.permute.xlu0 %5421
    %5423 = vrot.lane.b32.xlu0 %v5376, 32
    %v5424 = vpop.permute.xlu0 %5423
    %5425 = vrot.lane.b32.xlu0 %v5377, 32
    %v5426 = vpop.permute.xlu0 %5425
    %5427 = vrot.lane.b32.xlu0 %v5378, 32
    %v5428 = vpop.permute.xlu0 %5427
    %5429 = vrot.lane.b32.xlu0 %v5379, 32
    %v5430 = vpop.permute.xlu0 %5429
    %5431 = vrot.lane.b32.xlu0 %v5380, 32
    %v5432 = vpop.permute.xlu0 %5431
    %5433 = vrot.lane.b32.xlu0 %v5381, 32
    %v5434 = vpop.permute.xlu0 %5433
    %5435 = vrot.lane.b32.xlu0 %v5382, 32
    %v5436 = vpop.permute.xlu0 %5435
    %5437 = vrot.lane.b32.xlu0 %v5383, 32
    %v5438 = vpop.permute.xlu0 %5437
    %5439 = vrot.lane.b32.xlu0 %v5384, 32
    %v5440 = vpop.permute.xlu0 %5439
    %5441 = vrot.lane.b32.xlu0 %v5385, 32
    %v5442 = vpop.permute.xlu0 %5441
    %5443 = vrot.lane.b32.xlu0 %v5386, 32
    %v5444 = vpop.permute.xlu0 %5443
    %5445 = vrot.lane.b32.xlu0 %v5387, 32
    %v5446 = vpop.permute.xlu0 %5445
    %5447 = vrot.lane.b32.xlu0 %v5388, 32
    %v5448 = vpop.permute.xlu0 %5447
    %5449 = vrot.lane.b32.xlu0 %v5389, 32
    %v5450 = vpop.permute.xlu0 %5449
    %5451 = vrot.lane.b32.xlu0 %v5390, 32
    %v5452 = vpop.permute.xlu0 %5451
    %5453 = vrot.lane.b32.xlu0 %v5391, 32
    %v5454 = vpop.permute.xlu0 %5453
    %5455 = vrot.lane.b32.xlu0 %v5392, 32
    %v5456 = vpop.permute.xlu0 %5455
    %vm5489 = vcmask 519424
    %5490 = vst.msk [vmem:[%s5] sm:$0xf] %vm5489, %v5394
    %5491 = vst.msk [vmem:[%s5 + $0x4] sm:$0xf] %vm5489, %v5396
    %5492 = vst.msk [vmem:[%s5 + $0x8] sm:$0xf] %vm5489, %v5398
    %5493 = vst.msk [vmem:[%s5 + $0xc] sm:$0xf] %vm5489, %v5400
    %5494 = vst.msk [vmem:[%s5 + $0x10] sm:$0xf] %vm5489, %v5402
    %5495 = vst.msk [vmem:[%s5 + $0x14] sm:$0xf] %vm5489, %v5404
    %5496 = vst.msk [vmem:[%s5 + $0x18] sm:$0xf] %vm5489, %v5406
    %5497 = vst.msk [vmem:[%s5 + $0x1c] sm:$0xf] %vm5489, %v5408
    %5498 = vst.msk [vmem:[%s5 + $0x20] sm:$0xf] %vm5489, %v5410
    %5499 = vst.msk [vmem:[%s5 + $0x24] sm:$0xf] %vm5489, %v5412
    %5500 = vst.msk [vmem:[%s5 + $0x28] sm:$0xf] %vm5489, %v5414
    %5501 = vst.msk [vmem:[%s5 + $0x2c] sm:$0xf] %vm5489, %v5416
    %5502 = vst.msk [vmem:[%s5 + $0x30] sm:$0xf] %vm5489, %v5418
    %5503 = vst.msk [vmem:[%s5 + $0x34] sm:$0xf] %vm5489, %v5420
    %5504 = vst.msk [vmem:[%s5 + $0x38] sm:$0xf] %vm5489, %v5422
    %5505 = vst.msk [vmem:[%s5 + $0x3c] sm:$0xf] %vm5489, %v5424
    %5506 = vst.msk [vmem:[%s5 + $0x40] sm:$0xf] %vm5489, %v5426
    %5507 = vst.msk [vmem:[%s5 + $0x44] sm:$0xf] %vm5489, %v5428
    %5508 = vst.msk [vmem:[%s5 + $0x48] sm:$0xf] %vm5489, %v5430
    %5509 = vst.msk [vmem:[%s5 + $0x4c] sm:$0xf] %vm5489, %v5432
    %5510 = vst.msk [vmem:[%s5 + $0x50] sm:$0xf] %vm5489, %v5434
    %5511 = vst.msk [vmem:[%s5 + $0x54] sm:$0xf] %vm5489, %v5436
    %5512 = vst.msk [vmem:[%s5 + $0x58] sm:$0xf] %vm5489, %v5438
    %5513 = vst.msk [vmem:[%s5 + $0x5c] sm:$0xf] %vm5489, %v5440
    %5514 = vst.msk [vmem:[%s5 + $0x60] sm:$0xf] %vm5489, %v5442
    %5515 = vst.msk [vmem:[%s5 + $0x64] sm:$0xf] %vm5489, %v5444
    %5516 = vst.msk [vmem:[%s5 + $0x68] sm:$0xf] %vm5489, %v5446
    %5517 = vst.msk [vmem:[%s5 + $0x6c] sm:$0xf] %vm5489, %v5448
    %5518 = vst.msk [vmem:[%s5 + $0x70] sm:$0xf] %vm5489, %v5450
    %5519 = vst.msk [vmem:[%s5 + $0x74] sm:$0xf] %vm5489, %v5452
    %5520 = vst.msk [vmem:[%s5 + $0x78] sm:$0xf] %vm5489, %v5454
    %5521 = vst.msk [vmem:[%s5 + $0x7c] sm:$0xf] %vm5489, %v5456
  $region29: #{flash_mha_forward.4} parent=0 // pred_fallthru
    _
  // Predicated region
  $region30: #{flash_mha_forward.4} parent=0 // pred_check
    _
  $region31: #{flash_mha_forward.4} parent=0 // pred_check_branch
    %5523 = sbr.rel (0) target = $region33
  $region32: #{flash_mha_forward.4} parent=0 // pred_region
    _
  $region33: #{flash_mha_forward.4} parent=0 // pred_fallthru
    _
  // Predicated region
  $region34: #{flash_mha_forward.4} parent=0 // pred_check
    _
  $region35: #{flash_mha_forward.4} parent=0 // pred_check_branch
    %5525 = sbr.rel (0) target = $region37
  $region36: #{flash_mha_forward.4} parent=0 // pred_region
    _
  $region37: #{flash_mha_forward.4} parent=0 // pred_fallthru
    _

</llo_original>
